<compile_context>
chip_gen: v7x
topology: tpu7x:2x2x1
jax: 0.10.0
libtpu: 0.0.40
codegen_flags: <defaults>
</compile_context>

<pallas_src>
import functools

import numpy as np
import jax
import jax.numpy as jnp
from jax import lax
from jax.experimental import pallas as pl
from jax.experimental.pallas import tpu as pltpu

_EPS = 1e-5        # nn.BatchNorm2d default eps
_OUT_PAD = 8       # sublane padding of the output channel dimension


# ---------------------------------------------------------------------------
# Fused whole-network kernel (single grid step, everything VMEM resident).
# ---------------------------------------------------------------------------
def _hrnet_kernel(x_ref, mA_ref, mB_ref,
                  l1w_ref, l1g_ref, l1b_ref,
                  t0w_ref, t0b_ref,
                  s2w_ref, s2g_ref, s2b_ref,
                  fw_ref, fb_ref,
                  out_ref, *, img_w):
    """Whole HRNet forward on channel-major (C, M) activations.

    x_ref  : (64, M)      f32   input activation (M = N*H*W pixels on lanes)
    mA_ref : (576, M)     bf16  im2col pad masks for 64-channel convs
    mB_ref : (288, M)     bf16  im2col pad masks for 32-channel convs
    l1w_ref: (8, 64, 576) bf16  layer1 conv weights, (Cout, 9*Cin) per conv
    l1g/b  : (64, 8)      f32   layer1 BN gamma / beta (column j = BN j)
    t0w_ref: (32, 576)    bf16  transition1[0] conv weight
    t0b_ref: (32, 1)      f32   transition1[0] conv bias
    s2w_ref: (8, 32, 288) bf16  stage2[0] conv weights
    s2g/b  : (32, 8)      f32   stage2[0] BN gamma / beta
    fw_ref : (8, 32)      bf16  final 1x1 conv weight (Cout padded to 8 rows)
    fb_ref : (8, 1)       f32   final conv bias (padded)
    out_ref: (8, M)       f32   output, channel rows padded to 8
    """
    m = x_ref.shape[1]
    # Lane rotation (mod M) that brings tap (dy, dx)'s neighbour pixel to
    # every output pixel:  neighbour(p) = p + (dy-1)*W + (dx-1).
    shifts = [(-((dy - 1) * img_w + (dx - 1))) % m
              for dy in range(3) for dx in range(3)]

    mask_a = mA_ref[...]                         # loaded once, reused 9x
    mask_b = mB_ref[...]
    l1g, l1b = l1g_ref[...], l1b_ref[...]
    s2g, s2b = s2g_ref[...], s2b_ref[...]

    def conv3x3(act, w, mask):
        """3x3 'same' conv: act (Cin, M) f32 -> (Cout, M) f32.

        im2col via lane rotations (XLU); the 0/1 mask zeroes taps that fall
        into the zero padding; single bf16 MXU matmul with f32 accumulation.
        """
        pieces = [act if s == 0 else pltpu.roll(act, s, axis=1)
                  for s in shifts]                       # 9 x (Cin, M) f32
        xcol = jnp.concatenate(pieces, axis=0)           # (9*Cin, M) f32
        xcol = xcol.astype(jnp.bfloat16) * mask          # zero padded taps
        return jnp.dot(w, xcol, preferred_element_type=jnp.float32)

    def batchnorm(h, gamma, beta):
        """Train-mode BN: biased batch stats over the M = N*H*W pixels."""
        mean = jnp.mean(h, axis=1, keepdims=True)
        var = jnp.mean(jnp.square(h - mean), axis=1, keepdims=True)
        return (h - mean) * (gamma * lax.rsqrt(var + _EPS)) + beta

    def basic_block(act, w_ref, gam, bet, mask, blk):
        j1, j2 = 2 * blk, 2 * blk + 1
        h = conv3x3(act, w_ref[j1], mask)
        h = jnp.maximum(batchnorm(h, gam[:, j1:j1 + 1], bet[:, j1:j1 + 1]), 0.0)
        h = conv3x3(h, w_ref[j2], mask)
        h = batchnorm(h, gam[:, j2:j2 + 1], bet[:, j2:j2 + 1])
        return jnp.maximum(h + act, 0.0)                 # residual + ReLU

    act = x_ref[...]                                     # (64, M) f32

    # layer1: 4 BasicBlocks @ 64 channels
    for blk in range(4):
        act = basic_block(act, l1w_ref, l1g, l1b, mask_a, blk)

    # transition1[0]: 3x3 conv 64 -> 32 with bias (no BN / ReLU).
    # (transition1[1]'s output is discarded by HRNet.forward -> omitted.)
    act = conv3x3(act, t0w_ref[...], mask_a) + t0b_ref[...]

    # stage2[0]: 4 BasicBlocks @ 32 channels
    for blk in range(4):
        act = basic_block(act, s2w_ref, s2g, s2b, mask_b, blk)

    # final 1x1 conv 32 -> out_channels (rows padded to 8; lanes dense)
    out = jnp.dot(fw_ref[...], act.astype(jnp.bfloat16),
                  preferred_element_type=jnp.float32) + fb_ref[...]
    out_ref[...] = out


# ---------------------------------------------------------------------------
# Precomputed im2col pad masks (0/1, tap-major / channel-minor rows).
# ---------------------------------------------------------------------------
@functools.lru_cache(maxsize=None)
def _tap_valid_np(n, h, w):
    """(9, M) 0/1: tap t of pixel p lies inside the image (not padding)."""
    m = n * h * w
    p = np.arange(m)
    yy = (p // w) % h
    xx = p % w
    masks = np.empty((9, m), np.float32)
    for dy in range(3):
        for dx in range(3):
            ok = ((yy + dy - 1 >= 0) & (yy + dy - 1 < h) &
                  (xx + dx - 1 >= 0) & (xx + dx - 1 < w))
            masks[dy * 3 + dx] = ok.astype(np.float32)
    return masks


def _im2col_mask(n, h, w, cin):
    """(9*cin, M) bf16 mask matching the X_col row order (t*cin + c)."""
    return jnp.asarray(np.repeat(_tap_valid_np(n, h, w), cin, axis=0),
                       dtype=jnp.bfloat16)


# ---------------------------------------------------------------------------
# Parameter construction (packed into the layout the kernel consumes).
# ---------------------------------------------------------------------------
def _pack_conv(w_hwio):
    """(3, 3, Cin, Cout) f32 -> (Cout, 9*Cin) bf16, rows = (tap, cin)."""
    k1, k2, cin, cout = w_hwio.shape
    return w_hwio.reshape(k1 * k2 * cin, cout).T.astype(jnp.bfloat16)


def init_hrnet_params(key, in_channels=64, out_channels=4):
    # The residual add in the first BasicBlock forces in_channels == 64,
    # exactly as in the PyTorch module.
    assert in_channels == 64, "first BasicBlock residual requires in_channels == 64"
    assert out_channels <= _OUT_PAD
    keys = jax.random.split(key, 20)

    def conv_w(k, cin, cout, ksz):
        fan_in = ksz * ksz * cin
        return (jax.random.normal(k, (ksz, ksz, cin, cout), jnp.float32)
                / np.sqrt(fan_in))

    l1w_raw = [conv_w(keys[i], 64, 64, 3) for i in range(8)]
    t0w_raw = conv_w(keys[8], 64, 32, 3)
    t0b_raw = 0.01 * jax.random.normal(keys[9], (32,), jnp.float32)
    s2w_raw = [conv_w(keys[10 + i], 32, 32, 3) for i in range(8)]
    fw_raw = conv_w(keys[18], 32, out_channels, 1).reshape(32, out_channels)
    fb_raw = 0.01 * jax.random.normal(keys[19], (out_channels,), jnp.float32)

    fw_pad = jnp.zeros((_OUT_PAD, 32), jnp.float32).at[:out_channels].set(fw_raw.T)
    fb_pad = jnp.zeros((_OUT_PAD, 1), jnp.float32).at[:out_channels, 0].set(fb_raw)

    packed = {
        # bf16 matmul operands (f32 accumulation happens inside the kernel)
        "l1w": jnp.stack([_pack_conv(w) for w in l1w_raw]),   # (8, 64, 576)
        "t0w": _pack_conv(t0w_raw),                           # (32, 576)
        "s2w": jnp.stack([_pack_conv(w) for w in s2w_raw]),   # (8, 32, 288)
        "fw": fw_pad.astype(jnp.bfloat16),                    # (8, 32)
        # f32 BN / bias parameters (BatchNorm2d defaults: gamma=1, beta=0)
        "l1g": jnp.ones((64, 8), jnp.float32),
        "l1b": jnp.zeros((64, 8), jnp.float32),
        "s2g": jnp.ones((32, 8), jnp.float32),
        "s2b": jnp.zeros((32, 8), jnp.float32),
        "t0b": t0b_raw.reshape(32, 1),
        "fb": fb_pad,
    }
    raw = {"l1w": l1w_raw, "t0w": t0w_raw, "t0b": t0b_raw,
           "s2w": s2w_raw, "fw": fw_raw, "fb": fb_raw}
    return packed, raw


# ---------------------------------------------------------------------------
# Forward wrapper: one pallas_call for the whole network.
# ---------------------------------------------------------------------------
def hrnet_forward(params, x, *, out_channels=4):
    """x: (N, H, W, 64) f32 NHWC.  Returns (N, H, W, out_channels) f32."""
    n, h, w, cin = x.shape
    assert cin == 64
    m = n * h * w

    xc = jnp.transpose(x.reshape(m, cin))                # (64, M) channel-major
    mask_a = _im2col_mask(n, h, w, 64)
    mask_b = _im2col_mask(n, h, w, 32)

    args = (xc, mask_a, mask_b,
            params["l1w"], params["l1g"], params["l1b"],
            params["t0w"], params["t0b"],
            params["s2w"], params["s2g"], params["s2b"],
            params["fw"], params["fb"])

    # Single fused kernel: whole-array VMEM blocks, grid=(1,).
    in_specs = [pl.BlockSpec(a.shape, lambda i, nd=a.ndim: (0,) * nd)
                for a in args]
    out_spec = pl.BlockSpec((_OUT_PAD, m), lambda i: (0, 0))

    out = pl.pallas_call(
        functools.partial(_hrnet_kernel, img_w=w),
        out_shape=jax.ShapeDtypeStruct((_OUT_PAD, m), jnp.float32),
        grid=(1,),
        in_specs=in_specs,
        out_specs=out_spec,
    )(*args)

    return jnp.transpose(out[:out_channels]).reshape(n, h, w, out_channels)


# ---------------------------------------------------------------------------
# Pure-JAX (non-Pallas) reference with the same bf16/f32 mixed precision,
# used only for the correctness check in __main__.
# ---------------------------------------------------------------------------
def hrnet_reference(raw, x):
    def conv3x3(a, w_hwio, bias=None):
        out = lax.conv_general_dilated(
            a.astype(jnp.bfloat16), w_hwio.astype(jnp.bfloat16),
            window_strides=(1, 1), padding=((1, 1), (1, 1)),
            dimension_numbers=("NHWC", "HWIO", "NHWC"),
            preferred_element_type=jnp.float32)
        return out if bias is None else out + bias

    def batchnorm(h):   # train-mode BN, gamma=1 beta=0
        mean = jnp.mean(h, axis=(0, 1, 2), keepdims=True)
        var = jnp.mean(jnp.square(h - mean), axis=(0, 1, 2), keepdims=True)
        return (h - mean) * lax.rsqrt(var + _EPS)

    def basic_block(a, w1, w2):
        h = jnp.maximum(batchnorm(conv3x3(a, w1)), 0.0)
        h = batchnorm(conv3x3(h, w2))
        return jnp.maximum(h + a, 0.0)

    act = x
    for blk in range(4):
        act = basic_block(act, raw["l1w"][2 * blk], raw["l1w"][2 * blk + 1])
    act = conv3x3(act, raw["t0w"], raw["t0b"])
    for blk in range(4):
        act = basic_block(act, raw["s2w"][2 * blk], raw["s2w"][2 * blk + 1])
    out = jnp.einsum("nhwc,co->nhwo", act.astype(jnp.bfloat16),
                     raw["fw"].astype(jnp.bfloat16),
                     preferred_element_type=jnp.float32)
    return out + raw["fb"]


if __name__ == "__main__":
    key = jax.random.PRNGKey(0)
    k_param, k_x = jax.random.split(key)

    N, H, W = 2, 8, 8
    in_channels = 64      # required by the first BasicBlock's residual add
    out_channels = 4

    params, raw = init_hrnet_params(k_param, in_channels, out_channels)
    # NHWC input; the equivalent PyTorch NCHW input shape is (2, 64, 8, 8).
    x = jax.random.normal(k_x, (N, H, W, in_channels), jnp.float32)

    fwd = jax.jit(hrnet_forward, static_argnames=("out_channels",))
    out = fwd(params, x, out_channels=out_channels)
    jax.block_until_ready(out)
    assert out.shape == (N, H, W, out_channels), out.shape

    # Correctness check against a plain-JAX reference of the module.
    ref = jax.jit(hrnet_reference)(raw, x)
    max_err = float(jnp.max(jnp.abs(out - ref)))
    assert jnp.allclose(out, ref, atol=5e-2, rtol=5e-2), max_err

    print("KERNEL_OK")
</pallas_src>

<mosaic_0001>
module attributes {stable_mosaic.version = 11 : i64} {
  func.func @_hrnet_kernel(%arg0: i32, %arg1: memref<64x128xf32, #tpu.memory_space<vmem>>, %arg2: memref<576x128xbf16, #tpu.memory_space<vmem>>, %arg3: memref<288x128xbf16, #tpu.memory_space<vmem>>, %arg4: memref<8x64x576xbf16, #tpu.memory_space<vmem>>, %arg5: memref<64x8xf32, #tpu.memory_space<vmem>>, %arg6: memref<64x8xf32, #tpu.memory_space<vmem>>, %arg7: memref<32x576xbf16, #tpu.memory_space<vmem>>, %arg8: memref<32x1xf32, #tpu.memory_space<vmem>>, %arg9: memref<8x32x288xbf16, #tpu.memory_space<vmem>>, %arg10: memref<32x8xf32, #tpu.memory_space<vmem>>, %arg11: memref<32x8xf32, #tpu.memory_space<vmem>>, %arg12: memref<8x32xbf16, #tpu.memory_space<vmem>>, %arg13: memref<8x1xf32, #tpu.memory_space<vmem>>, %arg14: memref<8x128xf32, #tpu.memory_space<vmem>>) attributes {dimension_semantics = [#tpu.dimension_semantics<arbitrary>], iteration_bounds = array<i64: 1>, scalar_prefetch = 0 : i64, scratch_operands = 0 : i64, tpu.core_type = #tpu.core_type<tc>, window_params = [{pipeline_mode = #tpu.pipeline_mode<synchronous>, transform_indices = @transform_0, window_bounds = array<i64: 64, 128>}, {pipeline_mode = #tpu.pipeline_mode<synchronous>, transform_indices = @transform_1, window_bounds = array<i64: 576, 128>}, {pipeline_mode = #tpu.pipeline_mode<synchronous>, transform_indices = @transform_2, window_bounds = array<i64: 288, 128>}, {pipeline_mode = #tpu.pipeline_mode<synchronous>, transform_indices = @transform_3, window_bounds = array<i64: 8, 64, 576>}, {pipeline_mode = #tpu.pipeline_mode<synchronous>, transform_indices = @transform_4, window_bounds = array<i64: 64, 8>}, {pipeline_mode = #tpu.pipeline_mode<synchronous>, transform_indices = @transform_5, window_bounds = array<i64: 64, 8>}, {pipeline_mode = #tpu.pipeline_mode<synchronous>, transform_indices = @transform_6, window_bounds = array<i64: 32, 576>}, {pipeline_mode = #tpu.pipeline_mode<synchronous>, transform_indices = @transform_7, window_bounds = array<i64: 32, 1>}, {pipeline_mode = #tpu.pipeline_mode<synchronous>, transform_indices = @transform_8, window_bounds = array<i64: 8, 32, 288>}, {pipeline_mode = #tpu.pipeline_mode<synchronous>, transform_indices = @transform_9, window_bounds = array<i64: 32, 8>}, {pipeline_mode = #tpu.pipeline_mode<synchronous>, transform_indices = @transform_10, window_bounds = array<i64: 32, 8>}, {pipeline_mode = #tpu.pipeline_mode<synchronous>, transform_indices = @transform_11, window_bounds = array<i64: 8, 32>}, {pipeline_mode = #tpu.pipeline_mode<synchronous>, transform_indices = @transform_12, window_bounds = array<i64: 8, 1>}, {pipeline_mode = #tpu.pipeline_mode<synchronous>, transform_indices = @transform_13, window_bounds = array<i64: 8, 128>}]} {
    %c0 = arith.constant 0 : index
    %c0_0 = arith.constant 0 : index
    %0 = vector.load %arg2[%c0, %c0_0] : memref<576x128xbf16, #tpu.memory_space<vmem>>, vector<576x128xbf16>
    %c0_1 = arith.constant 0 : index
    %c0_2 = arith.constant 0 : index
    %1 = vector.load %arg3[%c0_1, %c0_2] : memref<288x128xbf16, #tpu.memory_space<vmem>>, vector<288x128xbf16>
    %c0_3 = arith.constant 0 : index
    %c0_4 = arith.constant 0 : index
    %2 = vector.load %arg5[%c0_3, %c0_4] : memref<64x8xf32, #tpu.memory_space<vmem>>, vector<64x8xf32>
    %c0_5 = arith.constant 0 : index
    %c0_6 = arith.constant 0 : index
    %3 = vector.load %arg6[%c0_5, %c0_6] : memref<64x8xf32, #tpu.memory_space<vmem>>, vector<64x8xf32>
    %c0_7 = arith.constant 0 : index
    %c0_8 = arith.constant 0 : index
    %4 = vector.load %arg10[%c0_7, %c0_8] : memref<32x8xf32, #tpu.memory_space<vmem>>, vector<32x8xf32>
    %c0_9 = arith.constant 0 : index
    %c0_10 = arith.constant 0 : index
    %5 = vector.load %arg11[%c0_9, %c0_10] : memref<32x8xf32, #tpu.memory_space<vmem>>, vector<32x8xf32>
    %c0_11 = arith.constant 0 : index
    %c0_12 = arith.constant 0 : index
    %6 = vector.load %arg1[%c0_11, %c0_12] : memref<64x128xf32, #tpu.memory_space<vmem>>, vector<64x128xf32>
    %c0_13 = arith.constant 0 : index
    %c0_14 = arith.constant 0 : index
    %c0_15 = arith.constant 0 : index
    %7 = vector.load %arg4[%c0_13, %c0_14, %c0_15] : memref<8x64x576xbf16, #tpu.memory_space<vmem>>, vector<1x64x576xbf16>
    %8 = vector.shape_cast %7 : vector<1x64x576xbf16> to vector<64x576xbf16>
    %c9_i32 = arith.constant 9 : i32
    %9 = tpu.dynamic_rotate %6 by %c9_i32 dim 1 : vector<64x128xf32>, i32 -> vector<64x128xf32>
    %c8_i32 = arith.constant 8 : i32
    %10 = tpu.dynamic_rotate %6 by %c8_i32 dim 1 : vector<64x128xf32>, i32 -> vector<64x128xf32>
    %c7_i32 = arith.constant 7 : i32
    %11 = tpu.dynamic_rotate %6 by %c7_i32 dim 1 : vector<64x128xf32>, i32 -> vector<64x128xf32>
    %c1_i32 = arith.constant 1 : i32
    %12 = tpu.dynamic_rotate %6 by %c1_i32 dim 1 : vector<64x128xf32>, i32 -> vector<64x128xf32>
    %c127_i32 = arith.constant 127 : i32
    %13 = tpu.dynamic_rotate %6 by %c127_i32 dim 1 : vector<64x128xf32>, i32 -> vector<64x128xf32>
    %c121_i32 = arith.constant 121 : i32
    %14 = tpu.dynamic_rotate %6 by %c121_i32 dim 1 : vector<64x128xf32>, i32 -> vector<64x128xf32>
    %c120_i32 = arith.constant 120 : i32
    %15 = tpu.dynamic_rotate %6 by %c120_i32 dim 1 : vector<64x128xf32>, i32 -> vector<64x128xf32>
    %c119_i32 = arith.constant 119 : i32
    %16 = tpu.dynamic_rotate %6 by %c119_i32 dim 1 : vector<64x128xf32>, i32 -> vector<64x128xf32>
    %17 = tpu.concatenate %9, %10, %11, %12, %6, %13, %14, %15, %16 in 0 : vector<64x128xf32>, vector<64x128xf32>, vector<64x128xf32>, vector<64x128xf32>, vector<64x128xf32>, vector<64x128xf32>, vector<64x128xf32>, vector<64x128xf32>, vector<64x128xf32> -> vector<576x128xf32>
    %18 = arith.truncf %17 : vector<576x128xf32> to vector<576x128xbf16>
    %19 = arith.mulf %18, %0 : vector<576x128xbf16>
    %cst = arith.constant dense<0.000000e+00> : vector<64x128xf32>
    %20 = tpu.matmul %8, %19, %cst {dimension_numbers = #tpu.dot_dimension_numbers<[1], [0], [0], [1], [0, 0, 1, 1], [], []>} : vector<64x576xbf16>, vector<576x128xbf16>, vector<64x128xf32> -> vector<64x128xf32>
    %21 = vector.extract_strided_slice %2 {offsets = [0, 0], sizes = [64, 1], strides = [1, 1]} : vector<64x8xf32> to vector<64x1xf32>
    %22 = vector.extract_strided_slice %3 {offsets = [0, 0], sizes = [64, 1], strides = [1, 1]} : vector<64x8xf32> to vector<64x1xf32>
    %cst_16 = arith.constant dense<0.000000e+00> : vector<64xf32>
    %23 = vector.multi_reduction <add>, %20, %cst_16 [1] : vector<64x128xf32> to vector<64xf32>
    %24 = vector.shape_cast %23 : vector<64xf32> to vector<64x1xf32>
    %cst_17 = arith.constant 1.280000e+02 : f32
    %25 = vector.broadcast %cst_17 : f32 to vector<64x1xf32>
    %26 = arith.divf %24, %25 : vector<64x1xf32>
    %27 = vector.broadcast %26 : vector<64x1xf32> to vector<64x128xf32>
    %28 = arith.subf %20, %27 : vector<64x128xf32>
    %29 = arith.mulf %28, %28 : vector<64x128xf32>
    %cst_18 = arith.constant dense<0.000000e+00> : vector<64xf32>
    %30 = vector.multi_reduction <add>, %29, %cst_18 [1] : vector<64x128xf32> to vector<64xf32>
    %31 = vector.shape_cast %30 : vector<64xf32> to vector<64x1xf32>
    %cst_19 = arith.constant 1.280000e+02 : f32
    %32 = vector.broadcast %cst_19 : f32 to vector<64x1xf32>
    %33 = arith.divf %31, %32 : vector<64x1xf32>
    %34 = vector.broadcast %26 : vector<64x1xf32> to vector<64x128xf32>
    %35 = arith.subf %20, %34 : vector<64x128xf32>
    %cst_20 = arith.constant 9.99999974E-6 : f32
    %36 = vector.broadcast %cst_20 : f32 to vector<64x1xf32>
    %37 = arith.addf %33, %36 : vector<64x1xf32>
    %38 = math.rsqrt %37 : vector<64x1xf32>
    %39 = arith.mulf %21, %38 : vector<64x1xf32>
    %40 = vector.broadcast %39 : vector<64x1xf32> to vector<64x128xf32>
    %41 = arith.mulf %35, %40 : vector<64x128xf32>
    %42 = vector.broadcast %22 : vector<64x1xf32> to vector<64x128xf32>
    %43 = arith.addf %41, %42 : vector<64x128xf32>
    %cst_21 = arith.constant 0.000000e+00 : f32
    %44 = vector.broadcast %cst_21 : f32 to vector<64x128xf32>
    %45 = arith.maximumf %43, %44 : vector<64x128xf32>
    %c1 = arith.constant 1 : index
    %c0_22 = arith.constant 0 : index
    %c0_23 = arith.constant 0 : index
    %46 = vector.load %arg4[%c1, %c0_22, %c0_23] : memref<8x64x576xbf16, #tpu.memory_space<vmem>>, vector<1x64x576xbf16>
    %47 = vector.shape_cast %46 : vector<1x64x576xbf16> to vector<64x576xbf16>
    %c9_i32_24 = arith.constant 9 : i32
    %48 = tpu.dynamic_rotate %45 by %c9_i32_24 dim 1 : vector<64x128xf32>, i32 -> vector<64x128xf32>
    %c8_i32_25 = arith.constant 8 : i32
    %49 = tpu.dynamic_rotate %45 by %c8_i32_25 dim 1 : vector<64x128xf32>, i32 -> vector<64x128xf32>
    %c7_i32_26 = arith.constant 7 : i32
    %50 = tpu.dynamic_rotate %45 by %c7_i32_26 dim 1 : vector<64x128xf32>, i32 -> vector<64x128xf32>
    %c1_i32_27 = arith.constant 1 : i32
    %51 = tpu.dynamic_rotate %45 by %c1_i32_27 dim 1 : vector<64x128xf32>, i32 -> vector<64x128xf32>
    %c127_i32_28 = arith.constant 127 : i32
    %52 = tpu.dynamic_rotate %45 by %c127_i32_28 dim 1 : vector<64x128xf32>, i32 -> vector<64x128xf32>
    %c121_i32_29 = arith.constant 121 : i32
    %53 = tpu.dynamic_rotate %45 by %c121_i32_29 dim 1 : vector<64x128xf32>, i32 -> vector<64x128xf32>
    %c120_i32_30 = arith.constant 120 : i32
    %54 = tpu.dynamic_rotate %45 by %c120_i32_30 dim 1 : vector<64x128xf32>, i32 -> vector<64x128xf32>
    %c119_i32_31 = arith.constant 119 : i32
    %55 = tpu.dynamic_rotate %45 by %c119_i32_31 dim 1 : vector<64x128xf32>, i32 -> vector<64x128xf32>
    %56 = tpu.concatenate %48, %49, %50, %51, %45, %52, %53, %54, %55 in 0 : vector<64x128xf32>, vector<64x128xf32>, vector<64x128xf32>, vector<64x128xf32>, vector<64x128xf32>, vector<64x128xf32>, vector<64x128xf32>, vector<64x128xf32>, vector<64x128xf32> -> vector<576x128xf32>
    %57 = arith.truncf %56 : vector<576x128xf32> to vector<576x128xbf16>
    %58 = arith.mulf %57, %0 : vector<576x128xbf16>
    %cst_32 = arith.constant dense<0.000000e+00> : vector<64x128xf32>
    %59 = tpu.matmul %47, %58, %cst_32 {dimension_numbers = #tpu.dot_dimension_numbers<[1], [0], [0], [1], [0, 0, 1, 1], [], []>} : vector<64x576xbf16>, vector<576x128xbf16>, vector<64x128xf32> -> vector<64x128xf32>
    %60 = vector.extract_strided_slice %2 {offsets = [0, 1], sizes = [64, 1], strides = [1, 1]} : vector<64x8xf32> to vector<64x1xf32>
    %61 = vector.extract_strided_slice %3 {offsets = [0, 1], sizes = [64, 1], strides = [1, 1]} : vector<64x8xf32> to vector<64x1xf32>
    %cst_33 = arith.constant dense<0.000000e+00> : vector<64xf32>
    %62 = vector.multi_reduction <add>, %59, %cst_33 [1] : vector<64x128xf32> to vector<64xf32>
    %63 = vector.shape_cast %62 : vector<64xf32> to vector<64x1xf32>
    %cst_34 = arith.constant 1.280000e+02 : f32
    %64 = vector.broadcast %cst_34 : f32 to vector<64x1xf32>
    %65 = arith.divf %63, %64 : vector<64x1xf32>
    %66 = vector.broadcast %65 : vector<64x1xf32> to vector<64x128xf32>
    %67 = arith.subf %59, %66 : vector<64x128xf32>
    %68 = arith.mulf %67, %67 : vector<64x128xf32>
    %cst_35 = arith.constant dense<0.000000e+00> : vector<64xf32>
    %69 = vector.multi_reduction <add>, %68, %cst_35 [1] : vector<64x128xf32> to vector<64xf32>
    %70 = vector.shape_cast %69 : vector<64xf32> to vector<64x1xf32>
    %cst_36 = arith.constant 1.280000e+02 : f32
    %71 = vector.broadcast %cst_36 : f32 to vector<64x1xf32>
    %72 = arith.divf %70, %71 : vector<64x1xf32>
    %73 = vector.broadcast %65 : vector<64x1xf32> to vector<64x128xf32>
    %74 = arith.subf %59, %73 : vector<64x128xf32>
    %cst_37 = arith.constant 9.99999974E-6 : f32
    %75 = vector.broadcast %cst_37 : f32 to vector<64x1xf32>
    %76 = arith.addf %72, %75 : vector<64x1xf32>
    %77 = math.rsqrt %76 : vector<64x1xf32>
    %78 = arith.mulf %60, %77 : vector<64x1xf32>
    %79 = vector.broadcast %78 : vector<64x1xf32> to vector<64x128xf32>
    %80 = arith.mulf %74, %79 : vector<64x128xf32>
    %81 = vector.broadcast %61 : vector<64x1xf32> to vector<64x128xf32>
    %82 = arith.addf %80, %81 : vector<64x128xf32>
    %83 = arith.addf %82, %6 : vector<64x128xf32>
    %cst_38 = arith.constant 0.000000e+00 : f32
    %84 = vector.broadcast %cst_38 : f32 to vector<64x128xf32>
    %85 = arith.maximumf %83, %84 : vector<64x128xf32>
    %c2 = arith.constant 2 : index
    %c0_39 = arith.constant 0 : index
    %c0_40 = arith.constant 0 : index
    %86 = vector.load %arg4[%c2, %c0_39, %c0_40] : memref<8x64x576xbf16, #tpu.memory_space<vmem>>, vector<1x64x576xbf16>
    %87 = vector.shape_cast %86 : vector<1x64x576xbf16> to vector<64x576xbf16>
    %c9_i32_41 = arith.constant 9 : i32
    %88 = tpu.dynamic_rotate %85 by %c9_i32_41 dim 1 : vector<64x128xf32>, i32 -> vector<64x128xf32>
    %c8_i32_42 = arith.constant 8 : i32
    %89 = tpu.dynamic_rotate %85 by %c8_i32_42 dim 1 : vector<64x128xf32>, i32 -> vector<64x128xf32>
    %c7_i32_43 = arith.constant 7 : i32
    %90 = tpu.dynamic_rotate %85 by %c7_i32_43 dim 1 : vector<64x128xf32>, i32 -> vector<64x128xf32>
    %c1_i32_44 = arith.constant 1 : i32
    %91 = tpu.dynamic_rotate %85 by %c1_i32_44 dim 1 : vector<64x128xf32>, i32 -> vector<64x128xf32>
    %c127_i32_45 = arith.constant 127 : i32
    %92 = tpu.dynamic_rotate %85 by %c127_i32_45 dim 1 : vector<64x128xf32>, i32 -> vector<64x128xf32>
    %c121_i32_46 = arith.constant 121 : i32
    %93 = tpu.dynamic_rotate %85 by %c121_i32_46 dim 1 : vector<64x128xf32>, i32 -> vector<64x128xf32>
    %c120_i32_47 = arith.constant 120 : i32
    %94 = tpu.dynamic_rotate %85 by %c120_i32_47 dim 1 : vector<64x128xf32>, i32 -> vector<64x128xf32>
    %c119_i32_48 = arith.constant 119 : i32
    %95 = tpu.dynamic_rotate %85 by %c119_i32_48 dim 1 : vector<64x128xf32>, i32 -> vector<64x128xf32>
    %96 = tpu.concatenate %88, %89, %90, %91, %85, %92, %93, %94, %95 in 0 : vector<64x128xf32>, vector<64x128xf32>, vector<64x128xf32>, vector<64x128xf32>, vector<64x128xf32>, vector<64x128xf32>, vector<64x128xf32>, vector<64x128xf32>, vector<64x128xf32> -> vector<576x128xf32>
    %97 = arith.truncf %96 : vector<576x128xf32> to vector<576x128xbf16>
    %98 = arith.mulf %97, %0 : vector<576x128xbf16>
    %cst_49 = arith.constant dense<0.000000e+00> : vector<64x128xf32>
    %99 = tpu.matmul %87, %98, %cst_49 {dimension_numbers = #tpu.dot_dimension_numbers<[1], [0], [0], [1], [0, 0, 1, 1], [], []>} : vector<64x576xbf16>, vector<576x128xbf16>, vector<64x128xf32> -> vector<64x128xf32>
    %100 = vector.extract_strided_slice %2 {offsets = [0, 2], sizes = [64, 1], strides = [1, 1]} : vector<64x8xf32> to vector<64x1xf32>
    %101 = vector.extract_strided_slice %3 {offsets = [0, 2], sizes = [64, 1], strides = [1, 1]} : vector<64x8xf32> to vector<64x1xf32>
    %cst_50 = arith.constant dense<0.000000e+00> : vector<64xf32>
    %102 = vector.multi_reduction <add>, %99, %cst_50 [1] : vector<64x128xf32> to vector<64xf32>
    %103 = vector.shape_cast %102 : vector<64xf32> to vector<64x1xf32>
    %cst_51 = arith.constant 1.280000e+02 : f32
    %104 = vector.broadcast %cst_51 : f32 to vector<64x1xf32>
    %105 = arith.divf %103, %104 : vector<64x1xf32>
    %106 = vector.broadcast %105 : vector<64x1xf32> to vector<64x128xf32>
    %107 = arith.subf %99, %106 : vector<64x128xf32>
    %108 = arith.mulf %107, %107 : vector<64x128xf32>
    %cst_52 = arith.constant dense<0.000000e+00> : vector<64xf32>
    %109 = vector.multi_reduction <add>, %108, %cst_52 [1] : vector<64x128xf32> to vector<64xf32>
    %110 = vector.shape_cast %109 : vector<64xf32> to vector<64x1xf32>
    %cst_53 = arith.constant 1.280000e+02 : f32
    %111 = vector.broadcast %cst_53 : f32 to vector<64x1xf32>
    %112 = arith.divf %110, %111 : vector<64x1xf32>
    %113 = vector.broadcast %105 : vector<64x1xf32> to vector<64x128xf32>
    %114 = arith.subf %99, %113 : vector<64x128xf32>
    %cst_54 = arith.constant 9.99999974E-6 : f32
    %115 = vector.broadcast %cst_54 : f32 to vector<64x1xf32>
    %116 = arith.addf %112, %115 : vector<64x1xf32>
    %117 = math.rsqrt %116 : vector<64x1xf32>
    %118 = arith.mulf %100, %117 : vector<64x1xf32>
    %119 = vector.broadcast %118 : vector<64x1xf32> to vector<64x128xf32>
    %120 = arith.mulf %114, %119 : vector<64x128xf32>
    %121 = vector.broadcast %101 : vector<64x1xf32> to vector<64x128xf32>
    %122 = arith.addf %120, %121 : vector<64x128xf32>
    %cst_55 = arith.constant 0.000000e+00 : f32
    %123 = vector.broadcast %cst_55 : f32 to vector<64x128xf32>
    %124 = arith.maximumf %122, %123 : vector<64x128xf32>
    %c3 = arith.constant 3 : index
    %c0_56 = arith.constant 0 : index
    %c0_57 = arith.constant 0 : index
    %125 = vector.load %arg4[%c3, %c0_56, %c0_57] : memref<8x64x576xbf16, #tpu.memory_space<vmem>>, vector<1x64x576xbf16>
    %126 = vector.shape_cast %125 : vector<1x64x576xbf16> to vector<64x576xbf16>
    %c9_i32_58 = arith.constant 9 : i32
    %127 = tpu.dynamic_rotate %124 by %c9_i32_58 dim 1 : vector<64x128xf32>, i32 -> vector<64x128xf32>
    %c8_i32_59 = arith.constant 8 : i32
    %128 = tpu.dynamic_rotate %124 by %c8_i32_59 dim 1 : vector<64x128xf32>, i32 -> vector<64x128xf32>
    %c7_i32_60 = arith.constant 7 : i32
    %129 = tpu.dynamic_rotate %124 by %c7_i32_60 dim 1 : vector<64x128xf32>, i32 -> vector<64x128xf32>
    %c1_i32_61 = arith.constant 1 : i32
    %130 = tpu.dynamic_rotate %124 by %c1_i32_61 dim 1 : vector<64x128xf32>, i32 -> vector<64x128xf32>
    %c127_i32_62 = arith.constant 127 : i32
    %131 = tpu.dynamic_rotate %124 by %c127_i32_62 dim 1 : vector<64x128xf32>, i32 -> vector<64x128xf32>
    %c121_i32_63 = arith.constant 121 : i32
    %132 = tpu.dynamic_rotate %124 by %c121_i32_63 dim 1 : vector<64x128xf32>, i32 -> vector<64x128xf32>
    %c120_i32_64 = arith.constant 120 : i32
    %133 = tpu.dynamic_rotate %124 by %c120_i32_64 dim 1 : vector<64x128xf32>, i32 -> vector<64x128xf32>
    %c119_i32_65 = arith.constant 119 : i32
    %134 = tpu.dynamic_rotate %124 by %c119_i32_65 dim 1 : vector<64x128xf32>, i32 -> vector<64x128xf32>
    %135 = tpu.concatenate %127, %128, %129, %130, %124, %131, %132, %133, %134 in 0 : vector<64x128xf32>, vector<64x128xf32>, vector<64x128xf32>, vector<64x128xf32>, vector<64x128xf32>, vector<64x128xf32>, vector<64x128xf32>, vector<64x128xf32>, vector<64x128xf32> -> vector<576x128xf32>
    %136 = arith.truncf %135 : vector<576x128xf32> to vector<576x128xbf16>
    %137 = arith.mulf %136, %0 : vector<576x128xbf16>
    %cst_66 = arith.constant dense<0.000000e+00> : vector<64x128xf32>
    %138 = tpu.matmul %126, %137, %cst_66 {dimension_numbers = #tpu.dot_dimension_numbers<[1], [0], [0], [1], [0, 0, 1, 1], [], []>} : vector<64x576xbf16>, vector<576x128xbf16>, vector<64x128xf32> -> vector<64x128xf32>
    %139 = vector.extract_strided_slice %2 {offsets = [0, 3], sizes = [64, 1], strides = [1, 1]} : vector<64x8xf32> to vector<64x1xf32>
    %140 = vector.extract_strided_slice %3 {offsets = [0, 3], sizes = [64, 1], strides = [1, 1]} : vector<64x8xf32> to vector<64x1xf32>
    %cst_67 = arith.constant dense<0.000000e+00> : vector<64xf32>
    %141 = vector.multi_reduction <add>, %138, %cst_67 [1] : vector<64x128xf32> to vector<64xf32>
    %142 = vector.shape_cast %141 : vector<64xf32> to vector<64x1xf32>
    %cst_68 = arith.constant 1.280000e+02 : f32
    %143 = vector.broadcast %cst_68 : f32 to vector<64x1xf32>
    %144 = arith.divf %142, %143 : vector<64x1xf32>
    %145 = vector.broadcast %144 : vector<64x1xf32> to vector<64x128xf32>
    %146 = arith.subf %138, %145 : vector<64x128xf32>
    %147 = arith.mulf %146, %146 : vector<64x128xf32>
    %cst_69 = arith.constant dense<0.000000e+00> : vector<64xf32>
    %148 = vector.multi_reduction <add>, %147, %cst_69 [1] : vector<64x128xf32> to vector<64xf32>
    %149 = vector.shape_cast %148 : vector<64xf32> to vector<64x1xf32>
    %cst_70 = arith.constant 1.280000e+02 : f32
    %150 = vector.broadcast %cst_70 : f32 to vector<64x1xf32>
    %151 = arith.divf %149, %150 : vector<64x1xf32>
    %152 = vector.broadcast %144 : vector<64x1xf32> to vector<64x128xf32>
    %153 = arith.subf %138, %152 : vector<64x128xf32>
    %cst_71 = arith.constant 9.99999974E-6 : f32
    %154 = vector.broadcast %cst_71 : f32 to vector<64x1xf32>
    %155 = arith.addf %151, %154 : vector<64x1xf32>
    %156 = math.rsqrt %155 : vector<64x1xf32>
    %157 = arith.mulf %139, %156 : vector<64x1xf32>
    %158 = vector.broadcast %157 : vector<64x1xf32> to vector<64x128xf32>
    %159 = arith.mulf %153, %158 : vector<64x128xf32>
    %160 = vector.broadcast %140 : vector<64x1xf32> to vector<64x128xf32>
    %161 = arith.addf %159, %160 : vector<64x128xf32>
    %162 = arith.addf %161, %85 : vector<64x128xf32>
    %cst_72 = arith.constant 0.000000e+00 : f32
    %163 = vector.broadcast %cst_72 : f32 to vector<64x128xf32>
    %164 = arith.maximumf %162, %163 : vector<64x128xf32>
    %c4 = arith.constant 4 : index
    %c0_73 = arith.constant 0 : index
    %c0_74 = arith.constant 0 : index
    %165 = vector.load %arg4[%c4, %c0_73, %c0_74] : memref<8x64x576xbf16, #tpu.memory_space<vmem>>, vector<1x64x576xbf16>
    %166 = vector.shape_cast %165 : vector<1x64x576xbf16> to vector<64x576xbf16>
    %c9_i32_75 = arith.constant 9 : i32
    %167 = tpu.dynamic_rotate %164 by %c9_i32_75 dim 1 : vector<64x128xf32>, i32 -> vector<64x128xf32>
    %c8_i32_76 = arith.constant 8 : i32
    %168 = tpu.dynamic_rotate %164 by %c8_i32_76 dim 1 : vector<64x128xf32>, i32 -> vector<64x128xf32>
    %c7_i32_77 = arith.constant 7 : i32
    %169 = tpu.dynamic_rotate %164 by %c7_i32_77 dim 1 : vector<64x128xf32>, i32 -> vector<64x128xf32>
    %c1_i32_78 = arith.constant 1 : i32
    %170 = tpu.dynamic_rotate %164 by %c1_i32_78 dim 1 : vector<64x128xf32>, i32 -> vector<64x128xf32>
    %c127_i32_79 = arith.constant 127 : i32
    %171 = tpu.dynamic_rotate %164 by %c127_i32_79 dim 1 : vector<64x128xf32>, i32 -> vector<64x128xf32>
    %c121_i32_80 = arith.constant 121 : i32
    %172 = tpu.dynamic_rotate %164 by %c121_i32_80 dim 1 : vector<64x128xf32>, i32 -> vector<64x128xf32>
    %c120_i32_81 = arith.constant 120 : i32
    %173 = tpu.dynamic_rotate %164 by %c120_i32_81 dim 1 : vector<64x128xf32>, i32 -> vector<64x128xf32>
    %c119_i32_82 = arith.constant 119 : i32
    %174 = tpu.dynamic_rotate %164 by %c119_i32_82 dim 1 : vector<64x128xf32>, i32 -> vector<64x128xf32>
    %175 = tpu.concatenate %167, %168, %169, %170, %164, %171, %172, %173, %174 in 0 : vector<64x128xf32>, vector<64x128xf32>, vector<64x128xf32>, vector<64x128xf32>, vector<64x128xf32>, vector<64x128xf32>, vector<64x128xf32>, vector<64x128xf32>, vector<64x128xf32> -> vector<576x128xf32>
    %176 = arith.truncf %175 : vector<576x128xf32> to vector<576x128xbf16>
    %177 = arith.mulf %176, %0 : vector<576x128xbf16>
    %cst_83 = arith.constant dense<0.000000e+00> : vector<64x128xf32>
    %178 = tpu.matmul %166, %177, %cst_83 {dimension_numbers = #tpu.dot_dimension_numbers<[1], [0], [0], [1], [0, 0, 1, 1], [], []>} : vector<64x576xbf16>, vector<576x128xbf16>, vector<64x128xf32> -> vector<64x128xf32>
    %179 = vector.extract_strided_slice %2 {offsets = [0, 4], sizes = [64, 1], strides = [1, 1]} : vector<64x8xf32> to vector<64x1xf32>
    %180 = vector.extract_strided_slice %3 {offsets = [0, 4], sizes = [64, 1], strides = [1, 1]} : vector<64x8xf32> to vector<64x1xf32>
    %cst_84 = arith.constant dense<0.000000e+00> : vector<64xf32>
    %181 = vector.multi_reduction <add>, %178, %cst_84 [1] : vector<64x128xf32> to vector<64xf32>
    %182 = vector.shape_cast %181 : vector<64xf32> to vector<64x1xf32>
    %cst_85 = arith.constant 1.280000e+02 : f32
    %183 = vector.broadcast %cst_85 : f32 to vector<64x1xf32>
    %184 = arith.divf %182, %183 : vector<64x1xf32>
    %185 = vector.broadcast %184 : vector<64x1xf32> to vector<64x128xf32>
    %186 = arith.subf %178, %185 : vector<64x128xf32>
    %187 = arith.mulf %186, %186 : vector<64x128xf32>
    %cst_86 = arith.constant dense<0.000000e+00> : vector<64xf32>
    %188 = vector.multi_reduction <add>, %187, %cst_86 [1] : vector<64x128xf32> to vector<64xf32>
    %189 = vector.shape_cast %188 : vector<64xf32> to vector<64x1xf32>
    %cst_87 = arith.constant 1.280000e+02 : f32
    %190 = vector.broadcast %cst_87 : f32 to vector<64x1xf32>
    %191 = arith.divf %189, %190 : vector<64x1xf32>
    %192 = vector.broadcast %184 : vector<64x1xf32> to vector<64x128xf32>
    %193 = arith.subf %178, %192 : vector<64x128xf32>
    %cst_88 = arith.constant 9.99999974E-6 : f32
    %194 = vector.broadcast %cst_88 : f32 to vector<64x1xf32>
    %195 = arith.addf %191, %194 : vector<64x1xf32>
    %196 = math.rsqrt %195 : vector<64x1xf32>
    %197 = arith.mulf %179, %196 : vector<64x1xf32>
    %198 = vector.broadcast %197 : vector<64x1xf32> to vector<64x128xf32>
    %199 = arith.mulf %193, %198 : vector<64x128xf32>
    %200 = vector.broadcast %180 : vector<64x1xf32> to vector<64x128xf32>
    %201 = arith.addf %199, %200 : vector<64x128xf32>
    %cst_89 = arith.constant 0.000000e+00 : f32
    %202 = vector.broadcast %cst_89 : f32 to vector<64x128xf32>
    %203 = arith.maximumf %201, %202 : vector<64x128xf32>
    %c5 = arith.constant 5 : index
    %c0_90 = arith.constant 0 : index
    %c0_91 = arith.constant 0 : index
    %204 = vector.load %arg4[%c5, %c0_90, %c0_91] : memref<8x64x576xbf16, #tpu.memory_space<vmem>>, vector<1x64x576xbf16>
    %205 = vector.shape_cast %204 : vector<1x64x576xbf16> to vector<64x576xbf16>
    %c9_i32_92 = arith.constant 9 : i32
    %206 = tpu.dynamic_rotate %203 by %c9_i32_92 dim 1 : vector<64x128xf32>, i32 -> vector<64x128xf32>
    %c8_i32_93 = arith.constant 8 : i32
    %207 = tpu.dynamic_rotate %203 by %c8_i32_93 dim 1 : vector<64x128xf32>, i32 -> vector<64x128xf32>
    %c7_i32_94 = arith.constant 7 : i32
    %208 = tpu.dynamic_rotate %203 by %c7_i32_94 dim 1 : vector<64x128xf32>, i32 -> vector<64x128xf32>
    %c1_i32_95 = arith.constant 1 : i32
    %209 = tpu.dynamic_rotate %203 by %c1_i32_95 dim 1 : vector<64x128xf32>, i32 -> vector<64x128xf32>
    %c127_i32_96 = arith.constant 127 : i32
    %210 = tpu.dynamic_rotate %203 by %c127_i32_96 dim 1 : vector<64x128xf32>, i32 -> vector<64x128xf32>
    %c121_i32_97 = arith.constant 121 : i32
    %211 = tpu.dynamic_rotate %203 by %c121_i32_97 dim 1 : vector<64x128xf32>, i32 -> vector<64x128xf32>
    %c120_i32_98 = arith.constant 120 : i32
    %212 = tpu.dynamic_rotate %203 by %c120_i32_98 dim 1 : vector<64x128xf32>, i32 -> vector<64x128xf32>
    %c119_i32_99 = arith.constant 119 : i32
    %213 = tpu.dynamic_rotate %203 by %c119_i32_99 dim 1 : vector<64x128xf32>, i32 -> vector<64x128xf32>
    %214 = tpu.concatenate %206, %207, %208, %209, %203, %210, %211, %212, %213 in 0 : vector<64x128xf32>, vector<64x128xf32>, vector<64x128xf32>, vector<64x128xf32>, vector<64x128xf32>, vector<64x128xf32>, vector<64x128xf32>, vector<64x128xf32>, vector<64x128xf32> -> vector<576x128xf32>
    %215 = arith.truncf %214 : vector<576x128xf32> to vector<576x128xbf16>
    %216 = arith.mulf %215, %0 : vector<576x128xbf16>
    %cst_100 = arith.constant dense<0.000000e+00> : vector<64x128xf32>
    %217 = tpu.matmul %205, %216, %cst_100 {dimension_numbers = #tpu.dot_dimension_numbers<[1], [0], [0], [1], [0, 0, 1, 1], [], []>} : vector<64x576xbf16>, vector<576x128xbf16>, vector<64x128xf32> -> vector<64x128xf32>
    %218 = vector.extract_strided_slice %2 {offsets = [0, 5], sizes = [64, 1], strides = [1, 1]} : vector<64x8xf32> to vector<64x1xf32>
    %219 = vector.extract_strided_slice %3 {offsets = [0, 5], sizes = [64, 1], strides = [1, 1]} : vector<64x8xf32> to vector<64x1xf32>
    %cst_101 = arith.constant dense<0.000000e+00> : vector<64xf32>
    %220 = vector.multi_reduction <add>, %217, %cst_101 [1] : vector<64x128xf32> to vector<64xf32>
    %221 = vector.shape_cast %220 : vector<64xf32> to vector<64x1xf32>
    %cst_102 = arith.constant 1.280000e+02 : f32
    %222 = vector.broadcast %cst_102 : f32 to vector<64x1xf32>
    %223 = arith.divf %221, %222 : vector<64x1xf32>
    %224 = vector.broadcast %223 : vector<64x1xf32> to vector<64x128xf32>
    %225 = arith.subf %217, %224 : vector<64x128xf32>
    %226 = arith.mulf %225, %225 : vector<64x128xf32>
    %cst_103 = arith.constant dense<0.000000e+00> : vector<64xf32>
    %227 = vector.multi_reduction <add>, %226, %cst_103 [1] : vector<64x128xf32> to vector<64xf32>
    %228 = vector.shape_cast %227 : vector<64xf32> to vector<64x1xf32>
    %cst_104 = arith.constant 1.280000e+02 : f32
    %229 = vector.broadcast %cst_104 : f32 to vector<64x1xf32>
    %230 = arith.divf %228, %229 : vector<64x1xf32>
    %231 = vector.broadcast %223 : vector<64x1xf32> to vector<64x128xf32>
    %232 = arith.subf %217, %231 : vector<64x128xf32>
    %cst_105 = arith.constant 9.99999974E-6 : f32
    %233 = vector.broadcast %cst_105 : f32 to vector<64x1xf32>
    %234 = arith.addf %230, %233 : vector<64x1xf32>
    %235 = math.rsqrt %234 : vector<64x1xf32>
    %236 = arith.mulf %218, %235 : vector<64x1xf32>
    %237 = vector.broadcast %236 : vector<64x1xf32> to vector<64x128xf32>
    %238 = arith.mulf %232, %237 : vector<64x128xf32>
    %239 = vector.broadcast %219 : vector<64x1xf32> to vector<64x128xf32>
    %240 = arith.addf %238, %239 : vector<64x128xf32>
    %241 = arith.addf %240, %164 : vector<64x128xf32>
    %cst_106 = arith.constant 0.000000e+00 : f32
    %242 = vector.broadcast %cst_106 : f32 to vector<64x128xf32>
    %243 = arith.maximumf %241, %242 : vector<64x128xf32>
    %c6 = arith.constant 6 : index
    %c0_107 = arith.constant 0 : index
    %c0_108 = arith.constant 0 : index
    %244 = vector.load %arg4[%c6, %c0_107, %c0_108] : memref<8x64x576xbf16, #tpu.memory_space<vmem>>, vector<1x64x576xbf16>
    %245 = vector.shape_cast %244 : vector<1x64x576xbf16> to vector<64x576xbf16>
    %c9_i32_109 = arith.constant 9 : i32
    %246 = tpu.dynamic_rotate %243 by %c9_i32_109 dim 1 : vector<64x128xf32>, i32 -> vector<64x128xf32>
    %c8_i32_110 = arith.constant 8 : i32
    %247 = tpu.dynamic_rotate %243 by %c8_i32_110 dim 1 : vector<64x128xf32>, i32 -> vector<64x128xf32>
    %c7_i32_111 = arith.constant 7 : i32
    %248 = tpu.dynamic_rotate %243 by %c7_i32_111 dim 1 : vector<64x128xf32>, i32 -> vector<64x128xf32>
    %c1_i32_112 = arith.constant 1 : i32
    %249 = tpu.dynamic_rotate %243 by %c1_i32_112 dim 1 : vector<64x128xf32>, i32 -> vector<64x128xf32>
    %c127_i32_113 = arith.constant 127 : i32
    %250 = tpu.dynamic_rotate %243 by %c127_i32_113 dim 1 : vector<64x128xf32>, i32 -> vector<64x128xf32>
    %c121_i32_114 = arith.constant 121 : i32
    %251 = tpu.dynamic_rotate %243 by %c121_i32_114 dim 1 : vector<64x128xf32>, i32 -> vector<64x128xf32>
    %c120_i32_115 = arith.constant 120 : i32
    %252 = tpu.dynamic_rotate %243 by %c120_i32_115 dim 1 : vector<64x128xf32>, i32 -> vector<64x128xf32>
    %c119_i32_116 = arith.constant 119 : i32
    %253 = tpu.dynamic_rotate %243 by %c119_i32_116 dim 1 : vector<64x128xf32>, i32 -> vector<64x128xf32>
    %254 = tpu.concatenate %246, %247, %248, %249, %243, %250, %251, %252, %253 in 0 : vector<64x128xf32>, vector<64x128xf32>, vector<64x128xf32>, vector<64x128xf32>, vector<64x128xf32>, vector<64x128xf32>, vector<64x128xf32>, vector<64x128xf32>, vector<64x128xf32> -> vector<576x128xf32>
    %255 = arith.truncf %254 : vector<576x128xf32> to vector<576x128xbf16>
    %256 = arith.mulf %255, %0 : vector<576x128xbf16>
    %cst_117 = arith.constant dense<0.000000e+00> : vector<64x128xf32>
    %257 = tpu.matmul %245, %256, %cst_117 {dimension_numbers = #tpu.dot_dimension_numbers<[1], [0], [0], [1], [0, 0, 1, 1], [], []>} : vector<64x576xbf16>, vector<576x128xbf16>, vector<64x128xf32> -> vector<64x128xf32>
    %258 = vector.extract_strided_slice %2 {offsets = [0, 6], sizes = [64, 1], strides = [1, 1]} : vector<64x8xf32> to vector<64x1xf32>
    %259 = vector.extract_strided_slice %3 {offsets = [0, 6], sizes = [64, 1], strides = [1, 1]} : vector<64x8xf32> to vector<64x1xf32>
    %cst_118 = arith.constant dense<0.000000e+00> : vector<64xf32>
    %260 = vector.multi_reduction <add>, %257, %cst_118 [1] : vector<64x128xf32> to vector<64xf32>
    %261 = vector.shape_cast %260 : vector<64xf32> to vector<64x1xf32>
    %cst_119 = arith.constant 1.280000e+02 : f32
    %262 = vector.broadcast %cst_119 : f32 to vector<64x1xf32>
    %263 = arith.divf %261, %262 : vector<64x1xf32>
    %264 = vector.broadcast %263 : vector<64x1xf32> to vector<64x128xf32>
    %265 = arith.subf %257, %264 : vector<64x128xf32>
    %266 = arith.mulf %265, %265 : vector<64x128xf32>
    %cst_120 = arith.constant dense<0.000000e+00> : vector<64xf32>
    %267 = vector.multi_reduction <add>, %266, %cst_120 [1] : vector<64x128xf32> to vector<64xf32>
    %268 = vector.shape_cast %267 : vector<64xf32> to vector<64x1xf32>
    %cst_121 = arith.constant 1.280000e+02 : f32
    %269 = vector.broadcast %cst_121 : f32 to vector<64x1xf32>
    %270 = arith.divf %268, %269 : vector<64x1xf32>
    %271 = vector.broadcast %263 : vector<64x1xf32> to vector<64x128xf32>
    %272 = arith.subf %257, %271 : vector<64x128xf32>
    %cst_122 = arith.constant 9.99999974E-6 : f32
    %273 = vector.broadcast %cst_122 : f32 to vector<64x1xf32>
    %274 = arith.addf %270, %273 : vector<64x1xf32>
    %275 = math.rsqrt %274 : vector<64x1xf32>
    %276 = arith.mulf %258, %275 : vector<64x1xf32>
    %277 = vector.broadcast %276 : vector<64x1xf32> to vector<64x128xf32>
    %278 = arith.mulf %272, %277 : vector<64x128xf32>
    %279 = vector.broadcast %259 : vector<64x1xf32> to vector<64x128xf32>
    %280 = arith.addf %278, %279 : vector<64x128xf32>
    %cst_123 = arith.constant 0.000000e+00 : f32
    %281 = vector.broadcast %cst_123 : f32 to vector<64x128xf32>
    %282 = arith.maximumf %280, %281 : vector<64x128xf32>
    %c7 = arith.constant 7 : index
    %c0_124 = arith.constant 0 : index
    %c0_125 = arith.constant 0 : index
    %283 = vector.load %arg4[%c7, %c0_124, %c0_125] : memref<8x64x576xbf16, #tpu.memory_space<vmem>>, vector<1x64x576xbf16>
    %284 = vector.shape_cast %283 : vector<1x64x576xbf16> to vector<64x576xbf16>
    %c9_i32_126 = arith.constant 9 : i32
    %285 = tpu.dynamic_rotate %282 by %c9_i32_126 dim 1 : vector<64x128xf32>, i32 -> vector<64x128xf32>
    %c8_i32_127 = arith.constant 8 : i32
    %286 = tpu.dynamic_rotate %282 by %c8_i32_127 dim 1 : vector<64x128xf32>, i32 -> vector<64x128xf32>
    %c7_i32_128 = arith.constant 7 : i32
    %287 = tpu.dynamic_rotate %282 by %c7_i32_128 dim 1 : vector<64x128xf32>, i32 -> vector<64x128xf32>
    %c1_i32_129 = arith.constant 1 : i32
    %288 = tpu.dynamic_rotate %282 by %c1_i32_129 dim 1 : vector<64x128xf32>, i32 -> vector<64x128xf32>
    %c127_i32_130 = arith.constant 127 : i32
    %289 = tpu.dynamic_rotate %282 by %c127_i32_130 dim 1 : vector<64x128xf32>, i32 -> vector<64x128xf32>
    %c121_i32_131 = arith.constant 121 : i32
    %290 = tpu.dynamic_rotate %282 by %c121_i32_131 dim 1 : vector<64x128xf32>, i32 -> vector<64x128xf32>
    %c120_i32_132 = arith.constant 120 : i32
    %291 = tpu.dynamic_rotate %282 by %c120_i32_132 dim 1 : vector<64x128xf32>, i32 -> vector<64x128xf32>
    %c119_i32_133 = arith.constant 119 : i32
    %292 = tpu.dynamic_rotate %282 by %c119_i32_133 dim 1 : vector<64x128xf32>, i32 -> vector<64x128xf32>
    %293 = tpu.concatenate %285, %286, %287, %288, %282, %289, %290, %291, %292 in 0 : vector<64x128xf32>, vector<64x128xf32>, vector<64x128xf32>, vector<64x128xf32>, vector<64x128xf32>, vector<64x128xf32>, vector<64x128xf32>, vector<64x128xf32>, vector<64x128xf32> -> vector<576x128xf32>
    %294 = arith.truncf %293 : vector<576x128xf32> to vector<576x128xbf16>
    %295 = arith.mulf %294, %0 : vector<576x128xbf16>
    %cst_134 = arith.constant dense<0.000000e+00> : vector<64x128xf32>
    %296 = tpu.matmul %284, %295, %cst_134 {dimension_numbers = #tpu.dot_dimension_numbers<[1], [0], [0], [1], [0, 0, 1, 1], [], []>} : vector<64x576xbf16>, vector<576x128xbf16>, vector<64x128xf32> -> vector<64x128xf32>
    %297 = vector.extract_strided_slice %2 {offsets = [0, 7], sizes = [64, 1], strides = [1, 1]} : vector<64x8xf32> to vector<64x1xf32>
    %298 = vector.extract_strided_slice %3 {offsets = [0, 7], sizes = [64, 1], strides = [1, 1]} : vector<64x8xf32> to vector<64x1xf32>
    %cst_135 = arith.constant dense<0.000000e+00> : vector<64xf32>
    %299 = vector.multi_reduction <add>, %296, %cst_135 [1] : vector<64x128xf32> to vector<64xf32>
    %300 = vector.shape_cast %299 : vector<64xf32> to vector<64x1xf32>
    %cst_136 = arith.constant 1.280000e+02 : f32
    %301 = vector.broadcast %cst_136 : f32 to vector<64x1xf32>
    %302 = arith.divf %300, %301 : vector<64x1xf32>
    %303 = vector.broadcast %302 : vector<64x1xf32> to vector<64x128xf32>
    %304 = arith.subf %296, %303 : vector<64x128xf32>
    %305 = arith.mulf %304, %304 : vector<64x128xf32>
    %cst_137 = arith.constant dense<0.000000e+00> : vector<64xf32>
    %306 = vector.multi_reduction <add>, %305, %cst_137 [1] : vector<64x128xf32> to vector<64xf32>
    %307 = vector.shape_cast %306 : vector<64xf32> to vector<64x1xf32>
    %cst_138 = arith.constant 1.280000e+02 : f32
    %308 = vector.broadcast %cst_138 : f32 to vector<64x1xf32>
    %309 = arith.divf %307, %308 : vector<64x1xf32>
    %310 = vector.broadcast %302 : vector<64x1xf32> to vector<64x128xf32>
    %311 = arith.subf %296, %310 : vector<64x128xf32>
    %cst_139 = arith.constant 9.99999974E-6 : f32
    %312 = vector.broadcast %cst_139 : f32 to vector<64x1xf32>
    %313 = arith.addf %309, %312 : vector<64x1xf32>
    %314 = math.rsqrt %313 : vector<64x1xf32>
    %315 = arith.mulf %297, %314 : vector<64x1xf32>
    %316 = vector.broadcast %315 : vector<64x1xf32> to vector<64x128xf32>
    %317 = arith.mulf %311, %316 : vector<64x128xf32>
    %318 = vector.broadcast %298 : vector<64x1xf32> to vector<64x128xf32>
    %319 = arith.addf %317, %318 : vector<64x128xf32>
    %320 = arith.addf %319, %243 : vector<64x128xf32>
    %cst_140 = arith.constant 0.000000e+00 : f32
    %321 = vector.broadcast %cst_140 : f32 to vector<64x128xf32>
    %322 = arith.maximumf %320, %321 : vector<64x128xf32>
    %c0_141 = arith.constant 0 : index
    %c0_142 = arith.constant 0 : index
    %323 = vector.load %arg7[%c0_141, %c0_142] : memref<32x576xbf16, #tpu.memory_space<vmem>>, vector<32x576xbf16>
    %c9_i32_143 = arith.constant 9 : i32
    %324 = tpu.dynamic_rotate %322 by %c9_i32_143 dim 1 : vector<64x128xf32>, i32 -> vector<64x128xf32>
    %c8_i32_144 = arith.constant 8 : i32
    %325 = tpu.dynamic_rotate %322 by %c8_i32_144 dim 1 : vector<64x128xf32>, i32 -> vector<64x128xf32>
    %c7_i32_145 = arith.constant 7 : i32
    %326 = tpu.dynamic_rotate %322 by %c7_i32_145 dim 1 : vector<64x128xf32>, i32 -> vector<64x128xf32>
    %c1_i32_146 = arith.constant 1 : i32
    %327 = tpu.dynamic_rotate %322 by %c1_i32_146 dim 1 : vector<64x128xf32>, i32 -> vector<64x128xf32>
    %c127_i32_147 = arith.constant 127 : i32
    %328 = tpu.dynamic_rotate %322 by %c127_i32_147 dim 1 : vector<64x128xf32>, i32 -> vector<64x128xf32>
    %c121_i32_148 = arith.constant 121 : i32
    %329 = tpu.dynamic_rotate %322 by %c121_i32_148 dim 1 : vector<64x128xf32>, i32 -> vector<64x128xf32>
    %c120_i32_149 = arith.constant 120 : i32
    %330 = tpu.dynamic_rotate %322 by %c120_i32_149 dim 1 : vector<64x128xf32>, i32 -> vector<64x128xf32>
    %c119_i32_150 = arith.constant 119 : i32
    %331 = tpu.dynamic_rotate %322 by %c119_i32_150 dim 1 : vector<64x128xf32>, i32 -> vector<64x128xf32>
    %332 = tpu.concatenate %324, %325, %326, %327, %322, %328, %329, %330, %331 in 0 : vector<64x128xf32>, vector<64x128xf32>, vector<64x128xf32>, vector<64x128xf32>, vector<64x128xf32>, vector<64x128xf32>, vector<64x128xf32>, vector<64x128xf32>, vector<64x128xf32> -> vector<576x128xf32>
    %333 = arith.truncf %332 : vector<576x128xf32> to vector<576x128xbf16>
    %334 = arith.mulf %333, %0 : vector<576x128xbf16>
    %cst_151 = arith.constant dense<0.000000e+00> : vector<32x128xf32>
    %335 = tpu.matmul %323, %334, %cst_151 {dimension_numbers = #tpu.dot_dimension_numbers<[1], [0], [0], [1], [0, 0, 1, 1], [], []>} : vector<32x576xbf16>, vector<576x128xbf16>, vector<32x128xf32> -> vector<32x128xf32>
    %c0_152 = arith.constant 0 : index
    %c0_153 = arith.constant 0 : index
    %336 = vector.load %arg8[%c0_152, %c0_153] : memref<32x1xf32, #tpu.memory_space<vmem>>, vector<32x1xf32>
    %337 = vector.broadcast %336 : vector<32x1xf32> to vector<32x128xf32>
    %338 = arith.addf %335, %337 : vector<32x128xf32>
    %c0_154 = arith.constant 0 : index
    %c0_155 = arith.constant 0 : index
    %c0_156 = arith.constant 0 : index
    %339 = vector.load %arg9[%c0_154, %c0_155, %c0_156] : memref<8x32x288xbf16, #tpu.memory_space<vmem>>, vector<1x32x288xbf16>
    %340 = vector.shape_cast %339 : vector<1x32x288xbf16> to vector<32x288xbf16>
    %c9_i32_157 = arith.constant 9 : i32
    %341 = tpu.dynamic_rotate %338 by %c9_i32_157 dim 1 : vector<32x128xf32>, i32 -> vector<32x128xf32>
    %c8_i32_158 = arith.constant 8 : i32
    %342 = tpu.dynamic_rotate %338 by %c8_i32_158 dim 1 : vector<32x128xf32>, i32 -> vector<32x128xf32>
    %c7_i32_159 = arith.constant 7 : i32
    %343 = tpu.dynamic_rotate %338 by %c7_i32_159 dim 1 : vector<32x128xf32>, i32 -> vector<32x128xf32>
    %c1_i32_160 = arith.constant 1 : i32
    %344 = tpu.dynamic_rotate %338 by %c1_i32_160 dim 1 : vector<32x128xf32>, i32 -> vector<32x128xf32>
    %c127_i32_161 = arith.constant 127 : i32
    %345 = tpu.dynamic_rotate %338 by %c127_i32_161 dim 1 : vector<32x128xf32>, i32 -> vector<32x128xf32>
    %c121_i32_162 = arith.constant 121 : i32
    %346 = tpu.dynamic_rotate %338 by %c121_i32_162 dim 1 : vector<32x128xf32>, i32 -> vector<32x128xf32>
    %c120_i32_163 = arith.constant 120 : i32
    %347 = tpu.dynamic_rotate %338 by %c120_i32_163 dim 1 : vector<32x128xf32>, i32 -> vector<32x128xf32>
    %c119_i32_164 = arith.constant 119 : i32
    %348 = tpu.dynamic_rotate %338 by %c119_i32_164 dim 1 : vector<32x128xf32>, i32 -> vector<32x128xf32>
    %349 = tpu.concatenate %341, %342, %343, %344, %338, %345, %346, %347, %348 in 0 : vector<32x128xf32>, vector<32x128xf32>, vector<32x128xf32>, vector<32x128xf32>, vector<32x128xf32>, vector<32x128xf32>, vector<32x128xf32>, vector<32x128xf32>, vector<32x128xf32> -> vector<288x128xf32>
    %350 = arith.truncf %349 : vector<288x128xf32> to vector<288x128xbf16>
    %351 = arith.mulf %350, %1 : vector<288x128xbf16>
    %cst_165 = arith.constant dense<0.000000e+00> : vector<32x128xf32>
    %352 = tpu.matmul %340, %351, %cst_165 {dimension_numbers = #tpu.dot_dimension_numbers<[1], [0], [0], [1], [0, 0, 1, 1], [], []>} : vector<32x288xbf16>, vector<288x128xbf16>, vector<32x128xf32> -> vector<32x128xf32>
    %353 = vector.extract_strided_slice %4 {offsets = [0, 0], sizes = [32, 1], strides = [1, 1]} : vector<32x8xf32> to vector<32x1xf32>
    %354 = vector.extract_strided_slice %5 {offsets = [0, 0], sizes = [32, 1], strides = [1, 1]} : vector<32x8xf32> to vector<32x1xf32>
    %cst_166 = arith.constant dense<0.000000e+00> : vector<32xf32>
    %355 = vector.multi_reduction <add>, %352, %cst_166 [1] : vector<32x128xf32> to vector<32xf32>
    %356 = vector.shape_cast %355 : vector<32xf32> to vector<32x1xf32>
    %cst_167 = arith.constant 1.280000e+02 : f32
    %357 = vector.broadcast %cst_167 : f32 to vector<32x1xf32>
    %358 = arith.divf %356, %357 : vector<32x1xf32>
    %359 = vector.broadcast %358 : vector<32x1xf32> to vector<32x128xf32>
    %360 = arith.subf %352, %359 : vector<32x128xf32>
    %361 = arith.mulf %360, %360 : vector<32x128xf32>
    %cst_168 = arith.constant dense<0.000000e+00> : vector<32xf32>
    %362 = vector.multi_reduction <add>, %361, %cst_168 [1] : vector<32x128xf32> to vector<32xf32>
    %363 = vector.shape_cast %362 : vector<32xf32> to vector<32x1xf32>
    %cst_169 = arith.constant 1.280000e+02 : f32
    %364 = vector.broadcast %cst_169 : f32 to vector<32x1xf32>
    %365 = arith.divf %363, %364 : vector<32x1xf32>
    %366 = vector.broadcast %358 : vector<32x1xf32> to vector<32x128xf32>
    %367 = arith.subf %352, %366 : vector<32x128xf32>
    %cst_170 = arith.constant 9.99999974E-6 : f32
    %368 = vector.broadcast %cst_170 : f32 to vector<32x1xf32>
    %369 = arith.addf %365, %368 : vector<32x1xf32>
    %370 = math.rsqrt %369 : vector<32x1xf32>
    %371 = arith.mulf %353, %370 : vector<32x1xf32>
    %372 = vector.broadcast %371 : vector<32x1xf32> to vector<32x128xf32>
    %373 = arith.mulf %367, %372 : vector<32x128xf32>
    %374 = vector.broadcast %354 : vector<32x1xf32> to vector<32x128xf32>
    %375 = arith.addf %373, %374 : vector<32x128xf32>
    %cst_171 = arith.constant 0.000000e+00 : f32
    %376 = vector.broadcast %cst_171 : f32 to vector<32x128xf32>
    %377 = arith.maximumf %375, %376 : vector<32x128xf32>
    %c1_172 = arith.constant 1 : index
    %c0_173 = arith.constant 0 : index
    %c0_174 = arith.constant 0 : index
    %378 = vector.load %arg9[%c1_172, %c0_173, %c0_174] : memref<8x32x288xbf16, #tpu.memory_space<vmem>>, vector<1x32x288xbf16>
    %379 = vector.shape_cast %378 : vector<1x32x288xbf16> to vector<32x288xbf16>
    %c9_i32_175 = arith.constant 9 : i32
    %380 = tpu.dynamic_rotate %377 by %c9_i32_175 dim 1 : vector<32x128xf32>, i32 -> vector<32x128xf32>
    %c8_i32_176 = arith.constant 8 : i32
    %381 = tpu.dynamic_rotate %377 by %c8_i32_176 dim 1 : vector<32x128xf32>, i32 -> vector<32x128xf32>
    %c7_i32_177 = arith.constant 7 : i32
    %382 = tpu.dynamic_rotate %377 by %c7_i32_177 dim 1 : vector<32x128xf32>, i32 -> vector<32x128xf32>
    %c1_i32_178 = arith.constant 1 : i32
    %383 = tpu.dynamic_rotate %377 by %c1_i32_178 dim 1 : vector<32x128xf32>, i32 -> vector<32x128xf32>
    %c127_i32_179 = arith.constant 127 : i32
    %384 = tpu.dynamic_rotate %377 by %c127_i32_179 dim 1 : vector<32x128xf32>, i32 -> vector<32x128xf32>
    %c121_i32_180 = arith.constant 121 : i32
    %385 = tpu.dynamic_rotate %377 by %c121_i32_180 dim 1 : vector<32x128xf32>, i32 -> vector<32x128xf32>
    %c120_i32_181 = arith.constant 120 : i32
    %386 = tpu.dynamic_rotate %377 by %c120_i32_181 dim 1 : vector<32x128xf32>, i32 -> vector<32x128xf32>
    %c119_i32_182 = arith.constant 119 : i32
    %387 = tpu.dynamic_rotate %377 by %c119_i32_182 dim 1 : vector<32x128xf32>, i32 -> vector<32x128xf32>
    %388 = tpu.concatenate %380, %381, %382, %383, %377, %384, %385, %386, %387 in 0 : vector<32x128xf32>, vector<32x128xf32>, vector<32x128xf32>, vector<32x128xf32>, vector<32x128xf32>, vector<32x128xf32>, vector<32x128xf32>, vector<32x128xf32>, vector<32x128xf32> -> vector<288x128xf32>
    %389 = arith.truncf %388 : vector<288x128xf32> to vector<288x128xbf16>
    %390 = arith.mulf %389, %1 : vector<288x128xbf16>
    %cst_183 = arith.constant dense<0.000000e+00> : vector<32x128xf32>
    %391 = tpu.matmul %379, %390, %cst_183 {dimension_numbers = #tpu.dot_dimension_numbers<[1], [0], [0], [1], [0, 0, 1, 1], [], []>} : vector<32x288xbf16>, vector<288x128xbf16>, vector<32x128xf32> -> vector<32x128xf32>
    %392 = vector.extract_strided_slice %4 {offsets = [0, 1], sizes = [32, 1], strides = [1, 1]} : vector<32x8xf32> to vector<32x1xf32>
    %393 = vector.extract_strided_slice %5 {offsets = [0, 1], sizes = [32, 1], strides = [1, 1]} : vector<32x8xf32> to vector<32x1xf32>
    %cst_184 = arith.constant dense<0.000000e+00> : vector<32xf32>
    %394 = vector.multi_reduction <add>, %391, %cst_184 [1] : vector<32x128xf32> to vector<32xf32>
    %395 = vector.shape_cast %394 : vector<32xf32> to vector<32x1xf32>
    %cst_185 = arith.constant 1.280000e+02 : f32
    %396 = vector.broadcast %cst_185 : f32 to vector<32x1xf32>
    %397 = arith.divf %395, %396 : vector<32x1xf32>
    %398 = vector.broadcast %397 : vector<32x1xf32> to vector<32x128xf32>
    %399 = arith.subf %391, %398 : vector<32x128xf32>
    %400 = arith.mulf %399, %399 : vector<32x128xf32>
    %cst_186 = arith.constant dense<0.000000e+00> : vector<32xf32>
    %401 = vector.multi_reduction <add>, %400, %cst_186 [1] : vector<32x128xf32> to vector<32xf32>
    %402 = vector.shape_cast %401 : vector<32xf32> to vector<32x1xf32>
    %cst_187 = arith.constant 1.280000e+02 : f32
    %403 = vector.broadcast %cst_187 : f32 to vector<32x1xf32>
    %404 = arith.divf %402, %403 : vector<32x1xf32>
    %405 = vector.broadcast %397 : vector<32x1xf32> to vector<32x128xf32>
    %406 = arith.subf %391, %405 : vector<32x128xf32>
    %cst_188 = arith.constant 9.99999974E-6 : f32
    %407 = vector.broadcast %cst_188 : f32 to vector<32x1xf32>
    %408 = arith.addf %404, %407 : vector<32x1xf32>
    %409 = math.rsqrt %408 : vector<32x1xf32>
    %410 = arith.mulf %392, %409 : vector<32x1xf32>
    %411 = vector.broadcast %410 : vector<32x1xf32> to vector<32x128xf32>
    %412 = arith.mulf %406, %411 : vector<32x128xf32>
    %413 = vector.broadcast %393 : vector<32x1xf32> to vector<32x128xf32>
    %414 = arith.addf %412, %413 : vector<32x128xf32>
    %415 = arith.addf %414, %338 : vector<32x128xf32>
    %cst_189 = arith.constant 0.000000e+00 : f32
    %416 = vector.broadcast %cst_189 : f32 to vector<32x128xf32>
    %417 = arith.maximumf %415, %416 : vector<32x128xf32>
    %c2_190 = arith.constant 2 : index
    %c0_191 = arith.constant 0 : index
    %c0_192 = arith.constant 0 : index
    %418 = vector.load %arg9[%c2_190, %c0_191, %c0_192] : memref<8x32x288xbf16, #tpu.memory_space<vmem>>, vector<1x32x288xbf16>
    %419 = vector.shape_cast %418 : vector<1x32x288xbf16> to vector<32x288xbf16>
    %c9_i32_193 = arith.constant 9 : i32
    %420 = tpu.dynamic_rotate %417 by %c9_i32_193 dim 1 : vector<32x128xf32>, i32 -> vector<32x128xf32>
    %c8_i32_194 = arith.constant 8 : i32
    %421 = tpu.dynamic_rotate %417 by %c8_i32_194 dim 1 : vector<32x128xf32>, i32 -> vector<32x128xf32>
    %c7_i32_195 = arith.constant 7 : i32
    %422 = tpu.dynamic_rotate %417 by %c7_i32_195 dim 1 : vector<32x128xf32>, i32 -> vector<32x128xf32>
    %c1_i32_196 = arith.constant 1 : i32
    %423 = tpu.dynamic_rotate %417 by %c1_i32_196 dim 1 : vector<32x128xf32>, i32 -> vector<32x128xf32>
    %c127_i32_197 = arith.constant 127 : i32
    %424 = tpu.dynamic_rotate %417 by %c127_i32_197 dim 1 : vector<32x128xf32>, i32 -> vector<32x128xf32>
    %c121_i32_198 = arith.constant 121 : i32
    %425 = tpu.dynamic_rotate %417 by %c121_i32_198 dim 1 : vector<32x128xf32>, i32 -> vector<32x128xf32>
    %c120_i32_199 = arith.constant 120 : i32
    %426 = tpu.dynamic_rotate %417 by %c120_i32_199 dim 1 : vector<32x128xf32>, i32 -> vector<32x128xf32>
    %c119_i32_200 = arith.constant 119 : i32
    %427 = tpu.dynamic_rotate %417 by %c119_i32_200 dim 1 : vector<32x128xf32>, i32 -> vector<32x128xf32>
    %428 = tpu.concatenate %420, %421, %422, %423, %417, %424, %425, %426, %427 in 0 : vector<32x128xf32>, vector<32x128xf32>, vector<32x128xf32>, vector<32x128xf32>, vector<32x128xf32>, vector<32x128xf32>, vector<32x128xf32>, vector<32x128xf32>, vector<32x128xf32> -> vector<288x128xf32>
    %429 = arith.truncf %428 : vector<288x128xf32> to vector<288x128xbf16>
    %430 = arith.mulf %429, %1 : vector<288x128xbf16>
    %cst_201 = arith.constant dense<0.000000e+00> : vector<32x128xf32>
    %431 = tpu.matmul %419, %430, %cst_201 {dimension_numbers = #tpu.dot_dimension_numbers<[1], [0], [0], [1], [0, 0, 1, 1], [], []>} : vector<32x288xbf16>, vector<288x128xbf16>, vector<32x128xf32> -> vector<32x128xf32>
    %432 = vector.extract_strided_slice %4 {offsets = [0, 2], sizes = [32, 1], strides = [1, 1]} : vector<32x8xf32> to vector<32x1xf32>
    %433 = vector.extract_strided_slice %5 {offsets = [0, 2], sizes = [32, 1], strides = [1, 1]} : vector<32x8xf32> to vector<32x1xf32>
    %cst_202 = arith.constant dense<0.000000e+00> : vector<32xf32>
    %434 = vector.multi_reduction <add>, %431, %cst_202 [1] : vector<32x128xf32> to vector<32xf32>
    %435 = vector.shape_cast %434 : vector<32xf32> to vector<32x1xf32>
    %cst_203 = arith.constant 1.280000e+02 : f32
    %436 = vector.broadcast %cst_203 : f32 to vector<32x1xf32>
    %437 = arith.divf %435, %436 : vector<32x1xf32>
    %438 = vector.broadcast %437 : vector<32x1xf32> to vector<32x128xf32>
    %439 = arith.subf %431, %438 : vector<32x128xf32>
    %440 = arith.mulf %439, %439 : vector<32x128xf32>
    %cst_204 = arith.constant dense<0.000000e+00> : vector<32xf32>
    %441 = vector.multi_reduction <add>, %440, %cst_204 [1] : vector<32x128xf32> to vector<32xf32>
    %442 = vector.shape_cast %441 : vector<32xf32> to vector<32x1xf32>
    %cst_205 = arith.constant 1.280000e+02 : f32
    %443 = vector.broadcast %cst_205 : f32 to vector<32x1xf32>
    %444 = arith.divf %442, %443 : vector<32x1xf32>
    %445 = vector.broadcast %437 : vector<32x1xf32> to vector<32x128xf32>
    %446 = arith.subf %431, %445 : vector<32x128xf32>
    %cst_206 = arith.constant 9.99999974E-6 : f32
    %447 = vector.broadcast %cst_206 : f32 to vector<32x1xf32>
    %448 = arith.addf %444, %447 : vector<32x1xf32>
    %449 = math.rsqrt %448 : vector<32x1xf32>
    %450 = arith.mulf %432, %449 : vector<32x1xf32>
    %451 = vector.broadcast %450 : vector<32x1xf32> to vector<32x128xf32>
    %452 = arith.mulf %446, %451 : vector<32x128xf32>
    %453 = vector.broadcast %433 : vector<32x1xf32> to vector<32x128xf32>
    %454 = arith.addf %452, %453 : vector<32x128xf32>
    %cst_207 = arith.constant 0.000000e+00 : f32
    %455 = vector.broadcast %cst_207 : f32 to vector<32x128xf32>
    %456 = arith.maximumf %454, %455 : vector<32x128xf32>
    %c3_208 = arith.constant 3 : index
    %c0_209 = arith.constant 0 : index
    %c0_210 = arith.constant 0 : index
    %457 = vector.load %arg9[%c3_208, %c0_209, %c0_210] : memref<8x32x288xbf16, #tpu.memory_space<vmem>>, vector<1x32x288xbf16>
    %458 = vector.shape_cast %457 : vector<1x32x288xbf16> to vector<32x288xbf16>
    %c9_i32_211 = arith.constant 9 : i32
    %459 = tpu.dynamic_rotate %456 by %c9_i32_211 dim 1 : vector<32x128xf32>, i32 -> vector<32x128xf32>
    %c8_i32_212 = arith.constant 8 : i32
    %460 = tpu.dynamic_rotate %456 by %c8_i32_212 dim 1 : vector<32x128xf32>, i32 -> vector<32x128xf32>
    %c7_i32_213 = arith.constant 7 : i32
    %461 = tpu.dynamic_rotate %456 by %c7_i32_213 dim 1 : vector<32x128xf32>, i32 -> vector<32x128xf32>
    %c1_i32_214 = arith.constant 1 : i32
    %462 = tpu.dynamic_rotate %456 by %c1_i32_214 dim 1 : vector<32x128xf32>, i32 -> vector<32x128xf32>
    %c127_i32_215 = arith.constant 127 : i32
    %463 = tpu.dynamic_rotate %456 by %c127_i32_215 dim 1 : vector<32x128xf32>, i32 -> vector<32x128xf32>
    %c121_i32_216 = arith.constant 121 : i32
    %464 = tpu.dynamic_rotate %456 by %c121_i32_216 dim 1 : vector<32x128xf32>, i32 -> vector<32x128xf32>
    %c120_i32_217 = arith.constant 120 : i32
    %465 = tpu.dynamic_rotate %456 by %c120_i32_217 dim 1 : vector<32x128xf32>, i32 -> vector<32x128xf32>
    %c119_i32_218 = arith.constant 119 : i32
    %466 = tpu.dynamic_rotate %456 by %c119_i32_218 dim 1 : vector<32x128xf32>, i32 -> vector<32x128xf32>
    %467 = tpu.concatenate %459, %460, %461, %462, %456, %463, %464, %465, %466 in 0 : vector<32x128xf32>, vector<32x128xf32>, vector<32x128xf32>, vector<32x128xf32>, vector<32x128xf32>, vector<32x128xf32>, vector<32x128xf32>, vector<32x128xf32>, vector<32x128xf32> -> vector<288x128xf32>
    %468 = arith.truncf %467 : vector<288x128xf32> to vector<288x128xbf16>
    %469 = arith.mulf %468, %1 : vector<288x128xbf16>
    %cst_219 = arith.constant dense<0.000000e+00> : vector<32x128xf32>
    %470 = tpu.matmul %458, %469, %cst_219 {dimension_numbers = #tpu.dot_dimension_numbers<[1], [0], [0], [1], [0, 0, 1, 1], [], []>} : vector<32x288xbf16>, vector<288x128xbf16>, vector<32x128xf32> -> vector<32x128xf32>
    %471 = vector.extract_strided_slice %4 {offsets = [0, 3], sizes = [32, 1], strides = [1, 1]} : vector<32x8xf32> to vector<32x1xf32>
    %472 = vector.extract_strided_slice %5 {offsets = [0, 3], sizes = [32, 1], strides = [1, 1]} : vector<32x8xf32> to vector<32x1xf32>
    %cst_220 = arith.constant dense<0.000000e+00> : vector<32xf32>
    %473 = vector.multi_reduction <add>, %470, %cst_220 [1] : vector<32x128xf32> to vector<32xf32>
    %474 = vector.shape_cast %473 : vector<32xf32> to vector<32x1xf32>
    %cst_221 = arith.constant 1.280000e+02 : f32
    %475 = vector.broadcast %cst_221 : f32 to vector<32x1xf32>
    %476 = arith.divf %474, %475 : vector<32x1xf32>
    %477 = vector.broadcast %476 : vector<32x1xf32> to vector<32x128xf32>
    %478 = arith.subf %470, %477 : vector<32x128xf32>
    %479 = arith.mulf %478, %478 : vector<32x128xf32>
    %cst_222 = arith.constant dense<0.000000e+00> : vector<32xf32>
    %480 = vector.multi_reduction <add>, %479, %cst_222 [1] : vector<32x128xf32> to vector<32xf32>
    %481 = vector.shape_cast %480 : vector<32xf32> to vector<32x1xf32>
    %cst_223 = arith.constant 1.280000e+02 : f32
    %482 = vector.broadcast %cst_223 : f32 to vector<32x1xf32>
    %483 = arith.divf %481, %482 : vector<32x1xf32>
    %484 = vector.broadcast %476 : vector<32x1xf32> to vector<32x128xf32>
    %485 = arith.subf %470, %484 : vector<32x128xf32>
    %cst_224 = arith.constant 9.99999974E-6 : f32
    %486 = vector.broadcast %cst_224 : f32 to vector<32x1xf32>
    %487 = arith.addf %483, %486 : vector<32x1xf32>
    %488 = math.rsqrt %487 : vector<32x1xf32>
    %489 = arith.mulf %471, %488 : vector<32x1xf32>
    %490 = vector.broadcast %489 : vector<32x1xf32> to vector<32x128xf32>
    %491 = arith.mulf %485, %490 : vector<32x128xf32>
    %492 = vector.broadcast %472 : vector<32x1xf32> to vector<32x128xf32>
    %493 = arith.addf %491, %492 : vector<32x128xf32>
    %494 = arith.addf %493, %417 : vector<32x128xf32>
    %cst_225 = arith.constant 0.000000e+00 : f32
    %495 = vector.broadcast %cst_225 : f32 to vector<32x128xf32>
    %496 = arith.maximumf %494, %495 : vector<32x128xf32>
    %c4_226 = arith.constant 4 : index
    %c0_227 = arith.constant 0 : index
    %c0_228 = arith.constant 0 : index
    %497 = vector.load %arg9[%c4_226, %c0_227, %c0_228] : memref<8x32x288xbf16, #tpu.memory_space<vmem>>, vector<1x32x288xbf16>
    %498 = vector.shape_cast %497 : vector<1x32x288xbf16> to vector<32x288xbf16>
    %c9_i32_229 = arith.constant 9 : i32
    %499 = tpu.dynamic_rotate %496 by %c9_i32_229 dim 1 : vector<32x128xf32>, i32 -> vector<32x128xf32>
    %c8_i32_230 = arith.constant 8 : i32
    %500 = tpu.dynamic_rotate %496 by %c8_i32_230 dim 1 : vector<32x128xf32>, i32 -> vector<32x128xf32>
    %c7_i32_231 = arith.constant 7 : i32
    %501 = tpu.dynamic_rotate %496 by %c7_i32_231 dim 1 : vector<32x128xf32>, i32 -> vector<32x128xf32>
    %c1_i32_232 = arith.constant 1 : i32
    %502 = tpu.dynamic_rotate %496 by %c1_i32_232 dim 1 : vector<32x128xf32>, i32 -> vector<32x128xf32>
    %c127_i32_233 = arith.constant 127 : i32
    %503 = tpu.dynamic_rotate %496 by %c127_i32_233 dim 1 : vector<32x128xf32>, i32 -> vector<32x128xf32>
    %c121_i32_234 = arith.constant 121 : i32
    %504 = tpu.dynamic_rotate %496 by %c121_i32_234 dim 1 : vector<32x128xf32>, i32 -> vector<32x128xf32>
    %c120_i32_235 = arith.constant 120 : i32
    %505 = tpu.dynamic_rotate %496 by %c120_i32_235 dim 1 : vector<32x128xf32>, i32 -> vector<32x128xf32>
    %c119_i32_236 = arith.constant 119 : i32
    %506 = tpu.dynamic_rotate %496 by %c119_i32_236 dim 1 : vector<32x128xf32>, i32 -> vector<32x128xf32>
    %507 = tpu.concatenate %499, %500, %501, %502, %496, %503, %504, %505, %506 in 0 : vector<32x128xf32>, vector<32x128xf32>, vector<32x128xf32>, vector<32x128xf32>, vector<32x128xf32>, vector<32x128xf32>, vector<32x128xf32>, vector<32x128xf32>, vector<32x128xf32> -> vector<288x128xf32>
    %508 = arith.truncf %507 : vector<288x128xf32> to vector<288x128xbf16>
    %509 = arith.mulf %508, %1 : vector<288x128xbf16>
    %cst_237 = arith.constant dense<0.000000e+00> : vector<32x128xf32>
    %510 = tpu.matmul %498, %509, %cst_237 {dimension_numbers = #tpu.dot_dimension_numbers<[1], [0], [0], [1], [0, 0, 1, 1], [], []>} : vector<32x288xbf16>, vector<288x128xbf16>, vector<32x128xf32> -> vector<32x128xf32>
    %511 = vector.extract_strided_slice %4 {offsets = [0, 4], sizes = [32, 1], strides = [1, 1]} : vector<32x8xf32> to vector<32x1xf32>
    %512 = vector.extract_strided_slice %5 {offsets = [0, 4], sizes = [32, 1], strides = [1, 1]} : vector<32x8xf32> to vector<32x1xf32>
    %cst_238 = arith.constant dense<0.000000e+00> : vector<32xf32>
    %513 = vector.multi_reduction <add>, %510, %cst_238 [1] : vector<32x128xf32> to vector<32xf32>
    %514 = vector.shape_cast %513 : vector<32xf32> to vector<32x1xf32>
    %cst_239 = arith.constant 1.280000e+02 : f32
    %515 = vector.broadcast %cst_239 : f32 to vector<32x1xf32>
    %516 = arith.divf %514, %515 : vector<32x1xf32>
    %517 = vector.broadcast %516 : vector<32x1xf32> to vector<32x128xf32>
    %518 = arith.subf %510, %517 : vector<32x128xf32>
    %519 = arith.mulf %518, %518 : vector<32x128xf32>
    %cst_240 = arith.constant dense<0.000000e+00> : vector<32xf32>
    %520 = vector.multi_reduction <add>, %519, %cst_240 [1] : vector<32x128xf32> to vector<32xf32>
    %521 = vector.shape_cast %520 : vector<32xf32> to vector<32x1xf32>
    %cst_241 = arith.constant 1.280000e+02 : f32
    %522 = vector.broadcast %cst_241 : f32 to vector<32x1xf32>
    %523 = arith.divf %521, %522 : vector<32x1xf32>
    %524 = vector.broadcast %516 : vector<32x1xf32> to vector<32x128xf32>
    %525 = arith.subf %510, %524 : vector<32x128xf32>
    %cst_242 = arith.constant 9.99999974E-6 : f32
    %526 = vector.broadcast %cst_242 : f32 to vector<32x1xf32>
    %527 = arith.addf %523, %526 : vector<32x1xf32>
    %528 = math.rsqrt %527 : vector<32x1xf32>
    %529 = arith.mulf %511, %528 : vector<32x1xf32>
    %530 = vector.broadcast %529 : vector<32x1xf32> to vector<32x128xf32>
    %531 = arith.mulf %525, %530 : vector<32x128xf32>
    %532 = vector.broadcast %512 : vector<32x1xf32> to vector<32x128xf32>
    %533 = arith.addf %531, %532 : vector<32x128xf32>
    %cst_243 = arith.constant 0.000000e+00 : f32
    %534 = vector.broadcast %cst_243 : f32 to vector<32x128xf32>
    %535 = arith.maximumf %533, %534 : vector<32x128xf32>
    %c5_244 = arith.constant 5 : index
    %c0_245 = arith.constant 0 : index
    %c0_246 = arith.constant 0 : index
    %536 = vector.load %arg9[%c5_244, %c0_245, %c0_246] : memref<8x32x288xbf16, #tpu.memory_space<vmem>>, vector<1x32x288xbf16>
    %537 = vector.shape_cast %536 : vector<1x32x288xbf16> to vector<32x288xbf16>
    %c9_i32_247 = arith.constant 9 : i32
    %538 = tpu.dynamic_rotate %535 by %c9_i32_247 dim 1 : vector<32x128xf32>, i32 -> vector<32x128xf32>
    %c8_i32_248 = arith.constant 8 : i32
    %539 = tpu.dynamic_rotate %535 by %c8_i32_248 dim 1 : vector<32x128xf32>, i32 -> vector<32x128xf32>
    %c7_i32_249 = arith.constant 7 : i32
    %540 = tpu.dynamic_rotate %535 by %c7_i32_249 dim 1 : vector<32x128xf32>, i32 -> vector<32x128xf32>
    %c1_i32_250 = arith.constant 1 : i32
    %541 = tpu.dynamic_rotate %535 by %c1_i32_250 dim 1 : vector<32x128xf32>, i32 -> vector<32x128xf32>
    %c127_i32_251 = arith.constant 127 : i32
    %542 = tpu.dynamic_rotate %535 by %c127_i32_251 dim 1 : vector<32x128xf32>, i32 -> vector<32x128xf32>
    %c121_i32_252 = arith.constant 121 : i32
    %543 = tpu.dynamic_rotate %535 by %c121_i32_252 dim 1 : vector<32x128xf32>, i32 -> vector<32x128xf32>
    %c120_i32_253 = arith.constant 120 : i32
    %544 = tpu.dynamic_rotate %535 by %c120_i32_253 dim 1 : vector<32x128xf32>, i32 -> vector<32x128xf32>
    %c119_i32_254 = arith.constant 119 : i32
    %545 = tpu.dynamic_rotate %535 by %c119_i32_254 dim 1 : vector<32x128xf32>, i32 -> vector<32x128xf32>
    %546 = tpu.concatenate %538, %539, %540, %541, %535, %542, %543, %544, %545 in 0 : vector<32x128xf32>, vector<32x128xf32>, vector<32x128xf32>, vector<32x128xf32>, vector<32x128xf32>, vector<32x128xf32>, vector<32x128xf32>, vector<32x128xf32>, vector<32x128xf32> -> vector<288x128xf32>
    %547 = arith.truncf %546 : vector<288x128xf32> to vector<288x128xbf16>
    %548 = arith.mulf %547, %1 : vector<288x128xbf16>
    %cst_255 = arith.constant dense<0.000000e+00> : vector<32x128xf32>
    %549 = tpu.matmul %537, %548, %cst_255 {dimension_numbers = #tpu.dot_dimension_numbers<[1], [0], [0], [1], [0, 0, 1, 1], [], []>} : vector<32x288xbf16>, vector<288x128xbf16>, vector<32x128xf32> -> vector<32x128xf32>
    %550 = vector.extract_strided_slice %4 {offsets = [0, 5], sizes = [32, 1], strides = [1, 1]} : vector<32x8xf32> to vector<32x1xf32>
    %551 = vector.extract_strided_slice %5 {offsets = [0, 5], sizes = [32, 1], strides = [1, 1]} : vector<32x8xf32> to vector<32x1xf32>
    %cst_256 = arith.constant dense<0.000000e+00> : vector<32xf32>
    %552 = vector.multi_reduction <add>, %549, %cst_256 [1] : vector<32x128xf32> to vector<32xf32>
    %553 = vector.shape_cast %552 : vector<32xf32> to vector<32x1xf32>
    %cst_257 = arith.constant 1.280000e+02 : f32
    %554 = vector.broadcast %cst_257 : f32 to vector<32x1xf32>
    %555 = arith.divf %553, %554 : vector<32x1xf32>
    %556 = vector.broadcast %555 : vector<32x1xf32> to vector<32x128xf32>
    %557 = arith.subf %549, %556 : vector<32x128xf32>
    %558 = arith.mulf %557, %557 : vector<32x128xf32>
    %cst_258 = arith.constant dense<0.000000e+00> : vector<32xf32>
    %559 = vector.multi_reduction <add>, %558, %cst_258 [1] : vector<32x128xf32> to vector<32xf32>
    %560 = vector.shape_cast %559 : vector<32xf32> to vector<32x1xf32>
    %cst_259 = arith.constant 1.280000e+02 : f32
    %561 = vector.broadcast %cst_259 : f32 to vector<32x1xf32>
    %562 = arith.divf %560, %561 : vector<32x1xf32>
    %563 = vector.broadcast %555 : vector<32x1xf32> to vector<32x128xf32>
    %564 = arith.subf %549, %563 : vector<32x128xf32>
    %cst_260 = arith.constant 9.99999974E-6 : f32
    %565 = vector.broadcast %cst_260 : f32 to vector<32x1xf32>
    %566 = arith.addf %562, %565 : vector<32x1xf32>
    %567 = math.rsqrt %566 : vector<32x1xf32>
    %568 = arith.mulf %550, %567 : vector<32x1xf32>
    %569 = vector.broadcast %568 : vector<32x1xf32> to vector<32x128xf32>
    %570 = arith.mulf %564, %569 : vector<32x128xf32>
    %571 = vector.broadcast %551 : vector<32x1xf32> to vector<32x128xf32>
    %572 = arith.addf %570, %571 : vector<32x128xf32>
    %573 = arith.addf %572, %496 : vector<32x128xf32>
    %cst_261 = arith.constant 0.000000e+00 : f32
    %574 = vector.broadcast %cst_261 : f32 to vector<32x128xf32>
    %575 = arith.maximumf %573, %574 : vector<32x128xf32>
    %c6_262 = arith.constant 6 : index
    %c0_263 = arith.constant 0 : index
    %c0_264 = arith.constant 0 : index
    %576 = vector.load %arg9[%c6_262, %c0_263, %c0_264] : memref<8x32x288xbf16, #tpu.memory_space<vmem>>, vector<1x32x288xbf16>
    %577 = vector.shape_cast %576 : vector<1x32x288xbf16> to vector<32x288xbf16>
    %c9_i32_265 = arith.constant 9 : i32
    %578 = tpu.dynamic_rotate %575 by %c9_i32_265 dim 1 : vector<32x128xf32>, i32 -> vector<32x128xf32>
    %c8_i32_266 = arith.constant 8 : i32
    %579 = tpu.dynamic_rotate %575 by %c8_i32_266 dim 1 : vector<32x128xf32>, i32 -> vector<32x128xf32>
    %c7_i32_267 = arith.constant 7 : i32
    %580 = tpu.dynamic_rotate %575 by %c7_i32_267 dim 1 : vector<32x128xf32>, i32 -> vector<32x128xf32>
    %c1_i32_268 = arith.constant 1 : i32
    %581 = tpu.dynamic_rotate %575 by %c1_i32_268 dim 1 : vector<32x128xf32>, i32 -> vector<32x128xf32>
    %c127_i32_269 = arith.constant 127 : i32
    %582 = tpu.dynamic_rotate %575 by %c127_i32_269 dim 1 : vector<32x128xf32>, i32 -> vector<32x128xf32>
    %c121_i32_270 = arith.constant 121 : i32
    %583 = tpu.dynamic_rotate %575 by %c121_i32_270 dim 1 : vector<32x128xf32>, i32 -> vector<32x128xf32>
    %c120_i32_271 = arith.constant 120 : i32
    %584 = tpu.dynamic_rotate %575 by %c120_i32_271 dim 1 : vector<32x128xf32>, i32 -> vector<32x128xf32>
    %c119_i32_272 = arith.constant 119 : i32
    %585 = tpu.dynamic_rotate %575 by %c119_i32_272 dim 1 : vector<32x128xf32>, i32 -> vector<32x128xf32>
    %586 = tpu.concatenate %578, %579, %580, %581, %575, %582, %583, %584, %585 in 0 : vector<32x128xf32>, vector<32x128xf32>, vector<32x128xf32>, vector<32x128xf32>, vector<32x128xf32>, vector<32x128xf32>, vector<32x128xf32>, vector<32x128xf32>, vector<32x128xf32> -> vector<288x128xf32>
    %587 = arith.truncf %586 : vector<288x128xf32> to vector<288x128xbf16>
    %588 = arith.mulf %587, %1 : vector<288x128xbf16>
    %cst_273 = arith.constant dense<0.000000e+00> : vector<32x128xf32>
    %589 = tpu.matmul %577, %588, %cst_273 {dimension_numbers = #tpu.dot_dimension_numbers<[1], [0], [0], [1], [0, 0, 1, 1], [], []>} : vector<32x288xbf16>, vector<288x128xbf16>, vector<32x128xf32> -> vector<32x128xf32>
    %590 = vector.extract_strided_slice %4 {offsets = [0, 6], sizes = [32, 1], strides = [1, 1]} : vector<32x8xf32> to vector<32x1xf32>
    %591 = vector.extract_strided_slice %5 {offsets = [0, 6], sizes = [32, 1], strides = [1, 1]} : vector<32x8xf32> to vector<32x1xf32>
    %cst_274 = arith.constant dense<0.000000e+00> : vector<32xf32>
    %592 = vector.multi_reduction <add>, %589, %cst_274 [1] : vector<32x128xf32> to vector<32xf32>
    %593 = vector.shape_cast %592 : vector<32xf32> to vector<32x1xf32>
    %cst_275 = arith.constant 1.280000e+02 : f32
    %594 = vector.broadcast %cst_275 : f32 to vector<32x1xf32>
    %595 = arith.divf %593, %594 : vector<32x1xf32>
    %596 = vector.broadcast %595 : vector<32x1xf32> to vector<32x128xf32>
    %597 = arith.subf %589, %596 : vector<32x128xf32>
    %598 = arith.mulf %597, %597 : vector<32x128xf32>
    %cst_276 = arith.constant dense<0.000000e+00> : vector<32xf32>
    %599 = vector.multi_reduction <add>, %598, %cst_276 [1] : vector<32x128xf32> to vector<32xf32>
    %600 = vector.shape_cast %599 : vector<32xf32> to vector<32x1xf32>
    %cst_277 = arith.constant 1.280000e+02 : f32
    %601 = vector.broadcast %cst_277 : f32 to vector<32x1xf32>
    %602 = arith.divf %600, %601 : vector<32x1xf32>
    %603 = vector.broadcast %595 : vector<32x1xf32> to vector<32x128xf32>
    %604 = arith.subf %589, %603 : vector<32x128xf32>
    %cst_278 = arith.constant 9.99999974E-6 : f32
    %605 = vector.broadcast %cst_278 : f32 to vector<32x1xf32>
    %606 = arith.addf %602, %605 : vector<32x1xf32>
    %607 = math.rsqrt %606 : vector<32x1xf32>
    %608 = arith.mulf %590, %607 : vector<32x1xf32>
    %609 = vector.broadcast %608 : vector<32x1xf32> to vector<32x128xf32>
    %610 = arith.mulf %604, %609 : vector<32x128xf32>
    %611 = vector.broadcast %591 : vector<32x1xf32> to vector<32x128xf32>
    %612 = arith.addf %610, %611 : vector<32x128xf32>
    %cst_279 = arith.constant 0.000000e+00 : f32
    %613 = vector.broadcast %cst_279 : f32 to vector<32x128xf32>
    %614 = arith.maximumf %612, %613 : vector<32x128xf32>
    %c7_280 = arith.constant 7 : index
    %c0_281 = arith.constant 0 : index
    %c0_282 = arith.constant 0 : index
    %615 = vector.load %arg9[%c7_280, %c0_281, %c0_282] : memref<8x32x288xbf16, #tpu.memory_space<vmem>>, vector<1x32x288xbf16>
    %616 = vector.shape_cast %615 : vector<1x32x288xbf16> to vector<32x288xbf16>
    %c9_i32_283 = arith.constant 9 : i32
    %617 = tpu.dynamic_rotate %614 by %c9_i32_283 dim 1 : vector<32x128xf32>, i32 -> vector<32x128xf32>
    %c8_i32_284 = arith.constant 8 : i32
    %618 = tpu.dynamic_rotate %614 by %c8_i32_284 dim 1 : vector<32x128xf32>, i32 -> vector<32x128xf32>
    %c7_i32_285 = arith.constant 7 : i32
    %619 = tpu.dynamic_rotate %614 by %c7_i32_285 dim 1 : vector<32x128xf32>, i32 -> vector<32x128xf32>
    %c1_i32_286 = arith.constant 1 : i32
    %620 = tpu.dynamic_rotate %614 by %c1_i32_286 dim 1 : vector<32x128xf32>, i32 -> vector<32x128xf32>
    %c127_i32_287 = arith.constant 127 : i32
    %621 = tpu.dynamic_rotate %614 by %c127_i32_287 dim 1 : vector<32x128xf32>, i32 -> vector<32x128xf32>
    %c121_i32_288 = arith.constant 121 : i32
    %622 = tpu.dynamic_rotate %614 by %c121_i32_288 dim 1 : vector<32x128xf32>, i32 -> vector<32x128xf32>
    %c120_i32_289 = arith.constant 120 : i32
    %623 = tpu.dynamic_rotate %614 by %c120_i32_289 dim 1 : vector<32x128xf32>, i32 -> vector<32x128xf32>
    %c119_i32_290 = arith.constant 119 : i32
    %624 = tpu.dynamic_rotate %614 by %c119_i32_290 dim 1 : vector<32x128xf32>, i32 -> vector<32x128xf32>
    %625 = tpu.concatenate %617, %618, %619, %620, %614, %621, %622, %623, %624 in 0 : vector<32x128xf32>, vector<32x128xf32>, vector<32x128xf32>, vector<32x128xf32>, vector<32x128xf32>, vector<32x128xf32>, vector<32x128xf32>, vector<32x128xf32>, vector<32x128xf32> -> vector<288x128xf32>
    %626 = arith.truncf %625 : vector<288x128xf32> to vector<288x128xbf16>
    %627 = arith.mulf %626, %1 : vector<288x128xbf16>
    %cst_291 = arith.constant dense<0.000000e+00> : vector<32x128xf32>
    %628 = tpu.matmul %616, %627, %cst_291 {dimension_numbers = #tpu.dot_dimension_numbers<[1], [0], [0], [1], [0, 0, 1, 1], [], []>} : vector<32x288xbf16>, vector<288x128xbf16>, vector<32x128xf32> -> vector<32x128xf32>
    %629 = vector.extract_strided_slice %4 {offsets = [0, 7], sizes = [32, 1], strides = [1, 1]} : vector<32x8xf32> to vector<32x1xf32>
    %630 = vector.extract_strided_slice %5 {offsets = [0, 7], sizes = [32, 1], strides = [1, 1]} : vector<32x8xf32> to vector<32x1xf32>
    %cst_292 = arith.constant dense<0.000000e+00> : vector<32xf32>
    %631 = vector.multi_reduction <add>, %628, %cst_292 [1] : vector<32x128xf32> to vector<32xf32>
    %632 = vector.shape_cast %631 : vector<32xf32> to vector<32x1xf32>
    %cst_293 = arith.constant 1.280000e+02 : f32
    %633 = vector.broadcast %cst_293 : f32 to vector<32x1xf32>
    %634 = arith.divf %632, %633 : vector<32x1xf32>
    %635 = vector.broadcast %634 : vector<32x1xf32> to vector<32x128xf32>
    %636 = arith.subf %628, %635 : vector<32x128xf32>
    %637 = arith.mulf %636, %636 : vector<32x128xf32>
    %cst_294 = arith.constant dense<0.000000e+00> : vector<32xf32>
    %638 = vector.multi_reduction <add>, %637, %cst_294 [1] : vector<32x128xf32> to vector<32xf32>
    %639 = vector.shape_cast %638 : vector<32xf32> to vector<32x1xf32>
    %cst_295 = arith.constant 1.280000e+02 : f32
    %640 = vector.broadcast %cst_295 : f32 to vector<32x1xf32>
    %641 = arith.divf %639, %640 : vector<32x1xf32>
    %642 = vector.broadcast %634 : vector<32x1xf32> to vector<32x128xf32>
    %643 = arith.subf %628, %642 : vector<32x128xf32>
    %cst_296 = arith.constant 9.99999974E-6 : f32
    %644 = vector.broadcast %cst_296 : f32 to vector<32x1xf32>
    %645 = arith.addf %641, %644 : vector<32x1xf32>
    %646 = math.rsqrt %645 : vector<32x1xf32>
    %647 = arith.mulf %629, %646 : vector<32x1xf32>
    %648 = vector.broadcast %647 : vector<32x1xf32> to vector<32x128xf32>
    %649 = arith.mulf %643, %648 : vector<32x128xf32>
    %650 = vector.broadcast %630 : vector<32x1xf32> to vector<32x128xf32>
    %651 = arith.addf %649, %650 : vector<32x128xf32>
    %652 = arith.addf %651, %575 : vector<32x128xf32>
    %cst_297 = arith.constant 0.000000e+00 : f32
    %653 = vector.broadcast %cst_297 : f32 to vector<32x128xf32>
    %654 = arith.maximumf %652, %653 : vector<32x128xf32>
    %c0_298 = arith.constant 0 : index
    %c0_299 = arith.constant 0 : index
    %655 = vector.load %arg12[%c0_298, %c0_299] : memref<8x32xbf16, #tpu.memory_space<vmem>>, vector<8x32xbf16>
    %656 = arith.truncf %654 : vector<32x128xf32> to vector<32x128xbf16>
    %cst_300 = arith.constant dense<0.000000e+00> : vector<8x128xf32>
    %657 = tpu.matmul %655, %656, %cst_300 {dimension_numbers = #tpu.dot_dimension_numbers<[1], [0], [0], [1], [0, 0, 1, 1], [], []>} : vector<8x32xbf16>, vector<32x128xbf16>, vector<8x128xf32> -> vector<8x128xf32>
    %c0_301 = arith.constant 0 : index
    %c0_302 = arith.constant 0 : index
    %658 = vector.load %arg13[%c0_301, %c0_302] : memref<8x1xf32, #tpu.memory_space<vmem>>, vector<8x1xf32>
    %659 = vector.broadcast %658 : vector<8x1xf32> to vector<8x128xf32>
    %660 = arith.addf %657, %659 : vector<8x128xf32>
    %c0_303 = arith.constant 0 : index
    %c0_304 = arith.constant 0 : index
    %661 = vector.load %arg14[%c0_303, %c0_304] : memref<8x128xf32, #tpu.memory_space<vmem>>, vector<8x128xf32>
    tpu.vector_store %arg14[%c0_303, %c0_304], %660 {strides = array<i32>} : memref<8x128xf32, #tpu.memory_space<vmem>>, vector<8x128xf32>,
    return
  }
  func.func @transform_0(%arg0: i32) -> (i32, i32) {
    %c0_i32 = arith.constant 0 : i32
    %c0_i32_0 = arith.constant 0 : i32
    %c0_i32_1 = arith.constant 0 : i32
    return %c0_i32, %c0_i32_0 : i32, i32
  }
  func.func @transform_1(%arg0: i32) -> (i32, i32) {
    %c0_i32 = arith.constant 0 : i32
    %c0_i32_0 = arith.constant 0 : i32
    %c0_i32_1 = arith.constant 0 : i32
    return %c0_i32, %c0_i32_0 : i32, i32
  }
  func.func @transform_2(%arg0: i32) -> (i32, i32) {
    %c0_i32 = arith.constant 0 : i32
    %c0_i32_0 = arith.constant 0 : i32
    %c0_i32_1 = arith.constant 0 : i32
    return %c0_i32, %c0_i32_0 : i32, i32
  }
  func.func @transform_3(%arg0: i32) -> (i32, i32, i32) {
    %c0_i32 = arith.constant 0 : i32
    %c0_i32_0 = arith.constant 0 : i32
    %c0_i32_1 = arith.constant 0 : i32
    %c0_i32_2 = arith.constant 0 : i32
    return %c0_i32, %c0_i32_0, %c0_i32_1 : i32, i32, i32
  }
  func.func @transform_4(%arg0: i32) -> (i32, i32) {
    %c0_i32 = arith.constant 0 : i32
    %c0_i32_0 = arith.constant 0 : i32
    %c0_i32_1 = arith.constant 0 : i32
    return %c0_i32, %c0_i32_0 : i32, i32
  }
  func.func @transform_5(%arg0: i32) -> (i32, i32) {
    %c0_i32 = arith.constant 0 : i32
    %c0_i32_0 = arith.constant 0 : i32
    %c0_i32_1 = arith.constant 0 : i32
    return %c0_i32, %c0_i32_0 : i32, i32
  }
  func.func @transform_6(%arg0: i32) -> (i32, i32) {
    %c0_i32 = arith.constant 0 : i32
    %c0_i32_0 = arith.constant 0 : i32
    %c0_i32_1 = arith.constant 0 : i32
    return %c0_i32, %c0_i32_0 : i32, i32
  }
  func.func @transform_7(%arg0: i32) -> (i32, i32) {
    %c0_i32 = arith.constant 0 : i32
    %c0_i32_0 = arith.constant 0 : i32
    %c0_i32_1 = arith.constant 0 : i32
    return %c0_i32, %c0_i32_0 : i32, i32
  }
  func.func @transform_8(%arg0: i32) -> (i32, i32, i32) {
    %c0_i32 = arith.constant 0 : i32
    %c0_i32_0 = arith.constant 0 : i32
    %c0_i32_1 = arith.constant 0 : i32
    %c0_i32_2 = arith.constant 0 : i32
    return %c0_i32, %c0_i32_0, %c0_i32_1 : i32, i32, i32
  }
  func.func @transform_9(%arg0: i32) -> (i32, i32) {
    %c0_i32 = arith.constant 0 : i32
    %c0_i32_0 = arith.constant 0 : i32
    %c0_i32_1 = arith.constant 0 : i32
    return %c0_i32, %c0_i32_0 : i32, i32
  }
  func.func @transform_10(%arg0: i32) -> (i32, i32) {
    %c0_i32 = arith.constant 0 : i32
    %c0_i32_0 = arith.constant 0 : i32
    %c0_i32_1 = arith.constant 0 : i32
    return %c0_i32, %c0_i32_0 : i32, i32
  }
  func.func @transform_11(%arg0: i32) -> (i32, i32) {
    %c0_i32 = arith.constant 0 : i32
    %c0_i32_0 = arith.constant 0 : i32
    %c0_i32_1 = arith.constant 0 : i32
    return %c0_i32, %c0_i32_0 : i32, i32
  }
  func.func @transform_12(%arg0: i32) -> (i32, i32) {
    %c0_i32 = arith.constant 0 : i32
    %c0_i32_0 = arith.constant 0 : i32
    %c0_i32_1 = arith.constant 0 : i32
    return %c0_i32, %c0_i32_0 : i32, i32
  }
  func.func @transform_13(%arg0: i32) -> (i32, i32) {
    %c0_i32 = arith.constant 0 : i32
    %c0_i32_0 = arith.constant 0 : i32
    %c0_i32_1 = arith.constant 0 : i32
    return %c0_i32, %c0_i32_0 : i32, i32
  }
}

</mosaic_0001>

<llo_original>
// kernel: hrnet_forward.1
$region0: #{hrnet_forward.1}
  #allocation0 [shape = 'u32[]', space=smem, size = 0x4, offset = 0x4, fixed_abs, tag = 'smem constant byte address 0x4 - core index']
  #allocation1 [shape = 'u32[144,128]{1,0:T(1,128)}', space=vmem, size = 0x12000, scoped, tag = 'internal scratch']
  %s0 = inlined_call_operand.vmem [shape: f32[64,128], index: 0, kind: input, shape index: {}]
  %s1 = inlined_call_operand.hbm [shape: bf16[576,128], index: 1, kind: input, shape index: {}]
  %s2 = inlined_call_operand.hbm [shape: bf16[288,128], index: 2, kind: input, shape index: {}]
  %s3 = inlined_call_operand.hbm [shape: bf16[8,64,576], index: 3, kind: input, shape index: {}]
  %s4 = inlined_call_operand.vmem [shape: f32[64,8], index: 4, kind: input, shape index: {}]
  %s5 = inlined_call_operand.vmem [shape: f32[64,8], index: 5, kind: input, shape index: {}]
  %s6 = inlined_call_operand.vmem [shape: bf16[32,576], index: 6, kind: input, shape index: {}]
  %s7 = inlined_call_operand.vmem [shape: f32[32,1], index: 7, kind: input, shape index: {}]
  %s8 = inlined_call_operand.vmem [shape: bf16[8,32,288], index: 8, kind: input, shape index: {}]
  %s9 = inlined_call_operand.vmem [shape: f32[32,8], index: 9, kind: input, shape index: {}]
  %s10 = inlined_call_operand.vmem [shape: f32[32,8], index: 10, kind: input, shape index: {}]
  %s11 = inlined_call_operand.vmem [shape: bf16[8,32], index: 11, kind: input, shape index: {}]
  %s12 = inlined_call_operand.vmem [shape: f32[8,1], index: 12, kind: input, shape index: {}]
  %s13 = inlined_call_operand.vmem [shape: f32[8,128], index: 13, kind: output, shape index: {}]
  %s14 = sld [smem:[#allocation0]]
  $region74: #{hrnet_forward.1} parent=0
    _
  %s16 = ssub.s32 1, %s14
  %s17 = scalar_select 0, %s16, %s14
  $region1: #{hrnet_forward.1} parent=0
    #allocation2 [shape = 'u8[147456]{0}', space=vmem, size = 0x24000, scoped, tag = 'input window, operand 1, single buffered']
    #allocation3 [shape = 's32[1]{0}', space=sflag, size = 0x4, scoped, tag = 'scoped memory for hrnet_forward.1']
    #allocation4 [shape = 'u8[73728]{0}', space=vmem, size = 0x12000, scoped, tag = 'input window, operand 2, single buffered']
    #allocation5 [shape = 's32[1]{0}', space=sflag, size = 0x4, scoped, tag = 'scoped memory for hrnet_forward.1']
    #allocation6 [shape = 'u8[655360]{0}', space=vmem, size = 0xa0000, scoped, tag = 'input window, operand 3, single buffered']
    %18 = vsyncpa [#allocation3], 0
    %19 = vsyncpa [#allocation5], 0
    // Predicated region
    $region2: #{hrnet_forward.1} parent=1 // pred_check
      _
    $region3: #{hrnet_forward.1} parent=1 // pred_check_branch
      %21 = sbr.rel (0) target = $region5
    $region4: #{hrnet_forward.1} parent=1 // pred_region
      _
    $region5: #{hrnet_forward.1} parent=1 // pred_fallthru
      _
    // Predicated region
    $region6: #{hrnet_forward.1} parent=1 // pred_check
      _
    $region7: #{hrnet_forward.1} parent=1 // pred_check_branch
      %23 = sbr.rel (0) target = $region9
    $region8: #{hrnet_forward.1} parent=1 // pred_region
      %s25 = ssub.s32 4608, 4608
      %26 = vsyncadd [#allocation3], %s25
      %s27 = sshll.u32 [#allocation2], 4
      %s28 = int_to_ptr.vmem [resolvable:$true] %s27
      %33 = dma.hbm_to_vmem [thread:$0]  %s1, 4608, %s28, [#allocation3], 64, 64, 4
    $region9: #{hrnet_forward.1} parent=1 // pred_fallthru
      _
    // Predicated region
    $region10: #{hrnet_forward.1} parent=1 // pred_check
      _
    $region11: #{hrnet_forward.1} parent=1 // pred_check_branch
      %35 = sbr.rel (0) target = $region13
    $region12: #{hrnet_forward.1} parent=1 // pred_region
      %s37 = ssub.s32 2304, 2304
      %38 = vsyncadd [#allocation5], %s37
      %s39 = sshll.u32 [#allocation4], 4
      %s40 = int_to_ptr.vmem [resolvable:$true] %s39
      %45 = dma.hbm_to_vmem [thread:$0]  %s2, 2304, %s40, [#allocation5], 64, 64, 4
    $region13: #{hrnet_forward.1} parent=1 // pred_fallthru
      _
    // Predicated region
    $region14: #{hrnet_forward.1} parent=1 // pred_check
      _
    $region15: #{hrnet_forward.1} parent=1 // pred_check_branch
      %47 = sbr.rel (0) target = $region17
    $region16: #{hrnet_forward.1} parent=1 // pred_region
      %s49 = ssub.s32 20480, 20480
      %50 = vsyncadd [#allocation5], %s49
      %s51 = sshll.u32 [#allocation6], 4
      %s52 = int_to_ptr.vmem [resolvable:$true] %s51
      %57 = dma.hbm_to_vmem [thread:$0]  %s3, 20480, %s52, [#allocation5], 320, 320, 20
    $region17: #{hrnet_forward.1} parent=1 // pred_fallthru
      _
    // Predicated region
    $region18: #{hrnet_forward.1} parent=1 // pred_check
      _
    $region19: #{hrnet_forward.1} parent=1 // pred_check_branch
      %59 = sbr.rel (0) target = $region21
    $region20: #{hrnet_forward.1} parent=1 // pred_region
      _
    $region21: #{hrnet_forward.1} parent=1 // pred_fallthru
      _
    // Predicated region
    $region22: #{hrnet_forward.1} parent=1 // pred_check
      _
    $region23: #{hrnet_forward.1} parent=1 // pred_check_branch
      %61 = sbr.rel (0) target = $region25
    $region24: #{hrnet_forward.1} parent=1 // pred_region
      _
    $region25: #{hrnet_forward.1} parent=1 // pred_fallthru
      _
    // Predicated region
    $region26: #{hrnet_forward.1} parent=1 // pred_check
      _
    $region27: #{hrnet_forward.1} parent=1 // pred_check_branch
      %63 = sbr.rel (0) target = $region29
    $region28: #{hrnet_forward.1} parent=1 // pred_region
      _
    $region29: #{hrnet_forward.1} parent=1 // pred_fallthru
      _
    // Predicated region
    $region30: #{hrnet_forward.1} parent=1 // pred_check
      _
    $region31: #{hrnet_forward.1} parent=1 // pred_check_branch
      %65 = sbr.rel (0) target = $region33
    $region32: #{hrnet_forward.1} parent=1 // pred_region
      _
    $region33: #{hrnet_forward.1} parent=1 // pred_fallthru
      _
    // Predicated region
    $region34: #{hrnet_forward.1} parent=1 // pred_check
      _
    $region35: #{hrnet_forward.1} parent=1 // pred_check_branch
      %67 = sbr.rel (0) target = $region37
    $region36: #{hrnet_forward.1} parent=1 // pred_region
      _
    $region37: #{hrnet_forward.1} parent=1 // pred_fallthru
      _
    // Predicated region
    $region38: #{hrnet_forward.1} parent=1 // pred_check
      _
    $region39: #{hrnet_forward.1} parent=1 // pred_check_branch
      %69 = sbr.rel (0) target = $region41
    $region40: #{hrnet_forward.1} parent=1 // pred_region
      _
    $region41: #{hrnet_forward.1} parent=1 // pred_fallthru
      _
    // Predicated region
    $region42: #{hrnet_forward.1} parent=1 // pred_check
      _
    $region43: #{hrnet_forward.1} parent=1 // pred_check_branch
      %71 = sbr.rel (0) target = $region45
    $region44: #{hrnet_forward.1} parent=1 // pred_region
      _
    $region45: #{hrnet_forward.1} parent=1 // pred_fallthru
      _
    // Predicated region
    $region46: #{hrnet_forward.1} parent=1 // pred_check
      _
    $region47: #{hrnet_forward.1} parent=1 // pred_check_branch
      %73 = sbr.rel (0) target = $region49
    $region48: #{hrnet_forward.1} parent=1 // pred_region
      _
    $region49: #{hrnet_forward.1} parent=1 // pred_fallthru
      _
    // Predicated region
    $region50: #{hrnet_forward.1} parent=1 // pred_check
      _
    $region51: #{hrnet_forward.1} parent=1 // pred_check_branch
      %75 = sbr.rel (0) target = $region53
    $region52: #{hrnet_forward.1} parent=1 // pred_region
      _
    $region53: #{hrnet_forward.1} parent=1 // pred_fallthru
      _
    // Predicated region
    $region54: #{hrnet_forward.1} parent=1 // pred_check
      _
    $region55: #{hrnet_forward.1} parent=1 // pred_check_branch
      %77 = sbr.rel (0) target = $region57
    $region56: #{hrnet_forward.1} parent=1 // pred_region
      %78 = dma.done [#allocation3], 4608
    $region57: #{hrnet_forward.1} parent=1 // pred_fallthru
      _
    // Predicated region
    $region58: #{hrnet_forward.1} parent=1 // pred_check
      _
    $region59: #{hrnet_forward.1} parent=1 // pred_check_branch
      %80 = sbr.rel (0) target = $region61
    $region60: #{hrnet_forward.1} parent=1 // pred_region
      %81 = dma.done [#allocation5], 2304
    $region61: #{hrnet_forward.1} parent=1 // pred_fallthru
      _
    // Predicated region
    $region62: #{hrnet_forward.1} parent=1 // pred_check
      _
    $region63: #{hrnet_forward.1} parent=1 // pred_check_branch
      %83 = sbr.rel (0) target = $region65
    $region64: #{hrnet_forward.1} parent=1 // pred_region
      %84 = dma.done [#allocation5], 20480
    $region65: #{hrnet_forward.1} parent=1 // pred_fallthru
      _
    %v86 = vld [vmem:[#allocation2] sm:$0xf]
    %v87 = vld [vmem:[#allocation2 + $0x4] sm:$0xf]
    %v88 = vld [vmem:[#allocation2 + $0x8] sm:$0xf]
    %v89 = vld [vmem:[#allocation2 + $0xc] sm:$0xf]
    %v90 = vld [vmem:[#allocation2 + $0x10] sm:$0xf]
    %v91 = vld [vmem:[#allocation2 + $0x14] sm:$0xf]
    %v92 = vld [vmem:[#allocation2 + $0x18] sm:$0xf]
    %v93 = vld [vmem:[#allocation2 + $0x1c] sm:$0xf]
    %v94 = vld [vmem:[#allocation2 + $0x20] sm:$0xf]
    %v95 = vld [vmem:[#allocation2 + $0x24] sm:$0xf]
    %v96 = vld [vmem:[#allocation2 + $0x28] sm:$0xf]
    %v97 = vld [vmem:[#allocation2 + $0x2c] sm:$0xf]
    %v98 = vld [vmem:[#allocation2 + $0x30] sm:$0xf]
    %v99 = vld [vmem:[#allocation2 + $0x34] sm:$0xf]
    %v100 = vld [vmem:[#allocation2 + $0x38] sm:$0xf]
    %v101 = vld [vmem:[#allocation2 + $0x3c] sm:$0xf]
    %v102 = vld [vmem:[#allocation2 + $0x40] sm:$0xf]
    %v103 = vld [vmem:[#allocation2 + $0x44] sm:$0xf]
    %v104 = vld [vmem:[#allocation2 + $0x48] sm:$0xf]
    %v105 = vld [vmem:[#allocation2 + $0x4c] sm:$0xf]
    %v106 = vld [vmem:[#allocation2 + $0x50] sm:$0xf]
    %v107 = vld [vmem:[#allocation2 + $0x54] sm:$0xf]
    %v108 = vld [vmem:[#allocation2 + $0x58] sm:$0xf]
    %v109 = vld [vmem:[#allocation2 + $0x5c] sm:$0xf]
    %v110 = vld [vmem:[#allocation2 + $0x60] sm:$0xf]
    %v111 = vld [vmem:[#allocation2 + $0x64] sm:$0xf]
    %v112 = vld [vmem:[#allocation2 + $0x68] sm:$0xf]
    %v113 = vld [vmem:[#allocation2 + $0x6c] sm:$0xf]
    %v114 = vld [vmem:[#allocation2 + $0x70] sm:$0xf]
    %v115 = vld [vmem:[#allocation2 + $0x74] sm:$0xf]
    %v116 = vld [vmem:[#allocation2 + $0x78] sm:$0xf]
    %v117 = vld [vmem:[#allocation2 + $0x7c] sm:$0xf]
    %v118 = vld [vmem:[#allocation2 + $0x80] sm:$0xf]
    %v119 = vld [vmem:[#allocation2 + $0x84] sm:$0xf]
    %v120 = vld [vmem:[#allocation2 + $0x88] sm:$0xf]
    %v121 = vld [vmem:[#allocation2 + $0x8c] sm:$0xf]
    %v122 = vld [vmem:[#allocation2 + $0x90] sm:$0xf]
    %v123 = vld [vmem:[#allocation2 + $0x94] sm:$0xf]
    %v124 = vld [vmem:[#allocation2 + $0x98] sm:$0xf]
    %v125 = vld [vmem:[#allocation2 + $0x9c] sm:$0xf]
    %v126 = vld [vmem:[#allocation2 + $0xa0] sm:$0xf]
    %v127 = vld [vmem:[#allocation2 + $0xa4] sm:$0xf]
    %v128 = vld [vmem:[#allocation2 + $0xa8] sm:$0xf]
    %v129 = vld [vmem:[#allocation2 + $0xac] sm:$0xf]
    %v130 = vld [vmem:[#allocation2 + $0xb0] sm:$0xf]
    %v131 = vld [vmem:[#allocation2 + $0xb4] sm:$0xf]
    %v132 = vld [vmem:[#allocation2 + $0xb8] sm:$0xf]
    %v133 = vld [vmem:[#allocation2 + $0xbc] sm:$0xf]
    %v134 = vld [vmem:[#allocation2 + $0xc0] sm:$0xf]
    %v135 = vld [vmem:[#allocation2 + $0xc4] sm:$0xf]
    %v136 = vld [vmem:[#allocation2 + $0xc8] sm:$0xf]
    %v137 = vld [vmem:[#allocation2 + $0xcc] sm:$0xf]
    %v138 = vld [vmem:[#allocation2 + $0xd0] sm:$0xf]
    %v139 = vld [vmem:[#allocation2 + $0xd4] sm:$0xf]
    %v140 = vld [vmem:[#allocation2 + $0xd8] sm:$0xf]
    %v141 = vld [vmem:[#allocation2 + $0xdc] sm:$0xf]
    %v142 = vld [vmem:[#allocation2 + $0xe0] sm:$0xf]
    %v143 = vld [vmem:[#allocation2 + $0xe4] sm:$0xf]
    %v144 = vld [vmem:[#allocation2 + $0xe8] sm:$0xf]
    %v145 = vld [vmem:[#allocation2 + $0xec] sm:$0xf]
    %v146 = vld [vmem:[#allocation2 + $0xf0] sm:$0xf]
    %v147 = vld [vmem:[#allocation2 + $0xf4] sm:$0xf]
    %v148 = vld [vmem:[#allocation2 + $0xf8] sm:$0xf]
    %v149 = vld [vmem:[#allocation2 + $0xfc] sm:$0xf]
    %v150 = vld [vmem:[#allocation2 + $0x100] sm:$0xf]
    %v151 = vld [vmem:[#allocation2 + $0x104] sm:$0xf]
    %v152 = vld [vmem:[#allocation2 + $0x108] sm:$0xf]
    %v153 = vld [vmem:[#allocation2 + $0x10c] sm:$0xf]
    %v154 = vld [vmem:[#allocation2 + $0x110] sm:$0xf]
    %v155 = vld [vmem:[#allocation2 + $0x114] sm:$0xf]
    %v156 = vld [vmem:[#allocation2 + $0x118] sm:$0xf]
    %v157 = vld [vmem:[#allocation2 + $0x11c] sm:$0xf]
    %v158 = vld [vmem:[#allocation4] sm:$0xf]
    %v159 = vld [vmem:[#allocation4 + $0x4] sm:$0xf]
    %v160 = vld [vmem:[#allocation4 + $0x8] sm:$0xf]
    %v161 = vld [vmem:[#allocation4 + $0xc] sm:$0xf]
    %v162 = vld [vmem:[#allocation4 + $0x10] sm:$0xf]
    %v163 = vld [vmem:[#allocation4 + $0x14] sm:$0xf]
    %v164 = vld [vmem:[#allocation4 + $0x18] sm:$0xf]
    %v165 = vld [vmem:[#allocation4 + $0x1c] sm:$0xf]
    %v166 = vld [vmem:[#allocation4 + $0x20] sm:$0xf]
    %v167 = vld [vmem:[#allocation4 + $0x24] sm:$0xf]
    %v168 = vld [vmem:[#allocation4 + $0x28] sm:$0xf]
    %v169 = vld [vmem:[#allocation4 + $0x2c] sm:$0xf]
    %v170 = vld [vmem:[#allocation4 + $0x30] sm:$0xf]
    %v171 = vld [vmem:[#allocation4 + $0x34] sm:$0xf]
    %v172 = vld [vmem:[#allocation4 + $0x38] sm:$0xf]
    %v173 = vld [vmem:[#allocation4 + $0x3c] sm:$0xf]
    %v174 = vld [vmem:[#allocation4 + $0x40] sm:$0xf]
    %v175 = vld [vmem:[#allocation4 + $0x44] sm:$0xf]
    %v176 = vld [vmem:[#allocation4 + $0x48] sm:$0xf]
    %v177 = vld [vmem:[#allocation4 + $0x4c] sm:$0xf]
    %v178 = vld [vmem:[#allocation4 + $0x50] sm:$0xf]
    %v179 = vld [vmem:[#allocation4 + $0x54] sm:$0xf]
    %v180 = vld [vmem:[#allocation4 + $0x58] sm:$0xf]
    %v181 = vld [vmem:[#allocation4 + $0x5c] sm:$0xf]
    %v182 = vld [vmem:[#allocation4 + $0x60] sm:$0xf]
    %v183 = vld [vmem:[#allocation4 + $0x64] sm:$0xf]
    %v184 = vld [vmem:[#allocation4 + $0x68] sm:$0xf]
    %v185 = vld [vmem:[#allocation4 + $0x6c] sm:$0xf]
    %v186 = vld [vmem:[#allocation4 + $0x70] sm:$0xf]
    %v187 = vld [vmem:[#allocation4 + $0x74] sm:$0xf]
    %v188 = vld [vmem:[#allocation4 + $0x78] sm:$0xf]
    %v189 = vld [vmem:[#allocation4 + $0x7c] sm:$0xf]
    %v190 = vld [vmem:[#allocation4 + $0x80] sm:$0xf]
    %v191 = vld [vmem:[#allocation4 + $0x84] sm:$0xf]
    %v192 = vld [vmem:[#allocation4 + $0x88] sm:$0xf]
    %v193 = vld [vmem:[#allocation4 + $0x8c] sm:$0xf]
    %v194 = vld [vmem:[%s4] sm:$0xff]
    %v195 = vld [vmem:[%s4 + $0x8] sm:$0xff]
    %v196 = vld [vmem:[%s4 + $0x10] sm:$0xff]
    %v197 = vld [vmem:[%s4 + $0x18] sm:$0xff]
    %v198 = vld [vmem:[%s4 + $0x20] sm:$0xff]
    %v199 = vld [vmem:[%s4 + $0x28] sm:$0xff]
    %v200 = vld [vmem:[%s4 + $0x30] sm:$0xff]
    %v201 = vld [vmem:[%s4 + $0x38] sm:$0xff]
    %v202 = vld [vmem:[%s5] sm:$0xff]
    %v203 = vld [vmem:[%s5 + $0x8] sm:$0xff]
    %v204 = vld [vmem:[%s5 + $0x10] sm:$0xff]
    %v205 = vld [vmem:[%s5 + $0x18] sm:$0xff]
    %v206 = vld [vmem:[%s5 + $0x20] sm:$0xff]
    %v207 = vld [vmem:[%s5 + $0x28] sm:$0xff]
    %v208 = vld [vmem:[%s5 + $0x30] sm:$0xff]
    %v209 = vld [vmem:[%s5 + $0x38] sm:$0xff]
    %v210 = vld [vmem:[%s9] sm:$0xff]
    %v211 = vld [vmem:[%s9 + $0x8] sm:$0xff]
    %v212 = vld [vmem:[%s9 + $0x10] sm:$0xff]
    %v213 = vld [vmem:[%s9 + $0x18] sm:$0xff]
    %v214 = vld [vmem:[%s10] sm:$0xff]
    %v215 = vld [vmem:[%s10 + $0x8] sm:$0xff]
    %v216 = vld [vmem:[%s10 + $0x10] sm:$0xff]
    %v217 = vld [vmem:[%s10 + $0x18] sm:$0xff]
    %v218 = vld [vmem:[%s0] sm:$0xff]
    %v219 = vld [vmem:[%s0 + $0x8] sm:$0xff]
    %v220 = vld [vmem:[%s0 + $0x10] sm:$0xff]
    %v221 = vld [vmem:[%s0 + $0x18] sm:$0xff]
    %v222 = vld [vmem:[%s0 + $0x20] sm:$0xff]
    %v223 = vld [vmem:[%s0 + $0x28] sm:$0xff]
    %v224 = vld [vmem:[%s0 + $0x30] sm:$0xff]
    %v225 = vld [vmem:[%s0 + $0x38] sm:$0xff]
    %v226 = vld [vmem:[#allocation6] sm:$0xff]
    %v227 = vld [vmem:[#allocation6 + $0x8] sm:$0xff]
    %v228 = vld [vmem:[#allocation6 + $0x10] sm:$0xf]
    %v229 = vld [vmem:[#allocation6 + $0x14] sm:$0xff]
    %v230 = vld [vmem:[#allocation6 + $0x1c] sm:$0xff]
    %v231 = vld [vmem:[#allocation6 + $0x24] sm:$0xf]
    %v232 = vld [vmem:[#allocation6 + $0x28] sm:$0xff]
    %v233 = vld [vmem:[#allocation6 + $0x30] sm:$0xff]
    %v234 = vld [vmem:[#allocation6 + $0x38] sm:$0xf]
    %v235 = vld [vmem:[#allocation6 + $0x3c] sm:$0xff]
    %v236 = vld [vmem:[#allocation6 + $0x44] sm:$0xff]
    %v237 = vld [vmem:[#allocation6 + $0x4c] sm:$0xf]
    %v238 = vld [vmem:[#allocation6 + $0x50] sm:$0xff]
    %v239 = vld [vmem:[#allocation6 + $0x58] sm:$0xff]
    %v240 = vld [vmem:[#allocation6 + $0x60] sm:$0xf]
    %v241 = vld [vmem:[#allocation6 + $0x64] sm:$0xff]
    %v242 = vld [vmem:[#allocation6 + $0x6c] sm:$0xff]
    %v243 = vld [vmem:[#allocation6 + $0x74] sm:$0xf]
    %v244 = vld [vmem:[#allocation6 + $0x78] sm:$0xff]
    %v245 = vld [vmem:[#allocation6 + $0x80] sm:$0xff]
    %v246 = vld [vmem:[#allocation6 + $0x88] sm:$0xf]
    %v247 = vld [vmem:[#allocation6 + $0x8c] sm:$0xff]
    %v248 = vld [vmem:[#allocation6 + $0x94] sm:$0xff]
    %v249 = vld [vmem:[#allocation6 + $0x9c] sm:$0xf]
    %250 = vrot.lane.b32.xlu0 %v218, 9
    %v251 = vpop.permute.xlu0 %250
    %252 = vrot.lane.b32.xlu0 %v219, 9
    %v253 = vpop.permute.xlu0 %252
    %254 = vrot.lane.b32.xlu0 %v220, 9
    %v255 = vpop.permute.xlu0 %254
    %256 = vrot.lane.b32.xlu0 %v221, 9
    %v257 = vpop.permute.xlu0 %256
    %258 = vrot.lane.b32.xlu0 %v222, 9
    %v259 = vpop.permute.xlu0 %258
    %260 = vrot.lane.b32.xlu0 %v223, 9
    %v261 = vpop.permute.xlu0 %260
    %262 = vrot.lane.b32.xlu0 %v224, 9
    %v263 = vpop.permute.xlu0 %262
    %264 = vrot.lane.b32.xlu0 %v225, 9
    %v265 = vpop.permute.xlu0 %264
    %266 = vrot.lane.b32.xlu0 %v218, 8
    %v267 = vpop.permute.xlu0 %266
    %268 = vrot.lane.b32.xlu0 %v219, 8
    %v269 = vpop.permute.xlu0 %268
    %270 = vrot.lane.b32.xlu0 %v220, 8
    %v271 = vpop.permute.xlu0 %270
    %272 = vrot.lane.b32.xlu0 %v221, 8
    %v273 = vpop.permute.xlu0 %272
    %274 = vrot.lane.b32.xlu0 %v222, 8
    %v275 = vpop.permute.xlu0 %274
    %276 = vrot.lane.b32.xlu0 %v223, 8
    %v277 = vpop.permute.xlu0 %276
    %278 = vrot.lane.b32.xlu0 %v224, 8
    %v279 = vpop.permute.xlu0 %278
    %280 = vrot.lane.b32.xlu0 %v225, 8
    %v281 = vpop.permute.xlu0 %280
    %282 = vrot.lane.b32.xlu0 %v218, 7
    %v283 = vpop.permute.xlu0 %282
    %284 = vrot.lane.b32.xlu0 %v219, 7
    %v285 = vpop.permute.xlu0 %284
    %286 = vrot.lane.b32.xlu0 %v220, 7
    %v287 = vpop.permute.xlu0 %286
    %288 = vrot.lane.b32.xlu0 %v221, 7
    %v289 = vpop.permute.xlu0 %288
    %290 = vrot.lane.b32.xlu0 %v222, 7
    %v291 = vpop.permute.xlu0 %290
    %292 = vrot.lane.b32.xlu0 %v223, 7
    %v293 = vpop.permute.xlu0 %292
    %294 = vrot.lane.b32.xlu0 %v224, 7
    %v295 = vpop.permute.xlu0 %294
    %296 = vrot.lane.b32.xlu0 %v225, 7
    %v297 = vpop.permute.xlu0 %296
    %298 = vrot.lane.b32.xlu0 %v218, 1
    %v299 = vpop.permute.xlu0 %298
    %300 = vrot.lane.b32.xlu0 %v219, 1
    %v301 = vpop.permute.xlu0 %300
    %302 = vrot.lane.b32.xlu0 %v220, 1
    %v303 = vpop.permute.xlu0 %302
    %304 = vrot.lane.b32.xlu0 %v221, 1
    %v305 = vpop.permute.xlu0 %304
    %306 = vrot.lane.b32.xlu0 %v222, 1
    %v307 = vpop.permute.xlu0 %306
    %308 = vrot.lane.b32.xlu0 %v223, 1
    %v309 = vpop.permute.xlu0 %308
    %310 = vrot.lane.b32.xlu0 %v224, 1
    %v311 = vpop.permute.xlu0 %310
    %312 = vrot.lane.b32.xlu0 %v225, 1
    %v313 = vpop.permute.xlu0 %312
    %314 = vrot.lane.b32.xlu0 %v218, 127
    %v315 = vpop.permute.xlu0 %314
    %316 = vrot.lane.b32.xlu0 %v219, 127
    %v317 = vpop.permute.xlu0 %316
    %318 = vrot.lane.b32.xlu0 %v220, 127
    %v319 = vpop.permute.xlu0 %318
    %320 = vrot.lane.b32.xlu0 %v221, 127
    %v321 = vpop.permute.xlu0 %320
    %322 = vrot.lane.b32.xlu0 %v222, 127
    %v323 = vpop.permute.xlu0 %322
    %324 = vrot.lane.b32.xlu0 %v223, 127
    %v325 = vpop.permute.xlu0 %324
    %326 = vrot.lane.b32.xlu0 %v224, 127
    %v327 = vpop.permute.xlu0 %326
    %328 = vrot.lane.b32.xlu0 %v225, 127
    %v329 = vpop.permute.xlu0 %328
    %330 = vrot.lane.b32.xlu0 %v218, 121
    %v331 = vpop.permute.xlu0 %330
    %332 = vrot.lane.b32.xlu0 %v219, 121
    %v333 = vpop.permute.xlu0 %332
    %334 = vrot.lane.b32.xlu0 %v220, 121
    %v335 = vpop.permute.xlu0 %334
    %336 = vrot.lane.b32.xlu0 %v221, 121
    %v337 = vpop.permute.xlu0 %336
    %338 = vrot.lane.b32.xlu0 %v222, 121
    %v339 = vpop.permute.xlu0 %338
    %340 = vrot.lane.b32.xlu0 %v223, 121
    %v341 = vpop.permute.xlu0 %340
    %342 = vrot.lane.b32.xlu0 %v224, 121
    %v343 = vpop.permute.xlu0 %342
    %344 = vrot.lane.b32.xlu0 %v225, 121
    %v345 = vpop.permute.xlu0 %344
    %346 = vrot.lane.b32.xlu0 %v218, 120
    %v347 = vpop.permute.xlu0 %346
    %348 = vrot.lane.b32.xlu0 %v219, 120
    %v349 = vpop.permute.xlu0 %348
    %350 = vrot.lane.b32.xlu0 %v220, 120
    %v351 = vpop.permute.xlu0 %350
    %352 = vrot.lane.b32.xlu0 %v221, 120
    %v353 = vpop.permute.xlu0 %352
    %354 = vrot.lane.b32.xlu0 %v222, 120
    %v355 = vpop.permute.xlu0 %354
    %356 = vrot.lane.b32.xlu0 %v223, 120
    %v357 = vpop.permute.xlu0 %356
    %358 = vrot.lane.b32.xlu0 %v224, 120
    %v359 = vpop.permute.xlu0 %358
    %360 = vrot.lane.b32.xlu0 %v225, 120
    %v361 = vpop.permute.xlu0 %360
    %362 = vrot.lane.b32.xlu0 %v218, 119
    %v363 = vpop.permute.xlu0 %362
    %364 = vrot.lane.b32.xlu0 %v219, 119
    %v365 = vpop.permute.xlu0 %364
    %366 = vrot.lane.b32.xlu0 %v220, 119
    %v367 = vpop.permute.xlu0 %366
    %368 = vrot.lane.b32.xlu0 %v221, 119
    %v369 = vpop.permute.xlu0 %368
    %370 = vrot.lane.b32.xlu0 %v222, 119
    %v371 = vpop.permute.xlu0 %370
    %372 = vrot.lane.b32.xlu0 %v223, 119
    %v373 = vpop.permute.xlu0 %372
    %374 = vrot.lane.b32.xlu0 %v224, 119
    %v375 = vpop.permute.xlu0 %374
    %376 = vrot.lane.b32.xlu0 %v225, 119
    %v377 = vpop.permute.xlu0 %376
    %v378 = vpack.c.bf16 %v253, %v251
    %v379 = vpack.c.bf16 %v257, %v255
    %v380 = vpack.c.bf16 %v261, %v259
    %v381 = vpack.c.bf16 %v265, %v263
    %v382 = vpack.c.bf16 %v269, %v267
    %v383 = vpack.c.bf16 %v273, %v271
    %v384 = vpack.c.bf16 %v277, %v275
    %v385 = vpack.c.bf16 %v281, %v279
    %v386 = vpack.c.bf16 %v285, %v283
    %v387 = vpack.c.bf16 %v289, %v287
    %v388 = vpack.c.bf16 %v293, %v291
    %v389 = vpack.c.bf16 %v297, %v295
    %v390 = vpack.c.bf16 %v301, %v299
    %v391 = vpack.c.bf16 %v305, %v303
    %v392 = vpack.c.bf16 %v309, %v307
    %v393 = vpack.c.bf16 %v313, %v311
    %v394 = vpack.c.bf16 %v219, %v218
    %v395 = vpack.c.bf16 %v221, %v220
    %v396 = vpack.c.bf16 %v223, %v222
    %v397 = vpack.c.bf16 %v225, %v224
    %v398 = vpack.c.bf16 %v317, %v315
    %v399 = vpack.c.bf16 %v321, %v319
    %v400 = vpack.c.bf16 %v325, %v323
    %v401 = vpack.c.bf16 %v329, %v327
    %v402 = vpack.c.bf16 %v333, %v331
    %v403 = vpack.c.bf16 %v337, %v335
    %v404 = vpack.c.bf16 %v341, %v339
    %v405 = vpack.c.bf16 %v345, %v343
    %v406 = vpack.c.bf16 %v349, %v347
    %v407 = vpack.c.bf16 %v353, %v351
    %v408 = vpack.c.bf16 %v357, %v355
    %v409 = vpack.c.bf16 %v361, %v359
    %v410 = vpack.c.bf16 %v365, %v363
    %v411 = vpack.c.bf16 %v369, %v367
    %v412 = vpack.c.bf16 %v373, %v371
    %v413 = vpack.c.bf16 %v377, %v375
    %v486 = vunpack.c.l.b16 %v86
    %v487 = vunpack.c.l.b16 %v87
    %v488 = vunpack.c.l.b16 %v88
    %v489 = vunpack.c.l.b16 %v89
    %v490 = vunpack.c.l.b16 %v90
    %v491 = vunpack.c.l.b16 %v91
    %v492 = vunpack.c.l.b16 %v92
    %v493 = vunpack.c.l.b16 %v93
    %v494 = vunpack.c.l.b16 %v94
    %v495 = vunpack.c.l.b16 %v95
    %v496 = vunpack.c.l.b16 %v96
    %v497 = vunpack.c.l.b16 %v97
    %v498 = vunpack.c.l.b16 %v98
    %v499 = vunpack.c.l.b16 %v99
    %v500 = vunpack.c.l.b16 %v100
    %v501 = vunpack.c.l.b16 %v101
    %v502 = vunpack.c.l.b16 %v102
    %v503 = vunpack.c.l.b16 %v103
    %v504 = vunpack.c.l.b16 %v104
    %v505 = vunpack.c.l.b16 %v105
    %v506 = vunpack.c.l.b16 %v106
    %v507 = vunpack.c.l.b16 %v107
    %v508 = vunpack.c.l.b16 %v108
    %v509 = vunpack.c.l.b16 %v109
    %v510 = vunpack.c.l.b16 %v110
    %v511 = vunpack.c.l.b16 %v111
    %v512 = vunpack.c.l.b16 %v112
    %v513 = vunpack.c.l.b16 %v113
    %v514 = vunpack.c.l.b16 %v114
    %v515 = vunpack.c.l.b16 %v115
    %v516 = vunpack.c.l.b16 %v116
    %v517 = vunpack.c.l.b16 %v117
    %v518 = vunpack.c.l.b16 %v118
    %v519 = vunpack.c.l.b16 %v119
    %v520 = vunpack.c.l.b16 %v120
    %v521 = vunpack.c.l.b16 %v121
    %v522 = vunpack.c.l.b16 %v122
    %v523 = vunpack.c.l.b16 %v123
    %v524 = vunpack.c.l.b16 %v124
    %v525 = vunpack.c.l.b16 %v125
    %v526 = vunpack.c.l.b16 %v126
    %v527 = vunpack.c.l.b16 %v127
    %v528 = vunpack.c.l.b16 %v128
    %v529 = vunpack.c.l.b16 %v129
    %v530 = vunpack.c.l.b16 %v130
    %v531 = vunpack.c.l.b16 %v131
    %v532 = vunpack.c.l.b16 %v132
    %v533 = vunpack.c.l.b16 %v133
    %v534 = vunpack.c.l.b16 %v134
    %v535 = vunpack.c.l.b16 %v135
    %v536 = vunpack.c.l.b16 %v136
    %v537 = vunpack.c.l.b16 %v137
    %v538 = vunpack.c.l.b16 %v138
    %v539 = vunpack.c.l.b16 %v139
    %v540 = vunpack.c.l.b16 %v140
    %v541 = vunpack.c.l.b16 %v141
    %v542 = vunpack.c.l.b16 %v142
    %v543 = vunpack.c.l.b16 %v143
    %v544 = vunpack.c.l.b16 %v144
    %v545 = vunpack.c.l.b16 %v145
    %v546 = vunpack.c.l.b16 %v146
    %v547 = vunpack.c.l.b16 %v147
    %v548 = vunpack.c.l.b16 %v148
    %v549 = vunpack.c.l.b16 %v149
    %v550 = vunpack.c.l.b16 %v150
    %v551 = vunpack.c.l.b16 %v151
    %v552 = vunpack.c.l.b16 %v152
    %v553 = vunpack.c.l.b16 %v153
    %v554 = vunpack.c.l.b16 %v154
    %v555 = vunpack.c.l.b16 %v155
    %v556 = vunpack.c.l.b16 %v156
    %v557 = vunpack.c.l.b16 %v157
    %v558 = vpack.c.b16 %v487, %v486
    %v559 = vpack.c.b16 %v489, %v488
    %v560 = vpack.c.b16 %v491, %v490
    %v561 = vpack.c.b16 %v493, %v492
    %v562 = vpack.c.b16 %v495, %v494
    %v563 = vpack.c.b16 %v497, %v496
    %v564 = vpack.c.b16 %v499, %v498
    %v565 = vpack.c.b16 %v501, %v500
    %v566 = vpack.c.b16 %v503, %v502
    %v567 = vpack.c.b16 %v505, %v504
    %v568 = vpack.c.b16 %v507, %v506
    %v569 = vpack.c.b16 %v509, %v508
    %v570 = vpack.c.b16 %v511, %v510
    %v571 = vpack.c.b16 %v513, %v512
    %v572 = vpack.c.b16 %v515, %v514
    %v573 = vpack.c.b16 %v517, %v516
    %v574 = vpack.c.b16 %v519, %v518
    %v575 = vpack.c.b16 %v521, %v520
    %v576 = vpack.c.b16 %v523, %v522
    %v577 = vpack.c.b16 %v525, %v524
    %v578 = vpack.c.b16 %v527, %v526
    %v579 = vpack.c.b16 %v529, %v528
    %v580 = vpack.c.b16 %v531, %v530
    %v581 = vpack.c.b16 %v533, %v532
    %v582 = vpack.c.b16 %v535, %v534
    %v583 = vpack.c.b16 %v537, %v536
    %v584 = vpack.c.b16 %v539, %v538
    %v585 = vpack.c.b16 %v541, %v540
    %v586 = vpack.c.b16 %v543, %v542
    %v587 = vpack.c.b16 %v545, %v544
    %v588 = vpack.c.b16 %v547, %v546
    %v589 = vpack.c.b16 %v549, %v548
    %v590 = vpack.c.b16 %v551, %v550
    %v591 = vpack.c.b16 %v553, %v552
    %v592 = vpack.c.b16 %v555, %v554
    %v593 = vpack.c.b16 %v557, %v556
    %v630 = vmul.bf16 %v378, %v558
    %v631 = vmul.bf16 %v379, %v559
    %v632 = vmul.bf16 %v380, %v560
    %v633 = vmul.bf16 %v381, %v561
    %v634 = vmul.bf16 %v382, %v562
    %v635 = vmul.bf16 %v383, %v563
    %v636 = vmul.bf16 %v384, %v564
    %v637 = vmul.bf16 %v385, %v565
    %v638 = vmul.bf16 %v386, %v566
    %v639 = vmul.bf16 %v387, %v567
    %v640 = vmul.bf16 %v388, %v568
    %v641 = vmul.bf16 %v389, %v569
    %v642 = vmul.bf16 %v390, %v570
    %v643 = vmul.bf16 %v391, %v571
    %v644 = vmul.bf16 %v392, %v572
    %v645 = vmul.bf16 %v393, %v573
    %v646 = vmul.bf16 %v394, %v574
    %v647 = vmul.bf16 %v395, %v575
    %v648 = vmul.bf16 %v396, %v576
    %v649 = vmul.bf16 %v397, %v577
    %v650 = vmul.bf16 %v398, %v578
    %v651 = vmul.bf16 %v399, %v579
    %v652 = vmul.bf16 %v400, %v580
    %v653 = vmul.bf16 %v401, %v581
    %v654 = vmul.bf16 %v402, %v582
    %v655 = vmul.bf16 %v403, %v583
    %v656 = vmul.bf16 %v404, %v584
    %v657 = vmul.bf16 %v405, %v585
    %v658 = vmul.bf16 %v406, %v586
    %v659 = vmul.bf16 %v407, %v587
    %v660 = vmul.bf16 %v408, %v588
    %v661 = vmul.bf16 %v409, %v589
    %v662 = vmul.bf16 %v410, %v590
    %v663 = vmul.bf16 %v411, %v591
    %v664 = vmul.bf16 %v412, %v592
    %v665 = vmul.bf16 %v413, %v593
    %v690 = vunpack.c.l.b16 %v226
    %v691 = vunpack.c.h.b16 %v226
    %v692 = vunpack.c.l.b16 %v227
    %v693 = vunpack.c.h.b16 %v227
    %v694 = vunpack.c.l.b16 %v228
    %v695 = vunpack.c.l.b16 %v229
    %v696 = vunpack.c.h.b16 %v229
    %v697 = vunpack.c.l.b16 %v230
    %v698 = vunpack.c.h.b16 %v230
    %v699 = vunpack.c.l.b16 %v231
    %v700 = vunpack.c.l.b16 %v232
    %v701 = vunpack.c.h.b16 %v232
    %v702 = vunpack.c.l.b16 %v233
    %v703 = vunpack.c.h.b16 %v233
    %v704 = vunpack.c.l.b16 %v234
    %v705 = vunpack.c.l.b16 %v235
    %v706 = vunpack.c.h.b16 %v235
    %v707 = vunpack.c.l.b16 %v236
    %v708 = vunpack.c.h.b16 %v236
    %v709 = vunpack.c.l.b16 %v237
    %v710 = vunpack.c.l.b16 %v238
    %v711 = vunpack.c.h.b16 %v238
    %v712 = vunpack.c.l.b16 %v239
    %v713 = vunpack.c.h.b16 %v239
    %v714 = vunpack.c.l.b16 %v240
    %v715 = vunpack.c.l.b16 %v241
    %v716 = vunpack.c.h.b16 %v241
    %v717 = vunpack.c.l.b16 %v242
    %v718 = vunpack.c.h.b16 %v242
    %v719 = vunpack.c.l.b16 %v243
    %v720 = vunpack.c.l.b16 %v244
    %v721 = vunpack.c.h.b16 %v244
    %v722 = vunpack.c.l.b16 %v245
    %v723 = vunpack.c.h.b16 %v245
    %v724 = vunpack.c.l.b16 %v246
    %v725 = vunpack.c.l.b16 %v247
    %v726 = vunpack.c.h.b16 %v247
    %v727 = vunpack.c.l.b16 %v248
    %v728 = vunpack.c.h.b16 %v248
    %v729 = vunpack.c.l.b16 %v249
    %v730 = vpack.c.b16 %v695, %v690
    %v731 = vpack.c.b16 %v696, %v691
    %v732 = vpack.c.b16 %v697, %v692
    %v733 = vpack.c.b16 %v698, %v693
    %v734 = vpack.c.b16 %v699, %v694
    %v735 = vpack.c.b16 %v705, %v700
    %v736 = vpack.c.b16 %v706, %v701
    %v737 = vpack.c.b16 %v707, %v702
    %v738 = vpack.c.b16 %v708, %v703
    %v739 = vpack.c.b16 %v709, %v704
    %v740 = vpack.c.b16 %v715, %v710
    %v741 = vpack.c.b16 %v716, %v711
    %v742 = vpack.c.b16 %v717, %v712
    %v743 = vpack.c.b16 %v718, %v713
    %v744 = vpack.c.b16 %v719, %v714
    %v745 = vpack.c.b16 %v725, %v720
    %v746 = vpack.c.b16 %v726, %v721
    %v747 = vpack.c.b16 %v727, %v722
    %v748 = vpack.c.b16 %v728, %v723
    %v749 = vpack.c.b16 %v729, %v724
    %vm766 = vcmask 523264
    %v768 = vsel %vm766, %v734, 0
    %v771 = vsel %vm766, %v739, 0
    %v774 = vsel %vm766, %v744, 0
    %v777 = vsel %vm766, %v749, 0
    %779 = vmatprep.subr.bf16.mxu0 0
    %780 = vmatpush1.bf16.msra.mxu0 %v630
    %781 = vmatprep.subr.bf16.mxu0 0
    %782 = vmatpush1.bf16.msra.mxu0 %v631
    %783 = vmatprep.subr.bf16.mxu0 0
    %784 = vmatpush1.bf16.msra.mxu0 %v632
    %785 = vmatprep.subr.bf16.mxu0 0
    %786 = vmatpush1.bf16.msra.mxu0 %v633
    %787 = vmatprep.subr.bf16.mxu0 0
    %788 = vmatpush1.bf16.msra.mxu0 %v634
    %789 = vmatprep.subr.bf16.mxu0 0
    %790 = vmatpush1.bf16.msra.mxu0 %v635
    %791 = vmatprep.subr.bf16.mxu0 0
    %792 = vmatpush1.bf16.msra.mxu0 %v636
    %793 = vmatprep.subr.bf16.mxu0 0
    %794 = vmatpush1.bf16.msra.mxu0 %v637
    %795 = vmatprep.subr.bf16.mxu0 0
    %796 = vmatpush1.bf16.msra.mxu0 %v638
    %797 = vmatprep.subr.bf16.mxu0 0
    %798 = vmatpush1.bf16.msra.mxu0 %v639
    %799 = vmatprep.subr.bf16.mxu0 0
    %800 = vmatpush1.bf16.msra.mxu0 %v640
    %801 = vmatprep.subr.bf16.mxu0 0
    %802 = vmatpush1.bf16.msra.mxu0 %v641
    %803 = vmatprep.subr.bf16.mxu0 0
    %804 = vmatpush1.bf16.msra.mxu0 %v642
    %805 = vmatprep.subr.bf16.mxu0 0
    %806 = vmatpush1.bf16.msra.mxu0 %v643
    %807 = vmatprep.subr.bf16.mxu0 0
    %808 = vmatpush1.bf16.msra.mxu0 %v644
    %809 = vmatprep.subr.bf16.mxu0 0
    %810 = vmatpush1.bf16.msra.mxu0 %v645
    %811 = vmatprep.mubr.bf16.mxu0 %v731
    %812 = vmatmul.mubr.bf16.gmra.mrb[0].mxu0 %v730
    %v813 = vpop.f32.mrb[0].mxu0
    %v814 = vadd.f32 0.0, %v813
    %v815 = vpop.f32.mrb[0].mxu0
    %v816 = vpop.f32.mrb[0].mxu0
    %v817 = vadd.f32 0.0, %v816
    %v818 = vpop.f32.mrb[0].mxu0
    %819 = vmatprep.mubr.bf16.mxu0 %v736
    %820 = vmatmul.mubr.bf16.gmra.mrb[0].mxu0 %v735
    %v821 = vpop.f32.mrb[0].mxu0
    %v822 = vadd.f32 0.0, %v821
    %v823 = vpop.f32.mrb[0].mxu0
    %v824 = vpop.f32.mrb[0].mxu0
    %v825 = vadd.f32 0.0, %v824
    %v826 = vpop.f32.mrb[0].mxu0
    %827 = vmatprep.mubr.bf16.mxu0 %v741
    %828 = vmatmul.mubr.bf16.gmra.mrb[0].mxu0 %v740
    %v829 = vpop.f32.mrb[0].mxu0
    %v830 = vadd.f32 0.0, %v829
    %v831 = vpop.f32.mrb[0].mxu0
    %v832 = vpop.f32.mrb[0].mxu0
    %v833 = vadd.f32 0.0, %v832
    %v834 = vpop.f32.mrb[0].mxu0
    %835 = vmatprep.mubr.bf16.mxu0 %v746
    %836 = vmatmul.mubr.bf16.gmra.mrb[0].mxu0 %v745
    %v837 = vpop.f32.mrb[0].mxu0
    %v838 = vadd.f32 0.0, %v837
    %v839 = vpop.f32.mrb[0].mxu0
    %v840 = vpop.f32.mrb[0].mxu0
    %v841 = vadd.f32 0.0, %v840
    %v842 = vpop.f32.mrb[0].mxu0
    %843 = vdwg.mxu0
    %844 = vmatprep.subr.bf16.mxu0 0
    %845 = vmatpush1.bf16.msra.mxu0 %v646
    %846 = vmatprep.subr.bf16.mxu0 0
    %847 = vmatpush1.bf16.msra.mxu0 %v647
    %848 = vmatprep.subr.bf16.mxu0 0
    %849 = vmatpush1.bf16.msra.mxu0 %v648
    %850 = vmatprep.subr.bf16.mxu0 0
    %851 = vmatpush1.bf16.msra.mxu0 %v649
    %852 = vmatprep.subr.bf16.mxu0 0
    %853 = vmatpush1.bf16.msra.mxu0 %v650
    %854 = vmatprep.subr.bf16.mxu0 0
    %855 = vmatpush1.bf16.msra.mxu0 %v651
    %856 = vmatprep.subr.bf16.mxu0 0
    %857 = vmatpush1.bf16.msra.mxu0 %v652
    %858 = vmatprep.subr.bf16.mxu0 0
    %859 = vmatpush1.bf16.msra.mxu0 %v653
    %860 = vmatprep.subr.bf16.mxu0 0
    %861 = vmatpush1.bf16.msra.mxu0 %v654
    %862 = vmatprep.subr.bf16.mxu0 0
    %863 = vmatpush1.bf16.msra.mxu0 %v655
    %864 = vmatprep.subr.bf16.mxu0 0
    %865 = vmatpush1.bf16.msra.mxu0 %v656
    %866 = vmatprep.subr.bf16.mxu0 0
    %867 = vmatpush1.bf16.msra.mxu0 %v657
    %868 = vmatprep.subr.bf16.mxu0 0
    %869 = vmatpush1.bf16.msra.mxu0 %v658
    %870 = vmatprep.subr.bf16.mxu0 0
    %871 = vmatpush1.bf16.msra.mxu0 %v659
    %872 = vmatprep.subr.bf16.mxu0 0
    %873 = vmatpush1.bf16.msra.mxu0 %v660
    %874 = vmatprep.subr.bf16.mxu0 0
    %875 = vmatpush1.bf16.msra.mxu0 %v661
    %876 = vmatprep.mubr.bf16.mxu0 %v733
    %877 = vmatmul.mubr.bf16.gmra.mrb[0].mxu0 %v732
    %v878 = vpop.f32.mrb[0].mxu0
    %v879 = vadd.f32 %v814, %v878
    %v880 = vpop.f32.mrb[0].mxu0
    %v881 = vpop.f32.mrb[0].mxu0
    %v882 = vadd.f32 %v817, %v881
    %v883 = vpop.f32.mrb[0].mxu0
    %884 = vmatprep.mubr.bf16.mxu0 %v738
    %885 = vmatmul.mubr.bf16.gmra.mrb[0].mxu0 %v737
    %v886 = vpop.f32.mrb[0].mxu0
    %v887 = vadd.f32 %v822, %v886
    %v888 = vpop.f32.mrb[0].mxu0
    %v889 = vpop.f32.mrb[0].mxu0
    %v890 = vadd.f32 %v825, %v889
    %v891 = vpop.f32.mrb[0].mxu0
    %892 = vmatprep.mubr.bf16.mxu0 %v743
    %893 = vmatmul.mubr.bf16.gmra.mrb[0].mxu0 %v742
    %v894 = vpop.f32.mrb[0].mxu0
    %v895 = vadd.f32 %v830, %v894
    %v896 = vpop.f32.mrb[0].mxu0
    %v897 = vpop.f32.mrb[0].mxu0
    %v898 = vadd.f32 %v833, %v897
    %v899 = vpop.f32.mrb[0].mxu0
    %900 = vmatprep.mubr.bf16.mxu0 %v748
    %901 = vmatmul.mubr.bf16.gmra.mrb[0].mxu0 %v747
    %v902 = vpop.f32.mrb[0].mxu0
    %v903 = vadd.f32 %v838, %v902
    %v904 = vpop.f32.mrb[0].mxu0
    %v905 = vpop.f32.mrb[0].mxu0
    %v906 = vadd.f32 %v841, %v905
    %v907 = vpop.f32.mrb[0].mxu0
    %908 = vdwg.mxu0
    %909 = vmatprep.subr.bf16.mxu0 0
    %910 = vmatpush1.bf16.msra.mxu0 %v662
    %911 = vmatprep.subr.bf16.mxu0 0
    %912 = vmatpush1.bf16.msra.mxu0 %v663
    %913 = vmatprep.subr.bf16.mxu0 0
    %914 = vmatpush1.bf16.msra.mxu0 %v664
    %915 = vmatprep.subr.bf16.mxu0 0
    %916 = vmatpush1.bf16.msra.mxu0 %v665
    %917 = vmatprep.subr.bf16.mxu0 0
    %918 = vmatpush1.bf16.msra.mxu0 0
    %919 = vmatprep.subr.bf16.mxu0 0
    %920 = vmatpush1.bf16.msra.mxu0 0
    %921 = vmatprep.subr.bf16.mxu0 0
    %922 = vmatpush1.bf16.msra.mxu0 0
    %923 = vmatprep.subr.bf16.mxu0 0
    %924 = vmatpush1.bf16.msra.mxu0 0
    %925 = vmatprep.subr.bf16.mxu0 0
    %926 = vmatpush1.bf16.msra.mxu0 0
    %927 = vmatprep.subr.bf16.mxu0 0
    %928 = vmatpush1.bf16.msra.mxu0 0
    %929 = vmatprep.subr.bf16.mxu0 0
    %930 = vmatpush1.bf16.msra.mxu0 0
    %931 = vmatprep.subr.bf16.mxu0 0
    %932 = vmatpush1.bf16.msra.mxu0 0
    %933 = vmatprep.subr.bf16.mxu0 0
    %934 = vmatpush1.bf16.msra.mxu0 0
    %935 = vmatprep.subr.bf16.mxu0 0
    %936 = vmatpush1.bf16.msra.mxu0 0
    %937 = vmatprep.subr.bf16.mxu0 0
    %938 = vmatpush1.bf16.msra.mxu0 0
    %939 = vmatprep.subr.bf16.mxu0 0
    %940 = vmatpush1.bf16.msra.mxu0 0
    %941 = vmatprep.mubr.bf16.mxu0 0
    %942 = vmatmul.mubr.bf16.gmra.mrb[0].mxu0 %v768
    %v943 = vpop.f32.mrb[0].mxu0
    %v944 = vadd.f32 %v879, %v943
    %v945 = vpop.f32.mrb[0].mxu0
    %v946 = vpop.f32.mrb[0].mxu0
    %v947 = vadd.f32 %v882, %v946
    %v948 = vpop.f32.mrb[0].mxu0
    %949 = vmatprep.mubr.bf16.mxu0 0
    %950 = vmatmul.mubr.bf16.gmra.mrb[0].mxu0 %v771
    %v951 = vpop.f32.mrb[0].mxu0
    %v952 = vadd.f32 %v887, %v951
    %v953 = vpop.f32.mrb[0].mxu0
    %v954 = vpop.f32.mrb[0].mxu0
    %v955 = vadd.f32 %v890, %v954
    %v956 = vpop.f32.mrb[0].mxu0
    %957 = vmatprep.mubr.bf16.mxu0 0
    %958 = vmatmul.mubr.bf16.gmra.mrb[0].mxu0 %v774
    %v959 = vpop.f32.mrb[0].mxu0
    %v960 = vadd.f32 %v895, %v959
    %v961 = vpop.f32.mrb[0].mxu0
    %v962 = vpop.f32.mrb[0].mxu0
    %v963 = vadd.f32 %v898, %v962
    %v964 = vpop.f32.mrb[0].mxu0
    %965 = vmatprep.mubr.bf16.mxu0 0
    %966 = vmatmul.mubr.bf16.gmra.mrb[0].mxu0 %v777
    %v967 = vpop.f32.mrb[0].mxu0
    %v968 = vadd.f32 %v903, %v967
    %v969 = vpop.f32.mrb[0].mxu0
    %v970 = vpop.f32.mrb[0].mxu0
    %v971 = vadd.f32 %v906, %v970
    %v972 = vpop.f32.mrb[0].mxu0
    %973 = vdwg.mxu0
    %974 = vadd.xlane.f32.xlu0 %v944
    %v975 = vpop.xlane.xlu0 %974
    %976 = vadd.xlane.f32.xlu0 %v947
    %v977 = vpop.xlane.xlu0 %976
    %978 = vadd.xlane.f32.xlu0 %v952
    %v979 = vpop.xlane.xlu0 %978
    %980 = vadd.xlane.f32.xlu0 %v955
    %v981 = vpop.xlane.xlu0 %980
    %982 = vadd.xlane.f32.xlu0 %v960
    %v983 = vpop.xlane.xlu0 %982
    %984 = vadd.xlane.f32.xlu0 %v963
    %v985 = vpop.xlane.xlu0 %984
    %986 = vadd.xlane.f32.xlu0 %v968
    %v987 = vpop.xlane.xlu0 %986
    %988 = vadd.xlane.f32.xlu0 %v971
    %v989 = vpop.xlane.xlu0 %988
    %v990 = vrcp.pop 128.0
    %v991 = vmul.f32 %v975, %v990
    %v992 = vmul.f32 %v977, %v990
    %v993 = vmul.f32 %v979, %v990
    %v994 = vmul.f32 %v981, %v990
    %v995 = vmul.f32 %v983, %v990
    %v996 = vmul.f32 %v985, %v990
    %v997 = vmul.f32 %v987, %v990
    %v998 = vmul.f32 %v989, %v990
    %v999 = vsub.f32 %v944, %v991
    %v1000 = vsub.f32 %v947, %v992
    %v1001 = vsub.f32 %v952, %v993
    %v1002 = vsub.f32 %v955, %v994
    %v1003 = vsub.f32 %v960, %v995
    %v1004 = vsub.f32 %v963, %v996
    %v1005 = vsub.f32 %v968, %v997
    %v1006 = vsub.f32 %v971, %v998
    %v1007 = vmul.f32 %v999, %v999
    %v1008 = vmul.f32 %v1000, %v1000
    %v1009 = vmul.f32 %v1001, %v1001
    %v1010 = vmul.f32 %v1002, %v1002
    %v1011 = vmul.f32 %v1003, %v1003
    %v1012 = vmul.f32 %v1004, %v1004
    %v1013 = vmul.f32 %v1005, %v1005
    %v1014 = vmul.f32 %v1006, %v1006
    %1015 = vadd.xlane.f32.xlu0 %v1007
    %v1016 = vpop.xlane.xlu0 %1015
    %1017 = vadd.xlane.f32.xlu0 %v1008
    %v1018 = vpop.xlane.xlu0 %1017
    %1019 = vadd.xlane.f32.xlu0 %v1009
    %v1020 = vpop.xlane.xlu0 %1019
    %1021 = vadd.xlane.f32.xlu0 %v1010
    %v1022 = vpop.xlane.xlu0 %1021
    %1023 = vadd.xlane.f32.xlu0 %v1011
    %v1024 = vpop.xlane.xlu0 %1023
    %1025 = vadd.xlane.f32.xlu0 %v1012
    %v1026 = vpop.xlane.xlu0 %1025
    %1027 = vadd.xlane.f32.xlu0 %v1013
    %v1028 = vpop.xlane.xlu0 %1027
    %1029 = vadd.xlane.f32.xlu0 %v1014
    %v1030 = vpop.xlane.xlu0 %1029
    %v1031 = vmul.f32 %v1016, %v990
    %v1032 = vmul.f32 %v1018, %v990
    %v1033 = vmul.f32 %v1020, %v990
    %v1034 = vmul.f32 %v1022, %v990
    %v1035 = vmul.f32 %v1024, %v990
    %v1036 = vmul.f32 %v1026, %v990
    %v1037 = vmul.f32 %v1028, %v990
    %v1038 = vmul.f32 %v1030, %v990
    %v1039 = vadd.f32 %v1031, 1e-05
    %v1040 = vadd.f32 %v1032, 1e-05
    %v1041 = vadd.f32 %v1033, 1e-05
    %v1042 = vadd.f32 %v1034, 1e-05
    %v1043 = vadd.f32 %v1035, 1e-05
    %v1044 = vadd.f32 %v1036, 1e-05
    %v1045 = vadd.f32 %v1037, 1e-05
    %v1046 = vadd.f32 %v1038, 1e-05
    %v1047 = vrsqrt.pop %v1039
    %v1048 = vrsqrt.pop %v1040
    %v1049 = vrsqrt.pop %v1041
    %v1050 = vrsqrt.pop %v1042
    %v1051 = vrsqrt.pop %v1043
    %v1052 = vrsqrt.pop %v1044
    %v1053 = vrsqrt.pop %v1045
    %v1054 = vrsqrt.pop %v1046
    %v1055 = vmul.f32 %v194, %v1047
    %v1056 = vmul.f32 %v195, %v1048
    %v1057 = vmul.f32 %v196, %v1049
    %v1058 = vmul.f32 %v197, %v1050
    %v1059 = vmul.f32 %v198, %v1051
    %v1060 = vmul.f32 %v199, %v1052
    %v1061 = vmul.f32 %v200, %v1053
    %v1062 = vmul.f32 %v201, %v1054
    %1064 = vset.pattern.permute.xlu0 0
    %1065 = vperm.xlu0 %1064, %v1055
    %v1066 = vpop.permute.xlu0 %1065
    %1069 = vset.pattern.permute.xlu0 0
    %1070 = vperm.xlu0 %1069, %v1056
    %v1071 = vpop.permute.xlu0 %1070
    %1074 = vset.pattern.permute.xlu0 0
    %1075 = vperm.xlu0 %1074, %v1057
    %v1076 = vpop.permute.xlu0 %1075
    %1079 = vset.pattern.permute.xlu0 0
    %1080 = vperm.xlu0 %1079, %v1058
    %v1081 = vpop.permute.xlu0 %1080
    %1084 = vset.pattern.permute.xlu0 0
    %1085 = vperm.xlu0 %1084, %v1059
    %v1086 = vpop.permute.xlu0 %1085
    %1089 = vset.pattern.permute.xlu0 0
    %1090 = vperm.xlu0 %1089, %v1060
    %v1091 = vpop.permute.xlu0 %1090
    %1094 = vset.pattern.permute.xlu0 0
    %1095 = vperm.xlu0 %1094, %v1061
    %v1096 = vpop.permute.xlu0 %1095
    %1099 = vset.pattern.permute.xlu0 0
    %1100 = vperm.xlu0 %1099, %v1062
    %v1101 = vpop.permute.xlu0 %1100
    %v1103 = vmul.f32 %v999, %v1066
    %v1104 = vmul.f32 %v1000, %v1071
    %v1105 = vmul.f32 %v1001, %v1076
    %v1106 = vmul.f32 %v1002, %v1081
    %v1107 = vmul.f32 %v1003, %v1086
    %v1108 = vmul.f32 %v1004, %v1091
    %v1109 = vmul.f32 %v1005, %v1096
    %v1110 = vmul.f32 %v1006, %v1101
    %1112 = vset.pattern.permute.xlu0 0
    %1113 = vperm.xlu0 %1112, %v202
    %v1114 = vpop.permute.xlu0 %1113
    %1117 = vset.pattern.permute.xlu0 0
    %1118 = vperm.xlu0 %1117, %v203
    %v1119 = vpop.permute.xlu0 %1118
    %1122 = vset.pattern.permute.xlu0 0
    %1123 = vperm.xlu0 %1122, %v204
    %v1124 = vpop.permute.xlu0 %1123
    %1127 = vset.pattern.permute.xlu0 0
    %1128 = vperm.xlu0 %1127, %v205
    %v1129 = vpop.permute.xlu0 %1128
    %1132 = vset.pattern.permute.xlu0 0
    %1133 = vperm.xlu0 %1132, %v206
    %v1134 = vpop.permute.xlu0 %1133
    %1137 = vset.pattern.permute.xlu0 0
    %1138 = vperm.xlu0 %1137, %v207
    %v1139 = vpop.permute.xlu0 %1138
    %1142 = vset.pattern.permute.xlu0 0
    %1143 = vperm.xlu0 %1142, %v208
    %v1144 = vpop.permute.xlu0 %1143
    %1147 = vset.pattern.permute.xlu0 0
    %1148 = vperm.xlu0 %1147, %v209
    %v1149 = vpop.permute.xlu0 %1148
    %v1151 = vadd.f32 %v1103, %v1114
    %v1152 = vadd.f32 %v1104, %v1119
    %v1153 = vadd.f32 %v1105, %v1124
    %v1154 = vadd.f32 %v1106, %v1129
    %v1155 = vadd.f32 %v1107, %v1134
    %v1156 = vadd.f32 %v1108, %v1139
    %v1157 = vadd.f32 %v1109, %v1144
    %v1158 = vadd.f32 %v1110, %v1149
    %v1159 = vmax.f32 %v1151, 0.0
    %v1160 = vmax.f32 %v1152, 0.0
    %v1161 = vmax.f32 %v1153, 0.0
    %v1162 = vmax.f32 %v1154, 0.0
    %v1163 = vmax.f32 %v1155, 0.0
    %v1164 = vmax.f32 %v1156, 0.0
    %v1165 = vmax.f32 %v1157, 0.0
    %v1166 = vmax.f32 %v1158, 0.0
    %s1167 = scalar_lea.vmem [#allocation6], 160
    %v1168 = vld [vmem:[%s1167] sm:$0xff]
    %v1169 = vld [vmem:[%s1167 + $0x8] sm:$0xff]
    %v1170 = vld [vmem:[%s1167 + $0x10] sm:$0xf]
    %v1171 = vld [vmem:[%s1167 + $0x14] sm:$0xff]
    %v1172 = vld [vmem:[%s1167 + $0x1c] sm:$0xff]
    %v1173 = vld [vmem:[%s1167 + $0x24] sm:$0xf]
    %v1174 = vld [vmem:[%s1167 + $0x28] sm:$0xff]
    %v1175 = vld [vmem:[%s1167 + $0x30] sm:$0xff]
    %v1176 = vld [vmem:[%s1167 + $0x38] sm:$0xf]
    %v1177 = vld [vmem:[%s1167 + $0x3c] sm:$0xff]
    %v1178 = vld [vmem:[%s1167 + $0x44] sm:$0xff]
    %v1179 = vld [vmem:[%s1167 + $0x4c] sm:$0xf]
    %v1180 = vld [vmem:[%s1167 + $0x50] sm:$0xff]
    %v1181 = vld [vmem:[%s1167 + $0x58] sm:$0xff]
    %v1182 = vld [vmem:[%s1167 + $0x60] sm:$0xf]
    %v1183 = vld [vmem:[%s1167 + $0x64] sm:$0xff]
    %v1184 = vld [vmem:[%s1167 + $0x6c] sm:$0xff]
    %v1185 = vld [vmem:[%s1167 + $0x74] sm:$0xf]
    %v1186 = vld [vmem:[%s1167 + $0x78] sm:$0xff]
    %v1187 = vld [vmem:[%s1167 + $0x80] sm:$0xff]
    %v1188 = vld [vmem:[%s1167 + $0x88] sm:$0xf]
    %v1189 = vld [vmem:[%s1167 + $0x8c] sm:$0xff]
    %v1190 = vld [vmem:[%s1167 + $0x94] sm:$0xff]
    %v1191 = vld [vmem:[%s1167 + $0x9c] sm:$0xf]
    %1192 = vrot.lane.b32.xlu0 %v1159, 9
    %v1193 = vpop.permute.xlu0 %1192
    %1194 = vrot.lane.b32.xlu0 %v1160, 9
    %v1195 = vpop.permute.xlu0 %1194
    %1196 = vrot.lane.b32.xlu0 %v1161, 9
    %v1197 = vpop.permute.xlu0 %1196
    %1198 = vrot.lane.b32.xlu0 %v1162, 9
    %v1199 = vpop.permute.xlu0 %1198
    %1200 = vrot.lane.b32.xlu0 %v1163, 9
    %v1201 = vpop.permute.xlu0 %1200
    %1202 = vrot.lane.b32.xlu0 %v1164, 9
    %v1203 = vpop.permute.xlu0 %1202
    %1204 = vrot.lane.b32.xlu0 %v1165, 9
    %v1205 = vpop.permute.xlu0 %1204
    %1206 = vrot.lane.b32.xlu0 %v1166, 9
    %v1207 = vpop.permute.xlu0 %1206
    %1208 = vrot.lane.b32.xlu0 %v1159, 8
    %v1209 = vpop.permute.xlu0 %1208
    %1210 = vrot.lane.b32.xlu0 %v1160, 8
    %v1211 = vpop.permute.xlu0 %1210
    %1212 = vrot.lane.b32.xlu0 %v1161, 8
    %v1213 = vpop.permute.xlu0 %1212
    %1214 = vrot.lane.b32.xlu0 %v1162, 8
    %v1215 = vpop.permute.xlu0 %1214
    %1216 = vrot.lane.b32.xlu0 %v1163, 8
    %v1217 = vpop.permute.xlu0 %1216
    %1218 = vrot.lane.b32.xlu0 %v1164, 8
    %v1219 = vpop.permute.xlu0 %1218
    %1220 = vrot.lane.b32.xlu0 %v1165, 8
    %v1221 = vpop.permute.xlu0 %1220
    %1222 = vrot.lane.b32.xlu0 %v1166, 8
    %v1223 = vpop.permute.xlu0 %1222
    %1224 = vrot.lane.b32.xlu0 %v1159, 7
    %v1225 = vpop.permute.xlu0 %1224
    %1226 = vrot.lane.b32.xlu0 %v1160, 7
    %v1227 = vpop.permute.xlu0 %1226
    %1228 = vrot.lane.b32.xlu0 %v1161, 7
    %v1229 = vpop.permute.xlu0 %1228
    %1230 = vrot.lane.b32.xlu0 %v1162, 7
    %v1231 = vpop.permute.xlu0 %1230
    %1232 = vrot.lane.b32.xlu0 %v1163, 7
    %v1233 = vpop.permute.xlu0 %1232
    %1234 = vrot.lane.b32.xlu0 %v1164, 7
    %v1235 = vpop.permute.xlu0 %1234
    %1236 = vrot.lane.b32.xlu0 %v1165, 7
    %v1237 = vpop.permute.xlu0 %1236
    %1238 = vrot.lane.b32.xlu0 %v1166, 7
    %v1239 = vpop.permute.xlu0 %1238
    %1240 = vrot.lane.b32.xlu0 %v1159, 1
    %v1241 = vpop.permute.xlu0 %1240
    %1242 = vrot.lane.b32.xlu0 %v1160, 1
    %v1243 = vpop.permute.xlu0 %1242
    %1244 = vrot.lane.b32.xlu0 %v1161, 1
    %v1245 = vpop.permute.xlu0 %1244
    %1246 = vrot.lane.b32.xlu0 %v1162, 1
    %v1247 = vpop.permute.xlu0 %1246
    %1248 = vrot.lane.b32.xlu0 %v1163, 1
    %v1249 = vpop.permute.xlu0 %1248
    %1250 = vrot.lane.b32.xlu0 %v1164, 1
    %v1251 = vpop.permute.xlu0 %1250
    %1252 = vrot.lane.b32.xlu0 %v1165, 1
    %v1253 = vpop.permute.xlu0 %1252
    %1254 = vrot.lane.b32.xlu0 %v1166, 1
    %v1255 = vpop.permute.xlu0 %1254
    %1256 = vrot.lane.b32.xlu0 %v1159, 127
    %v1257 = vpop.permute.xlu0 %1256
    %1258 = vrot.lane.b32.xlu0 %v1160, 127
    %v1259 = vpop.permute.xlu0 %1258
    %1260 = vrot.lane.b32.xlu0 %v1161, 127
    %v1261 = vpop.permute.xlu0 %1260
    %1262 = vrot.lane.b32.xlu0 %v1162, 127
    %v1263 = vpop.permute.xlu0 %1262
    %1264 = vrot.lane.b32.xlu0 %v1163, 127
    %v1265 = vpop.permute.xlu0 %1264
    %1266 = vrot.lane.b32.xlu0 %v1164, 127
    %v1267 = vpop.permute.xlu0 %1266
    %1268 = vrot.lane.b32.xlu0 %v1165, 127
    %v1269 = vpop.permute.xlu0 %1268
    %1270 = vrot.lane.b32.xlu0 %v1166, 127
    %v1271 = vpop.permute.xlu0 %1270
    %1272 = vrot.lane.b32.xlu0 %v1159, 121
    %v1273 = vpop.permute.xlu0 %1272
    %1274 = vrot.lane.b32.xlu0 %v1160, 121
    %v1275 = vpop.permute.xlu0 %1274
    %1276 = vrot.lane.b32.xlu0 %v1161, 121
    %v1277 = vpop.permute.xlu0 %1276
    %1278 = vrot.lane.b32.xlu0 %v1162, 121
    %v1279 = vpop.permute.xlu0 %1278
    %1280 = vrot.lane.b32.xlu0 %v1163, 121
    %v1281 = vpop.permute.xlu0 %1280
    %1282 = vrot.lane.b32.xlu0 %v1164, 121
    %v1283 = vpop.permute.xlu0 %1282
    %1284 = vrot.lane.b32.xlu0 %v1165, 121
    %v1285 = vpop.permute.xlu0 %1284
    %1286 = vrot.lane.b32.xlu0 %v1166, 121
    %v1287 = vpop.permute.xlu0 %1286
    %1288 = vrot.lane.b32.xlu0 %v1159, 120
    %v1289 = vpop.permute.xlu0 %1288
    %1290 = vrot.lane.b32.xlu0 %v1160, 120
    %v1291 = vpop.permute.xlu0 %1290
    %1292 = vrot.lane.b32.xlu0 %v1161, 120
    %v1293 = vpop.permute.xlu0 %1292
    %1294 = vrot.lane.b32.xlu0 %v1162, 120
    %v1295 = vpop.permute.xlu0 %1294
    %1296 = vrot.lane.b32.xlu0 %v1163, 120
    %v1297 = vpop.permute.xlu0 %1296
    %1298 = vrot.lane.b32.xlu0 %v1164, 120
    %v1299 = vpop.permute.xlu0 %1298
    %1300 = vrot.lane.b32.xlu0 %v1165, 120
    %v1301 = vpop.permute.xlu0 %1300
    %1302 = vrot.lane.b32.xlu0 %v1166, 120
    %v1303 = vpop.permute.xlu0 %1302
    %1304 = vrot.lane.b32.xlu0 %v1159, 119
    %v1305 = vpop.permute.xlu0 %1304
    %1306 = vrot.lane.b32.xlu0 %v1160, 119
    %v1307 = vpop.permute.xlu0 %1306
    %1308 = vrot.lane.b32.xlu0 %v1161, 119
    %v1309 = vpop.permute.xlu0 %1308
    %1310 = vrot.lane.b32.xlu0 %v1162, 119
    %v1311 = vpop.permute.xlu0 %1310
    %1312 = vrot.lane.b32.xlu0 %v1163, 119
    %v1313 = vpop.permute.xlu0 %1312
    %1314 = vrot.lane.b32.xlu0 %v1164, 119
    %v1315 = vpop.permute.xlu0 %1314
    %1316 = vrot.lane.b32.xlu0 %v1165, 119
    %v1317 = vpop.permute.xlu0 %1316
    %1318 = vrot.lane.b32.xlu0 %v1166, 119
    %v1319 = vpop.permute.xlu0 %1318
    %v1320 = vpack.c.bf16 %v1195, %v1193
    %v1321 = vpack.c.bf16 %v1199, %v1197
    %v1322 = vpack.c.bf16 %v1203, %v1201
    %v1323 = vpack.c.bf16 %v1207, %v1205
    %v1324 = vpack.c.bf16 %v1211, %v1209
    %v1325 = vpack.c.bf16 %v1215, %v1213
    %v1326 = vpack.c.bf16 %v1219, %v1217
    %v1327 = vpack.c.bf16 %v1223, %v1221
    %v1328 = vpack.c.bf16 %v1227, %v1225
    %v1329 = vpack.c.bf16 %v1231, %v1229
    %v1330 = vpack.c.bf16 %v1235, %v1233
    %v1331 = vpack.c.bf16 %v1239, %v1237
    %v1332 = vpack.c.bf16 %v1243, %v1241
    %v1333 = vpack.c.bf16 %v1247, %v1245
    %v1334 = vpack.c.bf16 %v1251, %v1249
    %v1335 = vpack.c.bf16 %v1255, %v1253
    %v1336 = vpack.c.bf16 %v1160, %v1159
    %v1337 = vpack.c.bf16 %v1162, %v1161
    %v1338 = vpack.c.bf16 %v1164, %v1163
    %v1339 = vpack.c.bf16 %v1166, %v1165
    %v1340 = vpack.c.bf16 %v1259, %v1257
    %v1341 = vpack.c.bf16 %v1263, %v1261
    %v1342 = vpack.c.bf16 %v1267, %v1265
    %v1343 = vpack.c.bf16 %v1271, %v1269
    %v1344 = vpack.c.bf16 %v1275, %v1273
    %v1345 = vpack.c.bf16 %v1279, %v1277
    %v1346 = vpack.c.bf16 %v1283, %v1281
    %v1347 = vpack.c.bf16 %v1287, %v1285
    %v1348 = vpack.c.bf16 %v1291, %v1289
    %v1349 = vpack.c.bf16 %v1295, %v1293
    %v1350 = vpack.c.bf16 %v1299, %v1297
    %v1351 = vpack.c.bf16 %v1303, %v1301
    %v1352 = vpack.c.bf16 %v1307, %v1305
    %v1353 = vpack.c.bf16 %v1311, %v1309
    %v1354 = vpack.c.bf16 %v1315, %v1313
    %v1355 = vpack.c.bf16 %v1319, %v1317
    %v1356 = vmul.bf16 %v1320, %v558
    %v1357 = vmul.bf16 %v1321, %v559
    %v1358 = vmul.bf16 %v1322, %v560
    %v1359 = vmul.bf16 %v1323, %v561
    %v1360 = vmul.bf16 %v1324, %v562
    %v1361 = vmul.bf16 %v1325, %v563
    %v1362 = vmul.bf16 %v1326, %v564
    %v1363 = vmul.bf16 %v1327, %v565
    %v1364 = vmul.bf16 %v1328, %v566
    %v1365 = vmul.bf16 %v1329, %v567
    %v1366 = vmul.bf16 %v1330, %v568
    %v1367 = vmul.bf16 %v1331, %v569
    %v1368 = vmul.bf16 %v1332, %v570
    %v1369 = vmul.bf16 %v1333, %v571
    %v1370 = vmul.bf16 %v1334, %v572
    %v1371 = vmul.bf16 %v1335, %v573
    %v1372 = vmul.bf16 %v1336, %v574
    %v1373 = vmul.bf16 %v1337, %v575
    %v1374 = vmul.bf16 %v1338, %v576
    %v1375 = vmul.bf16 %v1339, %v577
    %v1376 = vmul.bf16 %v1340, %v578
    %v1377 = vmul.bf16 %v1341, %v579
    %v1378 = vmul.bf16 %v1342, %v580
    %v1379 = vmul.bf16 %v1343, %v581
    %v1380 = vmul.bf16 %v1344, %v582
    %v1381 = vmul.bf16 %v1345, %v583
    %v1382 = vmul.bf16 %v1346, %v584
    %v1383 = vmul.bf16 %v1347, %v585
    %v1384 = vmul.bf16 %v1348, %v586
    %v1385 = vmul.bf16 %v1349, %v587
    %v1386 = vmul.bf16 %v1350, %v588
    %v1387 = vmul.bf16 %v1351, %v589
    %v1388 = vmul.bf16 %v1352, %v590
    %v1389 = vmul.bf16 %v1353, %v591
    %v1390 = vmul.bf16 %v1354, %v592
    %v1391 = vmul.bf16 %v1355, %v593
    %v1416 = vunpack.c.l.b16 %v1168
    %v1417 = vunpack.c.h.b16 %v1168
    %v1418 = vunpack.c.l.b16 %v1169
    %v1419 = vunpack.c.h.b16 %v1169
    %v1420 = vunpack.c.l.b16 %v1170
    %v1421 = vunpack.c.l.b16 %v1171
    %v1422 = vunpack.c.h.b16 %v1171
    %v1423 = vunpack.c.l.b16 %v1172
    %v1424 = vunpack.c.h.b16 %v1172
    %v1425 = vunpack.c.l.b16 %v1173
    %v1426 = vunpack.c.l.b16 %v1174
    %v1427 = vunpack.c.h.b16 %v1174
    %v1428 = vunpack.c.l.b16 %v1175
    %v1429 = vunpack.c.h.b16 %v1175
    %v1430 = vunpack.c.l.b16 %v1176
    %v1431 = vunpack.c.l.b16 %v1177
    %v1432 = vunpack.c.h.b16 %v1177
    %v1433 = vunpack.c.l.b16 %v1178
    %v1434 = vunpack.c.h.b16 %v1178
    %v1435 = vunpack.c.l.b16 %v1179
    %v1436 = vunpack.c.l.b16 %v1180
    %v1437 = vunpack.c.h.b16 %v1180
    %v1438 = vunpack.c.l.b16 %v1181
    %v1439 = vunpack.c.h.b16 %v1181
    %v1440 = vunpack.c.l.b16 %v1182
    %v1441 = vunpack.c.l.b16 %v1183
    %v1442 = vunpack.c.h.b16 %v1183
    %v1443 = vunpack.c.l.b16 %v1184
    %v1444 = vunpack.c.h.b16 %v1184
    %v1445 = vunpack.c.l.b16 %v1185
    %v1446 = vunpack.c.l.b16 %v1186
    %v1447 = vunpack.c.h.b16 %v1186
    %v1448 = vunpack.c.l.b16 %v1187
    %v1449 = vunpack.c.h.b16 %v1187
    %v1450 = vunpack.c.l.b16 %v1188
    %v1451 = vunpack.c.l.b16 %v1189
    %v1452 = vunpack.c.h.b16 %v1189
    %v1453 = vunpack.c.l.b16 %v1190
    %v1454 = vunpack.c.h.b16 %v1190
    %v1455 = vunpack.c.l.b16 %v1191
    %v1456 = vpack.c.b16 %v1421, %v1416
    %v1457 = vpack.c.b16 %v1422, %v1417
    %v1458 = vpack.c.b16 %v1423, %v1418
    %v1459 = vpack.c.b16 %v1424, %v1419
    %v1460 = vpack.c.b16 %v1425, %v1420
    %v1461 = vpack.c.b16 %v1431, %v1426
    %v1462 = vpack.c.b16 %v1432, %v1427
    %v1463 = vpack.c.b16 %v1433, %v1428
    %v1464 = vpack.c.b16 %v1434, %v1429
    %v1465 = vpack.c.b16 %v1435, %v1430
    %v1466 = vpack.c.b16 %v1441, %v1436
    %v1467 = vpack.c.b16 %v1442, %v1437
    %v1468 = vpack.c.b16 %v1443, %v1438
    %v1469 = vpack.c.b16 %v1444, %v1439
    %v1470 = vpack.c.b16 %v1445, %v1440
    %v1471 = vpack.c.b16 %v1451, %v1446
    %v1472 = vpack.c.b16 %v1452, %v1447
    %v1473 = vpack.c.b16 %v1453, %v1448
    %v1474 = vpack.c.b16 %v1454, %v1449
    %v1475 = vpack.c.b16 %v1455, %v1450
    %v1493 = vsel %vm766, %v1460, 0
    %v1496 = vsel %vm766, %v1465, 0
    %v1499 = vsel %vm766, %v1470, 0
    %v1502 = vsel %vm766, %v1475, 0
    %1504 = vmatprep.subr.bf16.mxu0 0
    %1505 = vmatpush1.bf16.msra.mxu0 %v1356
    %1506 = vmatprep.subr.bf16.mxu0 0
    %1507 = vmatpush1.bf16.msra.mxu0 %v1357
    %1508 = vmatprep.subr.bf16.mxu0 0
    %1509 = vmatpush1.bf16.msra.mxu0 %v1358
    %1510 = vmatprep.subr.bf16.mxu0 0
    %1511 = vmatpush1.bf16.msra.mxu0 %v1359
    %1512 = vmatprep.subr.bf16.mxu0 0
    %1513 = vmatpush1.bf16.msra.mxu0 %v1360
    %1514 = vmatprep.subr.bf16.mxu0 0
    %1515 = vmatpush1.bf16.msra.mxu0 %v1361
    %1516 = vmatprep.subr.bf16.mxu0 0
    %1517 = vmatpush1.bf16.msra.mxu0 %v1362
    %1518 = vmatprep.subr.bf16.mxu0 0
    %1519 = vmatpush1.bf16.msra.mxu0 %v1363
    %1520 = vmatprep.subr.bf16.mxu0 0
    %1521 = vmatpush1.bf16.msra.mxu0 %v1364
    %1522 = vmatprep.subr.bf16.mxu0 0
    %1523 = vmatpush1.bf16.msra.mxu0 %v1365
    %1524 = vmatprep.subr.bf16.mxu0 0
    %1525 = vmatpush1.bf16.msra.mxu0 %v1366
    %1526 = vmatprep.subr.bf16.mxu0 0
    %1527 = vmatpush1.bf16.msra.mxu0 %v1367
    %1528 = vmatprep.subr.bf16.mxu0 0
    %1529 = vmatpush1.bf16.msra.mxu0 %v1368
    %1530 = vmatprep.subr.bf16.mxu0 0
    %1531 = vmatpush1.bf16.msra.mxu0 %v1369
    %1532 = vmatprep.subr.bf16.mxu0 0
    %1533 = vmatpush1.bf16.msra.mxu0 %v1370
    %1534 = vmatprep.subr.bf16.mxu0 0
    %1535 = vmatpush1.bf16.msra.mxu0 %v1371
    %1536 = vmatprep.mubr.bf16.mxu0 %v1457
    %1537 = vmatmul.mubr.bf16.gmra.mrb[0].mxu0 %v1456
    %v1538 = vpop.f32.mrb[0].mxu0
    %v1539 = vadd.f32 0.0, %v1538
    %v1540 = vpop.f32.mrb[0].mxu0
    %v1541 = vpop.f32.mrb[0].mxu0
    %v1542 = vadd.f32 0.0, %v1541
    %v1543 = vpop.f32.mrb[0].mxu0
    %1544 = vmatprep.mubr.bf16.mxu0 %v1462
    %1545 = vmatmul.mubr.bf16.gmra.mrb[0].mxu0 %v1461
    %v1546 = vpop.f32.mrb[0].mxu0
    %v1547 = vadd.f32 0.0, %v1546
    %v1548 = vpop.f32.mrb[0].mxu0
    %v1549 = vpop.f32.mrb[0].mxu0
    %v1550 = vadd.f32 0.0, %v1549
    %v1551 = vpop.f32.mrb[0].mxu0
    %1552 = vmatprep.mubr.bf16.mxu0 %v1467
    %1553 = vmatmul.mubr.bf16.gmra.mrb[0].mxu0 %v1466
    %v1554 = vpop.f32.mrb[0].mxu0
    %v1555 = vadd.f32 0.0, %v1554
    %v1556 = vpop.f32.mrb[0].mxu0
    %v1557 = vpop.f32.mrb[0].mxu0
    %v1558 = vadd.f32 0.0, %v1557
    %v1559 = vpop.f32.mrb[0].mxu0
    %1560 = vmatprep.mubr.bf16.mxu0 %v1472
    %1561 = vmatmul.mubr.bf16.gmra.mrb[0].mxu0 %v1471
    %v1562 = vpop.f32.mrb[0].mxu0
    %v1563 = vadd.f32 0.0, %v1562
    %v1564 = vpop.f32.mrb[0].mxu0
    %v1565 = vpop.f32.mrb[0].mxu0
    %v1566 = vadd.f32 0.0, %v1565
    %v1567 = vpop.f32.mrb[0].mxu0
    %1568 = vdwg.mxu0
    %1569 = vmatprep.subr.bf16.mxu0 0
    %1570 = vmatpush1.bf16.msra.mxu0 %v1372
    %1571 = vmatprep.subr.bf16.mxu0 0
    %1572 = vmatpush1.bf16.msra.mxu0 %v1373
    %1573 = vmatprep.subr.bf16.mxu0 0
    %1574 = vmatpush1.bf16.msra.mxu0 %v1374
    %1575 = vmatprep.subr.bf16.mxu0 0
    %1576 = vmatpush1.bf16.msra.mxu0 %v1375
    %1577 = vmatprep.subr.bf16.mxu0 0
    %1578 = vmatpush1.bf16.msra.mxu0 %v1376
    %1579 = vmatprep.subr.bf16.mxu0 0
    %1580 = vmatpush1.bf16.msra.mxu0 %v1377
    %1581 = vmatprep.subr.bf16.mxu0 0
    %1582 = vmatpush1.bf16.msra.mxu0 %v1378
    %1583 = vmatprep.subr.bf16.mxu0 0
    %1584 = vmatpush1.bf16.msra.mxu0 %v1379
    %1585 = vmatprep.subr.bf16.mxu0 0
    %1586 = vmatpush1.bf16.msra.mxu0 %v1380
    %1587 = vmatprep.subr.bf16.mxu0 0
    %1588 = vmatpush1.bf16.msra.mxu0 %v1381
    %1589 = vmatprep.subr.bf16.mxu0 0
    %1590 = vmatpush1.bf16.msra.mxu0 %v1382
    %1591 = vmatprep.subr.bf16.mxu0 0
    %1592 = vmatpush1.bf16.msra.mxu0 %v1383
    %1593 = vmatprep.subr.bf16.mxu0 0
    %1594 = vmatpush1.bf16.msra.mxu0 %v1384
    %1595 = vmatprep.subr.bf16.mxu0 0
    %1596 = vmatpush1.bf16.msra.mxu0 %v1385
    %1597 = vmatprep.subr.bf16.mxu0 0
    %1598 = vmatpush1.bf16.msra.mxu0 %v1386
    %1599 = vmatprep.subr.bf16.mxu0 0
    %1600 = vmatpush1.bf16.msra.mxu0 %v1387
    %1601 = vmatprep.mubr.bf16.mxu0 %v1459
    %1602 = vmatmul.mubr.bf16.gmra.mrb[0].mxu0 %v1458
    %v1603 = vpop.f32.mrb[0].mxu0
    %v1604 = vadd.f32 %v1539, %v1603
    %v1605 = vpop.f32.mrb[0].mxu0
    %v1606 = vpop.f32.mrb[0].mxu0
    %v1607 = vadd.f32 %v1542, %v1606
    %v1608 = vpop.f32.mrb[0].mxu0
    %1609 = vmatprep.mubr.bf16.mxu0 %v1464
    %1610 = vmatmul.mubr.bf16.gmra.mrb[0].mxu0 %v1463
    %v1611 = vpop.f32.mrb[0].mxu0
    %v1612 = vadd.f32 %v1547, %v1611
    %v1613 = vpop.f32.mrb[0].mxu0
    %v1614 = vpop.f32.mrb[0].mxu0
    %v1615 = vadd.f32 %v1550, %v1614
    %v1616 = vpop.f32.mrb[0].mxu0
    %1617 = vmatprep.mubr.bf16.mxu0 %v1469
    %1618 = vmatmul.mubr.bf16.gmra.mrb[0].mxu0 %v1468
    %v1619 = vpop.f32.mrb[0].mxu0
    %v1620 = vadd.f32 %v1555, %v1619
    %v1621 = vpop.f32.mrb[0].mxu0
    %v1622 = vpop.f32.mrb[0].mxu0
    %v1623 = vadd.f32 %v1558, %v1622
    %v1624 = vpop.f32.mrb[0].mxu0
    %1625 = vmatprep.mubr.bf16.mxu0 %v1474
    %1626 = vmatmul.mubr.bf16.gmra.mrb[0].mxu0 %v1473
    %v1627 = vpop.f32.mrb[0].mxu0
    %v1628 = vadd.f32 %v1563, %v1627
    %v1629 = vpop.f32.mrb[0].mxu0
    %v1630 = vpop.f32.mrb[0].mxu0
    %v1631 = vadd.f32 %v1566, %v1630
    %v1632 = vpop.f32.mrb[0].mxu0
    %1633 = vdwg.mxu0
    %1634 = vmatprep.subr.bf16.mxu0 0
    %1635 = vmatpush1.bf16.msra.mxu0 %v1388
    %1636 = vmatprep.subr.bf16.mxu0 0
    %1637 = vmatpush1.bf16.msra.mxu0 %v1389
    %1638 = vmatprep.subr.bf16.mxu0 0
    %1639 = vmatpush1.bf16.msra.mxu0 %v1390
    %1640 = vmatprep.subr.bf16.mxu0 0
    %1641 = vmatpush1.bf16.msra.mxu0 %v1391
    %1642 = vmatprep.subr.bf16.mxu0 0
    %1643 = vmatpush1.bf16.msra.mxu0 0
    %1644 = vmatprep.subr.bf16.mxu0 0
    %1645 = vmatpush1.bf16.msra.mxu0 0
    %1646 = vmatprep.subr.bf16.mxu0 0
    %1647 = vmatpush1.bf16.msra.mxu0 0
    %1648 = vmatprep.subr.bf16.mxu0 0
    %1649 = vmatpush1.bf16.msra.mxu0 0
    %1650 = vmatprep.subr.bf16.mxu0 0
    %1651 = vmatpush1.bf16.msra.mxu0 0
    %1652 = vmatprep.subr.bf16.mxu0 0
    %1653 = vmatpush1.bf16.msra.mxu0 0
    %1654 = vmatprep.subr.bf16.mxu0 0
    %1655 = vmatpush1.bf16.msra.mxu0 0
    %1656 = vmatprep.subr.bf16.mxu0 0
    %1657 = vmatpush1.bf16.msra.mxu0 0
    %1658 = vmatprep.subr.bf16.mxu0 0
    %1659 = vmatpush1.bf16.msra.mxu0 0
    %1660 = vmatprep.subr.bf16.mxu0 0
    %1661 = vmatpush1.bf16.msra.mxu0 0
    %1662 = vmatprep.subr.bf16.mxu0 0
    %1663 = vmatpush1.bf16.msra.mxu0 0
    %1664 = vmatprep.subr.bf16.mxu0 0
    %1665 = vmatpush1.bf16.msra.mxu0 0
    %1666 = vmatprep.mubr.bf16.mxu0 0
    %1667 = vmatmul.mubr.bf16.gmra.mrb[0].mxu0 %v1493
    %v1668 = vpop.f32.mrb[0].mxu0
    %v1669 = vadd.f32 %v1604, %v1668
    %v1670 = vpop.f32.mrb[0].mxu0
    %v1671 = vpop.f32.mrb[0].mxu0
    %v1672 = vadd.f32 %v1607, %v1671
    %v1673 = vpop.f32.mrb[0].mxu0
    %1674 = vmatprep.mubr.bf16.mxu0 0
    %1675 = vmatmul.mubr.bf16.gmra.mrb[0].mxu0 %v1496
    %v1676 = vpop.f32.mrb[0].mxu0
    %v1677 = vadd.f32 %v1612, %v1676
    %v1678 = vpop.f32.mrb[0].mxu0
    %v1679 = vpop.f32.mrb[0].mxu0
    %v1680 = vadd.f32 %v1615, %v1679
    %v1681 = vpop.f32.mrb[0].mxu0
    %1682 = vmatprep.mubr.bf16.mxu0 0
    %1683 = vmatmul.mubr.bf16.gmra.mrb[0].mxu0 %v1499
    %v1684 = vpop.f32.mrb[0].mxu0
    %v1685 = vadd.f32 %v1620, %v1684
    %v1686 = vpop.f32.mrb[0].mxu0
    %v1687 = vpop.f32.mrb[0].mxu0
    %v1688 = vadd.f32 %v1623, %v1687
    %v1689 = vpop.f32.mrb[0].mxu0
    %1690 = vmatprep.mubr.bf16.mxu0 0
    %1691 = vmatmul.mubr.bf16.gmra.mrb[0].mxu0 %v1502
    %v1692 = vpop.f32.mrb[0].mxu0
    %v1693 = vadd.f32 %v1628, %v1692
    %v1694 = vpop.f32.mrb[0].mxu0
    %v1695 = vpop.f32.mrb[0].mxu0
    %v1696 = vadd.f32 %v1631, %v1695
    %v1697 = vpop.f32.mrb[0].mxu0
    %1698 = vdwg.mxu0
    %1699 = vadd.xlane.f32.xlu0 %v1669
    %v1700 = vpop.xlane.xlu0 %1699
    %1701 = vadd.xlane.f32.xlu0 %v1672
    %v1702 = vpop.xlane.xlu0 %1701
    %1703 = vadd.xlane.f32.xlu0 %v1677
    %v1704 = vpop.xlane.xlu0 %1703
    %1705 = vadd.xlane.f32.xlu0 %v1680
    %v1706 = vpop.xlane.xlu0 %1705
    %1707 = vadd.xlane.f32.xlu0 %v1685
    %v1708 = vpop.xlane.xlu0 %1707
    %1709 = vadd.xlane.f32.xlu0 %v1688
    %v1710 = vpop.xlane.xlu0 %1709
    %1711 = vadd.xlane.f32.xlu0 %v1693
    %v1712 = vpop.xlane.xlu0 %1711
    %1713 = vadd.xlane.f32.xlu0 %v1696
    %v1714 = vpop.xlane.xlu0 %1713
    %v1715 = vmul.f32 %v1700, %v990
    %v1716 = vmul.f32 %v1702, %v990
    %v1717 = vmul.f32 %v1704, %v990
    %v1718 = vmul.f32 %v1706, %v990
    %v1719 = vmul.f32 %v1708, %v990
    %v1720 = vmul.f32 %v1710, %v990
    %v1721 = vmul.f32 %v1712, %v990
    %v1722 = vmul.f32 %v1714, %v990
    %v1723 = vsub.f32 %v1669, %v1715
    %v1724 = vsub.f32 %v1672, %v1716
    %v1725 = vsub.f32 %v1677, %v1717
    %v1726 = vsub.f32 %v1680, %v1718
    %v1727 = vsub.f32 %v1685, %v1719
    %v1728 = vsub.f32 %v1688, %v1720
    %v1729 = vsub.f32 %v1693, %v1721
    %v1730 = vsub.f32 %v1696, %v1722
    %v1731 = vmul.f32 %v1723, %v1723
    %v1732 = vmul.f32 %v1724, %v1724
    %v1733 = vmul.f32 %v1725, %v1725
    %v1734 = vmul.f32 %v1726, %v1726
    %v1735 = vmul.f32 %v1727, %v1727
    %v1736 = vmul.f32 %v1728, %v1728
    %v1737 = vmul.f32 %v1729, %v1729
    %v1738 = vmul.f32 %v1730, %v1730
    %1739 = vadd.xlane.f32.xlu0 %v1731
    %v1740 = vpop.xlane.xlu0 %1739
    %1741 = vadd.xlane.f32.xlu0 %v1732
    %v1742 = vpop.xlane.xlu0 %1741
    %1743 = vadd.xlane.f32.xlu0 %v1733
    %v1744 = vpop.xlane.xlu0 %1743
    %1745 = vadd.xlane.f32.xlu0 %v1734
    %v1746 = vpop.xlane.xlu0 %1745
    %1747 = vadd.xlane.f32.xlu0 %v1735
    %v1748 = vpop.xlane.xlu0 %1747
    %1749 = vadd.xlane.f32.xlu0 %v1736
    %v1750 = vpop.xlane.xlu0 %1749
    %1751 = vadd.xlane.f32.xlu0 %v1737
    %v1752 = vpop.xlane.xlu0 %1751
    %1753 = vadd.xlane.f32.xlu0 %v1738
    %v1754 = vpop.xlane.xlu0 %1753
    %v1755 = vmul.f32 %v1740, %v990
    %v1756 = vmul.f32 %v1742, %v990
    %v1757 = vmul.f32 %v1744, %v990
    %v1758 = vmul.f32 %v1746, %v990
    %v1759 = vmul.f32 %v1748, %v990
    %v1760 = vmul.f32 %v1750, %v990
    %v1761 = vmul.f32 %v1752, %v990
    %v1762 = vmul.f32 %v1754, %v990
    %v1763 = vadd.f32 %v1755, 1e-05
    %v1764 = vadd.f32 %v1756, 1e-05
    %v1765 = vadd.f32 %v1757, 1e-05
    %v1766 = vadd.f32 %v1758, 1e-05
    %v1767 = vadd.f32 %v1759, 1e-05
    %v1768 = vadd.f32 %v1760, 1e-05
    %v1769 = vadd.f32 %v1761, 1e-05
    %v1770 = vadd.f32 %v1762, 1e-05
    %v1771 = vrsqrt.pop %v1763
    %v1772 = vrsqrt.pop %v1764
    %v1773 = vrsqrt.pop %v1765
    %v1774 = vrsqrt.pop %v1766
    %v1775 = vrsqrt.pop %v1767
    %v1776 = vrsqrt.pop %v1768
    %v1777 = vrsqrt.pop %v1769
    %v1778 = vrsqrt.pop %v1770
    %v1779 = vmul.f32 %v194, %v1771
    %v1780 = vmul.f32 %v195, %v1772
    %v1781 = vmul.f32 %v196, %v1773
    %v1782 = vmul.f32 %v197, %v1774
    %v1783 = vmul.f32 %v198, %v1775
    %v1784 = vmul.f32 %v199, %v1776
    %v1785 = vmul.f32 %v200, %v1777
    %v1786 = vmul.f32 %v201, %v1778
    %1788 = vset.pattern.permute.xlu0 1
    %1789 = vperm.xlu0 %1788, %v1779
    %v1790 = vpop.permute.xlu0 %1789
    %1793 = vset.pattern.permute.xlu0 1
    %1794 = vperm.xlu0 %1793, %v1780
    %v1795 = vpop.permute.xlu0 %1794
    %1798 = vset.pattern.permute.xlu0 1
    %1799 = vperm.xlu0 %1798, %v1781
    %v1800 = vpop.permute.xlu0 %1799
    %1803 = vset.pattern.permute.xlu0 1
    %1804 = vperm.xlu0 %1803, %v1782
    %v1805 = vpop.permute.xlu0 %1804
    %1808 = vset.pattern.permute.xlu0 1
    %1809 = vperm.xlu0 %1808, %v1783
    %v1810 = vpop.permute.xlu0 %1809
    %1813 = vset.pattern.permute.xlu0 1
    %1814 = vperm.xlu0 %1813, %v1784
    %v1815 = vpop.permute.xlu0 %1814
    %1818 = vset.pattern.permute.xlu0 1
    %1819 = vperm.xlu0 %1818, %v1785
    %v1820 = vpop.permute.xlu0 %1819
    %1823 = vset.pattern.permute.xlu0 1
    %1824 = vperm.xlu0 %1823, %v1786
    %v1825 = vpop.permute.xlu0 %1824
    %v1827 = vmul.f32 %v1723, %v1790
    %v1828 = vmul.f32 %v1724, %v1795
    %v1829 = vmul.f32 %v1725, %v1800
    %v1830 = vmul.f32 %v1726, %v1805
    %v1831 = vmul.f32 %v1727, %v1810
    %v1832 = vmul.f32 %v1728, %v1815
    %v1833 = vmul.f32 %v1729, %v1820
    %v1834 = vmul.f32 %v1730, %v1825
    %1835 = vset.pattern.permute.xlu0 1
    %1836 = vperm.xlu0 %1835, %v202
    %v1837 = vpop.permute.xlu0 %1836
    %1839 = vset.pattern.permute.xlu0 1
    %1840 = vperm.xlu0 %1839, %v203
    %v1841 = vpop.permute.xlu0 %1840
    %1843 = vset.pattern.permute.xlu0 1
    %1844 = vperm.xlu0 %1843, %v204
    %v1845 = vpop.permute.xlu0 %1844
    %1847 = vset.pattern.permute.xlu0 1
    %1848 = vperm.xlu0 %1847, %v205
    %v1849 = vpop.permute.xlu0 %1848
    %1851 = vset.pattern.permute.xlu0 1
    %1852 = vperm.xlu0 %1851, %v206
    %v1853 = vpop.permute.xlu0 %1852
    %1855 = vset.pattern.permute.xlu0 1
    %1856 = vperm.xlu0 %1855, %v207
    %v1857 = vpop.permute.xlu0 %1856
    %1859 = vset.pattern.permute.xlu0 1
    %1860 = vperm.xlu0 %1859, %v208
    %v1861 = vpop.permute.xlu0 %1860
    %1863 = vset.pattern.permute.xlu0 1
    %1864 = vperm.xlu0 %1863, %v209
    %v1865 = vpop.permute.xlu0 %1864
    %v1867 = vadd.f32 %v1827, %v1837
    %v1868 = vadd.f32 %v1828, %v1841
    %v1869 = vadd.f32 %v1829, %v1845
    %v1870 = vadd.f32 %v1830, %v1849
    %v1871 = vadd.f32 %v1831, %v1853
    %v1872 = vadd.f32 %v1832, %v1857
    %v1873 = vadd.f32 %v1833, %v1861
    %v1874 = vadd.f32 %v1834, %v1865
    %v1875 = vadd.f32 %v1867, %v218
    %v1876 = vadd.f32 %v1868, %v219
    %v1877 = vadd.f32 %v1869, %v220
    %v1878 = vadd.f32 %v1870, %v221
    %v1879 = vadd.f32 %v1871, %v222
    %v1880 = vadd.f32 %v1872, %v223
    %v1881 = vadd.f32 %v1873, %v224
    %v1882 = vadd.f32 %v1874, %v225
    %v1883 = vmax.f32 %v1875, 0.0
    %v1884 = vmax.f32 %v1876, 0.0
    %v1885 = vmax.f32 %v1877, 0.0
    %v1886 = vmax.f32 %v1878, 0.0
    %v1887 = vmax.f32 %v1879, 0.0
    %v1888 = vmax.f32 %v1880, 0.0
    %v1889 = vmax.f32 %v1881, 0.0
    %v1890 = vmax.f32 %v1882, 0.0
    %s1891 = scalar_lea.vmem [#allocation6], 320
    %v1892 = vld [vmem:[%s1891] sm:$0xff]
    %v1893 = vld [vmem:[%s1891 + $0x8] sm:$0xff]
    %v1894 = vld [vmem:[%s1891 + $0x10] sm:$0xf]
    %v1895 = vld [vmem:[%s1891 + $0x14] sm:$0xff]
    %v1896 = vld [vmem:[%s1891 + $0x1c] sm:$0xff]
    %v1897 = vld [vmem:[%s1891 + $0x24] sm:$0xf]
    %v1898 = vld [vmem:[%s1891 + $0x28] sm:$0xff]
    %v1899 = vld [vmem:[%s1891 + $0x30] sm:$0xff]
    %v1900 = vld [vmem:[%s1891 + $0x38] sm:$0xf]
    %v1901 = vld [vmem:[%s1891 + $0x3c] sm:$0xff]
    %v1902 = vld [vmem:[%s1891 + $0x44] sm:$0xff]
    %v1903 = vld [vmem:[%s1891 + $0x4c] sm:$0xf]
    %v1904 = vld [vmem:[%s1891 + $0x50] sm:$0xff]
    %v1905 = vld [vmem:[%s1891 + $0x58] sm:$0xff]
    %v1906 = vld [vmem:[%s1891 + $0x60] sm:$0xf]
    %v1907 = vld [vmem:[%s1891 + $0x64] sm:$0xff]
    %v1908 = vld [vmem:[%s1891 + $0x6c] sm:$0xff]
    %v1909 = vld [vmem:[%s1891 + $0x74] sm:$0xf]
    %v1910 = vld [vmem:[%s1891 + $0x78] sm:$0xff]
    %v1911 = vld [vmem:[%s1891 + $0x80] sm:$0xff]
    %v1912 = vld [vmem:[%s1891 + $0x88] sm:$0xf]
    %v1913 = vld [vmem:[%s1891 + $0x8c] sm:$0xff]
    %v1914 = vld [vmem:[%s1891 + $0x94] sm:$0xff]
    %v1915 = vld [vmem:[%s1891 + $0x9c] sm:$0xf]
    %1916 = vrot.lane.b32.xlu0 %v1883, 9
    %v1917 = vpop.permute.xlu0 %1916
    %1918 = vrot.lane.b32.xlu0 %v1884, 9
    %v1919 = vpop.permute.xlu0 %1918
    %1920 = vrot.lane.b32.xlu0 %v1885, 9
    %v1921 = vpop.permute.xlu0 %1920
    %1922 = vrot.lane.b32.xlu0 %v1886, 9
    %v1923 = vpop.permute.xlu0 %1922
    %1924 = vrot.lane.b32.xlu0 %v1887, 9
    %v1925 = vpop.permute.xlu0 %1924
    %1926 = vrot.lane.b32.xlu0 %v1888, 9
    %v1927 = vpop.permute.xlu0 %1926
    %1928 = vrot.lane.b32.xlu0 %v1889, 9
    %v1929 = vpop.permute.xlu0 %1928
    %1930 = vrot.lane.b32.xlu0 %v1890, 9
    %v1931 = vpop.permute.xlu0 %1930
    %1932 = vrot.lane.b32.xlu0 %v1883, 8
    %v1933 = vpop.permute.xlu0 %1932
    %1934 = vrot.lane.b32.xlu0 %v1884, 8
    %v1935 = vpop.permute.xlu0 %1934
    %1936 = vrot.lane.b32.xlu0 %v1885, 8
    %v1937 = vpop.permute.xlu0 %1936
    %1938 = vrot.lane.b32.xlu0 %v1886, 8
    %v1939 = vpop.permute.xlu0 %1938
    %1940 = vrot.lane.b32.xlu0 %v1887, 8
    %v1941 = vpop.permute.xlu0 %1940
    %1942 = vrot.lane.b32.xlu0 %v1888, 8
    %v1943 = vpop.permute.xlu0 %1942
    %1944 = vrot.lane.b32.xlu0 %v1889, 8
    %v1945 = vpop.permute.xlu0 %1944
    %1946 = vrot.lane.b32.xlu0 %v1890, 8
    %v1947 = vpop.permute.xlu0 %1946
    %1948 = vrot.lane.b32.xlu0 %v1883, 7
    %v1949 = vpop.permute.xlu0 %1948
    %1950 = vrot.lane.b32.xlu0 %v1884, 7
    %v1951 = vpop.permute.xlu0 %1950
    %1952 = vrot.lane.b32.xlu0 %v1885, 7
    %v1953 = vpop.permute.xlu0 %1952
    %1954 = vrot.lane.b32.xlu0 %v1886, 7
    %v1955 = vpop.permute.xlu0 %1954
    %1956 = vrot.lane.b32.xlu0 %v1887, 7
    %v1957 = vpop.permute.xlu0 %1956
    %1958 = vrot.lane.b32.xlu0 %v1888, 7
    %v1959 = vpop.permute.xlu0 %1958
    %1960 = vrot.lane.b32.xlu0 %v1889, 7
    %v1961 = vpop.permute.xlu0 %1960
    %1962 = vrot.lane.b32.xlu0 %v1890, 7
    %v1963 = vpop.permute.xlu0 %1962
    %1964 = vrot.lane.b32.xlu0 %v1883, 1
    %v1965 = vpop.permute.xlu0 %1964
    %1966 = vrot.lane.b32.xlu0 %v1884, 1
    %v1967 = vpop.permute.xlu0 %1966
    %1968 = vrot.lane.b32.xlu0 %v1885, 1
    %v1969 = vpop.permute.xlu0 %1968
    %1970 = vrot.lane.b32.xlu0 %v1886, 1
    %v1971 = vpop.permute.xlu0 %1970
    %1972 = vrot.lane.b32.xlu0 %v1887, 1
    %v1973 = vpop.permute.xlu0 %1972
    %1974 = vrot.lane.b32.xlu0 %v1888, 1
    %v1975 = vpop.permute.xlu0 %1974
    %1976 = vrot.lane.b32.xlu0 %v1889, 1
    %v1977 = vpop.permute.xlu0 %1976
    %1978 = vrot.lane.b32.xlu0 %v1890, 1
    %v1979 = vpop.permute.xlu0 %1978
    %1980 = vrot.lane.b32.xlu0 %v1883, 127
    %v1981 = vpop.permute.xlu0 %1980
    %1982 = vrot.lane.b32.xlu0 %v1884, 127
    %v1983 = vpop.permute.xlu0 %1982
    %1984 = vrot.lane.b32.xlu0 %v1885, 127
    %v1985 = vpop.permute.xlu0 %1984
    %1986 = vrot.lane.b32.xlu0 %v1886, 127
    %v1987 = vpop.permute.xlu0 %1986
    %1988 = vrot.lane.b32.xlu0 %v1887, 127
    %v1989 = vpop.permute.xlu0 %1988
    %1990 = vrot.lane.b32.xlu0 %v1888, 127
    %v1991 = vpop.permute.xlu0 %1990
    %1992 = vrot.lane.b32.xlu0 %v1889, 127
    %v1993 = vpop.permute.xlu0 %1992
    %1994 = vrot.lane.b32.xlu0 %v1890, 127
    %v1995 = vpop.permute.xlu0 %1994
    %1996 = vrot.lane.b32.xlu0 %v1883, 121
    %v1997 = vpop.permute.xlu0 %1996
    %1998 = vrot.lane.b32.xlu0 %v1884, 121
    %v1999 = vpop.permute.xlu0 %1998
    %2000 = vrot.lane.b32.xlu0 %v1885, 121
    %v2001 = vpop.permute.xlu0 %2000
    %2002 = vrot.lane.b32.xlu0 %v1886, 121
    %v2003 = vpop.permute.xlu0 %2002
    %2004 = vrot.lane.b32.xlu0 %v1887, 121
    %v2005 = vpop.permute.xlu0 %2004
    %2006 = vrot.lane.b32.xlu0 %v1888, 121
    %v2007 = vpop.permute.xlu0 %2006
    %2008 = vrot.lane.b32.xlu0 %v1889, 121
    %v2009 = vpop.permute.xlu0 %2008
    %2010 = vrot.lane.b32.xlu0 %v1890, 121
    %v2011 = vpop.permute.xlu0 %2010
    %2012 = vrot.lane.b32.xlu0 %v1883, 120
    %v2013 = vpop.permute.xlu0 %2012
    %2014 = vrot.lane.b32.xlu0 %v1884, 120
    %v2015 = vpop.permute.xlu0 %2014
    %2016 = vrot.lane.b32.xlu0 %v1885, 120
    %v2017 = vpop.permute.xlu0 %2016
    %2018 = vrot.lane.b32.xlu0 %v1886, 120
    %v2019 = vpop.permute.xlu0 %2018
    %2020 = vrot.lane.b32.xlu0 %v1887, 120
    %v2021 = vpop.permute.xlu0 %2020
    %2022 = vrot.lane.b32.xlu0 %v1888, 120
    %v2023 = vpop.permute.xlu0 %2022
    %2024 = vrot.lane.b32.xlu0 %v1889, 120
    %v2025 = vpop.permute.xlu0 %2024
    %2026 = vrot.lane.b32.xlu0 %v1890, 120
    %v2027 = vpop.permute.xlu0 %2026
    %2028 = vrot.lane.b32.xlu0 %v1883, 119
    %v2029 = vpop.permute.xlu0 %2028
    %2030 = vrot.lane.b32.xlu0 %v1884, 119
    %v2031 = vpop.permute.xlu0 %2030
    %2032 = vrot.lane.b32.xlu0 %v1885, 119
    %v2033 = vpop.permute.xlu0 %2032
    %2034 = vrot.lane.b32.xlu0 %v1886, 119
    %v2035 = vpop.permute.xlu0 %2034
    %2036 = vrot.lane.b32.xlu0 %v1887, 119
    %v2037 = vpop.permute.xlu0 %2036
    %2038 = vrot.lane.b32.xlu0 %v1888, 119
    %v2039 = vpop.permute.xlu0 %2038
    %2040 = vrot.lane.b32.xlu0 %v1889, 119
    %v2041 = vpop.permute.xlu0 %2040
    %2042 = vrot.lane.b32.xlu0 %v1890, 119
    %v2043 = vpop.permute.xlu0 %2042
    %v2044 = vpack.c.bf16 %v1919, %v1917
    %v2045 = vpack.c.bf16 %v1923, %v1921
    %v2046 = vpack.c.bf16 %v1927, %v1925
    %v2047 = vpack.c.bf16 %v1931, %v1929
    %v2048 = vpack.c.bf16 %v1935, %v1933
    %v2049 = vpack.c.bf16 %v1939, %v1937
    %v2050 = vpack.c.bf16 %v1943, %v1941
    %v2051 = vpack.c.bf16 %v1947, %v1945
    %v2052 = vpack.c.bf16 %v1951, %v1949
    %v2053 = vpack.c.bf16 %v1955, %v1953
    %v2054 = vpack.c.bf16 %v1959, %v1957
    %v2055 = vpack.c.bf16 %v1963, %v1961
    %v2056 = vpack.c.bf16 %v1967, %v1965
    %v2057 = vpack.c.bf16 %v1971, %v1969
    %v2058 = vpack.c.bf16 %v1975, %v1973
    %v2059 = vpack.c.bf16 %v1979, %v1977
    %v2060 = vpack.c.bf16 %v1884, %v1883
    %v2061 = vpack.c.bf16 %v1886, %v1885
    %v2062 = vpack.c.bf16 %v1888, %v1887
    %v2063 = vpack.c.bf16 %v1890, %v1889
    %v2064 = vpack.c.bf16 %v1983, %v1981
    %v2065 = vpack.c.bf16 %v1987, %v1985
    %v2066 = vpack.c.bf16 %v1991, %v1989
    %v2067 = vpack.c.bf16 %v1995, %v1993
    %v2068 = vpack.c.bf16 %v1999, %v1997
    %v2069 = vpack.c.bf16 %v2003, %v2001
    %v2070 = vpack.c.bf16 %v2007, %v2005
    %v2071 = vpack.c.bf16 %v2011, %v2009
    %v2072 = vpack.c.bf16 %v2015, %v2013
    %v2073 = vpack.c.bf16 %v2019, %v2017
    %v2074 = vpack.c.bf16 %v2023, %v2021
    %v2075 = vpack.c.bf16 %v2027, %v2025
    %v2076 = vpack.c.bf16 %v2031, %v2029
    %v2077 = vpack.c.bf16 %v2035, %v2033
    %v2078 = vpack.c.bf16 %v2039, %v2037
    %v2079 = vpack.c.bf16 %v2043, %v2041
    %v2080 = vmul.bf16 %v2044, %v558
    %v2081 = vmul.bf16 %v2045, %v559
    %v2082 = vmul.bf16 %v2046, %v560
    %v2083 = vmul.bf16 %v2047, %v561
    %v2084 = vmul.bf16 %v2048, %v562
    %v2085 = vmul.bf16 %v2049, %v563
    %v2086 = vmul.bf16 %v2050, %v564
    %v2087 = vmul.bf16 %v2051, %v565
    %v2088 = vmul.bf16 %v2052, %v566
    %v2089 = vmul.bf16 %v2053, %v567
    %v2090 = vmul.bf16 %v2054, %v568
    %v2091 = vmul.bf16 %v2055, %v569
    %v2092 = vmul.bf16 %v2056, %v570
    %v2093 = vmul.bf16 %v2057, %v571
    %v2094 = vmul.bf16 %v2058, %v572
    %v2095 = vmul.bf16 %v2059, %v573
    %v2096 = vmul.bf16 %v2060, %v574
    %v2097 = vmul.bf16 %v2061, %v575
    %v2098 = vmul.bf16 %v2062, %v576
    %v2099 = vmul.bf16 %v2063, %v577
    %v2100 = vmul.bf16 %v2064, %v578
    %v2101 = vmul.bf16 %v2065, %v579
    %v2102 = vmul.bf16 %v2066, %v580
    %v2103 = vmul.bf16 %v2067, %v581
    %v2104 = vmul.bf16 %v2068, %v582
    %v2105 = vmul.bf16 %v2069, %v583
    %v2106 = vmul.bf16 %v2070, %v584
    %v2107 = vmul.bf16 %v2071, %v585
    %v2108 = vmul.bf16 %v2072, %v586
    %v2109 = vmul.bf16 %v2073, %v587
    %v2110 = vmul.bf16 %v2074, %v588
    %v2111 = vmul.bf16 %v2075, %v589
    %v2112 = vmul.bf16 %v2076, %v590
    %v2113 = vmul.bf16 %v2077, %v591
    %v2114 = vmul.bf16 %v2078, %v592
    %v2115 = vmul.bf16 %v2079, %v593
    %v2140 = vunpack.c.l.b16 %v1892
    %v2141 = vunpack.c.h.b16 %v1892
    %v2142 = vunpack.c.l.b16 %v1893
    %v2143 = vunpack.c.h.b16 %v1893
    %v2144 = vunpack.c.l.b16 %v1894
    %v2145 = vunpack.c.l.b16 %v1895
    %v2146 = vunpack.c.h.b16 %v1895
    %v2147 = vunpack.c.l.b16 %v1896
    %v2148 = vunpack.c.h.b16 %v1896
    %v2149 = vunpack.c.l.b16 %v1897
    %v2150 = vunpack.c.l.b16 %v1898
    %v2151 = vunpack.c.h.b16 %v1898
    %v2152 = vunpack.c.l.b16 %v1899
    %v2153 = vunpack.c.h.b16 %v1899
    %v2154 = vunpack.c.l.b16 %v1900
    %v2155 = vunpack.c.l.b16 %v1901
    %v2156 = vunpack.c.h.b16 %v1901
    %v2157 = vunpack.c.l.b16 %v1902
    %v2158 = vunpack.c.h.b16 %v1902
    %v2159 = vunpack.c.l.b16 %v1903
    %v2160 = vunpack.c.l.b16 %v1904
    %v2161 = vunpack.c.h.b16 %v1904
    %v2162 = vunpack.c.l.b16 %v1905
    %v2163 = vunpack.c.h.b16 %v1905
    %v2164 = vunpack.c.l.b16 %v1906
    %v2165 = vunpack.c.l.b16 %v1907
    %v2166 = vunpack.c.h.b16 %v1907
    %v2167 = vunpack.c.l.b16 %v1908
    %v2168 = vunpack.c.h.b16 %v1908
    %v2169 = vunpack.c.l.b16 %v1909
    %v2170 = vunpack.c.l.b16 %v1910
    %v2171 = vunpack.c.h.b16 %v1910
    %v2172 = vunpack.c.l.b16 %v1911
    %v2173 = vunpack.c.h.b16 %v1911
    %v2174 = vunpack.c.l.b16 %v1912
    %v2175 = vunpack.c.l.b16 %v1913
    %v2176 = vunpack.c.h.b16 %v1913
    %v2177 = vunpack.c.l.b16 %v1914
    %v2178 = vunpack.c.h.b16 %v1914
    %v2179 = vunpack.c.l.b16 %v1915
    %v2180 = vpack.c.b16 %v2145, %v2140
    %v2181 = vpack.c.b16 %v2146, %v2141
    %v2182 = vpack.c.b16 %v2147, %v2142
    %v2183 = vpack.c.b16 %v2148, %v2143
    %v2184 = vpack.c.b16 %v2149, %v2144
    %v2185 = vpack.c.b16 %v2155, %v2150
    %v2186 = vpack.c.b16 %v2156, %v2151
    %v2187 = vpack.c.b16 %v2157, %v2152
    %v2188 = vpack.c.b16 %v2158, %v2153
    %v2189 = vpack.c.b16 %v2159, %v2154
    %v2190 = vpack.c.b16 %v2165, %v2160
    %v2191 = vpack.c.b16 %v2166, %v2161
    %v2192 = vpack.c.b16 %v2167, %v2162
    %v2193 = vpack.c.b16 %v2168, %v2163
    %v2194 = vpack.c.b16 %v2169, %v2164
    %v2195 = vpack.c.b16 %v2175, %v2170
    %v2196 = vpack.c.b16 %v2176, %v2171
    %v2197 = vpack.c.b16 %v2177, %v2172
    %v2198 = vpack.c.b16 %v2178, %v2173
    %v2199 = vpack.c.b16 %v2179, %v2174
    %v2217 = vsel %vm766, %v2184, 0
    %v2220 = vsel %vm766, %v2189, 0
    %v2223 = vsel %vm766, %v2194, 0
    %v2226 = vsel %vm766, %v2199, 0
    %2228 = vmatprep.subr.bf16.mxu0 0
    %2229 = vmatpush1.bf16.msra.mxu0 %v2080
    %2230 = vmatprep.subr.bf16.mxu0 0
    %2231 = vmatpush1.bf16.msra.mxu0 %v2081
    %2232 = vmatprep.subr.bf16.mxu0 0
    %2233 = vmatpush1.bf16.msra.mxu0 %v2082
    %2234 = vmatprep.subr.bf16.mxu0 0
    %2235 = vmatpush1.bf16.msra.mxu0 %v2083
    %2236 = vmatprep.subr.bf16.mxu0 0
    %2237 = vmatpush1.bf16.msra.mxu0 %v2084
    %2238 = vmatprep.subr.bf16.mxu0 0
    %2239 = vmatpush1.bf16.msra.mxu0 %v2085
    %2240 = vmatprep.subr.bf16.mxu0 0
    %2241 = vmatpush1.bf16.msra.mxu0 %v2086
    %2242 = vmatprep.subr.bf16.mxu0 0
    %2243 = vmatpush1.bf16.msra.mxu0 %v2087
    %2244 = vmatprep.subr.bf16.mxu0 0
    %2245 = vmatpush1.bf16.msra.mxu0 %v2088
    %2246 = vmatprep.subr.bf16.mxu0 0
    %2247 = vmatpush1.bf16.msra.mxu0 %v2089
    %2248 = vmatprep.subr.bf16.mxu0 0
    %2249 = vmatpush1.bf16.msra.mxu0 %v2090
    %2250 = vmatprep.subr.bf16.mxu0 0
    %2251 = vmatpush1.bf16.msra.mxu0 %v2091
    %2252 = vmatprep.subr.bf16.mxu0 0
    %2253 = vmatpush1.bf16.msra.mxu0 %v2092
    %2254 = vmatprep.subr.bf16.mxu0 0
    %2255 = vmatpush1.bf16.msra.mxu0 %v2093
    %2256 = vmatprep.subr.bf16.mxu0 0
    %2257 = vmatpush1.bf16.msra.mxu0 %v2094
    %2258 = vmatprep.subr.bf16.mxu0 0
    %2259 = vmatpush1.bf16.msra.mxu0 %v2095
    %2260 = vmatprep.mubr.bf16.mxu0 %v2181
    %2261 = vmatmul.mubr.bf16.gmra.mrb[0].mxu0 %v2180
    %v2262 = vpop.f32.mrb[0].mxu0
    %v2263 = vadd.f32 0.0, %v2262
    %v2264 = vpop.f32.mrb[0].mxu0
    %v2265 = vpop.f32.mrb[0].mxu0
    %v2266 = vadd.f32 0.0, %v2265
    %v2267 = vpop.f32.mrb[0].mxu0
    %2268 = vmatprep.mubr.bf16.mxu0 %v2186
    %2269 = vmatmul.mubr.bf16.gmra.mrb[0].mxu0 %v2185
    %v2270 = vpop.f32.mrb[0].mxu0
    %v2271 = vadd.f32 0.0, %v2270
    %v2272 = vpop.f32.mrb[0].mxu0
    %v2273 = vpop.f32.mrb[0].mxu0
    %v2274 = vadd.f32 0.0, %v2273
    %v2275 = vpop.f32.mrb[0].mxu0
    %2276 = vmatprep.mubr.bf16.mxu0 %v2191
    %2277 = vmatmul.mubr.bf16.gmra.mrb[0].mxu0 %v2190
    %v2278 = vpop.f32.mrb[0].mxu0
    %v2279 = vadd.f32 0.0, %v2278
    %v2280 = vpop.f32.mrb[0].mxu0
    %v2281 = vpop.f32.mrb[0].mxu0
    %v2282 = vadd.f32 0.0, %v2281
    %v2283 = vpop.f32.mrb[0].mxu0
    %2284 = vmatprep.mubr.bf16.mxu0 %v2196
    %2285 = vmatmul.mubr.bf16.gmra.mrb[0].mxu0 %v2195
    %v2286 = vpop.f32.mrb[0].mxu0
    %v2287 = vadd.f32 0.0, %v2286
    %v2288 = vpop.f32.mrb[0].mxu0
    %v2289 = vpop.f32.mrb[0].mxu0
    %v2290 = vadd.f32 0.0, %v2289
    %v2291 = vpop.f32.mrb[0].mxu0
    %2292 = vdwg.mxu0
    %2293 = vmatprep.subr.bf16.mxu0 0
    %2294 = vmatpush1.bf16.msra.mxu0 %v2096
    %2295 = vmatprep.subr.bf16.mxu0 0
    %2296 = vmatpush1.bf16.msra.mxu0 %v2097
    %2297 = vmatprep.subr.bf16.mxu0 0
    %2298 = vmatpush1.bf16.msra.mxu0 %v2098
    %2299 = vmatprep.subr.bf16.mxu0 0
    %2300 = vmatpush1.bf16.msra.mxu0 %v2099
    %2301 = vmatprep.subr.bf16.mxu0 0
    %2302 = vmatpush1.bf16.msra.mxu0 %v2100
    %2303 = vmatprep.subr.bf16.mxu0 0
    %2304 = vmatpush1.bf16.msra.mxu0 %v2101
    %2305 = vmatprep.subr.bf16.mxu0 0
    %2306 = vmatpush1.bf16.msra.mxu0 %v2102
    %2307 = vmatprep.subr.bf16.mxu0 0
    %2308 = vmatpush1.bf16.msra.mxu0 %v2103
    %2309 = vmatprep.subr.bf16.mxu0 0
    %2310 = vmatpush1.bf16.msra.mxu0 %v2104
    %2311 = vmatprep.subr.bf16.mxu0 0
    %2312 = vmatpush1.bf16.msra.mxu0 %v2105
    %2313 = vmatprep.subr.bf16.mxu0 0
    %2314 = vmatpush1.bf16.msra.mxu0 %v2106
    %2315 = vmatprep.subr.bf16.mxu0 0
    %2316 = vmatpush1.bf16.msra.mxu0 %v2107
    %2317 = vmatprep.subr.bf16.mxu0 0
    %2318 = vmatpush1.bf16.msra.mxu0 %v2108
    %2319 = vmatprep.subr.bf16.mxu0 0
    %2320 = vmatpush1.bf16.msra.mxu0 %v2109
    %2321 = vmatprep.subr.bf16.mxu0 0
    %2322 = vmatpush1.bf16.msra.mxu0 %v2110
    %2323 = vmatprep.subr.bf16.mxu0 0
    %2324 = vmatpush1.bf16.msra.mxu0 %v2111
    %2325 = vmatprep.mubr.bf16.mxu0 %v2183
    %2326 = vmatmul.mubr.bf16.gmra.mrb[0].mxu0 %v2182
    %v2327 = vpop.f32.mrb[0].mxu0
    %v2328 = vadd.f32 %v2263, %v2327
    %v2329 = vpop.f32.mrb[0].mxu0
    %v2330 = vpop.f32.mrb[0].mxu0
    %v2331 = vadd.f32 %v2266, %v2330
    %v2332 = vpop.f32.mrb[0].mxu0
    %2333 = vmatprep.mubr.bf16.mxu0 %v2188
    %2334 = vmatmul.mubr.bf16.gmra.mrb[0].mxu0 %v2187
    %v2335 = vpop.f32.mrb[0].mxu0
    %v2336 = vadd.f32 %v2271, %v2335
    %v2337 = vpop.f32.mrb[0].mxu0
    %v2338 = vpop.f32.mrb[0].mxu0
    %v2339 = vadd.f32 %v2274, %v2338
    %v2340 = vpop.f32.mrb[0].mxu0
    %2341 = vmatprep.mubr.bf16.mxu0 %v2193
    %2342 = vmatmul.mubr.bf16.gmra.mrb[0].mxu0 %v2192
    %v2343 = vpop.f32.mrb[0].mxu0
    %v2344 = vadd.f32 %v2279, %v2343
    %v2345 = vpop.f32.mrb[0].mxu0
    %v2346 = vpop.f32.mrb[0].mxu0
    %v2347 = vadd.f32 %v2282, %v2346
    %v2348 = vpop.f32.mrb[0].mxu0
    %2349 = vmatprep.mubr.bf16.mxu0 %v2198
    %2350 = vmatmul.mubr.bf16.gmra.mrb[0].mxu0 %v2197
    %v2351 = vpop.f32.mrb[0].mxu0
    %v2352 = vadd.f32 %v2287, %v2351
    %v2353 = vpop.f32.mrb[0].mxu0
    %v2354 = vpop.f32.mrb[0].mxu0
    %v2355 = vadd.f32 %v2290, %v2354
    %v2356 = vpop.f32.mrb[0].mxu0
    %2357 = vdwg.mxu0
    %2358 = vmatprep.subr.bf16.mxu0 0
    %2359 = vmatpush1.bf16.msra.mxu0 %v2112
    %2360 = vmatprep.subr.bf16.mxu0 0
    %2361 = vmatpush1.bf16.msra.mxu0 %v2113
    %2362 = vmatprep.subr.bf16.mxu0 0
    %2363 = vmatpush1.bf16.msra.mxu0 %v2114
    %2364 = vmatprep.subr.bf16.mxu0 0
    %2365 = vmatpush1.bf16.msra.mxu0 %v2115
    %2366 = vmatprep.subr.bf16.mxu0 0
    %2367 = vmatpush1.bf16.msra.mxu0 0
    %2368 = vmatprep.subr.bf16.mxu0 0
    %2369 = vmatpush1.bf16.msra.mxu0 0
    %2370 = vmatprep.subr.bf16.mxu0 0
    %2371 = vmatpush1.bf16.msra.mxu0 0
    %2372 = vmatprep.subr.bf16.mxu0 0
    %2373 = vmatpush1.bf16.msra.mxu0 0
    %2374 = vmatprep.subr.bf16.mxu0 0
    %2375 = vmatpush1.bf16.msra.mxu0 0
    %2376 = vmatprep.subr.bf16.mxu0 0
    %2377 = vmatpush1.bf16.msra.mxu0 0
    %2378 = vmatprep.subr.bf16.mxu0 0
    %2379 = vmatpush1.bf16.msra.mxu0 0
    %2380 = vmatprep.subr.bf16.mxu0 0
    %2381 = vmatpush1.bf16.msra.mxu0 0
    %2382 = vmatprep.subr.bf16.mxu0 0
    %2383 = vmatpush1.bf16.msra.mxu0 0
    %2384 = vmatprep.subr.bf16.mxu0 0
    %2385 = vmatpush1.bf16.msra.mxu0 0
    %2386 = vmatprep.subr.bf16.mxu0 0
    %2387 = vmatpush1.bf16.msra.mxu0 0
    %2388 = vmatprep.subr.bf16.mxu0 0
    %2389 = vmatpush1.bf16.msra.mxu0 0
    %2390 = vmatprep.mubr.bf16.mxu0 0
    %2391 = vmatmul.mubr.bf16.gmra.mrb[0].mxu0 %v2217
    %v2392 = vpop.f32.mrb[0].mxu0
    %v2393 = vadd.f32 %v2328, %v2392
    %v2394 = vpop.f32.mrb[0].mxu0
    %v2395 = vpop.f32.mrb[0].mxu0
    %v2396 = vadd.f32 %v2331, %v2395
    %v2397 = vpop.f32.mrb[0].mxu0
    %2398 = vmatprep.mubr.bf16.mxu0 0
    %2399 = vmatmul.mubr.bf16.gmra.mrb[0].mxu0 %v2220
    %v2400 = vpop.f32.mrb[0].mxu0
    %v2401 = vadd.f32 %v2336, %v2400
    %v2402 = vpop.f32.mrb[0].mxu0
    %v2403 = vpop.f32.mrb[0].mxu0
    %v2404 = vadd.f32 %v2339, %v2403
    %v2405 = vpop.f32.mrb[0].mxu0
    %2406 = vmatprep.mubr.bf16.mxu0 0
    %2407 = vmatmul.mubr.bf16.gmra.mrb[0].mxu0 %v2223
    %v2408 = vpop.f32.mrb[0].mxu0
    %v2409 = vadd.f32 %v2344, %v2408
    %v2410 = vpop.f32.mrb[0].mxu0
    %v2411 = vpop.f32.mrb[0].mxu0
    %v2412 = vadd.f32 %v2347, %v2411
    %v2413 = vpop.f32.mrb[0].mxu0
    %2414 = vmatprep.mubr.bf16.mxu0 0
    %2415 = vmatmul.mubr.bf16.gmra.mrb[0].mxu0 %v2226
    %v2416 = vpop.f32.mrb[0].mxu0
    %v2417 = vadd.f32 %v2352, %v2416
    %v2418 = vpop.f32.mrb[0].mxu0
    %v2419 = vpop.f32.mrb[0].mxu0
    %v2420 = vadd.f32 %v2355, %v2419
    %v2421 = vpop.f32.mrb[0].mxu0
    %2422 = vdwg.mxu0
    %2423 = vadd.xlane.f32.xlu0 %v2393
    %v2424 = vpop.xlane.xlu0 %2423
    %2425 = vadd.xlane.f32.xlu0 %v2396
    %v2426 = vpop.xlane.xlu0 %2425
    %2427 = vadd.xlane.f32.xlu0 %v2401
    %v2428 = vpop.xlane.xlu0 %2427
    %2429 = vadd.xlane.f32.xlu0 %v2404
    %v2430 = vpop.xlane.xlu0 %2429
    %2431 = vadd.xlane.f32.xlu0 %v2409
    %v2432 = vpop.xlane.xlu0 %2431
    %2433 = vadd.xlane.f32.xlu0 %v2412
    %v2434 = vpop.xlane.xlu0 %2433
    %2435 = vadd.xlane.f32.xlu0 %v2417
    %v2436 = vpop.xlane.xlu0 %2435
    %2437 = vadd.xlane.f32.xlu0 %v2420
    %v2438 = vpop.xlane.xlu0 %2437
    %v2439 = vmul.f32 %v2424, %v990
    %v2440 = vmul.f32 %v2426, %v990
    %v2441 = vmul.f32 %v2428, %v990
    %v2442 = vmul.f32 %v2430, %v990
    %v2443 = vmul.f32 %v2432, %v990
    %v2444 = vmul.f32 %v2434, %v990
    %v2445 = vmul.f32 %v2436, %v990
    %v2446 = vmul.f32 %v2438, %v990
    %v2447 = vsub.f32 %v2393, %v2439
    %v2448 = vsub.f32 %v2396, %v2440
    %v2449 = vsub.f32 %v2401, %v2441
    %v2450 = vsub.f32 %v2404, %v2442
    %v2451 = vsub.f32 %v2409, %v2443
    %v2452 = vsub.f32 %v2412, %v2444
    %v2453 = vsub.f32 %v2417, %v2445
    %v2454 = vsub.f32 %v2420, %v2446
    %v2455 = vmul.f32 %v2447, %v2447
    %v2456 = vmul.f32 %v2448, %v2448
    %v2457 = vmul.f32 %v2449, %v2449
    %v2458 = vmul.f32 %v2450, %v2450
    %v2459 = vmul.f32 %v2451, %v2451
    %v2460 = vmul.f32 %v2452, %v2452
    %v2461 = vmul.f32 %v2453, %v2453
    %v2462 = vmul.f32 %v2454, %v2454
    %2463 = vadd.xlane.f32.xlu0 %v2455
    %v2464 = vpop.xlane.xlu0 %2463
    %2465 = vadd.xlane.f32.xlu0 %v2456
    %v2466 = vpop.xlane.xlu0 %2465
    %2467 = vadd.xlane.f32.xlu0 %v2457
    %v2468 = vpop.xlane.xlu0 %2467
    %2469 = vadd.xlane.f32.xlu0 %v2458
    %v2470 = vpop.xlane.xlu0 %2469
    %2471 = vadd.xlane.f32.xlu0 %v2459
    %v2472 = vpop.xlane.xlu0 %2471
    %2473 = vadd.xlane.f32.xlu0 %v2460
    %v2474 = vpop.xlane.xlu0 %2473
    %2475 = vadd.xlane.f32.xlu0 %v2461
    %v2476 = vpop.xlane.xlu0 %2475
    %2477 = vadd.xlane.f32.xlu0 %v2462
    %v2478 = vpop.xlane.xlu0 %2477
    %v2479 = vmul.f32 %v2464, %v990
    %v2480 = vmul.f32 %v2466, %v990
    %v2481 = vmul.f32 %v2468, %v990
    %v2482 = vmul.f32 %v2470, %v990
    %v2483 = vmul.f32 %v2472, %v990
    %v2484 = vmul.f32 %v2474, %v990
    %v2485 = vmul.f32 %v2476, %v990
    %v2486 = vmul.f32 %v2478, %v990
    %v2487 = vadd.f32 %v2479, 1e-05
    %v2488 = vadd.f32 %v2480, 1e-05
    %v2489 = vadd.f32 %v2481, 1e-05
    %v2490 = vadd.f32 %v2482, 1e-05
    %v2491 = vadd.f32 %v2483, 1e-05
    %v2492 = vadd.f32 %v2484, 1e-05
    %v2493 = vadd.f32 %v2485, 1e-05
    %v2494 = vadd.f32 %v2486, 1e-05
    %v2495 = vrsqrt.pop %v2487
    %v2496 = vrsqrt.pop %v2488
    %v2497 = vrsqrt.pop %v2489
    %v2498 = vrsqrt.pop %v2490
    %v2499 = vrsqrt.pop %v2491
    %v2500 = vrsqrt.pop %v2492
    %v2501 = vrsqrt.pop %v2493
    %v2502 = vrsqrt.pop %v2494
    %v2503 = vmul.f32 %v194, %v2495
    %v2504 = vmul.f32 %v195, %v2496
    %v2505 = vmul.f32 %v196, %v2497
    %v2506 = vmul.f32 %v197, %v2498
    %v2507 = vmul.f32 %v198, %v2499
    %v2508 = vmul.f32 %v199, %v2500
    %v2509 = vmul.f32 %v200, %v2501
    %v2510 = vmul.f32 %v201, %v2502
    %2512 = vset.pattern.permute.xlu0 2
    %2513 = vperm.xlu0 %2512, %v2503
    %v2514 = vpop.permute.xlu0 %2513
    %2517 = vset.pattern.permute.xlu0 2
    %2518 = vperm.xlu0 %2517, %v2504
    %v2519 = vpop.permute.xlu0 %2518
    %2522 = vset.pattern.permute.xlu0 2
    %2523 = vperm.xlu0 %2522, %v2505
    %v2524 = vpop.permute.xlu0 %2523
    %2527 = vset.pattern.permute.xlu0 2
    %2528 = vperm.xlu0 %2527, %v2506
    %v2529 = vpop.permute.xlu0 %2528
    %2532 = vset.pattern.permute.xlu0 2
    %2533 = vperm.xlu0 %2532, %v2507
    %v2534 = vpop.permute.xlu0 %2533
    %2537 = vset.pattern.permute.xlu0 2
    %2538 = vperm.xlu0 %2537, %v2508
    %v2539 = vpop.permute.xlu0 %2538
    %2542 = vset.pattern.permute.xlu0 2
    %2543 = vperm.xlu0 %2542, %v2509
    %v2544 = vpop.permute.xlu0 %2543
    %2547 = vset.pattern.permute.xlu0 2
    %2548 = vperm.xlu0 %2547, %v2510
    %v2549 = vpop.permute.xlu0 %2548
    %v2551 = vmul.f32 %v2447, %v2514
    %v2552 = vmul.f32 %v2448, %v2519
    %v2553 = vmul.f32 %v2449, %v2524
    %v2554 = vmul.f32 %v2450, %v2529
    %v2555 = vmul.f32 %v2451, %v2534
    %v2556 = vmul.f32 %v2452, %v2539
    %v2557 = vmul.f32 %v2453, %v2544
    %v2558 = vmul.f32 %v2454, %v2549
    %2559 = vset.pattern.permute.xlu0 2
    %2560 = vperm.xlu0 %2559, %v202
    %v2561 = vpop.permute.xlu0 %2560
    %2563 = vset.pattern.permute.xlu0 2
    %2564 = vperm.xlu0 %2563, %v203
    %v2565 = vpop.permute.xlu0 %2564
    %2567 = vset.pattern.permute.xlu0 2
    %2568 = vperm.xlu0 %2567, %v204
    %v2569 = vpop.permute.xlu0 %2568
    %2571 = vset.pattern.permute.xlu0 2
    %2572 = vperm.xlu0 %2571, %v205
    %v2573 = vpop.permute.xlu0 %2572
    %2575 = vset.pattern.permute.xlu0 2
    %2576 = vperm.xlu0 %2575, %v206
    %v2577 = vpop.permute.xlu0 %2576
    %2579 = vset.pattern.permute.xlu0 2
    %2580 = vperm.xlu0 %2579, %v207
    %v2581 = vpop.permute.xlu0 %2580
    %2583 = vset.pattern.permute.xlu0 2
    %2584 = vperm.xlu0 %2583, %v208
    %v2585 = vpop.permute.xlu0 %2584
    %2587 = vset.pattern.permute.xlu0 2
    %2588 = vperm.xlu0 %2587, %v209
    %v2589 = vpop.permute.xlu0 %2588
    %v2591 = vadd.f32 %v2551, %v2561
    %v2592 = vadd.f32 %v2552, %v2565
    %v2593 = vadd.f32 %v2553, %v2569
    %v2594 = vadd.f32 %v2554, %v2573
    %v2595 = vadd.f32 %v2555, %v2577
    %v2596 = vadd.f32 %v2556, %v2581
    %v2597 = vadd.f32 %v2557, %v2585
    %v2598 = vadd.f32 %v2558, %v2589
    %v2599 = vmax.f32 %v2591, 0.0
    %v2600 = vmax.f32 %v2592, 0.0
    %v2601 = vmax.f32 %v2593, 0.0
    %v2602 = vmax.f32 %v2594, 0.0
    %v2603 = vmax.f32 %v2595, 0.0
    %v2604 = vmax.f32 %v2596, 0.0
    %v2605 = vmax.f32 %v2597, 0.0
    %v2606 = vmax.f32 %v2598, 0.0
    %s2607 = scalar_lea.vmem [#allocation6], 480
    %v2608 = vld [vmem:[%s2607] sm:$0xff]
    %v2609 = vld [vmem:[%s2607 + $0x8] sm:$0xff]
    %v2610 = vld [vmem:[%s2607 + $0x10] sm:$0xf]
    %v2611 = vld [vmem:[%s2607 + $0x14] sm:$0xff]
    %v2612 = vld [vmem:[%s2607 + $0x1c] sm:$0xff]
    %v2613 = vld [vmem:[%s2607 + $0x24] sm:$0xf]
    %v2614 = vld [vmem:[%s2607 + $0x28] sm:$0xff]
    %v2615 = vld [vmem:[%s2607 + $0x30] sm:$0xff]
    %v2616 = vld [vmem:[%s2607 + $0x38] sm:$0xf]
    %v2617 = vld [vmem:[%s2607 + $0x3c] sm:$0xff]
    %v2618 = vld [vmem:[%s2607 + $0x44] sm:$0xff]
    %v2619 = vld [vmem:[%s2607 + $0x4c] sm:$0xf]
    %v2620 = vld [vmem:[%s2607 + $0x50] sm:$0xff]
    %v2621 = vld [vmem:[%s2607 + $0x58] sm:$0xff]
    %v2622 = vld [vmem:[%s2607 + $0x60] sm:$0xf]
    %v2623 = vld [vmem:[%s2607 + $0x64] sm:$0xff]
    %v2624 = vld [vmem:[%s2607 + $0x6c] sm:$0xff]
    %v2625 = vld [vmem:[%s2607 + $0x74] sm:$0xf]
    %v2626 = vld [vmem:[%s2607 + $0x78] sm:$0xff]
    %v2627 = vld [vmem:[%s2607 + $0x80] sm:$0xff]
    %v2628 = vld [vmem:[%s2607 + $0x88] sm:$0xf]
    %v2629 = vld [vmem:[%s2607 + $0x8c] sm:$0xff]
    %v2630 = vld [vmem:[%s2607 + $0x94] sm:$0xff]
    %v2631 = vld [vmem:[%s2607 + $0x9c] sm:$0xf]
    %2632 = vrot.lane.b32.xlu0 %v2599, 9
    %v2633 = vpop.permute.xlu0 %2632
    %2634 = vrot.lane.b32.xlu0 %v2600, 9
    %v2635 = vpop.permute.xlu0 %2634
    %2636 = vrot.lane.b32.xlu0 %v2601, 9
    %v2637 = vpop.permute.xlu0 %2636
    %2638 = vrot.lane.b32.xlu0 %v2602, 9
    %v2639 = vpop.permute.xlu0 %2638
    %2640 = vrot.lane.b32.xlu0 %v2603, 9
    %v2641 = vpop.permute.xlu0 %2640
    %2642 = vrot.lane.b32.xlu0 %v2604, 9
    %v2643 = vpop.permute.xlu0 %2642
    %2644 = vrot.lane.b32.xlu0 %v2605, 9
    %v2645 = vpop.permute.xlu0 %2644
    %2646 = vrot.lane.b32.xlu0 %v2606, 9
    %v2647 = vpop.permute.xlu0 %2646
    %2648 = vrot.lane.b32.xlu0 %v2599, 8
    %v2649 = vpop.permute.xlu0 %2648
    %2650 = vrot.lane.b32.xlu0 %v2600, 8
    %v2651 = vpop.permute.xlu0 %2650
    %2652 = vrot.lane.b32.xlu0 %v2601, 8
    %v2653 = vpop.permute.xlu0 %2652
    %2654 = vrot.lane.b32.xlu0 %v2602, 8
    %v2655 = vpop.permute.xlu0 %2654
    %2656 = vrot.lane.b32.xlu0 %v2603, 8
    %v2657 = vpop.permute.xlu0 %2656
    %2658 = vrot.lane.b32.xlu0 %v2604, 8
    %v2659 = vpop.permute.xlu0 %2658
    %2660 = vrot.lane.b32.xlu0 %v2605, 8
    %v2661 = vpop.permute.xlu0 %2660
    %2662 = vrot.lane.b32.xlu0 %v2606, 8
    %v2663 = vpop.permute.xlu0 %2662
    %2664 = vrot.lane.b32.xlu0 %v2599, 7
    %v2665 = vpop.permute.xlu0 %2664
    %2666 = vrot.lane.b32.xlu0 %v2600, 7
    %v2667 = vpop.permute.xlu0 %2666
    %2668 = vrot.lane.b32.xlu0 %v2601, 7
    %v2669 = vpop.permute.xlu0 %2668
    %2670 = vrot.lane.b32.xlu0 %v2602, 7
    %v2671 = vpop.permute.xlu0 %2670
    %2672 = vrot.lane.b32.xlu0 %v2603, 7
    %v2673 = vpop.permute.xlu0 %2672
    %2674 = vrot.lane.b32.xlu0 %v2604, 7
    %v2675 = vpop.permute.xlu0 %2674
    %2676 = vrot.lane.b32.xlu0 %v2605, 7
    %v2677 = vpop.permute.xlu0 %2676
    %2678 = vrot.lane.b32.xlu0 %v2606, 7
    %v2679 = vpop.permute.xlu0 %2678
    %2680 = vrot.lane.b32.xlu0 %v2599, 1
    %v2681 = vpop.permute.xlu0 %2680
    %2682 = vrot.lane.b32.xlu0 %v2600, 1
    %v2683 = vpop.permute.xlu0 %2682
    %2684 = vrot.lane.b32.xlu0 %v2601, 1
    %v2685 = vpop.permute.xlu0 %2684
    %2686 = vrot.lane.b32.xlu0 %v2602, 1
    %v2687 = vpop.permute.xlu0 %2686
    %2688 = vrot.lane.b32.xlu0 %v2603, 1
    %v2689 = vpop.permute.xlu0 %2688
    %2690 = vrot.lane.b32.xlu0 %v2604, 1
    %v2691 = vpop.permute.xlu0 %2690
    %2692 = vrot.lane.b32.xlu0 %v2605, 1
    %v2693 = vpop.permute.xlu0 %2692
    %2694 = vrot.lane.b32.xlu0 %v2606, 1
    %v2695 = vpop.permute.xlu0 %2694
    %2696 = vrot.lane.b32.xlu0 %v2599, 127
    %v2697 = vpop.permute.xlu0 %2696
    %2698 = vrot.lane.b32.xlu0 %v2600, 127
    %v2699 = vpop.permute.xlu0 %2698
    %2700 = vrot.lane.b32.xlu0 %v2601, 127
    %v2701 = vpop.permute.xlu0 %2700
    %2702 = vrot.lane.b32.xlu0 %v2602, 127
    %v2703 = vpop.permute.xlu0 %2702
    %2704 = vrot.lane.b32.xlu0 %v2603, 127
    %v2705 = vpop.permute.xlu0 %2704
    %2706 = vrot.lane.b32.xlu0 %v2604, 127
    %v2707 = vpop.permute.xlu0 %2706
    %2708 = vrot.lane.b32.xlu0 %v2605, 127
    %v2709 = vpop.permute.xlu0 %2708
    %2710 = vrot.lane.b32.xlu0 %v2606, 127
    %v2711 = vpop.permute.xlu0 %2710
    %2712 = vrot.lane.b32.xlu0 %v2599, 121
    %v2713 = vpop.permute.xlu0 %2712
    %2714 = vrot.lane.b32.xlu0 %v2600, 121
    %v2715 = vpop.permute.xlu0 %2714
    %2716 = vrot.lane.b32.xlu0 %v2601, 121
    %v2717 = vpop.permute.xlu0 %2716
    %2718 = vrot.lane.b32.xlu0 %v2602, 121
    %v2719 = vpop.permute.xlu0 %2718
    %2720 = vrot.lane.b32.xlu0 %v2603, 121
    %v2721 = vpop.permute.xlu0 %2720
    %2722 = vrot.lane.b32.xlu0 %v2604, 121
    %v2723 = vpop.permute.xlu0 %2722
    %2724 = vrot.lane.b32.xlu0 %v2605, 121
    %v2725 = vpop.permute.xlu0 %2724
    %2726 = vrot.lane.b32.xlu0 %v2606, 121
    %v2727 = vpop.permute.xlu0 %2726
    %2728 = vrot.lane.b32.xlu0 %v2599, 120
    %v2729 = vpop.permute.xlu0 %2728
    %2730 = vrot.lane.b32.xlu0 %v2600, 120
    %v2731 = vpop.permute.xlu0 %2730
    %2732 = vrot.lane.b32.xlu0 %v2601, 120
    %v2733 = vpop.permute.xlu0 %2732
    %2734 = vrot.lane.b32.xlu0 %v2602, 120
    %v2735 = vpop.permute.xlu0 %2734
    %2736 = vrot.lane.b32.xlu0 %v2603, 120
    %v2737 = vpop.permute.xlu0 %2736
    %2738 = vrot.lane.b32.xlu0 %v2604, 120
    %v2739 = vpop.permute.xlu0 %2738
    %2740 = vrot.lane.b32.xlu0 %v2605, 120
    %v2741 = vpop.permute.xlu0 %2740
    %2742 = vrot.lane.b32.xlu0 %v2606, 120
    %v2743 = vpop.permute.xlu0 %2742
    %2744 = vrot.lane.b32.xlu0 %v2599, 119
    %v2745 = vpop.permute.xlu0 %2744
    %2746 = vrot.lane.b32.xlu0 %v2600, 119
    %v2747 = vpop.permute.xlu0 %2746
    %2748 = vrot.lane.b32.xlu0 %v2601, 119
    %v2749 = vpop.permute.xlu0 %2748
    %2750 = vrot.lane.b32.xlu0 %v2602, 119
    %v2751 = vpop.permute.xlu0 %2750
    %2752 = vrot.lane.b32.xlu0 %v2603, 119
    %v2753 = vpop.permute.xlu0 %2752
    %2754 = vrot.lane.b32.xlu0 %v2604, 119
    %v2755 = vpop.permute.xlu0 %2754
    %2756 = vrot.lane.b32.xlu0 %v2605, 119
    %v2757 = vpop.permute.xlu0 %2756
    %2758 = vrot.lane.b32.xlu0 %v2606, 119
    %v2759 = vpop.permute.xlu0 %2758
    %v2760 = vpack.c.bf16 %v2635, %v2633
    %v2761 = vpack.c.bf16 %v2639, %v2637
    %v2762 = vpack.c.bf16 %v2643, %v2641
    %v2763 = vpack.c.bf16 %v2647, %v2645
    %v2764 = vpack.c.bf16 %v2651, %v2649
    %v2765 = vpack.c.bf16 %v2655, %v2653
    %v2766 = vpack.c.bf16 %v2659, %v2657
    %v2767 = vpack.c.bf16 %v2663, %v2661
    %v2768 = vpack.c.bf16 %v2667, %v2665
    %v2769 = vpack.c.bf16 %v2671, %v2669
    %v2770 = vpack.c.bf16 %v2675, %v2673
    %v2771 = vpack.c.bf16 %v2679, %v2677
    %v2772 = vpack.c.bf16 %v2683, %v2681
    %v2773 = vpack.c.bf16 %v2687, %v2685
    %v2774 = vpack.c.bf16 %v2691, %v2689
    %v2775 = vpack.c.bf16 %v2695, %v2693
    %v2776 = vpack.c.bf16 %v2600, %v2599
    %v2777 = vpack.c.bf16 %v2602, %v2601
    %v2778 = vpack.c.bf16 %v2604, %v2603
    %v2779 = vpack.c.bf16 %v2606, %v2605
    %v2780 = vpack.c.bf16 %v2699, %v2697
    %v2781 = vpack.c.bf16 %v2703, %v2701
    %v2782 = vpack.c.bf16 %v2707, %v2705
    %v2783 = vpack.c.bf16 %v2711, %v2709
    %v2784 = vpack.c.bf16 %v2715, %v2713
    %v2785 = vpack.c.bf16 %v2719, %v2717
    %v2786 = vpack.c.bf16 %v2723, %v2721
    %v2787 = vpack.c.bf16 %v2727, %v2725
    %v2788 = vpack.c.bf16 %v2731, %v2729
    %v2789 = vpack.c.bf16 %v2735, %v2733
    %v2790 = vpack.c.bf16 %v2739, %v2737
    %v2791 = vpack.c.bf16 %v2743, %v2741
    %v2792 = vpack.c.bf16 %v2747, %v2745
    %v2793 = vpack.c.bf16 %v2751, %v2749
    %v2794 = vpack.c.bf16 %v2755, %v2753
    %v2795 = vpack.c.bf16 %v2759, %v2757
    %v2796 = vmul.bf16 %v2760, %v558
    %v2797 = vmul.bf16 %v2761, %v559
    %v2798 = vmul.bf16 %v2762, %v560
    %v2799 = vmul.bf16 %v2763, %v561
    %v2800 = vmul.bf16 %v2764, %v562
    %v2801 = vmul.bf16 %v2765, %v563
    %v2802 = vmul.bf16 %v2766, %v564
    %v2803 = vmul.bf16 %v2767, %v565
    %v2804 = vmul.bf16 %v2768, %v566
    %v2805 = vmul.bf16 %v2769, %v567
    %v2806 = vmul.bf16 %v2770, %v568
    %v2807 = vmul.bf16 %v2771, %v569
    %v2808 = vmul.bf16 %v2772, %v570
    %v2809 = vmul.bf16 %v2773, %v571
    %v2810 = vmul.bf16 %v2774, %v572
    %v2811 = vmul.bf16 %v2775, %v573
    %v2812 = vmul.bf16 %v2776, %v574
    %v2813 = vmul.bf16 %v2777, %v575
    %v2814 = vmul.bf16 %v2778, %v576
    %v2815 = vmul.bf16 %v2779, %v577
    %v2816 = vmul.bf16 %v2780, %v578
    %v2817 = vmul.bf16 %v2781, %v579
    %v2818 = vmul.bf16 %v2782, %v580
    %v2819 = vmul.bf16 %v2783, %v581
    %v2820 = vmul.bf16 %v2784, %v582
    %v2821 = vmul.bf16 %v2785, %v583
    %v2822 = vmul.bf16 %v2786, %v584
    %v2823 = vmul.bf16 %v2787, %v585
    %v2824 = vmul.bf16 %v2788, %v586
    %v2825 = vmul.bf16 %v2789, %v587
    %v2826 = vmul.bf16 %v2790, %v588
    %v2827 = vmul.bf16 %v2791, %v589
    %v2828 = vmul.bf16 %v2792, %v590
    %v2829 = vmul.bf16 %v2793, %v591
    %v2830 = vmul.bf16 %v2794, %v592
    %v2831 = vmul.bf16 %v2795, %v593
    %v2856 = vunpack.c.l.b16 %v2608
    %v2857 = vunpack.c.h.b16 %v2608
    %v2858 = vunpack.c.l.b16 %v2609
    %v2859 = vunpack.c.h.b16 %v2609
    %v2860 = vunpack.c.l.b16 %v2610
    %v2861 = vunpack.c.l.b16 %v2611
    %v2862 = vunpack.c.h.b16 %v2611
    %v2863 = vunpack.c.l.b16 %v2612
    %v2864 = vunpack.c.h.b16 %v2612
    %v2865 = vunpack.c.l.b16 %v2613
    %v2866 = vunpack.c.l.b16 %v2614
    %v2867 = vunpack.c.h.b16 %v2614
    %v2868 = vunpack.c.l.b16 %v2615
    %v2869 = vunpack.c.h.b16 %v2615
    %v2870 = vunpack.c.l.b16 %v2616
    %v2871 = vunpack.c.l.b16 %v2617
    %v2872 = vunpack.c.h.b16 %v2617
    %v2873 = vunpack.c.l.b16 %v2618
    %v2874 = vunpack.c.h.b16 %v2618
    %v2875 = vunpack.c.l.b16 %v2619
    %v2876 = vunpack.c.l.b16 %v2620
    %v2877 = vunpack.c.h.b16 %v2620
    %v2878 = vunpack.c.l.b16 %v2621
    %v2879 = vunpack.c.h.b16 %v2621
    %v2880 = vunpack.c.l.b16 %v2622
    %v2881 = vunpack.c.l.b16 %v2623
    %v2882 = vunpack.c.h.b16 %v2623
    %v2883 = vunpack.c.l.b16 %v2624
    %v2884 = vunpack.c.h.b16 %v2624
    %v2885 = vunpack.c.l.b16 %v2625
    %v2886 = vunpack.c.l.b16 %v2626
    %v2887 = vunpack.c.h.b16 %v2626
    %v2888 = vunpack.c.l.b16 %v2627
    %v2889 = vunpack.c.h.b16 %v2627
    %v2890 = vunpack.c.l.b16 %v2628
    %v2891 = vunpack.c.l.b16 %v2629
    %v2892 = vunpack.c.h.b16 %v2629
    %v2893 = vunpack.c.l.b16 %v2630
    %v2894 = vunpack.c.h.b16 %v2630
    %v2895 = vunpack.c.l.b16 %v2631
    %v2896 = vpack.c.b16 %v2861, %v2856
    %v2897 = vpack.c.b16 %v2862, %v2857
    %v2898 = vpack.c.b16 %v2863, %v2858
    %v2899 = vpack.c.b16 %v2864, %v2859
    %v2900 = vpack.c.b16 %v2865, %v2860
    %v2901 = vpack.c.b16 %v2871, %v2866
    %v2902 = vpack.c.b16 %v2872, %v2867
    %v2903 = vpack.c.b16 %v2873, %v2868
    %v2904 = vpack.c.b16 %v2874, %v2869
    %v2905 = vpack.c.b16 %v2875, %v2870
    %v2906 = vpack.c.b16 %v2881, %v2876
    %v2907 = vpack.c.b16 %v2882, %v2877
    %v2908 = vpack.c.b16 %v2883, %v2878
    %v2909 = vpack.c.b16 %v2884, %v2879
    %v2910 = vpack.c.b16 %v2885, %v2880
    %v2911 = vpack.c.b16 %v2891, %v2886
    %v2912 = vpack.c.b16 %v2892, %v2887
    %v2913 = vpack.c.b16 %v2893, %v2888
    %v2914 = vpack.c.b16 %v2894, %v2889
    %v2915 = vpack.c.b16 %v2895, %v2890
    %v2933 = vsel %vm766, %v2900, 0
    %v2936 = vsel %vm766, %v2905, 0
    %v2939 = vsel %vm766, %v2910, 0
    %v2942 = vsel %vm766, %v2915, 0
    %2944 = vmatprep.subr.bf16.mxu0 0
    %2945 = vmatpush1.bf16.msra.mxu0 %v2796
    %2946 = vmatprep.subr.bf16.mxu0 0
    %2947 = vmatpush1.bf16.msra.mxu0 %v2797
    %2948 = vmatprep.subr.bf16.mxu0 0
    %2949 = vmatpush1.bf16.msra.mxu0 %v2798
    %2950 = vmatprep.subr.bf16.mxu0 0
    %2951 = vmatpush1.bf16.msra.mxu0 %v2799
    %2952 = vmatprep.subr.bf16.mxu0 0
    %2953 = vmatpush1.bf16.msra.mxu0 %v2800
    %2954 = vmatprep.subr.bf16.mxu0 0
    %2955 = vmatpush1.bf16.msra.mxu0 %v2801
    %2956 = vmatprep.subr.bf16.mxu0 0
    %2957 = vmatpush1.bf16.msra.mxu0 %v2802
    %2958 = vmatprep.subr.bf16.mxu0 0
    %2959 = vmatpush1.bf16.msra.mxu0 %v2803
    %2960 = vmatprep.subr.bf16.mxu0 0
    %2961 = vmatpush1.bf16.msra.mxu0 %v2804
    %2962 = vmatprep.subr.bf16.mxu0 0
    %2963 = vmatpush1.bf16.msra.mxu0 %v2805
    %2964 = vmatprep.subr.bf16.mxu0 0
    %2965 = vmatpush1.bf16.msra.mxu0 %v2806
    %2966 = vmatprep.subr.bf16.mxu0 0
    %2967 = vmatpush1.bf16.msra.mxu0 %v2807
    %2968 = vmatprep.subr.bf16.mxu0 0
    %2969 = vmatpush1.bf16.msra.mxu0 %v2808
    %2970 = vmatprep.subr.bf16.mxu0 0
    %2971 = vmatpush1.bf16.msra.mxu0 %v2809
    %2972 = vmatprep.subr.bf16.mxu0 0
    %2973 = vmatpush1.bf16.msra.mxu0 %v2810
    %2974 = vmatprep.subr.bf16.mxu0 0
    %2975 = vmatpush1.bf16.msra.mxu0 %v2811
    %2976 = vmatprep.mubr.bf16.mxu0 %v2897
    %2977 = vmatmul.mubr.bf16.gmra.mrb[0].mxu0 %v2896
    %v2978 = vpop.f32.mrb[0].mxu0
    %v2979 = vadd.f32 0.0, %v2978
    %v2980 = vpop.f32.mrb[0].mxu0
    %v2981 = vpop.f32.mrb[0].mxu0
    %v2982 = vadd.f32 0.0, %v2981
    %v2983 = vpop.f32.mrb[0].mxu0
    %2984 = vmatprep.mubr.bf16.mxu0 %v2902
    %2985 = vmatmul.mubr.bf16.gmra.mrb[0].mxu0 %v2901
    %v2986 = vpop.f32.mrb[0].mxu0
    %v2987 = vadd.f32 0.0, %v2986
    %v2988 = vpop.f32.mrb[0].mxu0
    %v2989 = vpop.f32.mrb[0].mxu0
    %v2990 = vadd.f32 0.0, %v2989
    %v2991 = vpop.f32.mrb[0].mxu0
    %2992 = vmatprep.mubr.bf16.mxu0 %v2907
    %2993 = vmatmul.mubr.bf16.gmra.mrb[0].mxu0 %v2906
    %v2994 = vpop.f32.mrb[0].mxu0
    %v2995 = vadd.f32 0.0, %v2994
    %v2996 = vpop.f32.mrb[0].mxu0
    %v2997 = vpop.f32.mrb[0].mxu0
    %v2998 = vadd.f32 0.0, %v2997
    %v2999 = vpop.f32.mrb[0].mxu0
    %3000 = vmatprep.mubr.bf16.mxu0 %v2912
    %3001 = vmatmul.mubr.bf16.gmra.mrb[0].mxu0 %v2911
    %v3002 = vpop.f32.mrb[0].mxu0
    %v3003 = vadd.f32 0.0, %v3002
    %v3004 = vpop.f32.mrb[0].mxu0
    %v3005 = vpop.f32.mrb[0].mxu0
    %v3006 = vadd.f32 0.0, %v3005
    %v3007 = vpop.f32.mrb[0].mxu0
    %3008 = vdwg.mxu0
    %3009 = vmatprep.subr.bf16.mxu0 0
    %3010 = vmatpush1.bf16.msra.mxu0 %v2812
    %3011 = vmatprep.subr.bf16.mxu0 0
    %3012 = vmatpush1.bf16.msra.mxu0 %v2813
    %3013 = vmatprep.subr.bf16.mxu0 0
    %3014 = vmatpush1.bf16.msra.mxu0 %v2814
    %3015 = vmatprep.subr.bf16.mxu0 0
    %3016 = vmatpush1.bf16.msra.mxu0 %v2815
    %3017 = vmatprep.subr.bf16.mxu0 0
    %3018 = vmatpush1.bf16.msra.mxu0 %v2816
    %3019 = vmatprep.subr.bf16.mxu0 0
    %3020 = vmatpush1.bf16.msra.mxu0 %v2817
    %3021 = vmatprep.subr.bf16.mxu0 0
    %3022 = vmatpush1.bf16.msra.mxu0 %v2818
    %3023 = vmatprep.subr.bf16.mxu0 0
    %3024 = vmatpush1.bf16.msra.mxu0 %v2819
    %3025 = vmatprep.subr.bf16.mxu0 0
    %3026 = vmatpush1.bf16.msra.mxu0 %v2820
    %3027 = vmatprep.subr.bf16.mxu0 0
    %3028 = vmatpush1.bf16.msra.mxu0 %v2821
    %3029 = vmatprep.subr.bf16.mxu0 0
    %3030 = vmatpush1.bf16.msra.mxu0 %v2822
    %3031 = vmatprep.subr.bf16.mxu0 0
    %3032 = vmatpush1.bf16.msra.mxu0 %v2823
    %3033 = vmatprep.subr.bf16.mxu0 0
    %3034 = vmatpush1.bf16.msra.mxu0 %v2824
    %3035 = vmatprep.subr.bf16.mxu0 0
    %3036 = vmatpush1.bf16.msra.mxu0 %v2825
    %3037 = vmatprep.subr.bf16.mxu0 0
    %3038 = vmatpush1.bf16.msra.mxu0 %v2826
    %3039 = vmatprep.subr.bf16.mxu0 0
    %3040 = vmatpush1.bf16.msra.mxu0 %v2827
    %3041 = vmatprep.mubr.bf16.mxu0 %v2899
    %3042 = vmatmul.mubr.bf16.gmra.mrb[0].mxu0 %v2898
    %v3043 = vpop.f32.mrb[0].mxu0
    %v3044 = vadd.f32 %v2979, %v3043
    %v3045 = vpop.f32.mrb[0].mxu0
    %v3046 = vpop.f32.mrb[0].mxu0
    %v3047 = vadd.f32 %v2982, %v3046
    %v3048 = vpop.f32.mrb[0].mxu0
    %3049 = vmatprep.mubr.bf16.mxu0 %v2904
    %3050 = vmatmul.mubr.bf16.gmra.mrb[0].mxu0 %v2903
    %v3051 = vpop.f32.mrb[0].mxu0
    %v3052 = vadd.f32 %v2987, %v3051
    %v3053 = vpop.f32.mrb[0].mxu0
    %v3054 = vpop.f32.mrb[0].mxu0
    %v3055 = vadd.f32 %v2990, %v3054
    %v3056 = vpop.f32.mrb[0].mxu0
    %3057 = vmatprep.mubr.bf16.mxu0 %v2909
    %3058 = vmatmul.mubr.bf16.gmra.mrb[0].mxu0 %v2908
    %v3059 = vpop.f32.mrb[0].mxu0
    %v3060 = vadd.f32 %v2995, %v3059
    %v3061 = vpop.f32.mrb[0].mxu0
    %v3062 = vpop.f32.mrb[0].mxu0
    %v3063 = vadd.f32 %v2998, %v3062
    %v3064 = vpop.f32.mrb[0].mxu0
    %3065 = vmatprep.mubr.bf16.mxu0 %v2914
    %3066 = vmatmul.mubr.bf16.gmra.mrb[0].mxu0 %v2913
    %v3067 = vpop.f32.mrb[0].mxu0
    %v3068 = vadd.f32 %v3003, %v3067
    %v3069 = vpop.f32.mrb[0].mxu0
    %v3070 = vpop.f32.mrb[0].mxu0
    %v3071 = vadd.f32 %v3006, %v3070
    %v3072 = vpop.f32.mrb[0].mxu0
    %3073 = vdwg.mxu0
    %3074 = vmatprep.subr.bf16.mxu0 0
    %3075 = vmatpush1.bf16.msra.mxu0 %v2828
    %3076 = vmatprep.subr.bf16.mxu0 0
    %3077 = vmatpush1.bf16.msra.mxu0 %v2829
    %3078 = vmatprep.subr.bf16.mxu0 0
    %3079 = vmatpush1.bf16.msra.mxu0 %v2830
    %3080 = vmatprep.subr.bf16.mxu0 0
    %3081 = vmatpush1.bf16.msra.mxu0 %v2831
    %3082 = vmatprep.subr.bf16.mxu0 0
    %3083 = vmatpush1.bf16.msra.mxu0 0
    %3084 = vmatprep.subr.bf16.mxu0 0
    %3085 = vmatpush1.bf16.msra.mxu0 0
    %3086 = vmatprep.subr.bf16.mxu0 0
    %3087 = vmatpush1.bf16.msra.mxu0 0
    %3088 = vmatprep.subr.bf16.mxu0 0
    %3089 = vmatpush1.bf16.msra.mxu0 0
    %3090 = vmatprep.subr.bf16.mxu0 0
    %3091 = vmatpush1.bf16.msra.mxu0 0
    %3092 = vmatprep.subr.bf16.mxu0 0
    %3093 = vmatpush1.bf16.msra.mxu0 0
    %3094 = vmatprep.subr.bf16.mxu0 0
    %3095 = vmatpush1.bf16.msra.mxu0 0
    %3096 = vmatprep.subr.bf16.mxu0 0
    %3097 = vmatpush1.bf16.msra.mxu0 0
    %3098 = vmatprep.subr.bf16.mxu0 0
    %3099 = vmatpush1.bf16.msra.mxu0 0
    %3100 = vmatprep.subr.bf16.mxu0 0
    %3101 = vmatpush1.bf16.msra.mxu0 0
    %3102 = vmatprep.subr.bf16.mxu0 0
    %3103 = vmatpush1.bf16.msra.mxu0 0
    %3104 = vmatprep.subr.bf16.mxu0 0
    %3105 = vmatpush1.bf16.msra.mxu0 0
    %3106 = vmatprep.mubr.bf16.mxu0 0
    %3107 = vmatmul.mubr.bf16.gmra.mrb[0].mxu0 %v2933
    %v3108 = vpop.f32.mrb[0].mxu0
    %v3109 = vadd.f32 %v3044, %v3108
    %v3110 = vpop.f32.mrb[0].mxu0
    %v3111 = vpop.f32.mrb[0].mxu0
    %v3112 = vadd.f32 %v3047, %v3111
    %v3113 = vpop.f32.mrb[0].mxu0
    %3114 = vmatprep.mubr.bf16.mxu0 0
    %3115 = vmatmul.mubr.bf16.gmra.mrb[0].mxu0 %v2936
    %v3116 = vpop.f32.mrb[0].mxu0
    %v3117 = vadd.f32 %v3052, %v3116
    %v3118 = vpop.f32.mrb[0].mxu0
    %v3119 = vpop.f32.mrb[0].mxu0
    %v3120 = vadd.f32 %v3055, %v3119
    %v3121 = vpop.f32.mrb[0].mxu0
    %3122 = vmatprep.mubr.bf16.mxu0 0
    %3123 = vmatmul.mubr.bf16.gmra.mrb[0].mxu0 %v2939
    %v3124 = vpop.f32.mrb[0].mxu0
    %v3125 = vadd.f32 %v3060, %v3124
    %v3126 = vpop.f32.mrb[0].mxu0
    %v3127 = vpop.f32.mrb[0].mxu0
    %v3128 = vadd.f32 %v3063, %v3127
    %v3129 = vpop.f32.mrb[0].mxu0
    %3130 = vmatprep.mubr.bf16.mxu0 0
    %3131 = vmatmul.mubr.bf16.gmra.mrb[0].mxu0 %v2942
    %v3132 = vpop.f32.mrb[0].mxu0
    %v3133 = vadd.f32 %v3068, %v3132
    %v3134 = vpop.f32.mrb[0].mxu0
    %v3135 = vpop.f32.mrb[0].mxu0
    %v3136 = vadd.f32 %v3071, %v3135
    %v3137 = vpop.f32.mrb[0].mxu0
    %3138 = vdwg.mxu0
    %3139 = vadd.xlane.f32.xlu0 %v3109
    %v3140 = vpop.xlane.xlu0 %3139
    %3141 = vadd.xlane.f32.xlu0 %v3112
    %v3142 = vpop.xlane.xlu0 %3141
    %3143 = vadd.xlane.f32.xlu0 %v3117
    %v3144 = vpop.xlane.xlu0 %3143
    %3145 = vadd.xlane.f32.xlu0 %v3120
    %v3146 = vpop.xlane.xlu0 %3145
    %3147 = vadd.xlane.f32.xlu0 %v3125
    %v3148 = vpop.xlane.xlu0 %3147
    %3149 = vadd.xlane.f32.xlu0 %v3128
    %v3150 = vpop.xlane.xlu0 %3149
    %3151 = vadd.xlane.f32.xlu0 %v3133
    %v3152 = vpop.xlane.xlu0 %3151
    %3153 = vadd.xlane.f32.xlu0 %v3136
    %v3154 = vpop.xlane.xlu0 %3153
    %v3155 = vmul.f32 %v3140, %v990
    %v3156 = vmul.f32 %v3142, %v990
    %v3157 = vmul.f32 %v3144, %v990
    %v3158 = vmul.f32 %v3146, %v990
    %v3159 = vmul.f32 %v3148, %v990
    %v3160 = vmul.f32 %v3150, %v990
    %v3161 = vmul.f32 %v3152, %v990
    %v3162 = vmul.f32 %v3154, %v990
    %v3163 = vsub.f32 %v3109, %v3155
    %v3164 = vsub.f32 %v3112, %v3156
    %v3165 = vsub.f32 %v3117, %v3157
    %v3166 = vsub.f32 %v3120, %v3158
    %v3167 = vsub.f32 %v3125, %v3159
    %v3168 = vsub.f32 %v3128, %v3160
    %v3169 = vsub.f32 %v3133, %v3161
    %v3170 = vsub.f32 %v3136, %v3162
    %v3171 = vmul.f32 %v3163, %v3163
    %v3172 = vmul.f32 %v3164, %v3164
    %v3173 = vmul.f32 %v3165, %v3165
    %v3174 = vmul.f32 %v3166, %v3166
    %v3175 = vmul.f32 %v3167, %v3167
    %v3176 = vmul.f32 %v3168, %v3168
    %v3177 = vmul.f32 %v3169, %v3169
    %v3178 = vmul.f32 %v3170, %v3170
    %3179 = vadd.xlane.f32.xlu0 %v3171
    %v3180 = vpop.xlane.xlu0 %3179
    %3181 = vadd.xlane.f32.xlu0 %v3172
    %v3182 = vpop.xlane.xlu0 %3181
    %3183 = vadd.xlane.f32.xlu0 %v3173
    %v3184 = vpop.xlane.xlu0 %3183
    %3185 = vadd.xlane.f32.xlu0 %v3174
    %v3186 = vpop.xlane.xlu0 %3185
    %3187 = vadd.xlane.f32.xlu0 %v3175
    %v3188 = vpop.xlane.xlu0 %3187
    %3189 = vadd.xlane.f32.xlu0 %v3176
    %v3190 = vpop.xlane.xlu0 %3189
    %3191 = vadd.xlane.f32.xlu0 %v3177
    %v3192 = vpop.xlane.xlu0 %3191
    %3193 = vadd.xlane.f32.xlu0 %v3178
    %v3194 = vpop.xlane.xlu0 %3193
    %v3195 = vmul.f32 %v3180, %v990
    %v3196 = vmul.f32 %v3182, %v990
    %v3197 = vmul.f32 %v3184, %v990
    %v3198 = vmul.f32 %v3186, %v990
    %v3199 = vmul.f32 %v3188, %v990
    %v3200 = vmul.f32 %v3190, %v990
    %v3201 = vmul.f32 %v3192, %v990
    %v3202 = vmul.f32 %v3194, %v990
    %v3203 = vadd.f32 %v3195, 1e-05
    %v3204 = vadd.f32 %v3196, 1e-05
    %v3205 = vadd.f32 %v3197, 1e-05
    %v3206 = vadd.f32 %v3198, 1e-05
    %v3207 = vadd.f32 %v3199, 1e-05
    %v3208 = vadd.f32 %v3200, 1e-05
    %v3209 = vadd.f32 %v3201, 1e-05
    %v3210 = vadd.f32 %v3202, 1e-05
    %v3211 = vrsqrt.pop %v3203
    %v3212 = vrsqrt.pop %v3204
    %v3213 = vrsqrt.pop %v3205
    %v3214 = vrsqrt.pop %v3206
    %v3215 = vrsqrt.pop %v3207
    %v3216 = vrsqrt.pop %v3208
    %v3217 = vrsqrt.pop %v3209
    %v3218 = vrsqrt.pop %v3210
    %v3219 = vmul.f32 %v194, %v3211
    %v3220 = vmul.f32 %v195, %v3212
    %v3221 = vmul.f32 %v196, %v3213
    %v3222 = vmul.f32 %v197, %v3214
    %v3223 = vmul.f32 %v198, %v3215
    %v3224 = vmul.f32 %v199, %v3216
    %v3225 = vmul.f32 %v200, %v3217
    %v3226 = vmul.f32 %v201, %v3218
    %3228 = vset.pattern.permute.xlu0 3
    %3229 = vperm.xlu0 %3228, %v3219
    %v3230 = vpop.permute.xlu0 %3229
    %3233 = vset.pattern.permute.xlu0 3
    %3234 = vperm.xlu0 %3233, %v3220
    %v3235 = vpop.permute.xlu0 %3234
    %3238 = vset.pattern.permute.xlu0 3
    %3239 = vperm.xlu0 %3238, %v3221
    %v3240 = vpop.permute.xlu0 %3239
    %3243 = vset.pattern.permute.xlu0 3
    %3244 = vperm.xlu0 %3243, %v3222
    %v3245 = vpop.permute.xlu0 %3244
    %3248 = vset.pattern.permute.xlu0 3
    %3249 = vperm.xlu0 %3248, %v3223
    %v3250 = vpop.permute.xlu0 %3249
    %3253 = vset.pattern.permute.xlu0 3
    %3254 = vperm.xlu0 %3253, %v3224
    %v3255 = vpop.permute.xlu0 %3254
    %3258 = vset.pattern.permute.xlu0 3
    %3259 = vperm.xlu0 %3258, %v3225
    %v3260 = vpop.permute.xlu0 %3259
    %3263 = vset.pattern.permute.xlu0 3
    %3264 = vperm.xlu0 %3263, %v3226
    %v3265 = vpop.permute.xlu0 %3264
    %v3267 = vmul.f32 %v3163, %v3230
    %v3268 = vmul.f32 %v3164, %v3235
    %v3269 = vmul.f32 %v3165, %v3240
    %v3270 = vmul.f32 %v3166, %v3245
    %v3271 = vmul.f32 %v3167, %v3250
    %v3272 = vmul.f32 %v3168, %v3255
    %v3273 = vmul.f32 %v3169, %v3260
    %v3274 = vmul.f32 %v3170, %v3265
    %3275 = vset.pattern.permute.xlu0 3
    %3276 = vperm.xlu0 %3275, %v202
    %v3277 = vpop.permute.xlu0 %3276
    %3279 = vset.pattern.permute.xlu0 3
    %3280 = vperm.xlu0 %3279, %v203
    %v3281 = vpop.permute.xlu0 %3280
    %3283 = vset.pattern.permute.xlu0 3
    %3284 = vperm.xlu0 %3283, %v204
    %v3285 = vpop.permute.xlu0 %3284
    %3287 = vset.pattern.permute.xlu0 3
    %3288 = vperm.xlu0 %3287, %v205
    %v3289 = vpop.permute.xlu0 %3288
    %3291 = vset.pattern.permute.xlu0 3
    %3292 = vperm.xlu0 %3291, %v206
    %v3293 = vpop.permute.xlu0 %3292
    %3295 = vset.pattern.permute.xlu0 3
    %3296 = vperm.xlu0 %3295, %v207
    %v3297 = vpop.permute.xlu0 %3296
    %3299 = vset.pattern.permute.xlu0 3
    %3300 = vperm.xlu0 %3299, %v208
    %v3301 = vpop.permute.xlu0 %3300
    %3303 = vset.pattern.permute.xlu0 3
    %3304 = vperm.xlu0 %3303, %v209
    %v3305 = vpop.permute.xlu0 %3304
    %v3307 = vadd.f32 %v3267, %v3277
    %v3308 = vadd.f32 %v3268, %v3281
    %v3309 = vadd.f32 %v3269, %v3285
    %v3310 = vadd.f32 %v3270, %v3289
    %v3311 = vadd.f32 %v3271, %v3293
    %v3312 = vadd.f32 %v3272, %v3297
    %v3313 = vadd.f32 %v3273, %v3301
    %v3314 = vadd.f32 %v3274, %v3305
    %v3315 = vadd.f32 %v3307, %v1883
    %v3316 = vadd.f32 %v3308, %v1884
    %v3317 = vadd.f32 %v3309, %v1885
    %v3318 = vadd.f32 %v3310, %v1886
    %v3319 = vadd.f32 %v3311, %v1887
    %v3320 = vadd.f32 %v3312, %v1888
    %v3321 = vadd.f32 %v3313, %v1889
    %v3322 = vadd.f32 %v3314, %v1890
    %v3323 = vmax.f32 %v3315, 0.0
    %v3324 = vmax.f32 %v3316, 0.0
    %v3325 = vmax.f32 %v3317, 0.0
    %v3326 = vmax.f32 %v3318, 0.0
    %v3327 = vmax.f32 %v3319, 0.0
    %v3328 = vmax.f32 %v3320, 0.0
    %v3329 = vmax.f32 %v3321, 0.0
    %v3330 = vmax.f32 %v3322, 0.0
    %s3331 = scalar_lea.vmem [#allocation6], 640
    %v3332 = vld [vmem:[%s3331] sm:$0xff]
    %v3333 = vld [vmem:[%s3331 + $0x8] sm:$0xff]
    %v3334 = vld [vmem:[%s3331 + $0x10] sm:$0xf]
    %v3335 = vld [vmem:[%s3331 + $0x14] sm:$0xff]
    %v3336 = vld [vmem:[%s3331 + $0x1c] sm:$0xff]
    %v3337 = vld [vmem:[%s3331 + $0x24] sm:$0xf]
    %v3338 = vld [vmem:[%s3331 + $0x28] sm:$0xff]
    %v3339 = vld [vmem:[%s3331 + $0x30] sm:$0xff]
    %v3340 = vld [vmem:[%s3331 + $0x38] sm:$0xf]
    %v3341 = vld [vmem:[%s3331 + $0x3c] sm:$0xff]
    %v3342 = vld [vmem:[%s3331 + $0x44] sm:$0xff]
    %v3343 = vld [vmem:[%s3331 + $0x4c] sm:$0xf]
    %v3344 = vld [vmem:[%s3331 + $0x50] sm:$0xff]
    %v3345 = vld [vmem:[%s3331 + $0x58] sm:$0xff]
    %v3346 = vld [vmem:[%s3331 + $0x60] sm:$0xf]
    %v3347 = vld [vmem:[%s3331 + $0x64] sm:$0xff]
    %v3348 = vld [vmem:[%s3331 + $0x6c] sm:$0xff]
    %v3349 = vld [vmem:[%s3331 + $0x74] sm:$0xf]
    %v3350 = vld [vmem:[%s3331 + $0x78] sm:$0xff]
    %v3351 = vld [vmem:[%s3331 + $0x80] sm:$0xff]
    %v3352 = vld [vmem:[%s3331 + $0x88] sm:$0xf]
    %v3353 = vld [vmem:[%s3331 + $0x8c] sm:$0xff]
    %v3354 = vld [vmem:[%s3331 + $0x94] sm:$0xff]
    %v3355 = vld [vmem:[%s3331 + $0x9c] sm:$0xf]
    %3356 = vrot.lane.b32.xlu0 %v3323, 9
    %v3357 = vpop.permute.xlu0 %3356
    %3358 = vrot.lane.b32.xlu0 %v3324, 9
    %v3359 = vpop.permute.xlu0 %3358
    %3360 = vrot.lane.b32.xlu0 %v3325, 9
    %v3361 = vpop.permute.xlu0 %3360
    %3362 = vrot.lane.b32.xlu0 %v3326, 9
    %v3363 = vpop.permute.xlu0 %3362
    %3364 = vrot.lane.b32.xlu0 %v3327, 9
    %v3365 = vpop.permute.xlu0 %3364
    %3366 = vrot.lane.b32.xlu0 %v3328, 9
    %v3367 = vpop.permute.xlu0 %3366
    %3368 = vrot.lane.b32.xlu0 %v3329, 9
    %v3369 = vpop.permute.xlu0 %3368
    %3370 = vrot.lane.b32.xlu0 %v3330, 9
    %v3371 = vpop.permute.xlu0 %3370
    %3372 = vrot.lane.b32.xlu0 %v3323, 8
    %v3373 = vpop.permute.xlu0 %3372
    %3374 = vrot.lane.b32.xlu0 %v3324, 8
    %v3375 = vpop.permute.xlu0 %3374
    %3376 = vrot.lane.b32.xlu0 %v3325, 8
    %v3377 = vpop.permute.xlu0 %3376
    %3378 = vrot.lane.b32.xlu0 %v3326, 8
    %v3379 = vpop.permute.xlu0 %3378
    %3380 = vrot.lane.b32.xlu0 %v3327, 8
    %v3381 = vpop.permute.xlu0 %3380
    %3382 = vrot.lane.b32.xlu0 %v3328, 8
    %v3383 = vpop.permute.xlu0 %3382
    %3384 = vrot.lane.b32.xlu0 %v3329, 8
    %v3385 = vpop.permute.xlu0 %3384
    %3386 = vrot.lane.b32.xlu0 %v3330, 8
    %v3387 = vpop.permute.xlu0 %3386
    %3388 = vrot.lane.b32.xlu0 %v3323, 7
    %v3389 = vpop.permute.xlu0 %3388
    %3390 = vrot.lane.b32.xlu0 %v3324, 7
    %v3391 = vpop.permute.xlu0 %3390
    %3392 = vrot.lane.b32.xlu0 %v3325, 7
    %v3393 = vpop.permute.xlu0 %3392
    %3394 = vrot.lane.b32.xlu0 %v3326, 7
    %v3395 = vpop.permute.xlu0 %3394
    %3396 = vrot.lane.b32.xlu0 %v3327, 7
    %v3397 = vpop.permute.xlu0 %3396
    %3398 = vrot.lane.b32.xlu0 %v3328, 7
    %v3399 = vpop.permute.xlu0 %3398
    %3400 = vrot.lane.b32.xlu0 %v3329, 7
    %v3401 = vpop.permute.xlu0 %3400
    %3402 = vrot.lane.b32.xlu0 %v3330, 7
    %v3403 = vpop.permute.xlu0 %3402
    %3404 = vrot.lane.b32.xlu0 %v3323, 1
    %v3405 = vpop.permute.xlu0 %3404
    %3406 = vrot.lane.b32.xlu0 %v3324, 1
    %v3407 = vpop.permute.xlu0 %3406
    %3408 = vrot.lane.b32.xlu0 %v3325, 1
    %v3409 = vpop.permute.xlu0 %3408
    %3410 = vrot.lane.b32.xlu0 %v3326, 1
    %v3411 = vpop.permute.xlu0 %3410
    %3412 = vrot.lane.b32.xlu0 %v3327, 1
    %v3413 = vpop.permute.xlu0 %3412
    %3414 = vrot.lane.b32.xlu0 %v3328, 1
    %v3415 = vpop.permute.xlu0 %3414
    %3416 = vrot.lane.b32.xlu0 %v3329, 1
    %v3417 = vpop.permute.xlu0 %3416
    %3418 = vrot.lane.b32.xlu0 %v3330, 1
    %v3419 = vpop.permute.xlu0 %3418
    %3420 = vrot.lane.b32.xlu0 %v3323, 127
    %v3421 = vpop.permute.xlu0 %3420
    %3422 = vrot.lane.b32.xlu0 %v3324, 127
    %v3423 = vpop.permute.xlu0 %3422
    %3424 = vrot.lane.b32.xlu0 %v3325, 127
    %v3425 = vpop.permute.xlu0 %3424
    %3426 = vrot.lane.b32.xlu0 %v3326, 127
    %v3427 = vpop.permute.xlu0 %3426
    %3428 = vrot.lane.b32.xlu0 %v3327, 127
    %v3429 = vpop.permute.xlu0 %3428
    %3430 = vrot.lane.b32.xlu0 %v3328, 127
    %v3431 = vpop.permute.xlu0 %3430
    %3432 = vrot.lane.b32.xlu0 %v3329, 127
    %v3433 = vpop.permute.xlu0 %3432
    %3434 = vrot.lane.b32.xlu0 %v3330, 127
    %v3435 = vpop.permute.xlu0 %3434
    %3436 = vrot.lane.b32.xlu0 %v3323, 121
    %v3437 = vpop.permute.xlu0 %3436
    %3438 = vrot.lane.b32.xlu0 %v3324, 121
    %v3439 = vpop.permute.xlu0 %3438
    %3440 = vrot.lane.b32.xlu0 %v3325, 121
    %v3441 = vpop.permute.xlu0 %3440
    %3442 = vrot.lane.b32.xlu0 %v3326, 121
    %v3443 = vpop.permute.xlu0 %3442
    %3444 = vrot.lane.b32.xlu0 %v3327, 121
    %v3445 = vpop.permute.xlu0 %3444
    %3446 = vrot.lane.b32.xlu0 %v3328, 121
    %v3447 = vpop.permute.xlu0 %3446
    %3448 = vrot.lane.b32.xlu0 %v3329, 121
    %v3449 = vpop.permute.xlu0 %3448
    %3450 = vrot.lane.b32.xlu0 %v3330, 121
    %v3451 = vpop.permute.xlu0 %3450
    %3452 = vrot.lane.b32.xlu0 %v3323, 120
    %v3453 = vpop.permute.xlu0 %3452
    %3454 = vrot.lane.b32.xlu0 %v3324, 120
    %v3455 = vpop.permute.xlu0 %3454
    %3456 = vrot.lane.b32.xlu0 %v3325, 120
    %v3457 = vpop.permute.xlu0 %3456
    %3458 = vrot.lane.b32.xlu0 %v3326, 120
    %v3459 = vpop.permute.xlu0 %3458
    %3460 = vrot.lane.b32.xlu0 %v3327, 120
    %v3461 = vpop.permute.xlu0 %3460
    %3462 = vrot.lane.b32.xlu0 %v3328, 120
    %v3463 = vpop.permute.xlu0 %3462
    %3464 = vrot.lane.b32.xlu0 %v3329, 120
    %v3465 = vpop.permute.xlu0 %3464
    %3466 = vrot.lane.b32.xlu0 %v3330, 120
    %v3467 = vpop.permute.xlu0 %3466
    %3468 = vrot.lane.b32.xlu0 %v3323, 119
    %v3469 = vpop.permute.xlu0 %3468
    %3470 = vrot.lane.b32.xlu0 %v3324, 119
    %v3471 = vpop.permute.xlu0 %3470
    %3472 = vrot.lane.b32.xlu0 %v3325, 119
    %v3473 = vpop.permute.xlu0 %3472
    %3474 = vrot.lane.b32.xlu0 %v3326, 119
    %v3475 = vpop.permute.xlu0 %3474
    %3476 = vrot.lane.b32.xlu0 %v3327, 119
    %v3477 = vpop.permute.xlu0 %3476
    %3478 = vrot.lane.b32.xlu0 %v3328, 119
    %v3479 = vpop.permute.xlu0 %3478
    %3480 = vrot.lane.b32.xlu0 %v3329, 119
    %v3481 = vpop.permute.xlu0 %3480
    %3482 = vrot.lane.b32.xlu0 %v3330, 119
    %v3483 = vpop.permute.xlu0 %3482
    %v3484 = vpack.c.bf16 %v3359, %v3357
    %v3485 = vpack.c.bf16 %v3363, %v3361
    %v3486 = vpack.c.bf16 %v3367, %v3365
    %v3487 = vpack.c.bf16 %v3371, %v3369
    %v3488 = vpack.c.bf16 %v3375, %v3373
    %v3489 = vpack.c.bf16 %v3379, %v3377
    %v3490 = vpack.c.bf16 %v3383, %v3381
    %v3491 = vpack.c.bf16 %v3387, %v3385
    %v3492 = vpack.c.bf16 %v3391, %v3389
    %v3493 = vpack.c.bf16 %v3395, %v3393
    %v3494 = vpack.c.bf16 %v3399, %v3397
    %v3495 = vpack.c.bf16 %v3403, %v3401
    %v3496 = vpack.c.bf16 %v3407, %v3405
    %v3497 = vpack.c.bf16 %v3411, %v3409
    %v3498 = vpack.c.bf16 %v3415, %v3413
    %v3499 = vpack.c.bf16 %v3419, %v3417
    %v3500 = vpack.c.bf16 %v3324, %v3323
    %v3501 = vpack.c.bf16 %v3326, %v3325
    %v3502 = vpack.c.bf16 %v3328, %v3327
    %v3503 = vpack.c.bf16 %v3330, %v3329
    %v3504 = vpack.c.bf16 %v3423, %v3421
    %v3505 = vpack.c.bf16 %v3427, %v3425
    %v3506 = vpack.c.bf16 %v3431, %v3429
    %v3507 = vpack.c.bf16 %v3435, %v3433
    %v3508 = vpack.c.bf16 %v3439, %v3437
    %v3509 = vpack.c.bf16 %v3443, %v3441
    %v3510 = vpack.c.bf16 %v3447, %v3445
    %v3511 = vpack.c.bf16 %v3451, %v3449
    %v3512 = vpack.c.bf16 %v3455, %v3453
    %v3513 = vpack.c.bf16 %v3459, %v3457
    %v3514 = vpack.c.bf16 %v3463, %v3461
    %v3515 = vpack.c.bf16 %v3467, %v3465
    %v3516 = vpack.c.bf16 %v3471, %v3469
    %v3517 = vpack.c.bf16 %v3475, %v3473
    %v3518 = vpack.c.bf16 %v3479, %v3477
    %v3519 = vpack.c.bf16 %v3483, %v3481
    %v3520 = vmul.bf16 %v3484, %v558
    %v3521 = vmul.bf16 %v3485, %v559
    %v3522 = vmul.bf16 %v3486, %v560
    %v3523 = vmul.bf16 %v3487, %v561
    %v3524 = vmul.bf16 %v3488, %v562
    %v3525 = vmul.bf16 %v3489, %v563
    %v3526 = vmul.bf16 %v3490, %v564
    %v3527 = vmul.bf16 %v3491, %v565
    %v3528 = vmul.bf16 %v3492, %v566
    %v3529 = vmul.bf16 %v3493, %v567
    %v3530 = vmul.bf16 %v3494, %v568
    %v3531 = vmul.bf16 %v3495, %v569
    %v3532 = vmul.bf16 %v3496, %v570
    %v3533 = vmul.bf16 %v3497, %v571
    %v3534 = vmul.bf16 %v3498, %v572
    %v3535 = vmul.bf16 %v3499, %v573
    %v3536 = vmul.bf16 %v3500, %v574
    %v3537 = vmul.bf16 %v3501, %v575
    %v3538 = vmul.bf16 %v3502, %v576
    %v3539 = vmul.bf16 %v3503, %v577
    %v3540 = vmul.bf16 %v3504, %v578
    %v3541 = vmul.bf16 %v3505, %v579
    %v3542 = vmul.bf16 %v3506, %v580
    %v3543 = vmul.bf16 %v3507, %v581
    %v3544 = vmul.bf16 %v3508, %v582
    %v3545 = vmul.bf16 %v3509, %v583
    %v3546 = vmul.bf16 %v3510, %v584
    %v3547 = vmul.bf16 %v3511, %v585
    %v3548 = vmul.bf16 %v3512, %v586
    %v3549 = vmul.bf16 %v3513, %v587
    %v3550 = vmul.bf16 %v3514, %v588
    %v3551 = vmul.bf16 %v3515, %v589
    %v3552 = vmul.bf16 %v3516, %v590
    %v3553 = vmul.bf16 %v3517, %v591
    %v3554 = vmul.bf16 %v3518, %v592
    %v3555 = vmul.bf16 %v3519, %v593
    %v3580 = vunpack.c.l.b16 %v3332
    %v3581 = vunpack.c.h.b16 %v3332
    %v3582 = vunpack.c.l.b16 %v3333
    %v3583 = vunpack.c.h.b16 %v3333
    %v3584 = vunpack.c.l.b16 %v3334
    %v3585 = vunpack.c.l.b16 %v3335
    %v3586 = vunpack.c.h.b16 %v3335
    %v3587 = vunpack.c.l.b16 %v3336
    %v3588 = vunpack.c.h.b16 %v3336
    %v3589 = vunpack.c.l.b16 %v3337
    %v3590 = vunpack.c.l.b16 %v3338
    %v3591 = vunpack.c.h.b16 %v3338
    %v3592 = vunpack.c.l.b16 %v3339
    %v3593 = vunpack.c.h.b16 %v3339
    %v3594 = vunpack.c.l.b16 %v3340
    %v3595 = vunpack.c.l.b16 %v3341
    %v3596 = vunpack.c.h.b16 %v3341
    %v3597 = vunpack.c.l.b16 %v3342
    %v3598 = vunpack.c.h.b16 %v3342
    %v3599 = vunpack.c.l.b16 %v3343
    %v3600 = vunpack.c.l.b16 %v3344
    %v3601 = vunpack.c.h.b16 %v3344
    %v3602 = vunpack.c.l.b16 %v3345
    %v3603 = vunpack.c.h.b16 %v3345
    %v3604 = vunpack.c.l.b16 %v3346
    %v3605 = vunpack.c.l.b16 %v3347
    %v3606 = vunpack.c.h.b16 %v3347
    %v3607 = vunpack.c.l.b16 %v3348
    %v3608 = vunpack.c.h.b16 %v3348
    %v3609 = vunpack.c.l.b16 %v3349
    %v3610 = vunpack.c.l.b16 %v3350
    %v3611 = vunpack.c.h.b16 %v3350
    %v3612 = vunpack.c.l.b16 %v3351
    %v3613 = vunpack.c.h.b16 %v3351
    %v3614 = vunpack.c.l.b16 %v3352
    %v3615 = vunpack.c.l.b16 %v3353
    %v3616 = vunpack.c.h.b16 %v3353
    %v3617 = vunpack.c.l.b16 %v3354
    %v3618 = vunpack.c.h.b16 %v3354
    %v3619 = vunpack.c.l.b16 %v3355
    %v3620 = vpack.c.b16 %v3585, %v3580
    %v3621 = vpack.c.b16 %v3586, %v3581
    %v3622 = vpack.c.b16 %v3587, %v3582
    %v3623 = vpack.c.b16 %v3588, %v3583
    %v3624 = vpack.c.b16 %v3589, %v3584
    %v3625 = vpack.c.b16 %v3595, %v3590
    %v3626 = vpack.c.b16 %v3596, %v3591
    %v3627 = vpack.c.b16 %v3597, %v3592
    %v3628 = vpack.c.b16 %v3598, %v3593
    %v3629 = vpack.c.b16 %v3599, %v3594
    %v3630 = vpack.c.b16 %v3605, %v3600
    %v3631 = vpack.c.b16 %v3606, %v3601
    %v3632 = vpack.c.b16 %v3607, %v3602
    %v3633 = vpack.c.b16 %v3608, %v3603
    %v3634 = vpack.c.b16 %v3609, %v3604
    %v3635 = vpack.c.b16 %v3615, %v3610
    %v3636 = vpack.c.b16 %v3616, %v3611
    %v3637 = vpack.c.b16 %v3617, %v3612
    %v3638 = vpack.c.b16 %v3618, %v3613
    %v3639 = vpack.c.b16 %v3619, %v3614
    %v3657 = vsel %vm766, %v3624, 0
    %v3660 = vsel %vm766, %v3629, 0
    %v3663 = vsel %vm766, %v3634, 0
    %v3666 = vsel %vm766, %v3639, 0
    %3668 = vmatprep.subr.bf16.mxu0 0
    %3669 = vmatpush1.bf16.msra.mxu0 %v3520
    %3670 = vmatprep.subr.bf16.mxu0 0
    %3671 = vmatpush1.bf16.msra.mxu0 %v3521
    %3672 = vmatprep.subr.bf16.mxu0 0
    %3673 = vmatpush1.bf16.msra.mxu0 %v3522
    %3674 = vmatprep.subr.bf16.mxu0 0
    %3675 = vmatpush1.bf16.msra.mxu0 %v3523
    %3676 = vmatprep.subr.bf16.mxu0 0
    %3677 = vmatpush1.bf16.msra.mxu0 %v3524
    %3678 = vmatprep.subr.bf16.mxu0 0
    %3679 = vmatpush1.bf16.msra.mxu0 %v3525
    %3680 = vmatprep.subr.bf16.mxu0 0
    %3681 = vmatpush1.bf16.msra.mxu0 %v3526
    %3682 = vmatprep.subr.bf16.mxu0 0
    %3683 = vmatpush1.bf16.msra.mxu0 %v3527
    %3684 = vmatprep.subr.bf16.mxu0 0
    %3685 = vmatpush1.bf16.msra.mxu0 %v3528
    %3686 = vmatprep.subr.bf16.mxu0 0
    %3687 = vmatpush1.bf16.msra.mxu0 %v3529
    %3688 = vmatprep.subr.bf16.mxu0 0
    %3689 = vmatpush1.bf16.msra.mxu0 %v3530
    %3690 = vmatprep.subr.bf16.mxu0 0
    %3691 = vmatpush1.bf16.msra.mxu0 %v3531
    %3692 = vmatprep.subr.bf16.mxu0 0
    %3693 = vmatpush1.bf16.msra.mxu0 %v3532
    %3694 = vmatprep.subr.bf16.mxu0 0
    %3695 = vmatpush1.bf16.msra.mxu0 %v3533
    %3696 = vmatprep.subr.bf16.mxu0 0
    %3697 = vmatpush1.bf16.msra.mxu0 %v3534
    %3698 = vmatprep.subr.bf16.mxu0 0
    %3699 = vmatpush1.bf16.msra.mxu0 %v3535
    %3700 = vmatprep.mubr.bf16.mxu0 %v3621
    %3701 = vmatmul.mubr.bf16.gmra.mrb[0].mxu0 %v3620
    %v3702 = vpop.f32.mrb[0].mxu0
    %v3703 = vadd.f32 0.0, %v3702
    %v3704 = vpop.f32.mrb[0].mxu0
    %v3705 = vpop.f32.mrb[0].mxu0
    %v3706 = vadd.f32 0.0, %v3705
    %v3707 = vpop.f32.mrb[0].mxu0
    %3708 = vmatprep.mubr.bf16.mxu0 %v3626
    %3709 = vmatmul.mubr.bf16.gmra.mrb[0].mxu0 %v3625
    %v3710 = vpop.f32.mrb[0].mxu0
    %v3711 = vadd.f32 0.0, %v3710
    %v3712 = vpop.f32.mrb[0].mxu0
    %v3713 = vpop.f32.mrb[0].mxu0
    %v3714 = vadd.f32 0.0, %v3713
    %v3715 = vpop.f32.mrb[0].mxu0
    %3716 = vmatprep.mubr.bf16.mxu0 %v3631
    %3717 = vmatmul.mubr.bf16.gmra.mrb[0].mxu0 %v3630
    %v3718 = vpop.f32.mrb[0].mxu0
    %v3719 = vadd.f32 0.0, %v3718
    %v3720 = vpop.f32.mrb[0].mxu0
    %v3721 = vpop.f32.mrb[0].mxu0
    %v3722 = vadd.f32 0.0, %v3721
    %v3723 = vpop.f32.mrb[0].mxu0
    %3724 = vmatprep.mubr.bf16.mxu0 %v3636
    %3725 = vmatmul.mubr.bf16.gmra.mrb[0].mxu0 %v3635
    %v3726 = vpop.f32.mrb[0].mxu0
    %v3727 = vadd.f32 0.0, %v3726
    %v3728 = vpop.f32.mrb[0].mxu0
    %v3729 = vpop.f32.mrb[0].mxu0
    %v3730 = vadd.f32 0.0, %v3729
    %v3731 = vpop.f32.mrb[0].mxu0
    %3732 = vdwg.mxu0
    %3733 = vmatprep.subr.bf16.mxu0 0
    %3734 = vmatpush1.bf16.msra.mxu0 %v3536
    %3735 = vmatprep.subr.bf16.mxu0 0
    %3736 = vmatpush1.bf16.msra.mxu0 %v3537
    %3737 = vmatprep.subr.bf16.mxu0 0
    %3738 = vmatpush1.bf16.msra.mxu0 %v3538
    %3739 = vmatprep.subr.bf16.mxu0 0
    %3740 = vmatpush1.bf16.msra.mxu0 %v3539
    %3741 = vmatprep.subr.bf16.mxu0 0
    %3742 = vmatpush1.bf16.msra.mxu0 %v3540
    %3743 = vmatprep.subr.bf16.mxu0 0
    %3744 = vmatpush1.bf16.msra.mxu0 %v3541
    %3745 = vmatprep.subr.bf16.mxu0 0
    %3746 = vmatpush1.bf16.msra.mxu0 %v3542
    %3747 = vmatprep.subr.bf16.mxu0 0
    %3748 = vmatpush1.bf16.msra.mxu0 %v3543
    %3749 = vmatprep.subr.bf16.mxu0 0
    %3750 = vmatpush1.bf16.msra.mxu0 %v3544
    %3751 = vmatprep.subr.bf16.mxu0 0
    %3752 = vmatpush1.bf16.msra.mxu0 %v3545
    %3753 = vmatprep.subr.bf16.mxu0 0
    %3754 = vmatpush1.bf16.msra.mxu0 %v3546
    %3755 = vmatprep.subr.bf16.mxu0 0
    %3756 = vmatpush1.bf16.msra.mxu0 %v3547
    %3757 = vmatprep.subr.bf16.mxu0 0
    %3758 = vmatpush1.bf16.msra.mxu0 %v3548
    %3759 = vmatprep.subr.bf16.mxu0 0
    %3760 = vmatpush1.bf16.msra.mxu0 %v3549
    %3761 = vmatprep.subr.bf16.mxu0 0
    %3762 = vmatpush1.bf16.msra.mxu0 %v3550
    %3763 = vmatprep.subr.bf16.mxu0 0
    %3764 = vmatpush1.bf16.msra.mxu0 %v3551
    %3765 = vmatprep.mubr.bf16.mxu0 %v3623
    %3766 = vmatmul.mubr.bf16.gmra.mrb[0].mxu0 %v3622
    %v3767 = vpop.f32.mrb[0].mxu0
    %v3768 = vadd.f32 %v3703, %v3767
    %v3769 = vpop.f32.mrb[0].mxu0
    %v3770 = vpop.f32.mrb[0].mxu0
    %v3771 = vadd.f32 %v3706, %v3770
    %v3772 = vpop.f32.mrb[0].mxu0
    %3773 = vmatprep.mubr.bf16.mxu0 %v3628
    %3774 = vmatmul.mubr.bf16.gmra.mrb[0].mxu0 %v3627
    %v3775 = vpop.f32.mrb[0].mxu0
    %v3776 = vadd.f32 %v3711, %v3775
    %v3777 = vpop.f32.mrb[0].mxu0
    %v3778 = vpop.f32.mrb[0].mxu0
    %v3779 = vadd.f32 %v3714, %v3778
    %v3780 = vpop.f32.mrb[0].mxu0
    %3781 = vmatprep.mubr.bf16.mxu0 %v3633
    %3782 = vmatmul.mubr.bf16.gmra.mrb[0].mxu0 %v3632
    %v3783 = vpop.f32.mrb[0].mxu0
    %v3784 = vadd.f32 %v3719, %v3783
    %v3785 = vpop.f32.mrb[0].mxu0
    %v3786 = vpop.f32.mrb[0].mxu0
    %v3787 = vadd.f32 %v3722, %v3786
    %v3788 = vpop.f32.mrb[0].mxu0
    %3789 = vmatprep.mubr.bf16.mxu0 %v3638
    %3790 = vmatmul.mubr.bf16.gmra.mrb[0].mxu0 %v3637
    %v3791 = vpop.f32.mrb[0].mxu0
    %v3792 = vadd.f32 %v3727, %v3791
    %v3793 = vpop.f32.mrb[0].mxu0
    %v3794 = vpop.f32.mrb[0].mxu0
    %v3795 = vadd.f32 %v3730, %v3794
    %v3796 = vpop.f32.mrb[0].mxu0
    %3797 = vdwg.mxu0
    %3798 = vmatprep.subr.bf16.mxu0 0
    %3799 = vmatpush1.bf16.msra.mxu0 %v3552
    %3800 = vmatprep.subr.bf16.mxu0 0
    %3801 = vmatpush1.bf16.msra.mxu0 %v3553
    %3802 = vmatprep.subr.bf16.mxu0 0
    %3803 = vmatpush1.bf16.msra.mxu0 %v3554
    %3804 = vmatprep.subr.bf16.mxu0 0
    %3805 = vmatpush1.bf16.msra.mxu0 %v3555
    %3806 = vmatprep.subr.bf16.mxu0 0
    %3807 = vmatpush1.bf16.msra.mxu0 0
    %3808 = vmatprep.subr.bf16.mxu0 0
    %3809 = vmatpush1.bf16.msra.mxu0 0
    %3810 = vmatprep.subr.bf16.mxu0 0
    %3811 = vmatpush1.bf16.msra.mxu0 0
    %3812 = vmatprep.subr.bf16.mxu0 0
    %3813 = vmatpush1.bf16.msra.mxu0 0
    %3814 = vmatprep.subr.bf16.mxu0 0
    %3815 = vmatpush1.bf16.msra.mxu0 0
    %3816 = vmatprep.subr.bf16.mxu0 0
    %3817 = vmatpush1.bf16.msra.mxu0 0
    %3818 = vmatprep.subr.bf16.mxu0 0
    %3819 = vmatpush1.bf16.msra.mxu0 0
    %3820 = vmatprep.subr.bf16.mxu0 0
    %3821 = vmatpush1.bf16.msra.mxu0 0
    %3822 = vmatprep.subr.bf16.mxu0 0
    %3823 = vmatpush1.bf16.msra.mxu0 0
    %3824 = vmatprep.subr.bf16.mxu0 0
    %3825 = vmatpush1.bf16.msra.mxu0 0
    %3826 = vmatprep.subr.bf16.mxu0 0
    %3827 = vmatpush1.bf16.msra.mxu0 0
    %3828 = vmatprep.subr.bf16.mxu0 0
    %3829 = vmatpush1.bf16.msra.mxu0 0
    %3830 = vmatprep.mubr.bf16.mxu0 0
    %3831 = vmatmul.mubr.bf16.gmra.mrb[0].mxu0 %v3657
    %v3832 = vpop.f32.mrb[0].mxu0
    %v3833 = vadd.f32 %v3768, %v3832
    %v3834 = vpop.f32.mrb[0].mxu0
    %v3835 = vpop.f32.mrb[0].mxu0
    %v3836 = vadd.f32 %v3771, %v3835
    %v3837 = vpop.f32.mrb[0].mxu0
    %3838 = vmatprep.mubr.bf16.mxu0 0
    %3839 = vmatmul.mubr.bf16.gmra.mrb[0].mxu0 %v3660
    %v3840 = vpop.f32.mrb[0].mxu0
    %v3841 = vadd.f32 %v3776, %v3840
    %v3842 = vpop.f32.mrb[0].mxu0
    %v3843 = vpop.f32.mrb[0].mxu0
    %v3844 = vadd.f32 %v3779, %v3843
    %v3845 = vpop.f32.mrb[0].mxu0
    %3846 = vmatprep.mubr.bf16.mxu0 0
    %3847 = vmatmul.mubr.bf16.gmra.mrb[0].mxu0 %v3663
    %v3848 = vpop.f32.mrb[0].mxu0
    %v3849 = vadd.f32 %v3784, %v3848
    %v3850 = vpop.f32.mrb[0].mxu0
    %v3851 = vpop.f32.mrb[0].mxu0
    %v3852 = vadd.f32 %v3787, %v3851
    %v3853 = vpop.f32.mrb[0].mxu0
    %3854 = vmatprep.mubr.bf16.mxu0 0
    %3855 = vmatmul.mubr.bf16.gmra.mrb[0].mxu0 %v3666
    %v3856 = vpop.f32.mrb[0].mxu0
    %v3857 = vadd.f32 %v3792, %v3856
    %v3858 = vpop.f32.mrb[0].mxu0
    %v3859 = vpop.f32.mrb[0].mxu0
    %v3860 = vadd.f32 %v3795, %v3859
    %v3861 = vpop.f32.mrb[0].mxu0
    %3862 = vdwg.mxu0
    %3863 = vadd.xlane.f32.xlu0 %v3833
    %v3864 = vpop.xlane.xlu0 %3863
    %3865 = vadd.xlane.f32.xlu0 %v3836
    %v3866 = vpop.xlane.xlu0 %3865
    %3867 = vadd.xlane.f32.xlu0 %v3841
    %v3868 = vpop.xlane.xlu0 %3867
    %3869 = vadd.xlane.f32.xlu0 %v3844
    %v3870 = vpop.xlane.xlu0 %3869
    %3871 = vadd.xlane.f32.xlu0 %v3849
    %v3872 = vpop.xlane.xlu0 %3871
    %3873 = vadd.xlane.f32.xlu0 %v3852
    %v3874 = vpop.xlane.xlu0 %3873
    %3875 = vadd.xlane.f32.xlu0 %v3857
    %v3876 = vpop.xlane.xlu0 %3875
    %3877 = vadd.xlane.f32.xlu0 %v3860
    %v3878 = vpop.xlane.xlu0 %3877
    %v3879 = vmul.f32 %v3864, %v990
    %v3880 = vmul.f32 %v3866, %v990
    %v3881 = vmul.f32 %v3868, %v990
    %v3882 = vmul.f32 %v3870, %v990
    %v3883 = vmul.f32 %v3872, %v990
    %v3884 = vmul.f32 %v3874, %v990
    %v3885 = vmul.f32 %v3876, %v990
    %v3886 = vmul.f32 %v3878, %v990
    %v3887 = vsub.f32 %v3833, %v3879
    %v3888 = vsub.f32 %v3836, %v3880
    %v3889 = vsub.f32 %v3841, %v3881
    %v3890 = vsub.f32 %v3844, %v3882
    %v3891 = vsub.f32 %v3849, %v3883
    %v3892 = vsub.f32 %v3852, %v3884
    %v3893 = vsub.f32 %v3857, %v3885
    %v3894 = vsub.f32 %v3860, %v3886
    %v3895 = vmul.f32 %v3887, %v3887
    %v3896 = vmul.f32 %v3888, %v3888
    %v3897 = vmul.f32 %v3889, %v3889
    %v3898 = vmul.f32 %v3890, %v3890
    %v3899 = vmul.f32 %v3891, %v3891
    %v3900 = vmul.f32 %v3892, %v3892
    %v3901 = vmul.f32 %v3893, %v3893
    %v3902 = vmul.f32 %v3894, %v3894
    %3903 = vadd.xlane.f32.xlu0 %v3895
    %v3904 = vpop.xlane.xlu0 %3903
    %3905 = vadd.xlane.f32.xlu0 %v3896
    %v3906 = vpop.xlane.xlu0 %3905
    %3907 = vadd.xlane.f32.xlu0 %v3897
    %v3908 = vpop.xlane.xlu0 %3907
    %3909 = vadd.xlane.f32.xlu0 %v3898
    %v3910 = vpop.xlane.xlu0 %3909
    %3911 = vadd.xlane.f32.xlu0 %v3899
    %v3912 = vpop.xlane.xlu0 %3911
    %3913 = vadd.xlane.f32.xlu0 %v3900
    %v3914 = vpop.xlane.xlu0 %3913
    %3915 = vadd.xlane.f32.xlu0 %v3901
    %v3916 = vpop.xlane.xlu0 %3915
    %3917 = vadd.xlane.f32.xlu0 %v3902
    %v3918 = vpop.xlane.xlu0 %3917
    %v3919 = vmul.f32 %v3904, %v990
    %v3920 = vmul.f32 %v3906, %v990
    %v3921 = vmul.f32 %v3908, %v990
    %v3922 = vmul.f32 %v3910, %v990
    %v3923 = vmul.f32 %v3912, %v990
    %v3924 = vmul.f32 %v3914, %v990
    %v3925 = vmul.f32 %v3916, %v990
    %v3926 = vmul.f32 %v3918, %v990
    %v3927 = vadd.f32 %v3919, 1e-05
    %v3928 = vadd.f32 %v3920, 1e-05
    %v3929 = vadd.f32 %v3921, 1e-05
    %v3930 = vadd.f32 %v3922, 1e-05
    %v3931 = vadd.f32 %v3923, 1e-05
    %v3932 = vadd.f32 %v3924, 1e-05
    %v3933 = vadd.f32 %v3925, 1e-05
    %v3934 = vadd.f32 %v3926, 1e-05
    %v3935 = vrsqrt.pop %v3927
    %v3936 = vrsqrt.pop %v3928
    %v3937 = vrsqrt.pop %v3929
    %v3938 = vrsqrt.pop %v3930
    %v3939 = vrsqrt.pop %v3931
    %v3940 = vrsqrt.pop %v3932
    %v3941 = vrsqrt.pop %v3933
    %v3942 = vrsqrt.pop %v3934
    %v3943 = vmul.f32 %v194, %v3935
    %v3944 = vmul.f32 %v195, %v3936
    %v3945 = vmul.f32 %v196, %v3937
    %v3946 = vmul.f32 %v197, %v3938
    %v3947 = vmul.f32 %v198, %v3939
    %v3948 = vmul.f32 %v199, %v3940
    %v3949 = vmul.f32 %v200, %v3941
    %v3950 = vmul.f32 %v201, %v3942
    %3952 = vset.pattern.permute.xlu0 4
    %3953 = vperm.xlu0 %3952, %v3943
    %v3954 = vpop.permute.xlu0 %3953
    %3957 = vset.pattern.permute.xlu0 4
    %3958 = vperm.xlu0 %3957, %v3944
    %v3959 = vpop.permute.xlu0 %3958
    %3962 = vset.pattern.permute.xlu0 4
    %3963 = vperm.xlu0 %3962, %v3945
    %v3964 = vpop.permute.xlu0 %3963
    %3967 = vset.pattern.permute.xlu0 4
    %3968 = vperm.xlu0 %3967, %v3946
    %v3969 = vpop.permute.xlu0 %3968
    %3972 = vset.pattern.permute.xlu0 4
    %3973 = vperm.xlu0 %3972, %v3947
    %v3974 = vpop.permute.xlu0 %3973
    %3977 = vset.pattern.permute.xlu0 4
    %3978 = vperm.xlu0 %3977, %v3948
    %v3979 = vpop.permute.xlu0 %3978
    %3982 = vset.pattern.permute.xlu0 4
    %3983 = vperm.xlu0 %3982, %v3949
    %v3984 = vpop.permute.xlu0 %3983
    %3987 = vset.pattern.permute.xlu0 4
    %3988 = vperm.xlu0 %3987, %v3950
    %v3989 = vpop.permute.xlu0 %3988
    %v3991 = vmul.f32 %v3887, %v3954
    %v3992 = vmul.f32 %v3888, %v3959
    %v3993 = vmul.f32 %v3889, %v3964
    %v3994 = vmul.f32 %v3890, %v3969
    %v3995 = vmul.f32 %v3891, %v3974
    %v3996 = vmul.f32 %v3892, %v3979
    %v3997 = vmul.f32 %v3893, %v3984
    %v3998 = vmul.f32 %v3894, %v3989
    %3999 = vset.pattern.permute.xlu0 4
    %4000 = vperm.xlu0 %3999, %v202
    %v4001 = vpop.permute.xlu0 %4000
    %4003 = vset.pattern.permute.xlu0 4
    %4004 = vperm.xlu0 %4003, %v203
    %v4005 = vpop.permute.xlu0 %4004
    %4007 = vset.pattern.permute.xlu0 4
    %4008 = vperm.xlu0 %4007, %v204
    %v4009 = vpop.permute.xlu0 %4008
    %4011 = vset.pattern.permute.xlu0 4
    %4012 = vperm.xlu0 %4011, %v205
    %v4013 = vpop.permute.xlu0 %4012
    %4015 = vset.pattern.permute.xlu0 4
    %4016 = vperm.xlu0 %4015, %v206
    %v4017 = vpop.permute.xlu0 %4016
    %4019 = vset.pattern.permute.xlu0 4
    %4020 = vperm.xlu0 %4019, %v207
    %v4021 = vpop.permute.xlu0 %4020
    %4023 = vset.pattern.permute.xlu0 4
    %4024 = vperm.xlu0 %4023, %v208
    %v4025 = vpop.permute.xlu0 %4024
    %4027 = vset.pattern.permute.xlu0 4
    %4028 = vperm.xlu0 %4027, %v209
    %v4029 = vpop.permute.xlu0 %4028
    %v4031 = vadd.f32 %v3991, %v4001
    %v4032 = vadd.f32 %v3992, %v4005
    %v4033 = vadd.f32 %v3993, %v4009
    %v4034 = vadd.f32 %v3994, %v4013
    %v4035 = vadd.f32 %v3995, %v4017
    %v4036 = vadd.f32 %v3996, %v4021
    %v4037 = vadd.f32 %v3997, %v4025
    %v4038 = vadd.f32 %v3998, %v4029
    %v4039 = vmax.f32 %v4031, 0.0
    %v4040 = vmax.f32 %v4032, 0.0
    %v4041 = vmax.f32 %v4033, 0.0
    %v4042 = vmax.f32 %v4034, 0.0
    %v4043 = vmax.f32 %v4035, 0.0
    %v4044 = vmax.f32 %v4036, 0.0
    %v4045 = vmax.f32 %v4037, 0.0
    %v4046 = vmax.f32 %v4038, 0.0
    %s4047 = scalar_lea.vmem [#allocation6], 800
    %v4048 = vld [vmem:[%s4047] sm:$0xff]
    %v4049 = vld [vmem:[%s4047 + $0x8] sm:$0xff]
    %v4050 = vld [vmem:[%s4047 + $0x10] sm:$0xf]
    %v4051 = vld [vmem:[%s4047 + $0x14] sm:$0xff]
    %v4052 = vld [vmem:[%s4047 + $0x1c] sm:$0xff]
    %v4053 = vld [vmem:[%s4047 + $0x24] sm:$0xf]
    %v4054 = vld [vmem:[%s4047 + $0x28] sm:$0xff]
    %v4055 = vld [vmem:[%s4047 + $0x30] sm:$0xff]
    %v4056 = vld [vmem:[%s4047 + $0x38] sm:$0xf]
    %v4057 = vld [vmem:[%s4047 + $0x3c] sm:$0xff]
    %v4058 = vld [vmem:[%s4047 + $0x44] sm:$0xff]
    %v4059 = vld [vmem:[%s4047 + $0x4c] sm:$0xf]
    %v4060 = vld [vmem:[%s4047 + $0x50] sm:$0xff]
    %v4061 = vld [vmem:[%s4047 + $0x58] sm:$0xff]
    %v4062 = vld [vmem:[%s4047 + $0x60] sm:$0xf]
    %v4063 = vld [vmem:[%s4047 + $0x64] sm:$0xff]
    %v4064 = vld [vmem:[%s4047 + $0x6c] sm:$0xff]
    %v4065 = vld [vmem:[%s4047 + $0x74] sm:$0xf]
    %v4066 = vld [vmem:[%s4047 + $0x78] sm:$0xff]
    %v4067 = vld [vmem:[%s4047 + $0x80] sm:$0xff]
    %v4068 = vld [vmem:[%s4047 + $0x88] sm:$0xf]
    %v4069 = vld [vmem:[%s4047 + $0x8c] sm:$0xff]
    %v4070 = vld [vmem:[%s4047 + $0x94] sm:$0xff]
    %v4071 = vld [vmem:[%s4047 + $0x9c] sm:$0xf]
    %4072 = vrot.lane.b32.xlu0 %v4039, 9
    %v4073 = vpop.permute.xlu0 %4072
    %4074 = vrot.lane.b32.xlu0 %v4040, 9
    %v4075 = vpop.permute.xlu0 %4074
    %4076 = vrot.lane.b32.xlu0 %v4041, 9
    %v4077 = vpop.permute.xlu0 %4076
    %4078 = vrot.lane.b32.xlu0 %v4042, 9
    %v4079 = vpop.permute.xlu0 %4078
    %4080 = vrot.lane.b32.xlu0 %v4043, 9
    %v4081 = vpop.permute.xlu0 %4080
    %4082 = vrot.lane.b32.xlu0 %v4044, 9
    %v4083 = vpop.permute.xlu0 %4082
    %4084 = vrot.lane.b32.xlu0 %v4045, 9
    %v4085 = vpop.permute.xlu0 %4084
    %4086 = vrot.lane.b32.xlu0 %v4046, 9
    %v4087 = vpop.permute.xlu0 %4086
    %4088 = vrot.lane.b32.xlu0 %v4039, 8
    %v4089 = vpop.permute.xlu0 %4088
    %4090 = vrot.lane.b32.xlu0 %v4040, 8
    %v4091 = vpop.permute.xlu0 %4090
    %4092 = vrot.lane.b32.xlu0 %v4041, 8
    %v4093 = vpop.permute.xlu0 %4092
    %4094 = vrot.lane.b32.xlu0 %v4042, 8
    %v4095 = vpop.permute.xlu0 %4094
    %4096 = vrot.lane.b32.xlu0 %v4043, 8
    %v4097 = vpop.permute.xlu0 %4096
    %4098 = vrot.lane.b32.xlu0 %v4044, 8
    %v4099 = vpop.permute.xlu0 %4098
    %4100 = vrot.lane.b32.xlu0 %v4045, 8
    %v4101 = vpop.permute.xlu0 %4100
    %4102 = vrot.lane.b32.xlu0 %v4046, 8
    %v4103 = vpop.permute.xlu0 %4102
    %4104 = vrot.lane.b32.xlu0 %v4039, 7
    %v4105 = vpop.permute.xlu0 %4104
    %4106 = vrot.lane.b32.xlu0 %v4040, 7
    %v4107 = vpop.permute.xlu0 %4106
    %4108 = vrot.lane.b32.xlu0 %v4041, 7
    %v4109 = vpop.permute.xlu0 %4108
    %4110 = vrot.lane.b32.xlu0 %v4042, 7
    %v4111 = vpop.permute.xlu0 %4110
    %4112 = vrot.lane.b32.xlu0 %v4043, 7
    %v4113 = vpop.permute.xlu0 %4112
    %4114 = vrot.lane.b32.xlu0 %v4044, 7
    %v4115 = vpop.permute.xlu0 %4114
    %4116 = vrot.lane.b32.xlu0 %v4045, 7
    %v4117 = vpop.permute.xlu0 %4116
    %4118 = vrot.lane.b32.xlu0 %v4046, 7
    %v4119 = vpop.permute.xlu0 %4118
    %4120 = vrot.lane.b32.xlu0 %v4039, 1
    %v4121 = vpop.permute.xlu0 %4120
    %4122 = vrot.lane.b32.xlu0 %v4040, 1
    %v4123 = vpop.permute.xlu0 %4122
    %4124 = vrot.lane.b32.xlu0 %v4041, 1
    %v4125 = vpop.permute.xlu0 %4124
    %4126 = vrot.lane.b32.xlu0 %v4042, 1
    %v4127 = vpop.permute.xlu0 %4126
    %4128 = vrot.lane.b32.xlu0 %v4043, 1
    %v4129 = vpop.permute.xlu0 %4128
    %4130 = vrot.lane.b32.xlu0 %v4044, 1
    %v4131 = vpop.permute.xlu0 %4130
    %4132 = vrot.lane.b32.xlu0 %v4045, 1
    %v4133 = vpop.permute.xlu0 %4132
    %4134 = vrot.lane.b32.xlu0 %v4046, 1
    %v4135 = vpop.permute.xlu0 %4134
    %4136 = vrot.lane.b32.xlu0 %v4039, 127
    %v4137 = vpop.permute.xlu0 %4136
    %4138 = vrot.lane.b32.xlu0 %v4040, 127
    %v4139 = vpop.permute.xlu0 %4138
    %4140 = vrot.lane.b32.xlu0 %v4041, 127
    %v4141 = vpop.permute.xlu0 %4140
    %4142 = vrot.lane.b32.xlu0 %v4042, 127
    %v4143 = vpop.permute.xlu0 %4142
    %4144 = vrot.lane.b32.xlu0 %v4043, 127
    %v4145 = vpop.permute.xlu0 %4144
    %4146 = vrot.lane.b32.xlu0 %v4044, 127
    %v4147 = vpop.permute.xlu0 %4146
    %4148 = vrot.lane.b32.xlu0 %v4045, 127
    %v4149 = vpop.permute.xlu0 %4148
    %4150 = vrot.lane.b32.xlu0 %v4046, 127
    %v4151 = vpop.permute.xlu0 %4150
    %4152 = vrot.lane.b32.xlu0 %v4039, 121
    %v4153 = vpop.permute.xlu0 %4152
    %4154 = vrot.lane.b32.xlu0 %v4040, 121
    %v4155 = vpop.permute.xlu0 %4154
    %4156 = vrot.lane.b32.xlu0 %v4041, 121
    %v4157 = vpop.permute.xlu0 %4156
    %4158 = vrot.lane.b32.xlu0 %v4042, 121
    %v4159 = vpop.permute.xlu0 %4158
    %4160 = vrot.lane.b32.xlu0 %v4043, 121
    %v4161 = vpop.permute.xlu0 %4160
    %4162 = vrot.lane.b32.xlu0 %v4044, 121
    %v4163 = vpop.permute.xlu0 %4162
    %4164 = vrot.lane.b32.xlu0 %v4045, 121
    %v4165 = vpop.permute.xlu0 %4164
    %4166 = vrot.lane.b32.xlu0 %v4046, 121
    %v4167 = vpop.permute.xlu0 %4166
    %4168 = vrot.lane.b32.xlu0 %v4039, 120
    %v4169 = vpop.permute.xlu0 %4168
    %4170 = vrot.lane.b32.xlu0 %v4040, 120
    %v4171 = vpop.permute.xlu0 %4170
    %4172 = vrot.lane.b32.xlu0 %v4041, 120
    %v4173 = vpop.permute.xlu0 %4172
    %4174 = vrot.lane.b32.xlu0 %v4042, 120
    %v4175 = vpop.permute.xlu0 %4174
    %4176 = vrot.lane.b32.xlu0 %v4043, 120
    %v4177 = vpop.permute.xlu0 %4176
    %4178 = vrot.lane.b32.xlu0 %v4044, 120
    %v4179 = vpop.permute.xlu0 %4178
    %4180 = vrot.lane.b32.xlu0 %v4045, 120
    %v4181 = vpop.permute.xlu0 %4180
    %4182 = vrot.lane.b32.xlu0 %v4046, 120
    %v4183 = vpop.permute.xlu0 %4182
    %4184 = vrot.lane.b32.xlu0 %v4039, 119
    %v4185 = vpop.permute.xlu0 %4184
    %4186 = vrot.lane.b32.xlu0 %v4040, 119
    %v4187 = vpop.permute.xlu0 %4186
    %4188 = vrot.lane.b32.xlu0 %v4041, 119
    %v4189 = vpop.permute.xlu0 %4188
    %4190 = vrot.lane.b32.xlu0 %v4042, 119
    %v4191 = vpop.permute.xlu0 %4190
    %4192 = vrot.lane.b32.xlu0 %v4043, 119
    %v4193 = vpop.permute.xlu0 %4192
    %4194 = vrot.lane.b32.xlu0 %v4044, 119
    %v4195 = vpop.permute.xlu0 %4194
    %4196 = vrot.lane.b32.xlu0 %v4045, 119
    %v4197 = vpop.permute.xlu0 %4196
    %4198 = vrot.lane.b32.xlu0 %v4046, 119
    %v4199 = vpop.permute.xlu0 %4198
    %v4200 = vpack.c.bf16 %v4075, %v4073
    %v4201 = vpack.c.bf16 %v4079, %v4077
    %v4202 = vpack.c.bf16 %v4083, %v4081
    %v4203 = vpack.c.bf16 %v4087, %v4085
    %v4204 = vpack.c.bf16 %v4091, %v4089
    %v4205 = vpack.c.bf16 %v4095, %v4093
    %v4206 = vpack.c.bf16 %v4099, %v4097
    %v4207 = vpack.c.bf16 %v4103, %v4101
    %v4208 = vpack.c.bf16 %v4107, %v4105
    %v4209 = vpack.c.bf16 %v4111, %v4109
    %v4210 = vpack.c.bf16 %v4115, %v4113
    %v4211 = vpack.c.bf16 %v4119, %v4117
    %v4212 = vpack.c.bf16 %v4123, %v4121
    %v4213 = vpack.c.bf16 %v4127, %v4125
    %v4214 = vpack.c.bf16 %v4131, %v4129
    %v4215 = vpack.c.bf16 %v4135, %v4133
    %v4216 = vpack.c.bf16 %v4040, %v4039
    %v4217 = vpack.c.bf16 %v4042, %v4041
    %v4218 = vpack.c.bf16 %v4044, %v4043
    %v4219 = vpack.c.bf16 %v4046, %v4045
    %v4220 = vpack.c.bf16 %v4139, %v4137
    %v4221 = vpack.c.bf16 %v4143, %v4141
    %v4222 = vpack.c.bf16 %v4147, %v4145
    %v4223 = vpack.c.bf16 %v4151, %v4149
    %v4224 = vpack.c.bf16 %v4155, %v4153
    %v4225 = vpack.c.bf16 %v4159, %v4157
    %v4226 = vpack.c.bf16 %v4163, %v4161
    %v4227 = vpack.c.bf16 %v4167, %v4165
    %v4228 = vpack.c.bf16 %v4171, %v4169
    %v4229 = vpack.c.bf16 %v4175, %v4173
    %v4230 = vpack.c.bf16 %v4179, %v4177
    %v4231 = vpack.c.bf16 %v4183, %v4181
    %v4232 = vpack.c.bf16 %v4187, %v4185
    %v4233 = vpack.c.bf16 %v4191, %v4189
    %v4234 = vpack.c.bf16 %v4195, %v4193
    %v4235 = vpack.c.bf16 %v4199, %v4197
    %v4236 = vmul.bf16 %v4200, %v558
    %v4237 = vmul.bf16 %v4201, %v559
    %v4238 = vmul.bf16 %v4202, %v560
    %v4239 = vmul.bf16 %v4203, %v561
    %v4240 = vmul.bf16 %v4204, %v562
    %v4241 = vmul.bf16 %v4205, %v563
    %v4242 = vmul.bf16 %v4206, %v564
    %v4243 = vmul.bf16 %v4207, %v565
    %v4244 = vmul.bf16 %v4208, %v566
    %v4245 = vmul.bf16 %v4209, %v567
    %v4246 = vmul.bf16 %v4210, %v568
    %v4247 = vmul.bf16 %v4211, %v569
    %v4248 = vmul.bf16 %v4212, %v570
    %v4249 = vmul.bf16 %v4213, %v571
    %v4250 = vmul.bf16 %v4214, %v572
    %v4251 = vmul.bf16 %v4215, %v573
    %v4252 = vmul.bf16 %v4216, %v574
    %v4253 = vmul.bf16 %v4217, %v575
    %v4254 = vmul.bf16 %v4218, %v576
    %v4255 = vmul.bf16 %v4219, %v577
    %v4256 = vmul.bf16 %v4220, %v578
    %v4257 = vmul.bf16 %v4221, %v579
    %v4258 = vmul.bf16 %v4222, %v580
    %v4259 = vmul.bf16 %v4223, %v581
    %v4260 = vmul.bf16 %v4224, %v582
    %v4261 = vmul.bf16 %v4225, %v583
    %v4262 = vmul.bf16 %v4226, %v584
    %v4263 = vmul.bf16 %v4227, %v585
    %v4264 = vmul.bf16 %v4228, %v586
    %v4265 = vmul.bf16 %v4229, %v587
    %v4266 = vmul.bf16 %v4230, %v588
    %v4267 = vmul.bf16 %v4231, %v589
    %v4268 = vmul.bf16 %v4232, %v590
    %v4269 = vmul.bf16 %v4233, %v591
    %v4270 = vmul.bf16 %v4234, %v592
    %v4271 = vmul.bf16 %v4235, %v593
    %v4296 = vunpack.c.l.b16 %v4048
    %v4297 = vunpack.c.h.b16 %v4048
    %v4298 = vunpack.c.l.b16 %v4049
    %v4299 = vunpack.c.h.b16 %v4049
    %v4300 = vunpack.c.l.b16 %v4050
    %v4301 = vunpack.c.l.b16 %v4051
    %v4302 = vunpack.c.h.b16 %v4051
    %v4303 = vunpack.c.l.b16 %v4052
    %v4304 = vunpack.c.h.b16 %v4052
    %v4305 = vunpack.c.l.b16 %v4053
    %v4306 = vunpack.c.l.b16 %v4054
    %v4307 = vunpack.c.h.b16 %v4054
    %v4308 = vunpack.c.l.b16 %v4055
    %v4309 = vunpack.c.h.b16 %v4055
    %v4310 = vunpack.c.l.b16 %v4056
    %v4311 = vunpack.c.l.b16 %v4057
    %v4312 = vunpack.c.h.b16 %v4057
    %v4313 = vunpack.c.l.b16 %v4058
    %v4314 = vunpack.c.h.b16 %v4058
    %v4315 = vunpack.c.l.b16 %v4059
    %v4316 = vunpack.c.l.b16 %v4060
    %v4317 = vunpack.c.h.b16 %v4060
    %v4318 = vunpack.c.l.b16 %v4061
    %v4319 = vunpack.c.h.b16 %v4061
    %v4320 = vunpack.c.l.b16 %v4062
    %v4321 = vunpack.c.l.b16 %v4063
    %v4322 = vunpack.c.h.b16 %v4063
    %v4323 = vunpack.c.l.b16 %v4064
    %v4324 = vunpack.c.h.b16 %v4064
    %v4325 = vunpack.c.l.b16 %v4065
    %v4326 = vunpack.c.l.b16 %v4066
    %v4327 = vunpack.c.h.b16 %v4066
    %v4328 = vunpack.c.l.b16 %v4067
    %v4329 = vunpack.c.h.b16 %v4067
    %v4330 = vunpack.c.l.b16 %v4068
    %v4331 = vunpack.c.l.b16 %v4069
    %v4332 = vunpack.c.h.b16 %v4069
    %v4333 = vunpack.c.l.b16 %v4070
    %v4334 = vunpack.c.h.b16 %v4070
    %v4335 = vunpack.c.l.b16 %v4071
    %v4336 = vpack.c.b16 %v4301, %v4296
    %v4337 = vpack.c.b16 %v4302, %v4297
    %v4338 = vpack.c.b16 %v4303, %v4298
    %v4339 = vpack.c.b16 %v4304, %v4299
    %v4340 = vpack.c.b16 %v4305, %v4300
    %v4341 = vpack.c.b16 %v4311, %v4306
    %v4342 = vpack.c.b16 %v4312, %v4307
    %v4343 = vpack.c.b16 %v4313, %v4308
    %v4344 = vpack.c.b16 %v4314, %v4309
    %v4345 = vpack.c.b16 %v4315, %v4310
    %v4346 = vpack.c.b16 %v4321, %v4316
    %v4347 = vpack.c.b16 %v4322, %v4317
    %v4348 = vpack.c.b16 %v4323, %v4318
    %v4349 = vpack.c.b16 %v4324, %v4319
    %v4350 = vpack.c.b16 %v4325, %v4320
    %v4351 = vpack.c.b16 %v4331, %v4326
    %v4352 = vpack.c.b16 %v4332, %v4327
    %v4353 = vpack.c.b16 %v4333, %v4328
    %v4354 = vpack.c.b16 %v4334, %v4329
    %v4355 = vpack.c.b16 %v4335, %v4330
    %v4373 = vsel %vm766, %v4340, 0
    %v4376 = vsel %vm766, %v4345, 0
    %v4379 = vsel %vm766, %v4350, 0
    %v4382 = vsel %vm766, %v4355, 0
    %4384 = vmatprep.subr.bf16.mxu0 0
    %4385 = vmatpush1.bf16.msra.mxu0 %v4236
    %4386 = vmatprep.subr.bf16.mxu0 0
    %4387 = vmatpush1.bf16.msra.mxu0 %v4237
    %4388 = vmatprep.subr.bf16.mxu0 0
    %4389 = vmatpush1.bf16.msra.mxu0 %v4238
    %4390 = vmatprep.subr.bf16.mxu0 0
    %4391 = vmatpush1.bf16.msra.mxu0 %v4239
    %4392 = vmatprep.subr.bf16.mxu0 0
    %4393 = vmatpush1.bf16.msra.mxu0 %v4240
    %4394 = vmatprep.subr.bf16.mxu0 0
    %4395 = vmatpush1.bf16.msra.mxu0 %v4241
    %4396 = vmatprep.subr.bf16.mxu0 0
    %4397 = vmatpush1.bf16.msra.mxu0 %v4242
    %4398 = vmatprep.subr.bf16.mxu0 0
    %4399 = vmatpush1.bf16.msra.mxu0 %v4243
    %4400 = vmatprep.subr.bf16.mxu0 0
    %4401 = vmatpush1.bf16.msra.mxu0 %v4244
    %4402 = vmatprep.subr.bf16.mxu0 0
    %4403 = vmatpush1.bf16.msra.mxu0 %v4245
    %4404 = vmatprep.subr.bf16.mxu0 0
    %4405 = vmatpush1.bf16.msra.mxu0 %v4246
    %4406 = vmatprep.subr.bf16.mxu0 0
    %4407 = vmatpush1.bf16.msra.mxu0 %v4247
    %4408 = vmatprep.subr.bf16.mxu0 0
    %4409 = vmatpush1.bf16.msra.mxu0 %v4248
    %4410 = vmatprep.subr.bf16.mxu0 0
    %4411 = vmatpush1.bf16.msra.mxu0 %v4249
    %4412 = vmatprep.subr.bf16.mxu0 0
    %4413 = vmatpush1.bf16.msra.mxu0 %v4250
    %4414 = vmatprep.subr.bf16.mxu0 0
    %4415 = vmatpush1.bf16.msra.mxu0 %v4251
    %4416 = vmatprep.mubr.bf16.mxu0 %v4337
    %4417 = vmatmul.mubr.bf16.gmra.mrb[0].mxu0 %v4336
    %v4418 = vpop.f32.mrb[0].mxu0
    %v4419 = vadd.f32 0.0, %v4418
    %v4420 = vpop.f32.mrb[0].mxu0
    %v4421 = vpop.f32.mrb[0].mxu0
    %v4422 = vadd.f32 0.0, %v4421
    %v4423 = vpop.f32.mrb[0].mxu0
    %4424 = vmatprep.mubr.bf16.mxu0 %v4342
    %4425 = vmatmul.mubr.bf16.gmra.mrb[0].mxu0 %v4341
    %v4426 = vpop.f32.mrb[0].mxu0
    %v4427 = vadd.f32 0.0, %v4426
    %v4428 = vpop.f32.mrb[0].mxu0
    %v4429 = vpop.f32.mrb[0].mxu0
    %v4430 = vadd.f32 0.0, %v4429
    %v4431 = vpop.f32.mrb[0].mxu0
    %4432 = vmatprep.mubr.bf16.mxu0 %v4347
    %4433 = vmatmul.mubr.bf16.gmra.mrb[0].mxu0 %v4346
    %v4434 = vpop.f32.mrb[0].mxu0
    %v4435 = vadd.f32 0.0, %v4434
    %v4436 = vpop.f32.mrb[0].mxu0
    %v4437 = vpop.f32.mrb[0].mxu0
    %v4438 = vadd.f32 0.0, %v4437
    %v4439 = vpop.f32.mrb[0].mxu0
    %4440 = vmatprep.mubr.bf16.mxu0 %v4352
    %4441 = vmatmul.mubr.bf16.gmra.mrb[0].mxu0 %v4351
    %v4442 = vpop.f32.mrb[0].mxu0
    %v4443 = vadd.f32 0.0, %v4442
    %v4444 = vpop.f32.mrb[0].mxu0
    %v4445 = vpop.f32.mrb[0].mxu0
    %v4446 = vadd.f32 0.0, %v4445
    %v4447 = vpop.f32.mrb[0].mxu0
    %4448 = vdwg.mxu0
    %4449 = vmatprep.subr.bf16.mxu0 0
    %4450 = vmatpush1.bf16.msra.mxu0 %v4252
    %4451 = vmatprep.subr.bf16.mxu0 0
    %4452 = vmatpush1.bf16.msra.mxu0 %v4253
    %4453 = vmatprep.subr.bf16.mxu0 0
    %4454 = vmatpush1.bf16.msra.mxu0 %v4254
    %4455 = vmatprep.subr.bf16.mxu0 0
    %4456 = vmatpush1.bf16.msra.mxu0 %v4255
    %4457 = vmatprep.subr.bf16.mxu0 0
    %4458 = vmatpush1.bf16.msra.mxu0 %v4256
    %4459 = vmatprep.subr.bf16.mxu0 0
    %4460 = vmatpush1.bf16.msra.mxu0 %v4257
    %4461 = vmatprep.subr.bf16.mxu0 0
    %4462 = vmatpush1.bf16.msra.mxu0 %v4258
    %4463 = vmatprep.subr.bf16.mxu0 0
    %4464 = vmatpush1.bf16.msra.mxu0 %v4259
    %4465 = vmatprep.subr.bf16.mxu0 0
    %4466 = vmatpush1.bf16.msra.mxu0 %v4260
    %4467 = vmatprep.subr.bf16.mxu0 0
    %4468 = vmatpush1.bf16.msra.mxu0 %v4261
    %4469 = vmatprep.subr.bf16.mxu0 0
    %4470 = vmatpush1.bf16.msra.mxu0 %v4262
    %4471 = vmatprep.subr.bf16.mxu0 0
    %4472 = vmatpush1.bf16.msra.mxu0 %v4263
    %4473 = vmatprep.subr.bf16.mxu0 0
    %4474 = vmatpush1.bf16.msra.mxu0 %v4264
    %4475 = vmatprep.subr.bf16.mxu0 0
    %4476 = vmatpush1.bf16.msra.mxu0 %v4265
    %4477 = vmatprep.subr.bf16.mxu0 0
    %4478 = vmatpush1.bf16.msra.mxu0 %v4266
    %4479 = vmatprep.subr.bf16.mxu0 0
    %4480 = vmatpush1.bf16.msra.mxu0 %v4267
    %4481 = vmatprep.mubr.bf16.mxu0 %v4339
    %4482 = vmatmul.mubr.bf16.gmra.mrb[0].mxu0 %v4338
    %v4483 = vpop.f32.mrb[0].mxu0
    %v4484 = vadd.f32 %v4419, %v4483
    %v4485 = vpop.f32.mrb[0].mxu0
    %v4486 = vpop.f32.mrb[0].mxu0
    %v4487 = vadd.f32 %v4422, %v4486
    %v4488 = vpop.f32.mrb[0].mxu0
    %4489 = vmatprep.mubr.bf16.mxu0 %v4344
    %4490 = vmatmul.mubr.bf16.gmra.mrb[0].mxu0 %v4343
    %v4491 = vpop.f32.mrb[0].mxu0
    %v4492 = vadd.f32 %v4427, %v4491
    %v4493 = vpop.f32.mrb[0].mxu0
    %v4494 = vpop.f32.mrb[0].mxu0
    %v4495 = vadd.f32 %v4430, %v4494
    %v4496 = vpop.f32.mrb[0].mxu0
    %4497 = vmatprep.mubr.bf16.mxu0 %v4349
    %4498 = vmatmul.mubr.bf16.gmra.mrb[0].mxu0 %v4348
    %v4499 = vpop.f32.mrb[0].mxu0
    %v4500 = vadd.f32 %v4435, %v4499
    %v4501 = vpop.f32.mrb[0].mxu0
    %v4502 = vpop.f32.mrb[0].mxu0
    %v4503 = vadd.f32 %v4438, %v4502
    %v4504 = vpop.f32.mrb[0].mxu0
    %4505 = vmatprep.mubr.bf16.mxu0 %v4354
    %4506 = vmatmul.mubr.bf16.gmra.mrb[0].mxu0 %v4353
    %v4507 = vpop.f32.mrb[0].mxu0
    %v4508 = vadd.f32 %v4443, %v4507
    %v4509 = vpop.f32.mrb[0].mxu0
    %v4510 = vpop.f32.mrb[0].mxu0
    %v4511 = vadd.f32 %v4446, %v4510
    %v4512 = vpop.f32.mrb[0].mxu0
    %4513 = vdwg.mxu0
    %4514 = vmatprep.subr.bf16.mxu0 0
    %4515 = vmatpush1.bf16.msra.mxu0 %v4268
    %4516 = vmatprep.subr.bf16.mxu0 0
    %4517 = vmatpush1.bf16.msra.mxu0 %v4269
    %4518 = vmatprep.subr.bf16.mxu0 0
    %4519 = vmatpush1.bf16.msra.mxu0 %v4270
    %4520 = vmatprep.subr.bf16.mxu0 0
    %4521 = vmatpush1.bf16.msra.mxu0 %v4271
    %4522 = vmatprep.subr.bf16.mxu0 0
    %4523 = vmatpush1.bf16.msra.mxu0 0
    %4524 = vmatprep.subr.bf16.mxu0 0
    %4525 = vmatpush1.bf16.msra.mxu0 0
    %4526 = vmatprep.subr.bf16.mxu0 0
    %4527 = vmatpush1.bf16.msra.mxu0 0
    %4528 = vmatprep.subr.bf16.mxu0 0
    %4529 = vmatpush1.bf16.msra.mxu0 0
    %4530 = vmatprep.subr.bf16.mxu0 0
    %4531 = vmatpush1.bf16.msra.mxu0 0
    %4532 = vmatprep.subr.bf16.mxu0 0
    %4533 = vmatpush1.bf16.msra.mxu0 0
    %4534 = vmatprep.subr.bf16.mxu0 0
    %4535 = vmatpush1.bf16.msra.mxu0 0
    %4536 = vmatprep.subr.bf16.mxu0 0
    %4537 = vmatpush1.bf16.msra.mxu0 0
    %4538 = vmatprep.subr.bf16.mxu0 0
    %4539 = vmatpush1.bf16.msra.mxu0 0
    %4540 = vmatprep.subr.bf16.mxu0 0
    %4541 = vmatpush1.bf16.msra.mxu0 0
    %4542 = vmatprep.subr.bf16.mxu0 0
    %4543 = vmatpush1.bf16.msra.mxu0 0
    %4544 = vmatprep.subr.bf16.mxu0 0
    %4545 = vmatpush1.bf16.msra.mxu0 0
    %4546 = vmatprep.mubr.bf16.mxu0 0
    %4547 = vmatmul.mubr.bf16.gmra.mrb[0].mxu0 %v4373
    %v4548 = vpop.f32.mrb[0].mxu0
    %v4549 = vadd.f32 %v4484, %v4548
    %v4550 = vpop.f32.mrb[0].mxu0
    %v4551 = vpop.f32.mrb[0].mxu0
    %v4552 = vadd.f32 %v4487, %v4551
    %v4553 = vpop.f32.mrb[0].mxu0
    %4554 = vmatprep.mubr.bf16.mxu0 0
    %4555 = vmatmul.mubr.bf16.gmra.mrb[0].mxu0 %v4376
    %v4556 = vpop.f32.mrb[0].mxu0
    %v4557 = vadd.f32 %v4492, %v4556
    %v4558 = vpop.f32.mrb[0].mxu0
    %v4559 = vpop.f32.mrb[0].mxu0
    %v4560 = vadd.f32 %v4495, %v4559
    %v4561 = vpop.f32.mrb[0].mxu0
    %4562 = vmatprep.mubr.bf16.mxu0 0
    %4563 = vmatmul.mubr.bf16.gmra.mrb[0].mxu0 %v4379
    %v4564 = vpop.f32.mrb[0].mxu0
    %v4565 = vadd.f32 %v4500, %v4564
    %v4566 = vpop.f32.mrb[0].mxu0
    %v4567 = vpop.f32.mrb[0].mxu0
    %v4568 = vadd.f32 %v4503, %v4567
    %v4569 = vpop.f32.mrb[0].mxu0
    %4570 = vmatprep.mubr.bf16.mxu0 0
    %4571 = vmatmul.mubr.bf16.gmra.mrb[0].mxu0 %v4382
    %v4572 = vpop.f32.mrb[0].mxu0
    %v4573 = vadd.f32 %v4508, %v4572
    %v4574 = vpop.f32.mrb[0].mxu0
    %v4575 = vpop.f32.mrb[0].mxu0
    %v4576 = vadd.f32 %v4511, %v4575
    %v4577 = vpop.f32.mrb[0].mxu0
    %4578 = vdwg.mxu0
    %4579 = vadd.xlane.f32.xlu0 %v4549
    %v4580 = vpop.xlane.xlu0 %4579
    %4581 = vadd.xlane.f32.xlu0 %v4552
    %v4582 = vpop.xlane.xlu0 %4581
    %4583 = vadd.xlane.f32.xlu0 %v4557
    %v4584 = vpop.xlane.xlu0 %4583
    %4585 = vadd.xlane.f32.xlu0 %v4560
    %v4586 = vpop.xlane.xlu0 %4585
    %4587 = vadd.xlane.f32.xlu0 %v4565
    %v4588 = vpop.xlane.xlu0 %4587
    %4589 = vadd.xlane.f32.xlu0 %v4568
    %v4590 = vpop.xlane.xlu0 %4589
    %4591 = vadd.xlane.f32.xlu0 %v4573
    %v4592 = vpop.xlane.xlu0 %4591
    %4593 = vadd.xlane.f32.xlu0 %v4576
    %v4594 = vpop.xlane.xlu0 %4593
    %v4595 = vmul.f32 %v4580, %v990
    %v4596 = vmul.f32 %v4582, %v990
    %v4597 = vmul.f32 %v4584, %v990
    %v4598 = vmul.f32 %v4586, %v990
    %v4599 = vmul.f32 %v4588, %v990
    %v4600 = vmul.f32 %v4590, %v990
    %v4601 = vmul.f32 %v4592, %v990
    %v4602 = vmul.f32 %v4594, %v990
    %v4603 = vsub.f32 %v4549, %v4595
    %v4604 = vsub.f32 %v4552, %v4596
    %v4605 = vsub.f32 %v4557, %v4597
    %v4606 = vsub.f32 %v4560, %v4598
    %v4607 = vsub.f32 %v4565, %v4599
    %v4608 = vsub.f32 %v4568, %v4600
    %v4609 = vsub.f32 %v4573, %v4601
    %v4610 = vsub.f32 %v4576, %v4602
    %v4611 = vmul.f32 %v4603, %v4603
    %v4612 = vmul.f32 %v4604, %v4604
    %v4613 = vmul.f32 %v4605, %v4605
    %v4614 = vmul.f32 %v4606, %v4606
    %v4615 = vmul.f32 %v4607, %v4607
    %v4616 = vmul.f32 %v4608, %v4608
    %v4617 = vmul.f32 %v4609, %v4609
    %v4618 = vmul.f32 %v4610, %v4610
    %4619 = vadd.xlane.f32.xlu0 %v4611
    %v4620 = vpop.xlane.xlu0 %4619
    %4621 = vadd.xlane.f32.xlu0 %v4612
    %v4622 = vpop.xlane.xlu0 %4621
    %4623 = vadd.xlane.f32.xlu0 %v4613
    %v4624 = vpop.xlane.xlu0 %4623
    %4625 = vadd.xlane.f32.xlu0 %v4614
    %v4626 = vpop.xlane.xlu0 %4625
    %4627 = vadd.xlane.f32.xlu0 %v4615
    %v4628 = vpop.xlane.xlu0 %4627
    %4629 = vadd.xlane.f32.xlu0 %v4616
    %v4630 = vpop.xlane.xlu0 %4629
    %4631 = vadd.xlane.f32.xlu0 %v4617
    %v4632 = vpop.xlane.xlu0 %4631
    %4633 = vadd.xlane.f32.xlu0 %v4618
    %v4634 = vpop.xlane.xlu0 %4633
    %v4635 = vmul.f32 %v4620, %v990
    %v4636 = vmul.f32 %v4622, %v990
    %v4637 = vmul.f32 %v4624, %v990
    %v4638 = vmul.f32 %v4626, %v990
    %v4639 = vmul.f32 %v4628, %v990
    %v4640 = vmul.f32 %v4630, %v990
    %v4641 = vmul.f32 %v4632, %v990
    %v4642 = vmul.f32 %v4634, %v990
    %v4643 = vadd.f32 %v4635, 1e-05
    %v4644 = vadd.f32 %v4636, 1e-05
    %v4645 = vadd.f32 %v4637, 1e-05
    %v4646 = vadd.f32 %v4638, 1e-05
    %v4647 = vadd.f32 %v4639, 1e-05
    %v4648 = vadd.f32 %v4640, 1e-05
    %v4649 = vadd.f32 %v4641, 1e-05
    %v4650 = vadd.f32 %v4642, 1e-05
    %v4651 = vrsqrt.pop %v4643
    %v4652 = vrsqrt.pop %v4644
    %v4653 = vrsqrt.pop %v4645
    %v4654 = vrsqrt.pop %v4646
    %v4655 = vrsqrt.pop %v4647
    %v4656 = vrsqrt.pop %v4648
    %v4657 = vrsqrt.pop %v4649
    %v4658 = vrsqrt.pop %v4650
    %v4659 = vmul.f32 %v194, %v4651
    %v4660 = vmul.f32 %v195, %v4652
    %v4661 = vmul.f32 %v196, %v4653
    %v4662 = vmul.f32 %v197, %v4654
    %v4663 = vmul.f32 %v198, %v4655
    %v4664 = vmul.f32 %v199, %v4656
    %v4665 = vmul.f32 %v200, %v4657
    %v4666 = vmul.f32 %v201, %v4658
    %4668 = vset.pattern.permute.xlu0 5
    %4669 = vperm.xlu0 %4668, %v4659
    %v4670 = vpop.permute.xlu0 %4669
    %4673 = vset.pattern.permute.xlu0 5
    %4674 = vperm.xlu0 %4673, %v4660
    %v4675 = vpop.permute.xlu0 %4674
    %4678 = vset.pattern.permute.xlu0 5
    %4679 = vperm.xlu0 %4678, %v4661
    %v4680 = vpop.permute.xlu0 %4679
    %4683 = vset.pattern.permute.xlu0 5
    %4684 = vperm.xlu0 %4683, %v4662
    %v4685 = vpop.permute.xlu0 %4684
    %4688 = vset.pattern.permute.xlu0 5
    %4689 = vperm.xlu0 %4688, %v4663
    %v4690 = vpop.permute.xlu0 %4689
    %4693 = vset.pattern.permute.xlu0 5
    %4694 = vperm.xlu0 %4693, %v4664
    %v4695 = vpop.permute.xlu0 %4694
    %4698 = vset.pattern.permute.xlu0 5
    %4699 = vperm.xlu0 %4698, %v4665
    %v4700 = vpop.permute.xlu0 %4699
    %4703 = vset.pattern.permute.xlu0 5
    %4704 = vperm.xlu0 %4703, %v4666
    %v4705 = vpop.permute.xlu0 %4704
    %v4707 = vmul.f32 %v4603, %v4670
    %v4708 = vmul.f32 %v4604, %v4675
    %v4709 = vmul.f32 %v4605, %v4680
    %v4710 = vmul.f32 %v4606, %v4685
    %v4711 = vmul.f32 %v4607, %v4690
    %v4712 = vmul.f32 %v4608, %v4695
    %v4713 = vmul.f32 %v4609, %v4700
    %v4714 = vmul.f32 %v4610, %v4705
    %4715 = vset.pattern.permute.xlu0 5
    %4716 = vperm.xlu0 %4715, %v202
    %v4717 = vpop.permute.xlu0 %4716
    %4719 = vset.pattern.permute.xlu0 5
    %4720 = vperm.xlu0 %4719, %v203
    %v4721 = vpop.permute.xlu0 %4720
    %4723 = vset.pattern.permute.xlu0 5
    %4724 = vperm.xlu0 %4723, %v204
    %v4725 = vpop.permute.xlu0 %4724
    %4727 = vset.pattern.permute.xlu0 5
    %4728 = vperm.xlu0 %4727, %v205
    %v4729 = vpop.permute.xlu0 %4728
    %4731 = vset.pattern.permute.xlu0 5
    %4732 = vperm.xlu0 %4731, %v206
    %v4733 = vpop.permute.xlu0 %4732
    %4735 = vset.pattern.permute.xlu0 5
    %4736 = vperm.xlu0 %4735, %v207
    %v4737 = vpop.permute.xlu0 %4736
    %4739 = vset.pattern.permute.xlu0 5
    %4740 = vperm.xlu0 %4739, %v208
    %v4741 = vpop.permute.xlu0 %4740
    %4743 = vset.pattern.permute.xlu0 5
    %4744 = vperm.xlu0 %4743, %v209
    %v4745 = vpop.permute.xlu0 %4744
    %v4747 = vadd.f32 %v4707, %v4717
    %v4748 = vadd.f32 %v4708, %v4721
    %v4749 = vadd.f32 %v4709, %v4725
    %v4750 = vadd.f32 %v4710, %v4729
    %v4751 = vadd.f32 %v4711, %v4733
    %v4752 = vadd.f32 %v4712, %v4737
    %v4753 = vadd.f32 %v4713, %v4741
    %v4754 = vadd.f32 %v4714, %v4745
    %v4755 = vadd.f32 %v4747, %v3323
    %v4756 = vadd.f32 %v4748, %v3324
    %v4757 = vadd.f32 %v4749, %v3325
    %v4758 = vadd.f32 %v4750, %v3326
    %v4759 = vadd.f32 %v4751, %v3327
    %v4760 = vadd.f32 %v4752, %v3328
    %v4761 = vadd.f32 %v4753, %v3329
    %v4762 = vadd.f32 %v4754, %v3330
    %v4763 = vmax.f32 %v4755, 0.0
    %v4764 = vmax.f32 %v4756, 0.0
    %v4765 = vmax.f32 %v4757, 0.0
    %v4766 = vmax.f32 %v4758, 0.0
    %v4767 = vmax.f32 %v4759, 0.0
    %v4768 = vmax.f32 %v4760, 0.0
    %v4769 = vmax.f32 %v4761, 0.0
    %v4770 = vmax.f32 %v4762, 0.0
    %s4771 = scalar_lea.vmem [#allocation6], 960
    %v4772 = vld [vmem:[%s4771] sm:$0xff]
    %v4773 = vld [vmem:[%s4771 + $0x8] sm:$0xff]
    %v4774 = vld [vmem:[%s4771 + $0x10] sm:$0xf]
    %v4775 = vld [vmem:[%s4771 + $0x14] sm:$0xff]
    %v4776 = vld [vmem:[%s4771 + $0x1c] sm:$0xff]
    %v4777 = vld [vmem:[%s4771 + $0x24] sm:$0xf]
    %v4778 = vld [vmem:[%s4771 + $0x28] sm:$0xff]
    %v4779 = vld [vmem:[%s4771 + $0x30] sm:$0xff]
    %v4780 = vld [vmem:[%s4771 + $0x38] sm:$0xf]
    %v4781 = vld [vmem:[%s4771 + $0x3c] sm:$0xff]
    %v4782 = vld [vmem:[%s4771 + $0x44] sm:$0xff]
    %v4783 = vld [vmem:[%s4771 + $0x4c] sm:$0xf]
    %v4784 = vld [vmem:[%s4771 + $0x50] sm:$0xff]
    %v4785 = vld [vmem:[%s4771 + $0x58] sm:$0xff]
    %v4786 = vld [vmem:[%s4771 + $0x60] sm:$0xf]
    %v4787 = vld [vmem:[%s4771 + $0x64] sm:$0xff]
    %v4788 = vld [vmem:[%s4771 + $0x6c] sm:$0xff]
    %v4789 = vld [vmem:[%s4771 + $0x74] sm:$0xf]
    %v4790 = vld [vmem:[%s4771 + $0x78] sm:$0xff]
    %v4791 = vld [vmem:[%s4771 + $0x80] sm:$0xff]
    %v4792 = vld [vmem:[%s4771 + $0x88] sm:$0xf]
    %v4793 = vld [vmem:[%s4771 + $0x8c] sm:$0xff]
    %v4794 = vld [vmem:[%s4771 + $0x94] sm:$0xff]
    %v4795 = vld [vmem:[%s4771 + $0x9c] sm:$0xf]
    %4796 = vrot.lane.b32.xlu0 %v4763, 9
    %v4797 = vpop.permute.xlu0 %4796
    %4798 = vrot.lane.b32.xlu0 %v4764, 9
    %v4799 = vpop.permute.xlu0 %4798
    %4800 = vrot.lane.b32.xlu0 %v4765, 9
    %v4801 = vpop.permute.xlu0 %4800
    %4802 = vrot.lane.b32.xlu0 %v4766, 9
    %v4803 = vpop.permute.xlu0 %4802
    %4804 = vrot.lane.b32.xlu0 %v4767, 9
    %v4805 = vpop.permute.xlu0 %4804
    %4806 = vrot.lane.b32.xlu0 %v4768, 9
    %v4807 = vpop.permute.xlu0 %4806
    %4808 = vrot.lane.b32.xlu0 %v4769, 9
    %v4809 = vpop.permute.xlu0 %4808
    %4810 = vrot.lane.b32.xlu0 %v4770, 9
    %v4811 = vpop.permute.xlu0 %4810
    %4812 = vrot.lane.b32.xlu0 %v4763, 8
    %v4813 = vpop.permute.xlu0 %4812
    %4814 = vrot.lane.b32.xlu0 %v4764, 8
    %v4815 = vpop.permute.xlu0 %4814
    %4816 = vrot.lane.b32.xlu0 %v4765, 8
    %v4817 = vpop.permute.xlu0 %4816
    %4818 = vrot.lane.b32.xlu0 %v4766, 8
    %v4819 = vpop.permute.xlu0 %4818
    %4820 = vrot.lane.b32.xlu0 %v4767, 8
    %v4821 = vpop.permute.xlu0 %4820
    %4822 = vrot.lane.b32.xlu0 %v4768, 8
    %v4823 = vpop.permute.xlu0 %4822
    %4824 = vrot.lane.b32.xlu0 %v4769, 8
    %v4825 = vpop.permute.xlu0 %4824
    %4826 = vrot.lane.b32.xlu0 %v4770, 8
    %v4827 = vpop.permute.xlu0 %4826
    %4828 = vrot.lane.b32.xlu0 %v4763, 7
    %v4829 = vpop.permute.xlu0 %4828
    %4830 = vrot.lane.b32.xlu0 %v4764, 7
    %v4831 = vpop.permute.xlu0 %4830
    %4832 = vrot.lane.b32.xlu0 %v4765, 7
    %v4833 = vpop.permute.xlu0 %4832
    %4834 = vrot.lane.b32.xlu0 %v4766, 7
    %v4835 = vpop.permute.xlu0 %4834
    %4836 = vrot.lane.b32.xlu0 %v4767, 7
    %v4837 = vpop.permute.xlu0 %4836
    %4838 = vrot.lane.b32.xlu0 %v4768, 7
    %v4839 = vpop.permute.xlu0 %4838
    %4840 = vrot.lane.b32.xlu0 %v4769, 7
    %v4841 = vpop.permute.xlu0 %4840
    %4842 = vrot.lane.b32.xlu0 %v4770, 7
    %v4843 = vpop.permute.xlu0 %4842
    %4844 = vrot.lane.b32.xlu0 %v4763, 1
    %v4845 = vpop.permute.xlu0 %4844
    %4846 = vrot.lane.b32.xlu0 %v4764, 1
    %v4847 = vpop.permute.xlu0 %4846
    %4848 = vrot.lane.b32.xlu0 %v4765, 1
    %v4849 = vpop.permute.xlu0 %4848
    %4850 = vrot.lane.b32.xlu0 %v4766, 1
    %v4851 = vpop.permute.xlu0 %4850
    %4852 = vrot.lane.b32.xlu0 %v4767, 1
    %v4853 = vpop.permute.xlu0 %4852
    %4854 = vrot.lane.b32.xlu0 %v4768, 1
    %v4855 = vpop.permute.xlu0 %4854
    %4856 = vrot.lane.b32.xlu0 %v4769, 1
    %v4857 = vpop.permute.xlu0 %4856
    %4858 = vrot.lane.b32.xlu0 %v4770, 1
    %v4859 = vpop.permute.xlu0 %4858
    %4860 = vrot.lane.b32.xlu0 %v4763, 127
    %v4861 = vpop.permute.xlu0 %4860
    %4862 = vrot.lane.b32.xlu0 %v4764, 127
    %v4863 = vpop.permute.xlu0 %4862
    %4864 = vrot.lane.b32.xlu0 %v4765, 127
    %v4865 = vpop.permute.xlu0 %4864
    %4866 = vrot.lane.b32.xlu0 %v4766, 127
    %v4867 = vpop.permute.xlu0 %4866
    %4868 = vrot.lane.b32.xlu0 %v4767, 127
    %v4869 = vpop.permute.xlu0 %4868
    %4870 = vrot.lane.b32.xlu0 %v4768, 127
    %v4871 = vpop.permute.xlu0 %4870
    %4872 = vrot.lane.b32.xlu0 %v4769, 127
    %v4873 = vpop.permute.xlu0 %4872
    %4874 = vrot.lane.b32.xlu0 %v4770, 127
    %v4875 = vpop.permute.xlu0 %4874
    %4876 = vrot.lane.b32.xlu0 %v4763, 121
    %v4877 = vpop.permute.xlu0 %4876
    %4878 = vrot.lane.b32.xlu0 %v4764, 121
    %v4879 = vpop.permute.xlu0 %4878
    %4880 = vrot.lane.b32.xlu0 %v4765, 121
    %v4881 = vpop.permute.xlu0 %4880
    %4882 = vrot.lane.b32.xlu0 %v4766, 121
    %v4883 = vpop.permute.xlu0 %4882
    %4884 = vrot.lane.b32.xlu0 %v4767, 121
    %v4885 = vpop.permute.xlu0 %4884
    %4886 = vrot.lane.b32.xlu0 %v4768, 121
    %v4887 = vpop.permute.xlu0 %4886
    %4888 = vrot.lane.b32.xlu0 %v4769, 121
    %v4889 = vpop.permute.xlu0 %4888
    %4890 = vrot.lane.b32.xlu0 %v4770, 121
    %v4891 = vpop.permute.xlu0 %4890
    %4892 = vrot.lane.b32.xlu0 %v4763, 120
    %v4893 = vpop.permute.xlu0 %4892
    %4894 = vrot.lane.b32.xlu0 %v4764, 120
    %v4895 = vpop.permute.xlu0 %4894
    %4896 = vrot.lane.b32.xlu0 %v4765, 120
    %v4897 = vpop.permute.xlu0 %4896
    %4898 = vrot.lane.b32.xlu0 %v4766, 120
    %v4899 = vpop.permute.xlu0 %4898
    %4900 = vrot.lane.b32.xlu0 %v4767, 120
    %v4901 = vpop.permute.xlu0 %4900
    %4902 = vrot.lane.b32.xlu0 %v4768, 120
    %v4903 = vpop.permute.xlu0 %4902
    %4904 = vrot.lane.b32.xlu0 %v4769, 120
    %v4905 = vpop.permute.xlu0 %4904
    %4906 = vrot.lane.b32.xlu0 %v4770, 120
    %v4907 = vpop.permute.xlu0 %4906
    %4908 = vrot.lane.b32.xlu0 %v4763, 119
    %v4909 = vpop.permute.xlu0 %4908
    %4910 = vrot.lane.b32.xlu0 %v4764, 119
    %v4911 = vpop.permute.xlu0 %4910
    %4912 = vrot.lane.b32.xlu0 %v4765, 119
    %v4913 = vpop.permute.xlu0 %4912
    %4914 = vrot.lane.b32.xlu0 %v4766, 119
    %v4915 = vpop.permute.xlu0 %4914
    %4916 = vrot.lane.b32.xlu0 %v4767, 119
    %v4917 = vpop.permute.xlu0 %4916
    %4918 = vrot.lane.b32.xlu0 %v4768, 119
    %v4919 = vpop.permute.xlu0 %4918
    %4920 = vrot.lane.b32.xlu0 %v4769, 119
    %v4921 = vpop.permute.xlu0 %4920
    %4922 = vrot.lane.b32.xlu0 %v4770, 119
    %v4923 = vpop.permute.xlu0 %4922
    %v4924 = vpack.c.bf16 %v4799, %v4797
    %v4925 = vpack.c.bf16 %v4803, %v4801
    %v4926 = vpack.c.bf16 %v4807, %v4805
    %v4927 = vpack.c.bf16 %v4811, %v4809
    %v4928 = vpack.c.bf16 %v4815, %v4813
    %v4929 = vpack.c.bf16 %v4819, %v4817
    %v4930 = vpack.c.bf16 %v4823, %v4821
    %v4931 = vpack.c.bf16 %v4827, %v4825
    %v4932 = vpack.c.bf16 %v4831, %v4829
    %v4933 = vpack.c.bf16 %v4835, %v4833
    %v4934 = vpack.c.bf16 %v4839, %v4837
    %v4935 = vpack.c.bf16 %v4843, %v4841
    %v4936 = vpack.c.bf16 %v4847, %v4845
    %v4937 = vpack.c.bf16 %v4851, %v4849
    %v4938 = vpack.c.bf16 %v4855, %v4853
    %v4939 = vpack.c.bf16 %v4859, %v4857
    %v4940 = vpack.c.bf16 %v4764, %v4763
    %v4941 = vpack.c.bf16 %v4766, %v4765
    %v4942 = vpack.c.bf16 %v4768, %v4767
    %v4943 = vpack.c.bf16 %v4770, %v4769
    %v4944 = vpack.c.bf16 %v4863, %v4861
    %v4945 = vpack.c.bf16 %v4867, %v4865
    %v4946 = vpack.c.bf16 %v4871, %v4869
    %v4947 = vpack.c.bf16 %v4875, %v4873
    %v4948 = vpack.c.bf16 %v4879, %v4877
    %v4949 = vpack.c.bf16 %v4883, %v4881
    %v4950 = vpack.c.bf16 %v4887, %v4885
    %v4951 = vpack.c.bf16 %v4891, %v4889
    %v4952 = vpack.c.bf16 %v4895, %v4893
    %v4953 = vpack.c.bf16 %v4899, %v4897
    %v4954 = vpack.c.bf16 %v4903, %v4901
    %v4955 = vpack.c.bf16 %v4907, %v4905
    %v4956 = vpack.c.bf16 %v4911, %v4909
    %v4957 = vpack.c.bf16 %v4915, %v4913
    %v4958 = vpack.c.bf16 %v4919, %v4917
    %v4959 = vpack.c.bf16 %v4923, %v4921
    %v4960 = vmul.bf16 %v4924, %v558
    %v4961 = vmul.bf16 %v4925, %v559
    %v4962 = vmul.bf16 %v4926, %v560
    %v4963 = vmul.bf16 %v4927, %v561
    %v4964 = vmul.bf16 %v4928, %v562
    %v4965 = vmul.bf16 %v4929, %v563
    %v4966 = vmul.bf16 %v4930, %v564
    %v4967 = vmul.bf16 %v4931, %v565
    %v4968 = vmul.bf16 %v4932, %v566
    %v4969 = vmul.bf16 %v4933, %v567
    %v4970 = vmul.bf16 %v4934, %v568
    %v4971 = vmul.bf16 %v4935, %v569
    %v4972 = vmul.bf16 %v4936, %v570
    %v4973 = vmul.bf16 %v4937, %v571
    %v4974 = vmul.bf16 %v4938, %v572
    %v4975 = vmul.bf16 %v4939, %v573
    %v4976 = vmul.bf16 %v4940, %v574
    %v4977 = vmul.bf16 %v4941, %v575
    %v4978 = vmul.bf16 %v4942, %v576
    %v4979 = vmul.bf16 %v4943, %v577
    %v4980 = vmul.bf16 %v4944, %v578
    %v4981 = vmul.bf16 %v4945, %v579
    %v4982 = vmul.bf16 %v4946, %v580
    %v4983 = vmul.bf16 %v4947, %v581
    %v4984 = vmul.bf16 %v4948, %v582
    %v4985 = vmul.bf16 %v4949, %v583
    %v4986 = vmul.bf16 %v4950, %v584
    %v4987 = vmul.bf16 %v4951, %v585
    %v4988 = vmul.bf16 %v4952, %v586
    %v4989 = vmul.bf16 %v4953, %v587
    %v4990 = vmul.bf16 %v4954, %v588
    %v4991 = vmul.bf16 %v4955, %v589
    %v4992 = vmul.bf16 %v4956, %v590
    %v4993 = vmul.bf16 %v4957, %v591
    %v4994 = vmul.bf16 %v4958, %v592
    %v4995 = vmul.bf16 %v4959, %v593
    %v5020 = vunpack.c.l.b16 %v4772
    %v5021 = vunpack.c.h.b16 %v4772
    %v5022 = vunpack.c.l.b16 %v4773
    %v5023 = vunpack.c.h.b16 %v4773
    %v5024 = vunpack.c.l.b16 %v4774
    %v5025 = vunpack.c.l.b16 %v4775
    %v5026 = vunpack.c.h.b16 %v4775
    %v5027 = vunpack.c.l.b16 %v4776
    %v5028 = vunpack.c.h.b16 %v4776
    %v5029 = vunpack.c.l.b16 %v4777
    %v5030 = vunpack.c.l.b16 %v4778
    %v5031 = vunpack.c.h.b16 %v4778
    %v5032 = vunpack.c.l.b16 %v4779
    %v5033 = vunpack.c.h.b16 %v4779
    %v5034 = vunpack.c.l.b16 %v4780
    %v5035 = vunpack.c.l.b16 %v4781
    %v5036 = vunpack.c.h.b16 %v4781
    %v5037 = vunpack.c.l.b16 %v4782
    %v5038 = vunpack.c.h.b16 %v4782
    %v5039 = vunpack.c.l.b16 %v4783
    %v5040 = vunpack.c.l.b16 %v4784
    %v5041 = vunpack.c.h.b16 %v4784
    %v5042 = vunpack.c.l.b16 %v4785
    %v5043 = vunpack.c.h.b16 %v4785
    %v5044 = vunpack.c.l.b16 %v4786
    %v5045 = vunpack.c.l.b16 %v4787
    %v5046 = vunpack.c.h.b16 %v4787
    %v5047 = vunpack.c.l.b16 %v4788
    %v5048 = vunpack.c.h.b16 %v4788
    %v5049 = vunpack.c.l.b16 %v4789
    %v5050 = vunpack.c.l.b16 %v4790
    %v5051 = vunpack.c.h.b16 %v4790
    %v5052 = vunpack.c.l.b16 %v4791
    %v5053 = vunpack.c.h.b16 %v4791
    %v5054 = vunpack.c.l.b16 %v4792
    %v5055 = vunpack.c.l.b16 %v4793
    %v5056 = vunpack.c.h.b16 %v4793
    %v5057 = vunpack.c.l.b16 %v4794
    %v5058 = vunpack.c.h.b16 %v4794
    %v5059 = vunpack.c.l.b16 %v4795
    %v5060 = vpack.c.b16 %v5025, %v5020
    %v5061 = vpack.c.b16 %v5026, %v5021
    %v5062 = vpack.c.b16 %v5027, %v5022
    %v5063 = vpack.c.b16 %v5028, %v5023
    %v5064 = vpack.c.b16 %v5029, %v5024
    %v5065 = vpack.c.b16 %v5035, %v5030
    %v5066 = vpack.c.b16 %v5036, %v5031
    %v5067 = vpack.c.b16 %v5037, %v5032
    %v5068 = vpack.c.b16 %v5038, %v5033
    %v5069 = vpack.c.b16 %v5039, %v5034
    %v5070 = vpack.c.b16 %v5045, %v5040
    %v5071 = vpack.c.b16 %v5046, %v5041
    %v5072 = vpack.c.b16 %v5047, %v5042
    %v5073 = vpack.c.b16 %v5048, %v5043
    %v5074 = vpack.c.b16 %v5049, %v5044
    %v5075 = vpack.c.b16 %v5055, %v5050
    %v5076 = vpack.c.b16 %v5056, %v5051
    %v5077 = vpack.c.b16 %v5057, %v5052
    %v5078 = vpack.c.b16 %v5058, %v5053
    %v5079 = vpack.c.b16 %v5059, %v5054
    %v5097 = vsel %vm766, %v5064, 0
    %v5100 = vsel %vm766, %v5069, 0
    %v5103 = vsel %vm766, %v5074, 0
    %v5106 = vsel %vm766, %v5079, 0
    %5108 = vmatprep.subr.bf16.mxu0 0
    %5109 = vmatpush1.bf16.msra.mxu0 %v4960
    %5110 = vmatprep.subr.bf16.mxu0 0
    %5111 = vmatpush1.bf16.msra.mxu0 %v4961
    %5112 = vmatprep.subr.bf16.mxu0 0
    %5113 = vmatpush1.bf16.msra.mxu0 %v4962
    %5114 = vmatprep.subr.bf16.mxu0 0
    %5115 = vmatpush1.bf16.msra.mxu0 %v4963
    %5116 = vmatprep.subr.bf16.mxu0 0
    %5117 = vmatpush1.bf16.msra.mxu0 %v4964
    %5118 = vmatprep.subr.bf16.mxu0 0
    %5119 = vmatpush1.bf16.msra.mxu0 %v4965
    %5120 = vmatprep.subr.bf16.mxu0 0
    %5121 = vmatpush1.bf16.msra.mxu0 %v4966
    %5122 = vmatprep.subr.bf16.mxu0 0
    %5123 = vmatpush1.bf16.msra.mxu0 %v4967
    %5124 = vmatprep.subr.bf16.mxu0 0
    %5125 = vmatpush1.bf16.msra.mxu0 %v4968
    %5126 = vmatprep.subr.bf16.mxu0 0
    %5127 = vmatpush1.bf16.msra.mxu0 %v4969
    %5128 = vmatprep.subr.bf16.mxu0 0
    %5129 = vmatpush1.bf16.msra.mxu0 %v4970
    %5130 = vmatprep.subr.bf16.mxu0 0
    %5131 = vmatpush1.bf16.msra.mxu0 %v4971
    %5132 = vmatprep.subr.bf16.mxu0 0
    %5133 = vmatpush1.bf16.msra.mxu0 %v4972
    %5134 = vmatprep.subr.bf16.mxu0 0
    %5135 = vmatpush1.bf16.msra.mxu0 %v4973
    %5136 = vmatprep.subr.bf16.mxu0 0
    %5137 = vmatpush1.bf16.msra.mxu0 %v4974
    %5138 = vmatprep.subr.bf16.mxu0 0
    %5139 = vmatpush1.bf16.msra.mxu0 %v4975
    %5140 = vmatprep.mubr.bf16.mxu0 %v5061
    %5141 = vmatmul.mubr.bf16.gmra.mrb[0].mxu0 %v5060
    %v5142 = vpop.f32.mrb[0].mxu0
    %v5143 = vadd.f32 0.0, %v5142
    %v5144 = vpop.f32.mrb[0].mxu0
    %v5145 = vpop.f32.mrb[0].mxu0
    %v5146 = vadd.f32 0.0, %v5145
    %v5147 = vpop.f32.mrb[0].mxu0
    %5148 = vmatprep.mubr.bf16.mxu0 %v5066
    %5149 = vmatmul.mubr.bf16.gmra.mrb[0].mxu0 %v5065
    %v5150 = vpop.f32.mrb[0].mxu0
    %v5151 = vadd.f32 0.0, %v5150
    %v5152 = vpop.f32.mrb[0].mxu0
    %v5153 = vpop.f32.mrb[0].mxu0
    %v5154 = vadd.f32 0.0, %v5153
    %v5155 = vpop.f32.mrb[0].mxu0
    %5156 = vmatprep.mubr.bf16.mxu0 %v5071
    %5157 = vmatmul.mubr.bf16.gmra.mrb[0].mxu0 %v5070
    %v5158 = vpop.f32.mrb[0].mxu0
    %v5159 = vadd.f32 0.0, %v5158
    %v5160 = vpop.f32.mrb[0].mxu0
    %v5161 = vpop.f32.mrb[0].mxu0
    %v5162 = vadd.f32 0.0, %v5161
    %v5163 = vpop.f32.mrb[0].mxu0
    %5164 = vmatprep.mubr.bf16.mxu0 %v5076
    %5165 = vmatmul.mubr.bf16.gmra.mrb[0].mxu0 %v5075
    %v5166 = vpop.f32.mrb[0].mxu0
    %v5167 = vadd.f32 0.0, %v5166
    %v5168 = vpop.f32.mrb[0].mxu0
    %v5169 = vpop.f32.mrb[0].mxu0
    %v5170 = vadd.f32 0.0, %v5169
    %v5171 = vpop.f32.mrb[0].mxu0
    %5172 = vdwg.mxu0
    %5173 = vmatprep.subr.bf16.mxu0 0
    %5174 = vmatpush1.bf16.msra.mxu0 %v4976
    %5175 = vmatprep.subr.bf16.mxu0 0
    %5176 = vmatpush1.bf16.msra.mxu0 %v4977
    %5177 = vmatprep.subr.bf16.mxu0 0
    %5178 = vmatpush1.bf16.msra.mxu0 %v4978
    %5179 = vmatprep.subr.bf16.mxu0 0
    %5180 = vmatpush1.bf16.msra.mxu0 %v4979
    %5181 = vmatprep.subr.bf16.mxu0 0
    %5182 = vmatpush1.bf16.msra.mxu0 %v4980
    %5183 = vmatprep.subr.bf16.mxu0 0
    %5184 = vmatpush1.bf16.msra.mxu0 %v4981
    %5185 = vmatprep.subr.bf16.mxu0 0
    %5186 = vmatpush1.bf16.msra.mxu0 %v4982
    %5187 = vmatprep.subr.bf16.mxu0 0
    %5188 = vmatpush1.bf16.msra.mxu0 %v4983
    %5189 = vmatprep.subr.bf16.mxu0 0
    %5190 = vmatpush1.bf16.msra.mxu0 %v4984
    %5191 = vmatprep.subr.bf16.mxu0 0
    %5192 = vmatpush1.bf16.msra.mxu0 %v4985
    %5193 = vmatprep.subr.bf16.mxu0 0
    %5194 = vmatpush1.bf16.msra.mxu0 %v4986
    %5195 = vmatprep.subr.bf16.mxu0 0
    %5196 = vmatpush1.bf16.msra.mxu0 %v4987
    %5197 = vmatprep.subr.bf16.mxu0 0
    %5198 = vmatpush1.bf16.msra.mxu0 %v4988
    %5199 = vmatprep.subr.bf16.mxu0 0
    %5200 = vmatpush1.bf16.msra.mxu0 %v4989
    %5201 = vmatprep.subr.bf16.mxu0 0
    %5202 = vmatpush1.bf16.msra.mxu0 %v4990
    %5203 = vmatprep.subr.bf16.mxu0 0
    %5204 = vmatpush1.bf16.msra.mxu0 %v4991
    %5205 = vmatprep.mubr.bf16.mxu0 %v5063
    %5206 = vmatmul.mubr.bf16.gmra.mrb[0].mxu0 %v5062
    %v5207 = vpop.f32.mrb[0].mxu0
    %v5208 = vadd.f32 %v5143, %v5207
    %v5209 = vpop.f32.mrb[0].mxu0
    %v5210 = vpop.f32.mrb[0].mxu0
    %v5211 = vadd.f32 %v5146, %v5210
    %v5212 = vpop.f32.mrb[0].mxu0
    %5213 = vmatprep.mubr.bf16.mxu0 %v5068
    %5214 = vmatmul.mubr.bf16.gmra.mrb[0].mxu0 %v5067
    %v5215 = vpop.f32.mrb[0].mxu0
    %v5216 = vadd.f32 %v5151, %v5215
    %v5217 = vpop.f32.mrb[0].mxu0
    %v5218 = vpop.f32.mrb[0].mxu0
    %v5219 = vadd.f32 %v5154, %v5218
    %v5220 = vpop.f32.mrb[0].mxu0
    %5221 = vmatprep.mubr.bf16.mxu0 %v5073
    %5222 = vmatmul.mubr.bf16.gmra.mrb[0].mxu0 %v5072
    %v5223 = vpop.f32.mrb[0].mxu0
    %v5224 = vadd.f32 %v5159, %v5223
    %v5225 = vpop.f32.mrb[0].mxu0
    %v5226 = vpop.f32.mrb[0].mxu0
    %v5227 = vadd.f32 %v5162, %v5226
    %v5228 = vpop.f32.mrb[0].mxu0
    %5229 = vmatprep.mubr.bf16.mxu0 %v5078
    %5230 = vmatmul.mubr.bf16.gmra.mrb[0].mxu0 %v5077
    %v5231 = vpop.f32.mrb[0].mxu0
    %v5232 = vadd.f32 %v5167, %v5231
    %v5233 = vpop.f32.mrb[0].mxu0
    %v5234 = vpop.f32.mrb[0].mxu0
    %v5235 = vadd.f32 %v5170, %v5234
    %v5236 = vpop.f32.mrb[0].mxu0
    %5237 = vdwg.mxu0
    %5238 = vmatprep.subr.bf16.mxu0 0
    %5239 = vmatpush1.bf16.msra.mxu0 %v4992
    %5240 = vmatprep.subr.bf16.mxu0 0
    %5241 = vmatpush1.bf16.msra.mxu0 %v4993
    %5242 = vmatprep.subr.bf16.mxu0 0
    %5243 = vmatpush1.bf16.msra.mxu0 %v4994
    %5244 = vmatprep.subr.bf16.mxu0 0
    %5245 = vmatpush1.bf16.msra.mxu0 %v4995
    %5246 = vmatprep.subr.bf16.mxu0 0
    %5247 = vmatpush1.bf16.msra.mxu0 0
    %5248 = vmatprep.subr.bf16.mxu0 0
    %5249 = vmatpush1.bf16.msra.mxu0 0
    %5250 = vmatprep.subr.bf16.mxu0 0
    %5251 = vmatpush1.bf16.msra.mxu0 0
    %5252 = vmatprep.subr.bf16.mxu0 0
    %5253 = vmatpush1.bf16.msra.mxu0 0
    %5254 = vmatprep.subr.bf16.mxu0 0
    %5255 = vmatpush1.bf16.msra.mxu0 0
    %5256 = vmatprep.subr.bf16.mxu0 0
    %5257 = vmatpush1.bf16.msra.mxu0 0
    %5258 = vmatprep.subr.bf16.mxu0 0
    %5259 = vmatpush1.bf16.msra.mxu0 0
    %5260 = vmatprep.subr.bf16.mxu0 0
    %5261 = vmatpush1.bf16.msra.mxu0 0
    %5262 = vmatprep.subr.bf16.mxu0 0
    %5263 = vmatpush1.bf16.msra.mxu0 0
    %5264 = vmatprep.subr.bf16.mxu0 0
    %5265 = vmatpush1.bf16.msra.mxu0 0
    %5266 = vmatprep.subr.bf16.mxu0 0
    %5267 = vmatpush1.bf16.msra.mxu0 0
    %5268 = vmatprep.subr.bf16.mxu0 0
    %5269 = vmatpush1.bf16.msra.mxu0 0
    %5270 = vmatprep.mubr.bf16.mxu0 0
    %5271 = vmatmul.mubr.bf16.gmra.mrb[0].mxu0 %v5097
    %v5272 = vpop.f32.mrb[0].mxu0
    %v5273 = vadd.f32 %v5208, %v5272
    %v5274 = vpop.f32.mrb[0].mxu0
    %v5275 = vpop.f32.mrb[0].mxu0
    %v5276 = vadd.f32 %v5211, %v5275
    %v5277 = vpop.f32.mrb[0].mxu0
    %5278 = vmatprep.mubr.bf16.mxu0 0
    %5279 = vmatmul.mubr.bf16.gmra.mrb[0].mxu0 %v5100
    %v5280 = vpop.f32.mrb[0].mxu0
    %v5281 = vadd.f32 %v5216, %v5280
    %v5282 = vpop.f32.mrb[0].mxu0
    %v5283 = vpop.f32.mrb[0].mxu0
    %v5284 = vadd.f32 %v5219, %v5283
    %v5285 = vpop.f32.mrb[0].mxu0
    %5286 = vmatprep.mubr.bf16.mxu0 0
    %5287 = vmatmul.mubr.bf16.gmra.mrb[0].mxu0 %v5103
    %v5288 = vpop.f32.mrb[0].mxu0
    %v5289 = vadd.f32 %v5224, %v5288
    %v5290 = vpop.f32.mrb[0].mxu0
    %v5291 = vpop.f32.mrb[0].mxu0
    %v5292 = vadd.f32 %v5227, %v5291
    %v5293 = vpop.f32.mrb[0].mxu0
    %5294 = vmatprep.mubr.bf16.mxu0 0
    %5295 = vmatmul.mubr.bf16.gmra.mrb[0].mxu0 %v5106
    %v5296 = vpop.f32.mrb[0].mxu0
    %v5297 = vadd.f32 %v5232, %v5296
    %v5298 = vpop.f32.mrb[0].mxu0
    %v5299 = vpop.f32.mrb[0].mxu0
    %v5300 = vadd.f32 %v5235, %v5299
    %v5301 = vpop.f32.mrb[0].mxu0
    %5302 = vdwg.mxu0
    %5303 = vadd.xlane.f32.xlu0 %v5273
    %v5304 = vpop.xlane.xlu0 %5303
    %5305 = vadd.xlane.f32.xlu0 %v5276
    %v5306 = vpop.xlane.xlu0 %5305
    %5307 = vadd.xlane.f32.xlu0 %v5281
    %v5308 = vpop.xlane.xlu0 %5307
    %5309 = vadd.xlane.f32.xlu0 %v5284
    %v5310 = vpop.xlane.xlu0 %5309
    %5311 = vadd.xlane.f32.xlu0 %v5289
    %v5312 = vpop.xlane.xlu0 %5311
    %5313 = vadd.xlane.f32.xlu0 %v5292
    %v5314 = vpop.xlane.xlu0 %5313
    %5315 = vadd.xlane.f32.xlu0 %v5297
    %v5316 = vpop.xlane.xlu0 %5315
    %5317 = vadd.xlane.f32.xlu0 %v5300
    %v5318 = vpop.xlane.xlu0 %5317
    %v5319 = vmul.f32 %v5304, %v990
    %v5320 = vmul.f32 %v5306, %v990
    %v5321 = vmul.f32 %v5308, %v990
    %v5322 = vmul.f32 %v5310, %v990
    %v5323 = vmul.f32 %v5312, %v990
    %v5324 = vmul.f32 %v5314, %v990
    %v5325 = vmul.f32 %v5316, %v990
    %v5326 = vmul.f32 %v5318, %v990
    %v5327 = vsub.f32 %v5273, %v5319
    %v5328 = vsub.f32 %v5276, %v5320
    %v5329 = vsub.f32 %v5281, %v5321
    %v5330 = vsub.f32 %v5284, %v5322
    %v5331 = vsub.f32 %v5289, %v5323
    %v5332 = vsub.f32 %v5292, %v5324
    %v5333 = vsub.f32 %v5297, %v5325
    %v5334 = vsub.f32 %v5300, %v5326
    %v5335 = vmul.f32 %v5327, %v5327
    %v5336 = vmul.f32 %v5328, %v5328
    %v5337 = vmul.f32 %v5329, %v5329
    %v5338 = vmul.f32 %v5330, %v5330
    %v5339 = vmul.f32 %v5331, %v5331
    %v5340 = vmul.f32 %v5332, %v5332
    %v5341 = vmul.f32 %v5333, %v5333
    %v5342 = vmul.f32 %v5334, %v5334
    %5343 = vadd.xlane.f32.xlu0 %v5335
    %v5344 = vpop.xlane.xlu0 %5343
    %5345 = vadd.xlane.f32.xlu0 %v5336
    %v5346 = vpop.xlane.xlu0 %5345
    %5347 = vadd.xlane.f32.xlu0 %v5337
    %v5348 = vpop.xlane.xlu0 %5347
    %5349 = vadd.xlane.f32.xlu0 %v5338
    %v5350 = vpop.xlane.xlu0 %5349
    %5351 = vadd.xlane.f32.xlu0 %v5339
    %v5352 = vpop.xlane.xlu0 %5351
    %5353 = vadd.xlane.f32.xlu0 %v5340
    %v5354 = vpop.xlane.xlu0 %5353
    %5355 = vadd.xlane.f32.xlu0 %v5341
    %v5356 = vpop.xlane.xlu0 %5355
    %5357 = vadd.xlane.f32.xlu0 %v5342
    %v5358 = vpop.xlane.xlu0 %5357
    %v5359 = vmul.f32 %v5344, %v990
    %v5360 = vmul.f32 %v5346, %v990
    %v5361 = vmul.f32 %v5348, %v990
    %v5362 = vmul.f32 %v5350, %v990
    %v5363 = vmul.f32 %v5352, %v990
    %v5364 = vmul.f32 %v5354, %v990
    %v5365 = vmul.f32 %v5356, %v990
    %v5366 = vmul.f32 %v5358, %v990
    %v5367 = vadd.f32 %v5359, 1e-05
    %v5368 = vadd.f32 %v5360, 1e-05
    %v5369 = vadd.f32 %v5361, 1e-05
    %v5370 = vadd.f32 %v5362, 1e-05
    %v5371 = vadd.f32 %v5363, 1e-05
    %v5372 = vadd.f32 %v5364, 1e-05
    %v5373 = vadd.f32 %v5365, 1e-05
    %v5374 = vadd.f32 %v5366, 1e-05
    %v5375 = vrsqrt.pop %v5367
    %v5376 = vrsqrt.pop %v5368
    %v5377 = vrsqrt.pop %v5369
    %v5378 = vrsqrt.pop %v5370
    %v5379 = vrsqrt.pop %v5371
    %v5380 = vrsqrt.pop %v5372
    %v5381 = vrsqrt.pop %v5373
    %v5382 = vrsqrt.pop %v5374
    %v5383 = vmul.f32 %v194, %v5375
    %v5384 = vmul.f32 %v195, %v5376
    %v5385 = vmul.f32 %v196, %v5377
    %v5386 = vmul.f32 %v197, %v5378
    %v5387 = vmul.f32 %v198, %v5379
    %v5388 = vmul.f32 %v199, %v5380
    %v5389 = vmul.f32 %v200, %v5381
    %v5390 = vmul.f32 %v201, %v5382
    %5392 = vset.pattern.permute.xlu0 6
    %5393 = vperm.xlu0 %5392, %v5383
    %v5394 = vpop.permute.xlu0 %5393
    %5397 = vset.pattern.permute.xlu0 6
    %5398 = vperm.xlu0 %5397, %v5384
    %v5399 = vpop.permute.xlu0 %5398
    %5402 = vset.pattern.permute.xlu0 6
    %5403 = vperm.xlu0 %5402, %v5385
    %v5404 = vpop.permute.xlu0 %5403
    %5407 = vset.pattern.permute.xlu0 6
    %5408 = vperm.xlu0 %5407, %v5386
    %v5409 = vpop.permute.xlu0 %5408
    %5412 = vset.pattern.permute.xlu0 6
    %5413 = vperm.xlu0 %5412, %v5387
    %v5414 = vpop.permute.xlu0 %5413
    %5417 = vset.pattern.permute.xlu0 6
    %5418 = vperm.xlu0 %5417, %v5388
    %v5419 = vpop.permute.xlu0 %5418
    %5422 = vset.pattern.permute.xlu0 6
    %5423 = vperm.xlu0 %5422, %v5389
    %v5424 = vpop.permute.xlu0 %5423
    %5427 = vset.pattern.permute.xlu0 6
    %5428 = vperm.xlu0 %5427, %v5390
    %v5429 = vpop.permute.xlu0 %5428
    %v5431 = vmul.f32 %v5327, %v5394
    %v5432 = vmul.f32 %v5328, %v5399
    %v5433 = vmul.f32 %v5329, %v5404
    %v5434 = vmul.f32 %v5330, %v5409
    %v5435 = vmul.f32 %v5331, %v5414
    %v5436 = vmul.f32 %v5332, %v5419
    %v5437 = vmul.f32 %v5333, %v5424
    %v5438 = vmul.f32 %v5334, %v5429
    %5439 = vset.pattern.permute.xlu0 6
    %5440 = vperm.xlu0 %5439, %v202
    %v5441 = vpop.permute.xlu0 %5440
    %5443 = vset.pattern.permute.xlu0 6
    %5444 = vperm.xlu0 %5443, %v203
    %v5445 = vpop.permute.xlu0 %5444
    %5447 = vset.pattern.permute.xlu0 6
    %5448 = vperm.xlu0 %5447, %v204
    %v5449 = vpop.permute.xlu0 %5448
    %5451 = vset.pattern.permute.xlu0 6
    %5452 = vperm.xlu0 %5451, %v205
    %v5453 = vpop.permute.xlu0 %5452
    %5455 = vset.pattern.permute.xlu0 6
    %5456 = vperm.xlu0 %5455, %v206
    %v5457 = vpop.permute.xlu0 %5456
    %5459 = vset.pattern.permute.xlu0 6
    %5460 = vperm.xlu0 %5459, %v207
    %v5461 = vpop.permute.xlu0 %5460
    %5463 = vset.pattern.permute.xlu0 6
    %5464 = vperm.xlu0 %5463, %v208
    %v5465 = vpop.permute.xlu0 %5464
    %5467 = vset.pattern.permute.xlu0 6
    %5468 = vperm.xlu0 %5467, %v209
    %v5469 = vpop.permute.xlu0 %5468
    %v5471 = vadd.f32 %v5431, %v5441
    %v5472 = vadd.f32 %v5432, %v5445
    %v5473 = vadd.f32 %v5433, %v5449
    %v5474 = vadd.f32 %v5434, %v5453
    %v5475 = vadd.f32 %v5435, %v5457
    %v5476 = vadd.f32 %v5436, %v5461
    %v5477 = vadd.f32 %v5437, %v5465
    %v5478 = vadd.f32 %v5438, %v5469
    %v5479 = vmax.f32 %v5471, 0.0
    %v5480 = vmax.f32 %v5472, 0.0
    %v5481 = vmax.f32 %v5473, 0.0
    %v5482 = vmax.f32 %v5474, 0.0
    %v5483 = vmax.f32 %v5475, 0.0
    %v5484 = vmax.f32 %v5476, 0.0
    %v5485 = vmax.f32 %v5477, 0.0
    %v5486 = vmax.f32 %v5478, 0.0
    %s5487 = scalar_lea.vmem [#allocation6], 1120
    %v5488 = vld [vmem:[%s5487] sm:$0xff]
    %v5489 = vld [vmem:[%s5487 + $0x8] sm:$0xff]
    %v5490 = vld [vmem:[%s5487 + $0x10] sm:$0xf]
    %v5491 = vld [vmem:[%s5487 + $0x14] sm:$0xff]
    %v5492 = vld [vmem:[%s5487 + $0x1c] sm:$0xff]
    %v5493 = vld [vmem:[%s5487 + $0x24] sm:$0xf]
    %v5494 = vld [vmem:[%s5487 + $0x28] sm:$0xff]
    %v5495 = vld [vmem:[%s5487 + $0x30] sm:$0xff]
    %v5496 = vld [vmem:[%s5487 + $0x38] sm:$0xf]
    %v5497 = vld [vmem:[%s5487 + $0x3c] sm:$0xff]
    %v5498 = vld [vmem:[%s5487 + $0x44] sm:$0xff]
    %v5499 = vld [vmem:[%s5487 + $0x4c] sm:$0xf]
    %v5500 = vld [vmem:[%s5487 + $0x50] sm:$0xff]
    %v5501 = vld [vmem:[%s5487 + $0x58] sm:$0xff]
    %v5502 = vld [vmem:[%s5487 + $0x60] sm:$0xf]
    %v5503 = vld [vmem:[%s5487 + $0x64] sm:$0xff]
    %v5504 = vld [vmem:[%s5487 + $0x6c] sm:$0xff]
    %v5505 = vld [vmem:[%s5487 + $0x74] sm:$0xf]
    %v5506 = vld [vmem:[%s5487 + $0x78] sm:$0xff]
    %v5507 = vld [vmem:[%s5487 + $0x80] sm:$0xff]
    %v5508 = vld [vmem:[%s5487 + $0x88] sm:$0xf]
    %v5509 = vld [vmem:[%s5487 + $0x8c] sm:$0xff]
    %v5510 = vld [vmem:[%s5487 + $0x94] sm:$0xff]
    %v5511 = vld [vmem:[%s5487 + $0x9c] sm:$0xf]
    %5512 = vrot.lane.b32.xlu0 %v5479, 9
    %v5513 = vpop.permute.xlu0 %5512
    %5514 = vrot.lane.b32.xlu0 %v5480, 9
    %v5515 = vpop.permute.xlu0 %5514
    %5516 = vrot.lane.b32.xlu0 %v5481, 9
    %v5517 = vpop.permute.xlu0 %5516
    %5518 = vrot.lane.b32.xlu0 %v5482, 9
    %v5519 = vpop.permute.xlu0 %5518
    %5520 = vrot.lane.b32.xlu0 %v5483, 9
    %v5521 = vpop.permute.xlu0 %5520
    %5522 = vrot.lane.b32.xlu0 %v5484, 9
    %v5523 = vpop.permute.xlu0 %5522
    %5524 = vrot.lane.b32.xlu0 %v5485, 9
    %v5525 = vpop.permute.xlu0 %5524
    %5526 = vrot.lane.b32.xlu0 %v5486, 9
    %v5527 = vpop.permute.xlu0 %5526
    %5528 = vrot.lane.b32.xlu0 %v5479, 8
    %v5529 = vpop.permute.xlu0 %5528
    %5530 = vrot.lane.b32.xlu0 %v5480, 8
    %v5531 = vpop.permute.xlu0 %5530
    %5532 = vrot.lane.b32.xlu0 %v5481, 8
    %v5533 = vpop.permute.xlu0 %5532
    %5534 = vrot.lane.b32.xlu0 %v5482, 8
    %v5535 = vpop.permute.xlu0 %5534
    %5536 = vrot.lane.b32.xlu0 %v5483, 8
    %v5537 = vpop.permute.xlu0 %5536
    %5538 = vrot.lane.b32.xlu0 %v5484, 8
    %v5539 = vpop.permute.xlu0 %5538
    %5540 = vrot.lane.b32.xlu0 %v5485, 8
    %v5541 = vpop.permute.xlu0 %5540
    %5542 = vrot.lane.b32.xlu0 %v5486, 8
    %v5543 = vpop.permute.xlu0 %5542
    %5544 = vrot.lane.b32.xlu0 %v5479, 7
    %v5545 = vpop.permute.xlu0 %5544
    %5546 = vrot.lane.b32.xlu0 %v5480, 7
    %v5547 = vpop.permute.xlu0 %5546
    %5548 = vrot.lane.b32.xlu0 %v5481, 7
    %v5549 = vpop.permute.xlu0 %5548
    %5550 = vrot.lane.b32.xlu0 %v5482, 7
    %v5551 = vpop.permute.xlu0 %5550
    %5552 = vrot.lane.b32.xlu0 %v5483, 7
    %v5553 = vpop.permute.xlu0 %5552
    %5554 = vrot.lane.b32.xlu0 %v5484, 7
    %v5555 = vpop.permute.xlu0 %5554
    %5556 = vrot.lane.b32.xlu0 %v5485, 7
    %v5557 = vpop.permute.xlu0 %5556
    %5558 = vrot.lane.b32.xlu0 %v5486, 7
    %v5559 = vpop.permute.xlu0 %5558
    %5560 = vrot.lane.b32.xlu0 %v5479, 1
    %v5561 = vpop.permute.xlu0 %5560
    %5562 = vrot.lane.b32.xlu0 %v5480, 1
    %v5563 = vpop.permute.xlu0 %5562
    %5564 = vrot.lane.b32.xlu0 %v5481, 1
    %v5565 = vpop.permute.xlu0 %5564
    %5566 = vrot.lane.b32.xlu0 %v5482, 1
    %v5567 = vpop.permute.xlu0 %5566
    %5568 = vrot.lane.b32.xlu0 %v5483, 1
    %v5569 = vpop.permute.xlu0 %5568
    %5570 = vrot.lane.b32.xlu0 %v5484, 1
    %v5571 = vpop.permute.xlu0 %5570
    %5572 = vrot.lane.b32.xlu0 %v5485, 1
    %v5573 = vpop.permute.xlu0 %5572
    %5574 = vrot.lane.b32.xlu0 %v5486, 1
    %v5575 = vpop.permute.xlu0 %5574
    %5576 = vrot.lane.b32.xlu0 %v5479, 127
    %v5577 = vpop.permute.xlu0 %5576
    %5578 = vrot.lane.b32.xlu0 %v5480, 127
    %v5579 = vpop.permute.xlu0 %5578
    %5580 = vrot.lane.b32.xlu0 %v5481, 127
    %v5581 = vpop.permute.xlu0 %5580
    %5582 = vrot.lane.b32.xlu0 %v5482, 127
    %v5583 = vpop.permute.xlu0 %5582
    %5584 = vrot.lane.b32.xlu0 %v5483, 127
    %v5585 = vpop.permute.xlu0 %5584
    %5586 = vrot.lane.b32.xlu0 %v5484, 127
    %v5587 = vpop.permute.xlu0 %5586
    %5588 = vrot.lane.b32.xlu0 %v5485, 127
    %v5589 = vpop.permute.xlu0 %5588
    %5590 = vrot.lane.b32.xlu0 %v5486, 127
    %v5591 = vpop.permute.xlu0 %5590
    %5592 = vrot.lane.b32.xlu0 %v5479, 121
    %v5593 = vpop.permute.xlu0 %5592
    %5594 = vrot.lane.b32.xlu0 %v5480, 121
    %v5595 = vpop.permute.xlu0 %5594
    %5596 = vrot.lane.b32.xlu0 %v5481, 121
    %v5597 = vpop.permute.xlu0 %5596
    %5598 = vrot.lane.b32.xlu0 %v5482, 121
    %v5599 = vpop.permute.xlu0 %5598
    %5600 = vrot.lane.b32.xlu0 %v5483, 121
    %v5601 = vpop.permute.xlu0 %5600
    %5602 = vrot.lane.b32.xlu0 %v5484, 121
    %v5603 = vpop.permute.xlu0 %5602
    %5604 = vrot.lane.b32.xlu0 %v5485, 121
    %v5605 = vpop.permute.xlu0 %5604
    %5606 = vrot.lane.b32.xlu0 %v5486, 121
    %v5607 = vpop.permute.xlu0 %5606
    %5608 = vrot.lane.b32.xlu0 %v5479, 120
    %v5609 = vpop.permute.xlu0 %5608
    %5610 = vrot.lane.b32.xlu0 %v5480, 120
    %v5611 = vpop.permute.xlu0 %5610
    %5612 = vrot.lane.b32.xlu0 %v5481, 120
    %v5613 = vpop.permute.xlu0 %5612
    %5614 = vrot.lane.b32.xlu0 %v5482, 120
    %v5615 = vpop.permute.xlu0 %5614
    %5616 = vrot.lane.b32.xlu0 %v5483, 120
    %v5617 = vpop.permute.xlu0 %5616
    %5618 = vrot.lane.b32.xlu0 %v5484, 120
    %v5619 = vpop.permute.xlu0 %5618
    %5620 = vrot.lane.b32.xlu0 %v5485, 120
    %v5621 = vpop.permute.xlu0 %5620
    %5622 = vrot.lane.b32.xlu0 %v5486, 120
    %v5623 = vpop.permute.xlu0 %5622
    %5624 = vrot.lane.b32.xlu0 %v5479, 119
    %v5625 = vpop.permute.xlu0 %5624
    %5626 = vrot.lane.b32.xlu0 %v5480, 119
    %v5627 = vpop.permute.xlu0 %5626
    %5628 = vrot.lane.b32.xlu0 %v5481, 119
    %v5629 = vpop.permute.xlu0 %5628
    %5630 = vrot.lane.b32.xlu0 %v5482, 119
    %v5631 = vpop.permute.xlu0 %5630
    %5632 = vrot.lane.b32.xlu0 %v5483, 119
    %v5633 = vpop.permute.xlu0 %5632
    %5634 = vrot.lane.b32.xlu0 %v5484, 119
    %v5635 = vpop.permute.xlu0 %5634
    %5636 = vrot.lane.b32.xlu0 %v5485, 119
    %v5637 = vpop.permute.xlu0 %5636
    %5638 = vrot.lane.b32.xlu0 %v5486, 119
    %v5639 = vpop.permute.xlu0 %5638
    %v5640 = vpack.c.bf16 %v5515, %v5513
    %v5641 = vpack.c.bf16 %v5519, %v5517
    %v5642 = vpack.c.bf16 %v5523, %v5521
    %v5643 = vpack.c.bf16 %v5527, %v5525
    %v5644 = vpack.c.bf16 %v5531, %v5529
    %v5645 = vpack.c.bf16 %v5535, %v5533
    %v5646 = vpack.c.bf16 %v5539, %v5537
    %v5647 = vpack.c.bf16 %v5543, %v5541
    %v5648 = vpack.c.bf16 %v5547, %v5545
    %v5649 = vpack.c.bf16 %v5551, %v5549
    %v5650 = vpack.c.bf16 %v5555, %v5553
    %v5651 = vpack.c.bf16 %v5559, %v5557
    %v5652 = vpack.c.bf16 %v5563, %v5561
    %v5653 = vpack.c.bf16 %v5567, %v5565
    %v5654 = vpack.c.bf16 %v5571, %v5569
    %v5655 = vpack.c.bf16 %v5575, %v5573
    %v5656 = vpack.c.bf16 %v5480, %v5479
    %v5657 = vpack.c.bf16 %v5482, %v5481
    %v5658 = vpack.c.bf16 %v5484, %v5483
    %v5659 = vpack.c.bf16 %v5486, %v5485
    %v5660 = vpack.c.bf16 %v5579, %v5577
    %v5661 = vpack.c.bf16 %v5583, %v5581
    %v5662 = vpack.c.bf16 %v5587, %v5585
    %v5663 = vpack.c.bf16 %v5591, %v5589
    %v5664 = vpack.c.bf16 %v5595, %v5593
    %v5665 = vpack.c.bf16 %v5599, %v5597
    %v5666 = vpack.c.bf16 %v5603, %v5601
    %v5667 = vpack.c.bf16 %v5607, %v5605
    %v5668 = vpack.c.bf16 %v5611, %v5609
    %v5669 = vpack.c.bf16 %v5615, %v5613
    %v5670 = vpack.c.bf16 %v5619, %v5617
    %v5671 = vpack.c.bf16 %v5623, %v5621
    %v5672 = vpack.c.bf16 %v5627, %v5625
    %v5673 = vpack.c.bf16 %v5631, %v5629
    %v5674 = vpack.c.bf16 %v5635, %v5633
    %v5675 = vpack.c.bf16 %v5639, %v5637
    %v5676 = vmul.bf16 %v5640, %v558
    %v5677 = vmul.bf16 %v5641, %v559
    %v5678 = vmul.bf16 %v5642, %v560
    %v5679 = vmul.bf16 %v5643, %v561
    %v5680 = vmul.bf16 %v5644, %v562
    %v5681 = vmul.bf16 %v5645, %v563
    %v5682 = vmul.bf16 %v5646, %v564
    %v5683 = vmul.bf16 %v5647, %v565
    %v5684 = vmul.bf16 %v5648, %v566
    %v5685 = vmul.bf16 %v5649, %v567
    %v5686 = vmul.bf16 %v5650, %v568
    %v5687 = vmul.bf16 %v5651, %v569
    %v5688 = vmul.bf16 %v5652, %v570
    %v5689 = vmul.bf16 %v5653, %v571
    %v5690 = vmul.bf16 %v5654, %v572
    %v5691 = vmul.bf16 %v5655, %v573
    %v5692 = vmul.bf16 %v5656, %v574
    %v5693 = vmul.bf16 %v5657, %v575
    %v5694 = vmul.bf16 %v5658, %v576
    %v5695 = vmul.bf16 %v5659, %v577
    %v5696 = vmul.bf16 %v5660, %v578
    %v5697 = vmul.bf16 %v5661, %v579
    %v5698 = vmul.bf16 %v5662, %v580
    %v5699 = vmul.bf16 %v5663, %v581
    %v5700 = vmul.bf16 %v5664, %v582
    %v5701 = vmul.bf16 %v5665, %v583
    %v5702 = vmul.bf16 %v5666, %v584
    %v5703 = vmul.bf16 %v5667, %v585
    %v5704 = vmul.bf16 %v5668, %v586
    %v5705 = vmul.bf16 %v5669, %v587
    %v5706 = vmul.bf16 %v5670, %v588
    %v5707 = vmul.bf16 %v5671, %v589
    %v5708 = vmul.bf16 %v5672, %v590
    %v5709 = vmul.bf16 %v5673, %v591
    %v5710 = vmul.bf16 %v5674, %v592
    %v5711 = vmul.bf16 %v5675, %v593
    %v5736 = vunpack.c.l.b16 %v5488
    %v5737 = vunpack.c.h.b16 %v5488
    %v5738 = vunpack.c.l.b16 %v5489
    %v5739 = vunpack.c.h.b16 %v5489
    %v5740 = vunpack.c.l.b16 %v5490
    %v5741 = vunpack.c.l.b16 %v5491
    %v5742 = vunpack.c.h.b16 %v5491
    %v5743 = vunpack.c.l.b16 %v5492
    %v5744 = vunpack.c.h.b16 %v5492
    %v5745 = vunpack.c.l.b16 %v5493
    %v5746 = vunpack.c.l.b16 %v5494
    %v5747 = vunpack.c.h.b16 %v5494
    %v5748 = vunpack.c.l.b16 %v5495
    %v5749 = vunpack.c.h.b16 %v5495
    %v5750 = vunpack.c.l.b16 %v5496
    %v5751 = vunpack.c.l.b16 %v5497
    %v5752 = vunpack.c.h.b16 %v5497
    %v5753 = vunpack.c.l.b16 %v5498
    %v5754 = vunpack.c.h.b16 %v5498
    %v5755 = vunpack.c.l.b16 %v5499
    %v5756 = vunpack.c.l.b16 %v5500
    %v5757 = vunpack.c.h.b16 %v5500
    %v5758 = vunpack.c.l.b16 %v5501
    %v5759 = vunpack.c.h.b16 %v5501
    %v5760 = vunpack.c.l.b16 %v5502
    %v5761 = vunpack.c.l.b16 %v5503
    %v5762 = vunpack.c.h.b16 %v5503
    %v5763 = vunpack.c.l.b16 %v5504
    %v5764 = vunpack.c.h.b16 %v5504
    %v5765 = vunpack.c.l.b16 %v5505
    %v5766 = vunpack.c.l.b16 %v5506
    %v5767 = vunpack.c.h.b16 %v5506
    %v5768 = vunpack.c.l.b16 %v5507
    %v5769 = vunpack.c.h.b16 %v5507
    %v5770 = vunpack.c.l.b16 %v5508
    %v5771 = vunpack.c.l.b16 %v5509
    %v5772 = vunpack.c.h.b16 %v5509
    %v5773 = vunpack.c.l.b16 %v5510
    %v5774 = vunpack.c.h.b16 %v5510
    %v5775 = vunpack.c.l.b16 %v5511
    %v5776 = vpack.c.b16 %v5741, %v5736
    %v5777 = vpack.c.b16 %v5742, %v5737
    %v5778 = vpack.c.b16 %v5743, %v5738
    %v5779 = vpack.c.b16 %v5744, %v5739
    %v5780 = vpack.c.b16 %v5745, %v5740
    %v5781 = vpack.c.b16 %v5751, %v5746
    %v5782 = vpack.c.b16 %v5752, %v5747
    %v5783 = vpack.c.b16 %v5753, %v5748
    %v5784 = vpack.c.b16 %v5754, %v5749
    %v5785 = vpack.c.b16 %v5755, %v5750
    %v5786 = vpack.c.b16 %v5761, %v5756
    %v5787 = vpack.c.b16 %v5762, %v5757
    %v5788 = vpack.c.b16 %v5763, %v5758
    %v5789 = vpack.c.b16 %v5764, %v5759
    %v5790 = vpack.c.b16 %v5765, %v5760
    %v5791 = vpack.c.b16 %v5771, %v5766
    %v5792 = vpack.c.b16 %v5772, %v5767
    %v5793 = vpack.c.b16 %v5773, %v5768
    %v5794 = vpack.c.b16 %v5774, %v5769
    %v5795 = vpack.c.b16 %v5775, %v5770
    %v5813 = vsel %vm766, %v5780, 0
    %v5816 = vsel %vm766, %v5785, 0
    %v5819 = vsel %vm766, %v5790, 0
    %v5822 = vsel %vm766, %v5795, 0
    %5824 = vmatprep.subr.bf16.mxu0 0
    %5825 = vmatpush1.bf16.msra.mxu0 %v5676
    %5826 = vmatprep.subr.bf16.mxu0 0
    %5827 = vmatpush1.bf16.msra.mxu0 %v5677
    %5828 = vmatprep.subr.bf16.mxu0 0
    %5829 = vmatpush1.bf16.msra.mxu0 %v5678
    %5830 = vmatprep.subr.bf16.mxu0 0
    %5831 = vmatpush1.bf16.msra.mxu0 %v5679
    %5832 = vmatprep.subr.bf16.mxu0 0
    %5833 = vmatpush1.bf16.msra.mxu0 %v5680
    %5834 = vmatprep.subr.bf16.mxu0 0
    %5835 = vmatpush1.bf16.msra.mxu0 %v5681
    %5836 = vmatprep.subr.bf16.mxu0 0
    %5837 = vmatpush1.bf16.msra.mxu0 %v5682
    %5838 = vmatprep.subr.bf16.mxu0 0
    %5839 = vmatpush1.bf16.msra.mxu0 %v5683
    %5840 = vmatprep.subr.bf16.mxu0 0
    %5841 = vmatpush1.bf16.msra.mxu0 %v5684
    %5842 = vmatprep.subr.bf16.mxu0 0
    %5843 = vmatpush1.bf16.msra.mxu0 %v5685
    %5844 = vmatprep.subr.bf16.mxu0 0
    %5845 = vmatpush1.bf16.msra.mxu0 %v5686
    %5846 = vmatprep.subr.bf16.mxu0 0
    %5847 = vmatpush1.bf16.msra.mxu0 %v5687
    %5848 = vmatprep.subr.bf16.mxu0 0
    %5849 = vmatpush1.bf16.msra.mxu0 %v5688
    %5850 = vmatprep.subr.bf16.mxu0 0
    %5851 = vmatpush1.bf16.msra.mxu0 %v5689
    %5852 = vmatprep.subr.bf16.mxu0 0
    %5853 = vmatpush1.bf16.msra.mxu0 %v5690
    %5854 = vmatprep.subr.bf16.mxu0 0
    %5855 = vmatpush1.bf16.msra.mxu0 %v5691
    %5856 = vmatprep.mubr.bf16.mxu0 %v5777
    %5857 = vmatmul.mubr.bf16.gmra.mrb[0].mxu0 %v5776
    %v5858 = vpop.f32.mrb[0].mxu0
    %v5859 = vadd.f32 0.0, %v5858
    %v5860 = vpop.f32.mrb[0].mxu0
    %v5861 = vpop.f32.mrb[0].mxu0
    %v5862 = vadd.f32 0.0, %v5861
    %v5863 = vpop.f32.mrb[0].mxu0
    %5864 = vmatprep.mubr.bf16.mxu0 %v5782
    %5865 = vmatmul.mubr.bf16.gmra.mrb[0].mxu0 %v5781
    %v5866 = vpop.f32.mrb[0].mxu0
    %v5867 = vadd.f32 0.0, %v5866
    %v5868 = vpop.f32.mrb[0].mxu0
    %v5869 = vpop.f32.mrb[0].mxu0
    %v5870 = vadd.f32 0.0, %v5869
    %v5871 = vpop.f32.mrb[0].mxu0
    %5872 = vmatprep.mubr.bf16.mxu0 %v5787
    %5873 = vmatmul.mubr.bf16.gmra.mrb[0].mxu0 %v5786
    %v5874 = vpop.f32.mrb[0].mxu0
    %v5875 = vadd.f32 0.0, %v5874
    %v5876 = vpop.f32.mrb[0].mxu0
    %v5877 = vpop.f32.mrb[0].mxu0
    %v5878 = vadd.f32 0.0, %v5877
    %v5879 = vpop.f32.mrb[0].mxu0
    %5880 = vmatprep.mubr.bf16.mxu0 %v5792
    %5881 = vmatmul.mubr.bf16.gmra.mrb[0].mxu0 %v5791
    %v5882 = vpop.f32.mrb[0].mxu0
    %v5883 = vadd.f32 0.0, %v5882
    %v5884 = vpop.f32.mrb[0].mxu0
    %v5885 = vpop.f32.mrb[0].mxu0
    %v5886 = vadd.f32 0.0, %v5885
    %v5887 = vpop.f32.mrb[0].mxu0
    %5888 = vdwg.mxu0
    %5889 = vmatprep.subr.bf16.mxu0 0
    %5890 = vmatpush1.bf16.msra.mxu0 %v5692
    %5891 = vmatprep.subr.bf16.mxu0 0
    %5892 = vmatpush1.bf16.msra.mxu0 %v5693
    %5893 = vmatprep.subr.bf16.mxu0 0
    %5894 = vmatpush1.bf16.msra.mxu0 %v5694
    %5895 = vmatprep.subr.bf16.mxu0 0
    %5896 = vmatpush1.bf16.msra.mxu0 %v5695
    %5897 = vmatprep.subr.bf16.mxu0 0
    %5898 = vmatpush1.bf16.msra.mxu0 %v5696
    %5899 = vmatprep.subr.bf16.mxu0 0
    %5900 = vmatpush1.bf16.msra.mxu0 %v5697
    %5901 = vmatprep.subr.bf16.mxu0 0
    %5902 = vmatpush1.bf16.msra.mxu0 %v5698
    %5903 = vmatprep.subr.bf16.mxu0 0
    %5904 = vmatpush1.bf16.msra.mxu0 %v5699
    %5905 = vmatprep.subr.bf16.mxu0 0
    %5906 = vmatpush1.bf16.msra.mxu0 %v5700
    %5907 = vmatprep.subr.bf16.mxu0 0
    %5908 = vmatpush1.bf16.msra.mxu0 %v5701
    %5909 = vmatprep.subr.bf16.mxu0 0
    %5910 = vmatpush1.bf16.msra.mxu0 %v5702
    %5911 = vmatprep.subr.bf16.mxu0 0
    %5912 = vmatpush1.bf16.msra.mxu0 %v5703
    %5913 = vmatprep.subr.bf16.mxu0 0
    %5914 = vmatpush1.bf16.msra.mxu0 %v5704
    %5915 = vmatprep.subr.bf16.mxu0 0
    %5916 = vmatpush1.bf16.msra.mxu0 %v5705
    %5917 = vmatprep.subr.bf16.mxu0 0
    %5918 = vmatpush1.bf16.msra.mxu0 %v5706
    %5919 = vmatprep.subr.bf16.mxu0 0
    %5920 = vmatpush1.bf16.msra.mxu0 %v5707
    %5921 = vmatprep.mubr.bf16.mxu0 %v5779
    %5922 = vmatmul.mubr.bf16.gmra.mrb[0].mxu0 %v5778
    %v5923 = vpop.f32.mrb[0].mxu0
    %v5924 = vadd.f32 %v5859, %v5923
    %v5925 = vpop.f32.mrb[0].mxu0
    %v5926 = vpop.f32.mrb[0].mxu0
    %v5927 = vadd.f32 %v5862, %v5926
    %v5928 = vpop.f32.mrb[0].mxu0
    %5929 = vmatprep.mubr.bf16.mxu0 %v5784
    %5930 = vmatmul.mubr.bf16.gmra.mrb[0].mxu0 %v5783
    %v5931 = vpop.f32.mrb[0].mxu0
    %v5932 = vadd.f32 %v5867, %v5931
    %v5933 = vpop.f32.mrb[0].mxu0
    %v5934 = vpop.f32.mrb[0].mxu0
    %v5935 = vadd.f32 %v5870, %v5934
    %v5936 = vpop.f32.mrb[0].mxu0
    %5937 = vmatprep.mubr.bf16.mxu0 %v5789
    %5938 = vmatmul.mubr.bf16.gmra.mrb[0].mxu0 %v5788
    %v5939 = vpop.f32.mrb[0].mxu0
    %v5940 = vadd.f32 %v5875, %v5939
    %v5941 = vpop.f32.mrb[0].mxu0
    %v5942 = vpop.f32.mrb[0].mxu0
    %v5943 = vadd.f32 %v5878, %v5942
    %v5944 = vpop.f32.mrb[0].mxu0
    %5945 = vmatprep.mubr.bf16.mxu0 %v5794
    %5946 = vmatmul.mubr.bf16.gmra.mrb[0].mxu0 %v5793
    %v5947 = vpop.f32.mrb[0].mxu0
    %v5948 = vadd.f32 %v5883, %v5947
    %v5949 = vpop.f32.mrb[0].mxu0
    %v5950 = vpop.f32.mrb[0].mxu0
    %v5951 = vadd.f32 %v5886, %v5950
    %v5952 = vpop.f32.mrb[0].mxu0
    %5953 = vdwg.mxu0
    %5954 = vmatprep.subr.bf16.mxu0 0
    %5955 = vmatpush1.bf16.msra.mxu0 %v5708
    %5956 = vmatprep.subr.bf16.mxu0 0
    %5957 = vmatpush1.bf16.msra.mxu0 %v5709
    %5958 = vmatprep.subr.bf16.mxu0 0
    %5959 = vmatpush1.bf16.msra.mxu0 %v5710
    %5960 = vmatprep.subr.bf16.mxu0 0
    %5961 = vmatpush1.bf16.msra.mxu0 %v5711
    %5962 = vmatprep.subr.bf16.mxu0 0
    %5963 = vmatpush1.bf16.msra.mxu0 0
    %5964 = vmatprep.subr.bf16.mxu0 0
    %5965 = vmatpush1.bf16.msra.mxu0 0
    %5966 = vmatprep.subr.bf16.mxu0 0
    %5967 = vmatpush1.bf16.msra.mxu0 0
    %5968 = vmatprep.subr.bf16.mxu0 0
    %5969 = vmatpush1.bf16.msra.mxu0 0
    %5970 = vmatprep.subr.bf16.mxu0 0
    %5971 = vmatpush1.bf16.msra.mxu0 0
    %5972 = vmatprep.subr.bf16.mxu0 0
    %5973 = vmatpush1.bf16.msra.mxu0 0
    %5974 = vmatprep.subr.bf16.mxu0 0
    %5975 = vmatpush1.bf16.msra.mxu0 0
    %5976 = vmatprep.subr.bf16.mxu0 0
    %5977 = vmatpush1.bf16.msra.mxu0 0
    %5978 = vmatprep.subr.bf16.mxu0 0
    %5979 = vmatpush1.bf16.msra.mxu0 0
    %5980 = vmatprep.subr.bf16.mxu0 0
    %5981 = vmatpush1.bf16.msra.mxu0 0
    %5982 = vmatprep.subr.bf16.mxu0 0
    %5983 = vmatpush1.bf16.msra.mxu0 0
    %5984 = vmatprep.subr.bf16.mxu0 0
    %5985 = vmatpush1.bf16.msra.mxu0 0
    %5986 = vmatprep.mubr.bf16.mxu0 0
    %5987 = vmatmul.mubr.bf16.gmra.mrb[0].mxu0 %v5813
    %v5988 = vpop.f32.mrb[0].mxu0
    %v5989 = vadd.f32 %v5924, %v5988
    %v5990 = vpop.f32.mrb[0].mxu0
    %v5991 = vpop.f32.mrb[0].mxu0
    %v5992 = vadd.f32 %v5927, %v5991
    %v5993 = vpop.f32.mrb[0].mxu0
    %5994 = vmatprep.mubr.bf16.mxu0 0
    %5995 = vmatmul.mubr.bf16.gmra.mrb[0].mxu0 %v5816
    %v5996 = vpop.f32.mrb[0].mxu0
    %v5997 = vadd.f32 %v5932, %v5996
    %v5998 = vpop.f32.mrb[0].mxu0
    %v5999 = vpop.f32.mrb[0].mxu0
    %v6000 = vadd.f32 %v5935, %v5999
    %v6001 = vpop.f32.mrb[0].mxu0
    %6002 = vmatprep.mubr.bf16.mxu0 0
    %6003 = vmatmul.mubr.bf16.gmra.mrb[0].mxu0 %v5819
    %v6004 = vpop.f32.mrb[0].mxu0
    %v6005 = vadd.f32 %v5940, %v6004
    %v6006 = vpop.f32.mrb[0].mxu0
    %v6007 = vpop.f32.mrb[0].mxu0
    %v6008 = vadd.f32 %v5943, %v6007
    %v6009 = vpop.f32.mrb[0].mxu0
    %6010 = vmatprep.mubr.bf16.mxu0 0
    %6011 = vmatmul.mubr.bf16.gmra.mrb[0].mxu0 %v5822
    %v6012 = vpop.f32.mrb[0].mxu0
    %v6013 = vadd.f32 %v5948, %v6012
    %v6014 = vpop.f32.mrb[0].mxu0
    %v6015 = vpop.f32.mrb[0].mxu0
    %v6016 = vadd.f32 %v5951, %v6015
    %v6017 = vpop.f32.mrb[0].mxu0
    %6018 = vdwg.mxu0
    %6019 = vadd.xlane.f32.xlu0 %v5989
    %v6020 = vpop.xlane.xlu0 %6019
    %6021 = vadd.xlane.f32.xlu0 %v5992
    %v6022 = vpop.xlane.xlu0 %6021
    %6023 = vadd.xlane.f32.xlu0 %v5997
    %v6024 = vpop.xlane.xlu0 %6023
    %6025 = vadd.xlane.f32.xlu0 %v6000
    %v6026 = vpop.xlane.xlu0 %6025
    %6027 = vadd.xlane.f32.xlu0 %v6005
    %v6028 = vpop.xlane.xlu0 %6027
    %6029 = vadd.xlane.f32.xlu0 %v6008
    %v6030 = vpop.xlane.xlu0 %6029
    %6031 = vadd.xlane.f32.xlu0 %v6013
    %v6032 = vpop.xlane.xlu0 %6031
    %6033 = vadd.xlane.f32.xlu0 %v6016
    %v6034 = vpop.xlane.xlu0 %6033
    %v6035 = vmul.f32 %v6020, %v990
    %v6036 = vmul.f32 %v6022, %v990
    %v6037 = vmul.f32 %v6024, %v990
    %v6038 = vmul.f32 %v6026, %v990
    %v6039 = vmul.f32 %v6028, %v990
    %v6040 = vmul.f32 %v6030, %v990
    %v6041 = vmul.f32 %v6032, %v990
    %v6042 = vmul.f32 %v6034, %v990
    %v6043 = vsub.f32 %v5989, %v6035
    %v6044 = vsub.f32 %v5992, %v6036
    %v6045 = vsub.f32 %v5997, %v6037
    %v6046 = vsub.f32 %v6000, %v6038
    %v6047 = vsub.f32 %v6005, %v6039
    %v6048 = vsub.f32 %v6008, %v6040
    %v6049 = vsub.f32 %v6013, %v6041
    %v6050 = vsub.f32 %v6016, %v6042
    %v6051 = vmul.f32 %v6043, %v6043
    %v6052 = vmul.f32 %v6044, %v6044
    %v6053 = vmul.f32 %v6045, %v6045
    %v6054 = vmul.f32 %v6046, %v6046
    %v6055 = vmul.f32 %v6047, %v6047
    %v6056 = vmul.f32 %v6048, %v6048
    %v6057 = vmul.f32 %v6049, %v6049
    %v6058 = vmul.f32 %v6050, %v6050
    %6059 = vadd.xlane.f32.xlu0 %v6051
    %v6060 = vpop.xlane.xlu0 %6059
    %6061 = vadd.xlane.f32.xlu0 %v6052
    %v6062 = vpop.xlane.xlu0 %6061
    %6063 = vadd.xlane.f32.xlu0 %v6053
    %v6064 = vpop.xlane.xlu0 %6063
    %6065 = vadd.xlane.f32.xlu0 %v6054
    %v6066 = vpop.xlane.xlu0 %6065
    %6067 = vadd.xlane.f32.xlu0 %v6055
    %v6068 = vpop.xlane.xlu0 %6067
    %6069 = vadd.xlane.f32.xlu0 %v6056
    %v6070 = vpop.xlane.xlu0 %6069
    %6071 = vadd.xlane.f32.xlu0 %v6057
    %v6072 = vpop.xlane.xlu0 %6071
    %6073 = vadd.xlane.f32.xlu0 %v6058
    %v6074 = vpop.xlane.xlu0 %6073
    %v6075 = vmul.f32 %v6060, %v990
    %v6076 = vmul.f32 %v6062, %v990
    %v6077 = vmul.f32 %v6064, %v990
    %v6078 = vmul.f32 %v6066, %v990
    %v6079 = vmul.f32 %v6068, %v990
    %v6080 = vmul.f32 %v6070, %v990
    %v6081 = vmul.f32 %v6072, %v990
    %v6082 = vmul.f32 %v6074, %v990
    %v6083 = vadd.f32 %v6075, 1e-05
    %v6084 = vadd.f32 %v6076, 1e-05
    %v6085 = vadd.f32 %v6077, 1e-05
    %v6086 = vadd.f32 %v6078, 1e-05
    %v6087 = vadd.f32 %v6079, 1e-05
    %v6088 = vadd.f32 %v6080, 1e-05
    %v6089 = vadd.f32 %v6081, 1e-05
    %v6090 = vadd.f32 %v6082, 1e-05
    %v6091 = vrsqrt.pop %v6083
    %v6092 = vrsqrt.pop %v6084
    %v6093 = vrsqrt.pop %v6085
    %v6094 = vrsqrt.pop %v6086
    %v6095 = vrsqrt.pop %v6087
    %v6096 = vrsqrt.pop %v6088
    %v6097 = vrsqrt.pop %v6089
    %v6098 = vrsqrt.pop %v6090
    %v6099 = vmul.f32 %v194, %v6091
    %v6100 = vmul.f32 %v195, %v6092
    %v6101 = vmul.f32 %v196, %v6093
    %v6102 = vmul.f32 %v197, %v6094
    %v6103 = vmul.f32 %v198, %v6095
    %v6104 = vmul.f32 %v199, %v6096
    %v6105 = vmul.f32 %v200, %v6097
    %v6106 = vmul.f32 %v201, %v6098
    %6108 = vset.pattern.permute.xlu0 7
    %6109 = vperm.xlu0 %6108, %v6099
    %v6110 = vpop.permute.xlu0 %6109
    %6113 = vset.pattern.permute.xlu0 7
    %6114 = vperm.xlu0 %6113, %v6100
    %v6115 = vpop.permute.xlu0 %6114
    %6118 = vset.pattern.permute.xlu0 7
    %6119 = vperm.xlu0 %6118, %v6101
    %v6120 = vpop.permute.xlu0 %6119
    %6123 = vset.pattern.permute.xlu0 7
    %6124 = vperm.xlu0 %6123, %v6102
    %v6125 = vpop.permute.xlu0 %6124
    %6128 = vset.pattern.permute.xlu0 7
    %6129 = vperm.xlu0 %6128, %v6103
    %v6130 = vpop.permute.xlu0 %6129
    %6133 = vset.pattern.permute.xlu0 7
    %6134 = vperm.xlu0 %6133, %v6104
    %v6135 = vpop.permute.xlu0 %6134
    %6138 = vset.pattern.permute.xlu0 7
    %6139 = vperm.xlu0 %6138, %v6105
    %v6140 = vpop.permute.xlu0 %6139
    %6143 = vset.pattern.permute.xlu0 7
    %6144 = vperm.xlu0 %6143, %v6106
    %v6145 = vpop.permute.xlu0 %6144
    %v6147 = vmul.f32 %v6043, %v6110
    %v6148 = vmul.f32 %v6044, %v6115
    %v6149 = vmul.f32 %v6045, %v6120
    %v6150 = vmul.f32 %v6046, %v6125
    %v6151 = vmul.f32 %v6047, %v6130
    %v6152 = vmul.f32 %v6048, %v6135
    %v6153 = vmul.f32 %v6049, %v6140
    %v6154 = vmul.f32 %v6050, %v6145
    %6155 = vset.pattern.permute.xlu0 7
    %6156 = vperm.xlu0 %6155, %v202
    %v6157 = vpop.permute.xlu0 %6156
    %6159 = vset.pattern.permute.xlu0 7
    %6160 = vperm.xlu0 %6159, %v203
    %v6161 = vpop.permute.xlu0 %6160
    %6163 = vset.pattern.permute.xlu0 7
    %6164 = vperm.xlu0 %6163, %v204
    %v6165 = vpop.permute.xlu0 %6164
    %6167 = vset.pattern.permute.xlu0 7
    %6168 = vperm.xlu0 %6167, %v205
    %v6169 = vpop.permute.xlu0 %6168
    %6171 = vset.pattern.permute.xlu0 7
    %6172 = vperm.xlu0 %6171, %v206
    %v6173 = vpop.permute.xlu0 %6172
    %6175 = vset.pattern.permute.xlu0 7
    %6176 = vperm.xlu0 %6175, %v207
    %v6177 = vpop.permute.xlu0 %6176
    %6179 = vset.pattern.permute.xlu0 7
    %6180 = vperm.xlu0 %6179, %v208
    %v6181 = vpop.permute.xlu0 %6180
    %6183 = vset.pattern.permute.xlu0 7
    %6184 = vperm.xlu0 %6183, %v209
    %v6185 = vpop.permute.xlu0 %6184
    %v6187 = vadd.f32 %v6147, %v6157
    %v6188 = vadd.f32 %v6148, %v6161
    %v6189 = vadd.f32 %v6149, %v6165
    %v6190 = vadd.f32 %v6150, %v6169
    %v6191 = vadd.f32 %v6151, %v6173
    %v6192 = vadd.f32 %v6152, %v6177
    %v6193 = vadd.f32 %v6153, %v6181
    %v6194 = vadd.f32 %v6154, %v6185
    %v6195 = vadd.f32 %v6187, %v4763
    %v6196 = vadd.f32 %v6188, %v4764
    %v6197 = vadd.f32 %v6189, %v4765
    %v6198 = vadd.f32 %v6190, %v4766
    %v6199 = vadd.f32 %v6191, %v4767
    %v6200 = vadd.f32 %v6192, %v4768
    %v6201 = vadd.f32 %v6193, %v4769
    %v6202 = vadd.f32 %v6194, %v4770
    %v6203 = vmax.f32 %v6195, 0.0
    %v6204 = vmax.f32 %v6196, 0.0
    %v6205 = vmax.f32 %v6197, 0.0
    %v6206 = vmax.f32 %v6198, 0.0
    %v6207 = vmax.f32 %v6199, 0.0
    %v6208 = vmax.f32 %v6200, 0.0
    %v6209 = vmax.f32 %v6201, 0.0
    %v6210 = vmax.f32 %v6202, 0.0
    %v6211 = vld [vmem:[%s6] sm:$0xff]
    %v6212 = vld [vmem:[%s6 + $0x8] sm:$0xff]
    %v6213 = vld [vmem:[%s6 + $0x10] sm:$0xf]
    %v6214 = vld [vmem:[%s6 + $0x14] sm:$0xff]
    %v6215 = vld [vmem:[%s6 + $0x1c] sm:$0xff]
    %v6216 = vld [vmem:[%s6 + $0x24] sm:$0xf]
    %v6217 = vld [vmem:[%s6 + $0x28] sm:$0xff]
    %v6218 = vld [vmem:[%s6 + $0x30] sm:$0xff]
    %v6219 = vld [vmem:[%s6 + $0x38] sm:$0xf]
    %v6220 = vld [vmem:[%s6 + $0x3c] sm:$0xff]
    %v6221 = vld [vmem:[%s6 + $0x44] sm:$0xff]
    %v6222 = vld [vmem:[%s6 + $0x4c] sm:$0xf]
    %6223 = vrot.lane.b32.xlu0 %v6203, 9
    %v6224 = vpop.permute.xlu0 %6223
    %6225 = vrot.lane.b32.xlu0 %v6204, 9
    %v6226 = vpop.permute.xlu0 %6225
    %6227 = vrot.lane.b32.xlu0 %v6205, 9
    %v6228 = vpop.permute.xlu0 %6227
    %6229 = vrot.lane.b32.xlu0 %v6206, 9
    %v6230 = vpop.permute.xlu0 %6229
    %6231 = vrot.lane.b32.xlu0 %v6207, 9
    %v6232 = vpop.permute.xlu0 %6231
    %6233 = vrot.lane.b32.xlu0 %v6208, 9
    %v6234 = vpop.permute.xlu0 %6233
    %6235 = vrot.lane.b32.xlu0 %v6209, 9
    %v6236 = vpop.permute.xlu0 %6235
    %6237 = vrot.lane.b32.xlu0 %v6210, 9
    %v6238 = vpop.permute.xlu0 %6237
    %6239 = vrot.lane.b32.xlu0 %v6203, 8
    %v6240 = vpop.permute.xlu0 %6239
    %6241 = vrot.lane.b32.xlu0 %v6204, 8
    %v6242 = vpop.permute.xlu0 %6241
    %6243 = vrot.lane.b32.xlu0 %v6205, 8
    %v6244 = vpop.permute.xlu0 %6243
    %6245 = vrot.lane.b32.xlu0 %v6206, 8
    %v6246 = vpop.permute.xlu0 %6245
    %6247 = vrot.lane.b32.xlu0 %v6207, 8
    %v6248 = vpop.permute.xlu0 %6247
    %6249 = vrot.lane.b32.xlu0 %v6208, 8
    %v6250 = vpop.permute.xlu0 %6249
    %6251 = vrot.lane.b32.xlu0 %v6209, 8
    %v6252 = vpop.permute.xlu0 %6251
    %6253 = vrot.lane.b32.xlu0 %v6210, 8
    %v6254 = vpop.permute.xlu0 %6253
    %6255 = vrot.lane.b32.xlu0 %v6203, 7
    %v6256 = vpop.permute.xlu0 %6255
    %6257 = vrot.lane.b32.xlu0 %v6204, 7
    %v6258 = vpop.permute.xlu0 %6257
    %6259 = vrot.lane.b32.xlu0 %v6205, 7
    %v6260 = vpop.permute.xlu0 %6259
    %6261 = vrot.lane.b32.xlu0 %v6206, 7
    %v6262 = vpop.permute.xlu0 %6261
    %6263 = vrot.lane.b32.xlu0 %v6207, 7
    %v6264 = vpop.permute.xlu0 %6263
    %6265 = vrot.lane.b32.xlu0 %v6208, 7
    %v6266 = vpop.permute.xlu0 %6265
    %6267 = vrot.lane.b32.xlu0 %v6209, 7
    %v6268 = vpop.permute.xlu0 %6267
    %6269 = vrot.lane.b32.xlu0 %v6210, 7
    %v6270 = vpop.permute.xlu0 %6269
    %6271 = vrot.lane.b32.xlu0 %v6203, 1
    %v6272 = vpop.permute.xlu0 %6271
    %6273 = vrot.lane.b32.xlu0 %v6204, 1
    %v6274 = vpop.permute.xlu0 %6273
    %6275 = vrot.lane.b32.xlu0 %v6205, 1
    %v6276 = vpop.permute.xlu0 %6275
    %6277 = vrot.lane.b32.xlu0 %v6206, 1
    %v6278 = vpop.permute.xlu0 %6277
    %6279 = vrot.lane.b32.xlu0 %v6207, 1
    %v6280 = vpop.permute.xlu0 %6279
    %6281 = vrot.lane.b32.xlu0 %v6208, 1
    %v6282 = vpop.permute.xlu0 %6281
    %6283 = vrot.lane.b32.xlu0 %v6209, 1
    %v6284 = vpop.permute.xlu0 %6283
    %6285 = vrot.lane.b32.xlu0 %v6210, 1
    %v6286 = vpop.permute.xlu0 %6285
    %6287 = vrot.lane.b32.xlu0 %v6203, 127
    %v6288 = vpop.permute.xlu0 %6287
    %6289 = vrot.lane.b32.xlu0 %v6204, 127
    %v6290 = vpop.permute.xlu0 %6289
    %6291 = vrot.lane.b32.xlu0 %v6205, 127
    %v6292 = vpop.permute.xlu0 %6291
    %6293 = vrot.lane.b32.xlu0 %v6206, 127
    %v6294 = vpop.permute.xlu0 %6293
    %6295 = vrot.lane.b32.xlu0 %v6207, 127
    %v6296 = vpop.permute.xlu0 %6295
    %6297 = vrot.lane.b32.xlu0 %v6208, 127
    %v6298 = vpop.permute.xlu0 %6297
    %6299 = vrot.lane.b32.xlu0 %v6209, 127
    %v6300 = vpop.permute.xlu0 %6299
    %6301 = vrot.lane.b32.xlu0 %v6210, 127
    %v6302 = vpop.permute.xlu0 %6301
    %6303 = vrot.lane.b32.xlu0 %v6203, 121
    %v6304 = vpop.permute.xlu0 %6303
    %6305 = vrot.lane.b32.xlu0 %v6204, 121
    %v6306 = vpop.permute.xlu0 %6305
    %6307 = vrot.lane.b32.xlu0 %v6205, 121
    %v6308 = vpop.permute.xlu0 %6307
    %6309 = vrot.lane.b32.xlu0 %v6206, 121
    %v6310 = vpop.permute.xlu0 %6309
    %6311 = vrot.lane.b32.xlu0 %v6207, 121
    %v6312 = vpop.permute.xlu0 %6311
    %6313 = vrot.lane.b32.xlu0 %v6208, 121
    %v6314 = vpop.permute.xlu0 %6313
    %6315 = vrot.lane.b32.xlu0 %v6209, 121
    %v6316 = vpop.permute.xlu0 %6315
    %6317 = vrot.lane.b32.xlu0 %v6210, 121
    %v6318 = vpop.permute.xlu0 %6317
    %6319 = vrot.lane.b32.xlu0 %v6203, 120
    %v6320 = vpop.permute.xlu0 %6319
    %6321 = vrot.lane.b32.xlu0 %v6204, 120
    %v6322 = vpop.permute.xlu0 %6321
    %6323 = vrot.lane.b32.xlu0 %v6205, 120
    %v6324 = vpop.permute.xlu0 %6323
    %6325 = vrot.lane.b32.xlu0 %v6206, 120
    %v6326 = vpop.permute.xlu0 %6325
    %6327 = vrot.lane.b32.xlu0 %v6207, 120
    %v6328 = vpop.permute.xlu0 %6327
    %6329 = vrot.lane.b32.xlu0 %v6208, 120
    %v6330 = vpop.permute.xlu0 %6329
    %6331 = vrot.lane.b32.xlu0 %v6209, 120
    %v6332 = vpop.permute.xlu0 %6331
    %6333 = vrot.lane.b32.xlu0 %v6210, 120
    %v6334 = vpop.permute.xlu0 %6333
    %6335 = vrot.lane.b32.xlu0 %v6203, 119
    %v6336 = vpop.permute.xlu0 %6335
    %6337 = vrot.lane.b32.xlu0 %v6204, 119
    %v6338 = vpop.permute.xlu0 %6337
    %6339 = vrot.lane.b32.xlu0 %v6205, 119
    %v6340 = vpop.permute.xlu0 %6339
    %6341 = vrot.lane.b32.xlu0 %v6206, 119
    %v6342 = vpop.permute.xlu0 %6341
    %6343 = vrot.lane.b32.xlu0 %v6207, 119
    %v6344 = vpop.permute.xlu0 %6343
    %6345 = vrot.lane.b32.xlu0 %v6208, 119
    %v6346 = vpop.permute.xlu0 %6345
    %6347 = vrot.lane.b32.xlu0 %v6209, 119
    %v6348 = vpop.permute.xlu0 %6347
    %6349 = vrot.lane.b32.xlu0 %v6210, 119
    %v6350 = vpop.permute.xlu0 %6349
    %v6351 = vpack.c.bf16 %v6226, %v6224
    %v6352 = vpack.c.bf16 %v6230, %v6228
    %v6353 = vpack.c.bf16 %v6234, %v6232
    %v6354 = vpack.c.bf16 %v6238, %v6236
    %v6355 = vpack.c.bf16 %v6242, %v6240
    %v6356 = vpack.c.bf16 %v6246, %v6244
    %v6357 = vpack.c.bf16 %v6250, %v6248
    %v6358 = vpack.c.bf16 %v6254, %v6252
    %v6359 = vpack.c.bf16 %v6258, %v6256
    %v6360 = vpack.c.bf16 %v6262, %v6260
    %v6361 = vpack.c.bf16 %v6266, %v6264
    %v6362 = vpack.c.bf16 %v6270, %v6268
    %v6363 = vpack.c.bf16 %v6274, %v6272
    %v6364 = vpack.c.bf16 %v6278, %v6276
    %v6365 = vpack.c.bf16 %v6282, %v6280
    %v6366 = vpack.c.bf16 %v6286, %v6284
    %v6367 = vpack.c.bf16 %v6204, %v6203
    %v6368 = vpack.c.bf16 %v6206, %v6205
    %v6369 = vpack.c.bf16 %v6208, %v6207
    %v6370 = vpack.c.bf16 %v6210, %v6209
    %v6371 = vpack.c.bf16 %v6290, %v6288
    %v6372 = vpack.c.bf16 %v6294, %v6292
    %v6373 = vpack.c.bf16 %v6298, %v6296
    %v6374 = vpack.c.bf16 %v6302, %v6300
    %v6375 = vpack.c.bf16 %v6306, %v6304
    %v6376 = vpack.c.bf16 %v6310, %v6308
    %v6377 = vpack.c.bf16 %v6314, %v6312
    %v6378 = vpack.c.bf16 %v6318, %v6316
    %v6379 = vpack.c.bf16 %v6322, %v6320
    %v6380 = vpack.c.bf16 %v6326, %v6324
    %v6381 = vpack.c.bf16 %v6330, %v6328
    %v6382 = vpack.c.bf16 %v6334, %v6332
    %v6383 = vpack.c.bf16 %v6338, %v6336
    %v6384 = vpack.c.bf16 %v6342, %v6340
    %v6385 = vpack.c.bf16 %v6346, %v6344
    %v6386 = vpack.c.bf16 %v6350, %v6348
    %v6387 = vmul.bf16 %v6351, %v558
    %v6388 = vmul.bf16 %v6352, %v559
    %v6389 = vmul.bf16 %v6353, %v560
    %v6390 = vmul.bf16 %v6354, %v561
    %v6391 = vmul.bf16 %v6355, %v562
    %v6392 = vmul.bf16 %v6356, %v563
    %v6393 = vmul.bf16 %v6357, %v564
    %v6394 = vmul.bf16 %v6358, %v565
    %v6395 = vmul.bf16 %v6359, %v566
    %v6396 = vmul.bf16 %v6360, %v567
    %v6397 = vmul.bf16 %v6361, %v568
    %v6398 = vmul.bf16 %v6362, %v569
    %v6399 = vmul.bf16 %v6363, %v570
    %v6400 = vmul.bf16 %v6364, %v571
    %v6401 = vmul.bf16 %v6365, %v572
    %v6402 = vmul.bf16 %v6366, %v573
    %v6403 = vmul.bf16 %v6367, %v574
    %v6404 = vmul.bf16 %v6368, %v575
    %v6405 = vmul.bf16 %v6369, %v576
    %v6406 = vmul.bf16 %v6370, %v577
    %v6407 = vmul.bf16 %v6371, %v578
    %v6408 = vmul.bf16 %v6372, %v579
    %v6409 = vmul.bf16 %v6373, %v580
    %v6410 = vmul.bf16 %v6374, %v581
    %v6411 = vmul.bf16 %v6375, %v582
    %v6412 = vmul.bf16 %v6376, %v583
    %v6413 = vmul.bf16 %v6377, %v584
    %v6414 = vmul.bf16 %v6378, %v585
    %v6415 = vmul.bf16 %v6379, %v586
    %v6416 = vmul.bf16 %v6380, %v587
    %v6417 = vmul.bf16 %v6381, %v588
    %v6418 = vmul.bf16 %v6382, %v589
    %v6419 = vmul.bf16 %v6383, %v590
    %v6420 = vmul.bf16 %v6384, %v591
    %v6421 = vmul.bf16 %v6385, %v592
    %v6422 = vmul.bf16 %v6386, %v593
    %v6423 = vld [vmem:[%s7] sm:$0xff]
    %v6424 = vld [vmem:[%s7 + $0x8] sm:$0xff]
    %v6425 = vld [vmem:[%s7 + $0x10] sm:$0xff]
    %v6426 = vld [vmem:[%s7 + $0x18] sm:$0xff]
    %6428 = vset.pattern.permute.xlu0 0
    %6429 = vperm.xlu0 %6428, %v6423
    %v6430 = vpop.permute.xlu0 %6429
    %6433 = vset.pattern.permute.xlu0 0
    %6434 = vperm.xlu0 %6433, %v6424
    %v6435 = vpop.permute.xlu0 %6434
    %6438 = vset.pattern.permute.xlu0 0
    %6439 = vperm.xlu0 %6438, %v6425
    %v6440 = vpop.permute.xlu0 %6439
    %6443 = vset.pattern.permute.xlu0 0
    %6444 = vperm.xlu0 %6443, %v6426
    %v6445 = vpop.permute.xlu0 %6444
    %v6459 = vunpack.c.l.b16 %v6211
    %v6460 = vunpack.c.h.b16 %v6211
    %v6461 = vunpack.c.l.b16 %v6212
    %v6462 = vunpack.c.h.b16 %v6212
    %v6463 = vunpack.c.l.b16 %v6213
    %v6464 = vunpack.c.l.b16 %v6214
    %v6465 = vunpack.c.h.b16 %v6214
    %v6466 = vunpack.c.l.b16 %v6215
    %v6467 = vunpack.c.h.b16 %v6215
    %v6468 = vunpack.c.l.b16 %v6216
    %v6469 = vunpack.c.l.b16 %v6217
    %v6470 = vunpack.c.h.b16 %v6217
    %v6471 = vunpack.c.l.b16 %v6218
    %v6472 = vunpack.c.h.b16 %v6218
    %v6473 = vunpack.c.l.b16 %v6219
    %v6474 = vunpack.c.l.b16 %v6220
    %v6475 = vunpack.c.h.b16 %v6220
    %v6476 = vunpack.c.l.b16 %v6221
    %v6477 = vunpack.c.h.b16 %v6221
    %v6478 = vunpack.c.l.b16 %v6222
    %v6479 = vpack.c.b16 %v6464, %v6459
    %v6480 = vpack.c.b16 %v6465, %v6460
    %v6481 = vpack.c.b16 %v6466, %v6461
    %v6482 = vpack.c.b16 %v6467, %v6462
    %v6483 = vpack.c.b16 %v6468, %v6463
    %v6484 = vpack.c.b16 %v6474, %v6469
    %v6485 = vpack.c.b16 %v6475, %v6470
    %v6486 = vpack.c.b16 %v6476, %v6471
    %v6487 = vpack.c.b16 %v6477, %v6472
    %v6488 = vpack.c.b16 %v6478, %v6473
    %v6498 = vsel %vm766, %v6483, 0
    %v6501 = vsel %vm766, %v6488, 0
    %6503 = vmatprep.subr.bf16.mxu0 0
    %6504 = vmatpush1.bf16.msra.mxu0 %v6387
    %6505 = vmatprep.subr.bf16.mxu0 0
    %6506 = vmatpush1.bf16.msra.mxu0 %v6388
    %6507 = vmatprep.subr.bf16.mxu0 0
    %6508 = vmatpush1.bf16.msra.mxu0 %v6389
    %6509 = vmatprep.subr.bf16.mxu0 0
    %6510 = vmatpush1.bf16.msra.mxu0 %v6390
    %6511 = vmatprep.subr.bf16.mxu0 0
    %6512 = vmatpush1.bf16.msra.mxu0 %v6391
    %6513 = vmatprep.subr.bf16.mxu0 0
    %6514 = vmatpush1.bf16.msra.mxu0 %v6392
    %6515 = vmatprep.subr.bf16.mxu0 0
    %6516 = vmatpush1.bf16.msra.mxu0 %v6393
    %6517 = vmatprep.subr.bf16.mxu0 0
    %6518 = vmatpush1.bf16.msra.mxu0 %v6394
    %6519 = vmatprep.subr.bf16.mxu0 0
    %6520 = vmatpush1.bf16.msra.mxu0 %v6395
    %6521 = vmatprep.subr.bf16.mxu0 0
    %6522 = vmatpush1.bf16.msra.mxu0 %v6396
    %6523 = vmatprep.subr.bf16.mxu0 0
    %6524 = vmatpush1.bf16.msra.mxu0 %v6397
    %6525 = vmatprep.subr.bf16.mxu0 0
    %6526 = vmatpush1.bf16.msra.mxu0 %v6398
    %6527 = vmatprep.subr.bf16.mxu0 0
    %6528 = vmatpush1.bf16.msra.mxu0 %v6399
    %6529 = vmatprep.subr.bf16.mxu0 0
    %6530 = vmatpush1.bf16.msra.mxu0 %v6400
    %6531 = vmatprep.subr.bf16.mxu0 0
    %6532 = vmatpush1.bf16.msra.mxu0 %v6401
    %6533 = vmatprep.subr.bf16.mxu0 0
    %6534 = vmatpush1.bf16.msra.mxu0 %v6402
    %6535 = vmatprep.mubr.bf16.mxu0 %v6480
    %6536 = vmatmul.mubr.bf16.gmra.mrb[0].mxu0 %v6479
    %v6537 = vpop.f32.mrb[0].mxu0
    %v6538 = vadd.f32 %v6430, %v6537
    %v6539 = vpop.f32.mrb[0].mxu0
    %v6540 = vpop.f32.mrb[0].mxu0
    %v6541 = vadd.f32 %v6435, %v6540
    %v6542 = vpop.f32.mrb[0].mxu0
    %6543 = vmatprep.mubr.bf16.mxu0 %v6485
    %6544 = vmatmul.mubr.bf16.gmra.mrb[0].mxu0 %v6484
    %v6545 = vpop.f32.mrb[0].mxu0
    %v6546 = vadd.f32 %v6440, %v6545
    %v6547 = vpop.f32.mrb[0].mxu0
    %v6548 = vpop.f32.mrb[0].mxu0
    %v6549 = vadd.f32 %v6445, %v6548
    %v6550 = vpop.f32.mrb[0].mxu0
    %6551 = vdwg.mxu0
    %6552 = vmatprep.subr.bf16.mxu0 0
    %6553 = vmatpush1.bf16.msra.mxu0 %v6403
    %6554 = vmatprep.subr.bf16.mxu0 0
    %6555 = vmatpush1.bf16.msra.mxu0 %v6404
    %6556 = vmatprep.subr.bf16.mxu0 0
    %6557 = vmatpush1.bf16.msra.mxu0 %v6405
    %6558 = vmatprep.subr.bf16.mxu0 0
    %6559 = vmatpush1.bf16.msra.mxu0 %v6406
    %6560 = vmatprep.subr.bf16.mxu0 0
    %6561 = vmatpush1.bf16.msra.mxu0 %v6407
    %6562 = vmatprep.subr.bf16.mxu0 0
    %6563 = vmatpush1.bf16.msra.mxu0 %v6408
    %6564 = vmatprep.subr.bf16.mxu0 0
    %6565 = vmatpush1.bf16.msra.mxu0 %v6409
    %6566 = vmatprep.subr.bf16.mxu0 0
    %6567 = vmatpush1.bf16.msra.mxu0 %v6410
    %6568 = vmatprep.subr.bf16.mxu0 0
    %6569 = vmatpush1.bf16.msra.mxu0 %v6411
    %6570 = vmatprep.subr.bf16.mxu0 0
    %6571 = vmatpush1.bf16.msra.mxu0 %v6412
    %6572 = vmatprep.subr.bf16.mxu0 0
    %6573 = vmatpush1.bf16.msra.mxu0 %v6413
    %6574 = vmatprep.subr.bf16.mxu0 0
    %6575 = vmatpush1.bf16.msra.mxu0 %v6414
    %6576 = vmatprep.subr.bf16.mxu0 0
    %6577 = vmatpush1.bf16.msra.mxu0 %v6415
    %6578 = vmatprep.subr.bf16.mxu0 0
    %6579 = vmatpush1.bf16.msra.mxu0 %v6416
    %6580 = vmatprep.subr.bf16.mxu0 0
    %6581 = vmatpush1.bf16.msra.mxu0 %v6417
    %6582 = vmatprep.subr.bf16.mxu0 0
    %6583 = vmatpush1.bf16.msra.mxu0 %v6418
    %6584 = vmatprep.mubr.bf16.mxu0 %v6482
    %6585 = vmatmul.mubr.bf16.gmra.mrb[0].mxu0 %v6481
    %v6586 = vpop.f32.mrb[0].mxu0
    %v6587 = vadd.f32 %v6538, %v6586
    %v6588 = vpop.f32.mrb[0].mxu0
    %v6589 = vpop.f32.mrb[0].mxu0
    %v6590 = vadd.f32 %v6541, %v6589
    %v6591 = vpop.f32.mrb[0].mxu0
    %6592 = vmatprep.mubr.bf16.mxu0 %v6487
    %6593 = vmatmul.mubr.bf16.gmra.mrb[0].mxu0 %v6486
    %v6594 = vpop.f32.mrb[0].mxu0
    %v6595 = vadd.f32 %v6546, %v6594
    %v6596 = vpop.f32.mrb[0].mxu0
    %v6597 = vpop.f32.mrb[0].mxu0
    %v6598 = vadd.f32 %v6549, %v6597
    %v6599 = vpop.f32.mrb[0].mxu0
    %6600 = vdwg.mxu0
    %6601 = vmatprep.subr.bf16.mxu0 0
    %6602 = vmatpush1.bf16.msra.mxu0 %v6419
    %6603 = vmatprep.subr.bf16.mxu0 0
    %6604 = vmatpush1.bf16.msra.mxu0 %v6420
    %6605 = vmatprep.subr.bf16.mxu0 0
    %6606 = vmatpush1.bf16.msra.mxu0 %v6421
    %6607 = vmatprep.subr.bf16.mxu0 0
    %6608 = vmatpush1.bf16.msra.mxu0 %v6422
    %6609 = vmatprep.subr.bf16.mxu0 0
    %6610 = vmatpush1.bf16.msra.mxu0 0
    %6611 = vmatprep.subr.bf16.mxu0 0
    %6612 = vmatpush1.bf16.msra.mxu0 0
    %6613 = vmatprep.subr.bf16.mxu0 0
    %6614 = vmatpush1.bf16.msra.mxu0 0
    %6615 = vmatprep.subr.bf16.mxu0 0
    %6616 = vmatpush1.bf16.msra.mxu0 0
    %6617 = vmatprep.subr.bf16.mxu0 0
    %6618 = vmatpush1.bf16.msra.mxu0 0
    %6619 = vmatprep.subr.bf16.mxu0 0
    %6620 = vmatpush1.bf16.msra.mxu0 0
    %6621 = vmatprep.subr.bf16.mxu0 0
    %6622 = vmatpush1.bf16.msra.mxu0 0
    %6623 = vmatprep.subr.bf16.mxu0 0
    %6624 = vmatpush1.bf16.msra.mxu0 0
    %6625 = vmatprep.subr.bf16.mxu0 0
    %6626 = vmatpush1.bf16.msra.mxu0 0
    %6627 = vmatprep.subr.bf16.mxu0 0
    %6628 = vmatpush1.bf16.msra.mxu0 0
    %6629 = vmatprep.subr.bf16.mxu0 0
    %6630 = vmatpush1.bf16.msra.mxu0 0
    %6631 = vmatprep.subr.bf16.mxu0 0
    %6632 = vmatpush1.bf16.msra.mxu0 0
    %6633 = vmatprep.mubr.bf16.mxu0 0
    %6634 = vmatmul.mubr.bf16.gmra.mrb[0].mxu0 %v6498
    %v6635 = vpop.f32.mrb[0].mxu0
    %v6636 = vadd.f32 %v6587, %v6635
    %v6637 = vpop.f32.mrb[0].mxu0
    %v6638 = vpop.f32.mrb[0].mxu0
    %v6639 = vadd.f32 %v6590, %v6638
    %v6640 = vpop.f32.mrb[0].mxu0
    %6641 = vmatprep.mubr.bf16.mxu0 0
    %6642 = vmatmul.mubr.bf16.gmra.mrb[0].mxu0 %v6501
    %v6643 = vpop.f32.mrb[0].mxu0
    %v6644 = vadd.f32 %v6595, %v6643
    %v6645 = vpop.f32.mrb[0].mxu0
    %v6646 = vpop.f32.mrb[0].mxu0
    %v6647 = vadd.f32 %v6598, %v6646
    %v6648 = vpop.f32.mrb[0].mxu0
    %6649 = vdwg.mxu0
    %v6650 = vld [vmem:[%s8] sm:$0xff]
    %v6651 = vld [vmem:[%s8 + $0x8] sm:$0xf]
    %v6652 = vld [vmem:[%s8 + $0xc] sm:$0xff]
    %v6653 = vld [vmem:[%s8 + $0x14] sm:$0xf]
    %v6654 = vld [vmem:[%s8 + $0x18] sm:$0xff]
    %v6655 = vld [vmem:[%s8 + $0x20] sm:$0xf]
    %v6656 = vld [vmem:[%s8 + $0x24] sm:$0xff]
    %v6657 = vld [vmem:[%s8 + $0x2c] sm:$0xf]
    %6658 = vrot.lane.b32.xlu0 %v6636, 9
    %v6659 = vpop.permute.xlu0 %6658
    %6660 = vrot.lane.b32.xlu0 %v6639, 9
    %v6661 = vpop.permute.xlu0 %6660
    %6662 = vrot.lane.b32.xlu0 %v6644, 9
    %v6663 = vpop.permute.xlu0 %6662
    %6664 = vrot.lane.b32.xlu0 %v6647, 9
    %v6665 = vpop.permute.xlu0 %6664
    %6666 = vrot.lane.b32.xlu0 %v6636, 8
    %v6667 = vpop.permute.xlu0 %6666
    %6668 = vrot.lane.b32.xlu0 %v6639, 8
    %v6669 = vpop.permute.xlu0 %6668
    %6670 = vrot.lane.b32.xlu0 %v6644, 8
    %v6671 = vpop.permute.xlu0 %6670
    %6672 = vrot.lane.b32.xlu0 %v6647, 8
    %v6673 = vpop.permute.xlu0 %6672
    %6674 = vrot.lane.b32.xlu0 %v6636, 7
    %v6675 = vpop.permute.xlu0 %6674
    %6676 = vrot.lane.b32.xlu0 %v6639, 7
    %v6677 = vpop.permute.xlu0 %6676
    %6678 = vrot.lane.b32.xlu0 %v6644, 7
    %v6679 = vpop.permute.xlu0 %6678
    %6680 = vrot.lane.b32.xlu0 %v6647, 7
    %v6681 = vpop.permute.xlu0 %6680
    %6682 = vrot.lane.b32.xlu0 %v6636, 1
    %v6683 = vpop.permute.xlu0 %6682
    %6684 = vrot.lane.b32.xlu0 %v6639, 1
    %v6685 = vpop.permute.xlu0 %6684
    %6686 = vrot.lane.b32.xlu0 %v6644, 1
    %v6687 = vpop.permute.xlu0 %6686
    %6688 = vrot.lane.b32.xlu0 %v6647, 1
    %v6689 = vpop.permute.xlu0 %6688
    %6690 = vrot.lane.b32.xlu0 %v6636, 127
    %v6691 = vpop.permute.xlu0 %6690
    %6692 = vrot.lane.b32.xlu0 %v6639, 127
    %v6693 = vpop.permute.xlu0 %6692
    %6694 = vrot.lane.b32.xlu0 %v6644, 127
    %v6695 = vpop.permute.xlu0 %6694
    %6696 = vrot.lane.b32.xlu0 %v6647, 127
    %v6697 = vpop.permute.xlu0 %6696
    %6698 = vrot.lane.b32.xlu0 %v6636, 121
    %v6699 = vpop.permute.xlu0 %6698
    %6700 = vrot.lane.b32.xlu0 %v6639, 121
    %v6701 = vpop.permute.xlu0 %6700
    %6702 = vrot.lane.b32.xlu0 %v6644, 121
    %v6703 = vpop.permute.xlu0 %6702
    %6704 = vrot.lane.b32.xlu0 %v6647, 121
    %v6705 = vpop.permute.xlu0 %6704
    %6706 = vrot.lane.b32.xlu0 %v6636, 120
    %v6707 = vpop.permute.xlu0 %6706
    %6708 = vrot.lane.b32.xlu0 %v6639, 120
    %v6709 = vpop.permute.xlu0 %6708
    %6710 = vrot.lane.b32.xlu0 %v6644, 120
    %v6711 = vpop.permute.xlu0 %6710
    %6712 = vrot.lane.b32.xlu0 %v6647, 120
    %v6713 = vpop.permute.xlu0 %6712
    %6714 = vrot.lane.b32.xlu0 %v6636, 119
    %v6715 = vpop.permute.xlu0 %6714
    %6716 = vrot.lane.b32.xlu0 %v6639, 119
    %v6717 = vpop.permute.xlu0 %6716
    %6718 = vrot.lane.b32.xlu0 %v6644, 119
    %v6719 = vpop.permute.xlu0 %6718
    %6720 = vrot.lane.b32.xlu0 %v6647, 119
    %v6721 = vpop.permute.xlu0 %6720
    %v6722 = vpack.c.bf16 %v6661, %v6659
    %v6723 = vpack.c.bf16 %v6665, %v6663
    %v6724 = vpack.c.bf16 %v6669, %v6667
    %v6725 = vpack.c.bf16 %v6673, %v6671
    %v6726 = vpack.c.bf16 %v6677, %v6675
    %v6727 = vpack.c.bf16 %v6681, %v6679
    %v6728 = vpack.c.bf16 %v6685, %v6683
    %v6729 = vpack.c.bf16 %v6689, %v6687
    %v6730 = vpack.c.bf16 %v6639, %v6636
    %v6731 = vpack.c.bf16 %v6647, %v6644
    %v6732 = vpack.c.bf16 %v6693, %v6691
    %v6733 = vpack.c.bf16 %v6697, %v6695
    %v6734 = vpack.c.bf16 %v6701, %v6699
    %v6735 = vpack.c.bf16 %v6705, %v6703
    %v6736 = vpack.c.bf16 %v6709, %v6707
    %v6737 = vpack.c.bf16 %v6713, %v6711
    %v6738 = vpack.c.bf16 %v6717, %v6715
    %v6739 = vpack.c.bf16 %v6721, %v6719
    %v6776 = vunpack.c.l.b16 %v158
    %v6777 = vunpack.c.l.b16 %v159
    %v6778 = vunpack.c.l.b16 %v160
    %v6779 = vunpack.c.l.b16 %v161
    %v6780 = vunpack.c.l.b16 %v162
    %v6781 = vunpack.c.l.b16 %v163
    %v6782 = vunpack.c.l.b16 %v164
    %v6783 = vunpack.c.l.b16 %v165
    %v6784 = vunpack.c.l.b16 %v166
    %v6785 = vunpack.c.l.b16 %v167
    %v6786 = vunpack.c.l.b16 %v168
    %v6787 = vunpack.c.l.b16 %v169
    %v6788 = vunpack.c.l.b16 %v170
    %v6789 = vunpack.c.l.b16 %v171
    %v6790 = vunpack.c.l.b16 %v172
    %v6791 = vunpack.c.l.b16 %v173
    %v6792 = vunpack.c.l.b16 %v174
    %v6793 = vunpack.c.l.b16 %v175
    %v6794 = vunpack.c.l.b16 %v176
    %v6795 = vunpack.c.l.b16 %v177
    %v6796 = vunpack.c.l.b16 %v178
    %v6797 = vunpack.c.l.b16 %v179
    %v6798 = vunpack.c.l.b16 %v180
    %v6799 = vunpack.c.l.b16 %v181
    %v6800 = vunpack.c.l.b16 %v182
    %v6801 = vunpack.c.l.b16 %v183
    %v6802 = vunpack.c.l.b16 %v184
    %v6803 = vunpack.c.l.b16 %v185
    %v6804 = vunpack.c.l.b16 %v186
    %v6805 = vunpack.c.l.b16 %v187
    %v6806 = vunpack.c.l.b16 %v188
    %v6807 = vunpack.c.l.b16 %v189
    %v6808 = vunpack.c.l.b16 %v190
    %v6809 = vunpack.c.l.b16 %v191
    %v6810 = vunpack.c.l.b16 %v192
    %v6811 = vunpack.c.l.b16 %v193
    %v6812 = vpack.c.b16 %v6777, %v6776
    %v6813 = vpack.c.b16 %v6779, %v6778
    %v6814 = vpack.c.b16 %v6781, %v6780
    %v6815 = vpack.c.b16 %v6783, %v6782
    %v6816 = vpack.c.b16 %v6785, %v6784
    %v6817 = vpack.c.b16 %v6787, %v6786
    %v6818 = vpack.c.b16 %v6789, %v6788
    %v6819 = vpack.c.b16 %v6791, %v6790
    %v6820 = vpack.c.b16 %v6793, %v6792
    %v6821 = vpack.c.b16 %v6795, %v6794
    %v6822 = vpack.c.b16 %v6797, %v6796
    %v6823 = vpack.c.b16 %v6799, %v6798
    %v6824 = vpack.c.b16 %v6801, %v6800
    %v6825 = vpack.c.b16 %v6803, %v6802
    %v6826 = vpack.c.b16 %v6805, %v6804
    %v6827 = vpack.c.b16 %v6807, %v6806
    %v6828 = vpack.c.b16 %v6809, %v6808
    %v6829 = vpack.c.b16 %v6811, %v6810
    %v6848 = vmul.bf16 %v6722, %v6812
    %v6849 = vmul.bf16 %v6723, %v6813
    %v6850 = vmul.bf16 %v6724, %v6814
    %v6851 = vmul.bf16 %v6725, %v6815
    %v6852 = vmul.bf16 %v6726, %v6816
    %v6853 = vmul.bf16 %v6727, %v6817
    %v6854 = vmul.bf16 %v6728, %v6818
    %v6855 = vmul.bf16 %v6729, %v6819
    %v6856 = vmul.bf16 %v6730, %v6820
    %v6857 = vmul.bf16 %v6731, %v6821
    %v6858 = vmul.bf16 %v6732, %v6822
    %v6859 = vmul.bf16 %v6733, %v6823
    %v6860 = vmul.bf16 %v6734, %v6824
    %v6861 = vmul.bf16 %v6735, %v6825
    %v6862 = vmul.bf16 %v6736, %v6826
    %v6863 = vmul.bf16 %v6737, %v6827
    %v6864 = vmul.bf16 %v6738, %v6828
    %v6865 = vmul.bf16 %v6739, %v6829
    %v6874 = vunpack.c.l.b16 %v6650
    %v6875 = vunpack.c.h.b16 %v6650
    %v6876 = vunpack.c.l.b16 %v6651
    %v6877 = vunpack.c.l.b16 %v6652
    %v6878 = vunpack.c.h.b16 %v6652
    %v6879 = vunpack.c.l.b16 %v6653
    %v6880 = vunpack.c.l.b16 %v6654
    %v6881 = vunpack.c.h.b16 %v6654
    %v6882 = vunpack.c.l.b16 %v6655
    %v6883 = vunpack.c.l.b16 %v6656
    %v6884 = vunpack.c.h.b16 %v6656
    %v6885 = vunpack.c.l.b16 %v6657
    %v6886 = vpack.c.b16 %v6877, %v6874
    %v6887 = vpack.c.b16 %v6878, %v6875
    %v6888 = vpack.c.b16 %v6879, %v6876
    %v6889 = vpack.c.b16 %v6883, %v6880
    %v6890 = vpack.c.b16 %v6884, %v6881
    %v6891 = vpack.c.b16 %v6885, %v6882
    %vm6896 = vcmask 261120
    %v6898 = vsel %vm6896, %v6888, 0
    %v6901 = vsel %vm6896, %v6891, 0
    %6903 = vmatprep.subr.bf16.mxu0 0
    %6904 = vmatpush1.bf16.msra.mxu0 %v6848
    %6905 = vmatprep.subr.bf16.mxu0 0
    %6906 = vmatpush1.bf16.msra.mxu0 %v6849
    %6907 = vmatprep.subr.bf16.mxu0 0
    %6908 = vmatpush1.bf16.msra.mxu0 %v6850
    %6909 = vmatprep.subr.bf16.mxu0 0
    %6910 = vmatpush1.bf16.msra.mxu0 %v6851
    %6911 = vmatprep.subr.bf16.mxu0 0
    %6912 = vmatpush1.bf16.msra.mxu0 %v6852
    %6913 = vmatprep.subr.bf16.mxu0 0
    %6914 = vmatpush1.bf16.msra.mxu0 %v6853
    %6915 = vmatprep.subr.bf16.mxu0 0
    %6916 = vmatpush1.bf16.msra.mxu0 %v6854
    %6917 = vmatprep.subr.bf16.mxu0 0
    %6918 = vmatpush1.bf16.msra.mxu0 %v6855
    %6919 = vmatprep.subr.bf16.mxu0 0
    %6920 = vmatpush1.bf16.msra.mxu0 %v6856
    %6921 = vmatprep.subr.bf16.mxu0 0
    %6922 = vmatpush1.bf16.msra.mxu0 %v6857
    %6923 = vmatprep.subr.bf16.mxu0 0
    %6924 = vmatpush1.bf16.msra.mxu0 %v6858
    %6925 = vmatprep.subr.bf16.mxu0 0
    %6926 = vmatpush1.bf16.msra.mxu0 %v6859
    %6927 = vmatprep.subr.bf16.mxu0 0
    %6928 = vmatpush1.bf16.msra.mxu0 %v6860
    %6929 = vmatprep.subr.bf16.mxu0 0
    %6930 = vmatpush1.bf16.msra.mxu0 %v6861
    %6931 = vmatprep.subr.bf16.mxu0 0
    %6932 = vmatpush1.bf16.msra.mxu0 %v6862
    %6933 = vmatprep.subr.bf16.mxu0 0
    %6934 = vmatpush1.bf16.msra.mxu0 %v6863
    %6935 = vmatprep.mubr.bf16.mxu0 %v6887
    %6936 = vmatmul.mubr.bf16.gmra.mrb[0].mxu0 %v6886
    %v6937 = vpop.f32.mrb[0].mxu0
    %v6938 = vadd.f32 0.0, %v6937
    %v6939 = vpop.f32.mrb[0].mxu0
    %v6940 = vpop.f32.mrb[0].mxu0
    %v6941 = vadd.f32 0.0, %v6940
    %v6942 = vpop.f32.mrb[0].mxu0
    %6943 = vmatprep.mubr.bf16.mxu0 %v6890
    %6944 = vmatmul.mubr.bf16.gmra.mrb[0].mxu0 %v6889
    %v6945 = vpop.f32.mrb[0].mxu0
    %v6946 = vadd.f32 0.0, %v6945
    %v6947 = vpop.f32.mrb[0].mxu0
    %v6948 = vpop.f32.mrb[0].mxu0
    %v6949 = vadd.f32 0.0, %v6948
    %v6950 = vpop.f32.mrb[0].mxu0
    %6951 = vdwg.mxu0
    %6952 = vmatprep.subr.bf16.mxu0 0
    %6953 = vmatpush1.bf16.msra.mxu0 %v6864
    %6954 = vmatprep.subr.bf16.mxu0 0
    %6955 = vmatpush1.bf16.msra.mxu0 %v6865
    %6956 = vmatprep.subr.bf16.mxu0 0
    %6957 = vmatpush1.bf16.msra.mxu0 0
    %6958 = vmatprep.subr.bf16.mxu0 0
    %6959 = vmatpush1.bf16.msra.mxu0 0
    %6960 = vmatprep.subr.bf16.mxu0 0
    %6961 = vmatpush1.bf16.msra.mxu0 0
    %6962 = vmatprep.subr.bf16.mxu0 0
    %6963 = vmatpush1.bf16.msra.mxu0 0
    %6964 = vmatprep.subr.bf16.mxu0 0
    %6965 = vmatpush1.bf16.msra.mxu0 0
    %6966 = vmatprep.subr.bf16.mxu0 0
    %6967 = vmatpush1.bf16.msra.mxu0 0
    %6968 = vmatprep.subr.bf16.mxu0 0
    %6969 = vmatpush1.bf16.msra.mxu0 0
    %6970 = vmatprep.subr.bf16.mxu0 0
    %6971 = vmatpush1.bf16.msra.mxu0 0
    %6972 = vmatprep.subr.bf16.mxu0 0
    %6973 = vmatpush1.bf16.msra.mxu0 0
    %6974 = vmatprep.subr.bf16.mxu0 0
    %6975 = vmatpush1.bf16.msra.mxu0 0
    %6976 = vmatprep.subr.bf16.mxu0 0
    %6977 = vmatpush1.bf16.msra.mxu0 0
    %6978 = vmatprep.subr.bf16.mxu0 0
    %6979 = vmatpush1.bf16.msra.mxu0 0
    %6980 = vmatprep.subr.bf16.mxu0 0
    %6981 = vmatpush1.bf16.msra.mxu0 0
    %6982 = vmatprep.subr.bf16.mxu0 0
    %6983 = vmatpush1.bf16.msra.mxu0 0
    %6984 = vmatprep.mubr.bf16.mxu0 0
    %6985 = vmatmul.mubr.bf16.gmra.mrb[0].mxu0 %v6898
    %v6986 = vpop.f32.mrb[0].mxu0
    %v6987 = vadd.f32 %v6938, %v6986
    %v6988 = vpop.f32.mrb[0].mxu0
    %v6989 = vpop.f32.mrb[0].mxu0
    %v6990 = vadd.f32 %v6941, %v6989
    %v6991 = vpop.f32.mrb[0].mxu0
    %6992 = vmatprep.mubr.bf16.mxu0 0
    %6993 = vmatmul.mubr.bf16.gmra.mrb[0].mxu0 %v6901
    %v6994 = vpop.f32.mrb[0].mxu0
    %v6995 = vadd.f32 %v6946, %v6994
    %v6996 = vpop.f32.mrb[0].mxu0
    %v6997 = vpop.f32.mrb[0].mxu0
    %v6998 = vadd.f32 %v6949, %v6997
    %v6999 = vpop.f32.mrb[0].mxu0
    %7000 = vdwg.mxu0
    %7001 = vadd.xlane.f32.xlu0 %v6987
    %v7002 = vpop.xlane.xlu0 %7001
    %7003 = vadd.xlane.f32.xlu0 %v6990
    %v7004 = vpop.xlane.xlu0 %7003
    %7005 = vadd.xlane.f32.xlu0 %v6995
    %v7006 = vpop.xlane.xlu0 %7005
    %7007 = vadd.xlane.f32.xlu0 %v6998
    %v7008 = vpop.xlane.xlu0 %7007
    %v7009 = vmul.f32 %v7002, %v990
    %v7010 = vmul.f32 %v7004, %v990
    %v7011 = vmul.f32 %v7006, %v990
    %v7012 = vmul.f32 %v7008, %v990
    %v7013 = vsub.f32 %v6987, %v7009
    %v7014 = vsub.f32 %v6990, %v7010
    %v7015 = vsub.f32 %v6995, %v7011
    %v7016 = vsub.f32 %v6998, %v7012
    %v7017 = vmul.f32 %v7013, %v7013
    %v7018 = vmul.f32 %v7014, %v7014
    %v7019 = vmul.f32 %v7015, %v7015
    %v7020 = vmul.f32 %v7016, %v7016
    %7021 = vadd.xlane.f32.xlu0 %v7017
    %v7022 = vpop.xlane.xlu0 %7021
    %7023 = vadd.xlane.f32.xlu0 %v7018
    %v7024 = vpop.xlane.xlu0 %7023
    %7025 = vadd.xlane.f32.xlu0 %v7019
    %v7026 = vpop.xlane.xlu0 %7025
    %7027 = vadd.xlane.f32.xlu0 %v7020
    %v7028 = vpop.xlane.xlu0 %7027
    %v7029 = vmul.f32 %v7022, %v990
    %v7030 = vmul.f32 %v7024, %v990
    %v7031 = vmul.f32 %v7026, %v990
    %v7032 = vmul.f32 %v7028, %v990
    %v7033 = vadd.f32 %v7029, 1e-05
    %v7034 = vadd.f32 %v7030, 1e-05
    %v7035 = vadd.f32 %v7031, 1e-05
    %v7036 = vadd.f32 %v7032, 1e-05
    %v7037 = vrsqrt.pop %v7033
    %v7038 = vrsqrt.pop %v7034
    %v7039 = vrsqrt.pop %v7035
    %v7040 = vrsqrt.pop %v7036
    %v7041 = vmul.f32 %v210, %v7037
    %v7042 = vmul.f32 %v211, %v7038
    %v7043 = vmul.f32 %v212, %v7039
    %v7044 = vmul.f32 %v213, %v7040
    %7046 = vset.pattern.permute.xlu0 0
    %7047 = vperm.xlu0 %7046, %v7041
    %v7048 = vpop.permute.xlu0 %7047
    %7051 = vset.pattern.permute.xlu0 0
    %7052 = vperm.xlu0 %7051, %v7042
    %v7053 = vpop.permute.xlu0 %7052
    %7056 = vset.pattern.permute.xlu0 0
    %7057 = vperm.xlu0 %7056, %v7043
    %v7058 = vpop.permute.xlu0 %7057
    %7061 = vset.pattern.permute.xlu0 0
    %7062 = vperm.xlu0 %7061, %v7044
    %v7063 = vpop.permute.xlu0 %7062
    %v7065 = vmul.f32 %v7013, %v7048
    %v7066 = vmul.f32 %v7014, %v7053
    %v7067 = vmul.f32 %v7015, %v7058
    %v7068 = vmul.f32 %v7016, %v7063
    %7070 = vset.pattern.permute.xlu0 0
    %7071 = vperm.xlu0 %7070, %v214
    %v7072 = vpop.permute.xlu0 %7071
    %7075 = vset.pattern.permute.xlu0 0
    %7076 = vperm.xlu0 %7075, %v215
    %v7077 = vpop.permute.xlu0 %7076
    %7080 = vset.pattern.permute.xlu0 0
    %7081 = vperm.xlu0 %7080, %v216
    %v7082 = vpop.permute.xlu0 %7081
    %7085 = vset.pattern.permute.xlu0 0
    %7086 = vperm.xlu0 %7085, %v217
    %v7087 = vpop.permute.xlu0 %7086
    %v7089 = vadd.f32 %v7065, %v7072
    %v7090 = vadd.f32 %v7066, %v7077
    %v7091 = vadd.f32 %v7067, %v7082
    %v7092 = vadd.f32 %v7068, %v7087
    %v7093 = vmax.f32 %v7089, 0.0
    %v7094 = vmax.f32 %v7090, 0.0
    %v7095 = vmax.f32 %v7091, 0.0
    %v7096 = vmax.f32 %v7092, 0.0
    %s7097 = scalar_lea.vmem %s8, 48
    %v7098 = vld [vmem:[%s7097] sm:$0xff]
    %v7099 = vld [vmem:[%s7097 + $0x8] sm:$0xf]
    %v7100 = vld [vmem:[%s7097 + $0xc] sm:$0xff]
    %v7101 = vld [vmem:[%s7097 + $0x14] sm:$0xf]
    %v7102 = vld [vmem:[%s7097 + $0x18] sm:$0xff]
    %v7103 = vld [vmem:[%s7097 + $0x20] sm:$0xf]
    %v7104 = vld [vmem:[%s7097 + $0x24] sm:$0xff]
    %v7105 = vld [vmem:[%s7097 + $0x2c] sm:$0xf]
    %7106 = vrot.lane.b32.xlu0 %v7093, 9
    %v7107 = vpop.permute.xlu0 %7106
    %7108 = vrot.lane.b32.xlu0 %v7094, 9
    %v7109 = vpop.permute.xlu0 %7108
    %7110 = vrot.lane.b32.xlu0 %v7095, 9
    %v7111 = vpop.permute.xlu0 %7110
    %7112 = vrot.lane.b32.xlu0 %v7096, 9
    %v7113 = vpop.permute.xlu0 %7112
    %7114 = vrot.lane.b32.xlu0 %v7093, 8
    %v7115 = vpop.permute.xlu0 %7114
    %7116 = vrot.lane.b32.xlu0 %v7094, 8
    %v7117 = vpop.permute.xlu0 %7116
    %7118 = vrot.lane.b32.xlu0 %v7095, 8
    %v7119 = vpop.permute.xlu0 %7118
    %7120 = vrot.lane.b32.xlu0 %v7096, 8
    %v7121 = vpop.permute.xlu0 %7120
    %7122 = vrot.lane.b32.xlu0 %v7093, 7
    %v7123 = vpop.permute.xlu0 %7122
    %7124 = vrot.lane.b32.xlu0 %v7094, 7
    %v7125 = vpop.permute.xlu0 %7124
    %7126 = vrot.lane.b32.xlu0 %v7095, 7
    %v7127 = vpop.permute.xlu0 %7126
    %7128 = vrot.lane.b32.xlu0 %v7096, 7
    %v7129 = vpop.permute.xlu0 %7128
    %7130 = vrot.lane.b32.xlu0 %v7093, 1
    %v7131 = vpop.permute.xlu0 %7130
    %7132 = vrot.lane.b32.xlu0 %v7094, 1
    %v7133 = vpop.permute.xlu0 %7132
    %7134 = vrot.lane.b32.xlu0 %v7095, 1
    %v7135 = vpop.permute.xlu0 %7134
    %7136 = vrot.lane.b32.xlu0 %v7096, 1
    %v7137 = vpop.permute.xlu0 %7136
    %7138 = vrot.lane.b32.xlu0 %v7093, 127
    %v7139 = vpop.permute.xlu0 %7138
    %7140 = vrot.lane.b32.xlu0 %v7094, 127
    %v7141 = vpop.permute.xlu0 %7140
    %7142 = vrot.lane.b32.xlu0 %v7095, 127
    %v7143 = vpop.permute.xlu0 %7142
    %7144 = vrot.lane.b32.xlu0 %v7096, 127
    %v7145 = vpop.permute.xlu0 %7144
    %7146 = vrot.lane.b32.xlu0 %v7093, 121
    %v7147 = vpop.permute.xlu0 %7146
    %7148 = vrot.lane.b32.xlu0 %v7094, 121
    %v7149 = vpop.permute.xlu0 %7148
    %7150 = vrot.lane.b32.xlu0 %v7095, 121
    %v7151 = vpop.permute.xlu0 %7150
    %7152 = vrot.lane.b32.xlu0 %v7096, 121
    %v7153 = vpop.permute.xlu0 %7152
    %7154 = vrot.lane.b32.xlu0 %v7093, 120
    %v7155 = vpop.permute.xlu0 %7154
    %7156 = vrot.lane.b32.xlu0 %v7094, 120
    %v7157 = vpop.permute.xlu0 %7156
    %7158 = vrot.lane.b32.xlu0 %v7095, 120
    %v7159 = vpop.permute.xlu0 %7158
    %7160 = vrot.lane.b32.xlu0 %v7096, 120
    %v7161 = vpop.permute.xlu0 %7160
    %7162 = vrot.lane.b32.xlu0 %v7093, 119
    %v7163 = vpop.permute.xlu0 %7162
    %7164 = vrot.lane.b32.xlu0 %v7094, 119
    %v7165 = vpop.permute.xlu0 %7164
    %7166 = vrot.lane.b32.xlu0 %v7095, 119
    %v7167 = vpop.permute.xlu0 %7166
    %7168 = vrot.lane.b32.xlu0 %v7096, 119
    %v7169 = vpop.permute.xlu0 %7168
    %v7170 = vpack.c.bf16 %v7109, %v7107
    %v7171 = vpack.c.bf16 %v7113, %v7111
    %v7172 = vpack.c.bf16 %v7117, %v7115
    %v7173 = vpack.c.bf16 %v7121, %v7119
    %v7174 = vpack.c.bf16 %v7125, %v7123
    %v7175 = vpack.c.bf16 %v7129, %v7127
    %v7176 = vpack.c.bf16 %v7133, %v7131
    %v7177 = vpack.c.bf16 %v7137, %v7135
    %v7178 = vpack.c.bf16 %v7094, %v7093
    %v7179 = vpack.c.bf16 %v7096, %v7095
    %v7180 = vpack.c.bf16 %v7141, %v7139
    %v7181 = vpack.c.bf16 %v7145, %v7143
    %v7182 = vpack.c.bf16 %v7149, %v7147
    %v7183 = vpack.c.bf16 %v7153, %v7151
    %v7184 = vpack.c.bf16 %v7157, %v7155
    %v7185 = vpack.c.bf16 %v7161, %v7159
    %v7186 = vpack.c.bf16 %v7165, %v7163
    %v7187 = vpack.c.bf16 %v7169, %v7167
    %v7188 = vmul.bf16 %v7170, %v6812
    %v7189 = vmul.bf16 %v7171, %v6813
    %v7190 = vmul.bf16 %v7172, %v6814
    %v7191 = vmul.bf16 %v7173, %v6815
    %v7192 = vmul.bf16 %v7174, %v6816
    %v7193 = vmul.bf16 %v7175, %v6817
    %v7194 = vmul.bf16 %v7176, %v6818
    %v7195 = vmul.bf16 %v7177, %v6819
    %v7196 = vmul.bf16 %v7178, %v6820
    %v7197 = vmul.bf16 %v7179, %v6821
    %v7198 = vmul.bf16 %v7180, %v6822
    %v7199 = vmul.bf16 %v7181, %v6823
    %v7200 = vmul.bf16 %v7182, %v6824
    %v7201 = vmul.bf16 %v7183, %v6825
    %v7202 = vmul.bf16 %v7184, %v6826
    %v7203 = vmul.bf16 %v7185, %v6827
    %v7204 = vmul.bf16 %v7186, %v6828
    %v7205 = vmul.bf16 %v7187, %v6829
    %v7214 = vunpack.c.l.b16 %v7098
    %v7215 = vunpack.c.h.b16 %v7098
    %v7216 = vunpack.c.l.b16 %v7099
    %v7217 = vunpack.c.l.b16 %v7100
    %v7218 = vunpack.c.h.b16 %v7100
    %v7219 = vunpack.c.l.b16 %v7101
    %v7220 = vunpack.c.l.b16 %v7102
    %v7221 = vunpack.c.h.b16 %v7102
    %v7222 = vunpack.c.l.b16 %v7103
    %v7223 = vunpack.c.l.b16 %v7104
    %v7224 = vunpack.c.h.b16 %v7104
    %v7225 = vunpack.c.l.b16 %v7105
    %v7226 = vpack.c.b16 %v7217, %v7214
    %v7227 = vpack.c.b16 %v7218, %v7215
    %v7228 = vpack.c.b16 %v7219, %v7216
    %v7229 = vpack.c.b16 %v7223, %v7220
    %v7230 = vpack.c.b16 %v7224, %v7221
    %v7231 = vpack.c.b16 %v7225, %v7222
    %v7237 = vsel %vm6896, %v7228, 0
    %v7240 = vsel %vm6896, %v7231, 0
    %7242 = vmatprep.subr.bf16.mxu0 0
    %7243 = vmatpush1.bf16.msra.mxu0 %v7188
    %7244 = vmatprep.subr.bf16.mxu0 0
    %7245 = vmatpush1.bf16.msra.mxu0 %v7189
    %7246 = vmatprep.subr.bf16.mxu0 0
    %7247 = vmatpush1.bf16.msra.mxu0 %v7190
    %7248 = vmatprep.subr.bf16.mxu0 0
    %7249 = vmatpush1.bf16.msra.mxu0 %v7191
    %7250 = vmatprep.subr.bf16.mxu0 0
    %7251 = vmatpush1.bf16.msra.mxu0 %v7192
    %7252 = vmatprep.subr.bf16.mxu0 0
    %7253 = vmatpush1.bf16.msra.mxu0 %v7193
    %7254 = vmatprep.subr.bf16.mxu0 0
    %7255 = vmatpush1.bf16.msra.mxu0 %v7194
    %7256 = vmatprep.subr.bf16.mxu0 0
    %7257 = vmatpush1.bf16.msra.mxu0 %v7195
    %7258 = vmatprep.subr.bf16.mxu0 0
    %7259 = vmatpush1.bf16.msra.mxu0 %v7196
    %7260 = vmatprep.subr.bf16.mxu0 0
    %7261 = vmatpush1.bf16.msra.mxu0 %v7197
    %7262 = vmatprep.subr.bf16.mxu0 0
    %7263 = vmatpush1.bf16.msra.mxu0 %v7198
    %7264 = vmatprep.subr.bf16.mxu0 0
    %7265 = vmatpush1.bf16.msra.mxu0 %v7199
    %7266 = vmatprep.subr.bf16.mxu0 0
    %7267 = vmatpush1.bf16.msra.mxu0 %v7200
    %7268 = vmatprep.subr.bf16.mxu0 0
    %7269 = vmatpush1.bf16.msra.mxu0 %v7201
    %7270 = vmatprep.subr.bf16.mxu0 0
    %7271 = vmatpush1.bf16.msra.mxu0 %v7202
    %7272 = vmatprep.subr.bf16.mxu0 0
    %7273 = vmatpush1.bf16.msra.mxu0 %v7203
    %7274 = vmatprep.mubr.bf16.mxu0 %v7227
    %7275 = vmatmul.mubr.bf16.gmra.mrb[0].mxu0 %v7226
    %v7276 = vpop.f32.mrb[0].mxu0
    %v7277 = vadd.f32 0.0, %v7276
    %v7278 = vpop.f32.mrb[0].mxu0
    %v7279 = vpop.f32.mrb[0].mxu0
    %v7280 = vadd.f32 0.0, %v7279
    %v7281 = vpop.f32.mrb[0].mxu0
    %7282 = vmatprep.mubr.bf16.mxu0 %v7230
    %7283 = vmatmul.mubr.bf16.gmra.mrb[0].mxu0 %v7229
    %v7284 = vpop.f32.mrb[0].mxu0
    %v7285 = vadd.f32 0.0, %v7284
    %v7286 = vpop.f32.mrb[0].mxu0
    %v7287 = vpop.f32.mrb[0].mxu0
    %v7288 = vadd.f32 0.0, %v7287
    %v7289 = vpop.f32.mrb[0].mxu0
    %7290 = vdwg.mxu0
    %7291 = vmatprep.subr.bf16.mxu0 0
    %7292 = vmatpush1.bf16.msra.mxu0 %v7204
    %7293 = vmatprep.subr.bf16.mxu0 0
    %7294 = vmatpush1.bf16.msra.mxu0 %v7205
    %7295 = vmatprep.subr.bf16.mxu0 0
    %7296 = vmatpush1.bf16.msra.mxu0 0
    %7297 = vmatprep.subr.bf16.mxu0 0
    %7298 = vmatpush1.bf16.msra.mxu0 0
    %7299 = vmatprep.subr.bf16.mxu0 0
    %7300 = vmatpush1.bf16.msra.mxu0 0
    %7301 = vmatprep.subr.bf16.mxu0 0
    %7302 = vmatpush1.bf16.msra.mxu0 0
    %7303 = vmatprep.subr.bf16.mxu0 0
    %7304 = vmatpush1.bf16.msra.mxu0 0
    %7305 = vmatprep.subr.bf16.mxu0 0
    %7306 = vmatpush1.bf16.msra.mxu0 0
    %7307 = vmatprep.subr.bf16.mxu0 0
    %7308 = vmatpush1.bf16.msra.mxu0 0
    %7309 = vmatprep.subr.bf16.mxu0 0
    %7310 = vmatpush1.bf16.msra.mxu0 0
    %7311 = vmatprep.subr.bf16.mxu0 0
    %7312 = vmatpush1.bf16.msra.mxu0 0
    %7313 = vmatprep.subr.bf16.mxu0 0
    %7314 = vmatpush1.bf16.msra.mxu0 0
    %7315 = vmatprep.subr.bf16.mxu0 0
    %7316 = vmatpush1.bf16.msra.mxu0 0
    %7317 = vmatprep.subr.bf16.mxu0 0
    %7318 = vmatpush1.bf16.msra.mxu0 0
    %7319 = vmatprep.subr.bf16.mxu0 0
    %7320 = vmatpush1.bf16.msra.mxu0 0
    %7321 = vmatprep.subr.bf16.mxu0 0
    %7322 = vmatpush1.bf16.msra.mxu0 0
    %7323 = vmatprep.mubr.bf16.mxu0 0
    %7324 = vmatmul.mubr.bf16.gmra.mrb[0].mxu0 %v7237
    %v7325 = vpop.f32.mrb[0].mxu0
    %v7326 = vadd.f32 %v7277, %v7325
    %v7327 = vpop.f32.mrb[0].mxu0
    %v7328 = vpop.f32.mrb[0].mxu0
    %v7329 = vadd.f32 %v7280, %v7328
    %v7330 = vpop.f32.mrb[0].mxu0
    %7331 = vmatprep.mubr.bf16.mxu0 0
    %7332 = vmatmul.mubr.bf16.gmra.mrb[0].mxu0 %v7240
    %v7333 = vpop.f32.mrb[0].mxu0
    %v7334 = vadd.f32 %v7285, %v7333
    %v7335 = vpop.f32.mrb[0].mxu0
    %v7336 = vpop.f32.mrb[0].mxu0
    %v7337 = vadd.f32 %v7288, %v7336
    %v7338 = vpop.f32.mrb[0].mxu0
    %7339 = vdwg.mxu0
    %7340 = vadd.xlane.f32.xlu0 %v7326
    %v7341 = vpop.xlane.xlu0 %7340
    %7342 = vadd.xlane.f32.xlu0 %v7329
    %v7343 = vpop.xlane.xlu0 %7342
    %7344 = vadd.xlane.f32.xlu0 %v7334
    %v7345 = vpop.xlane.xlu0 %7344
    %7346 = vadd.xlane.f32.xlu0 %v7337
    %v7347 = vpop.xlane.xlu0 %7346
    %v7348 = vmul.f32 %v7341, %v990
    %v7349 = vmul.f32 %v7343, %v990
    %v7350 = vmul.f32 %v7345, %v990
    %v7351 = vmul.f32 %v7347, %v990
    %v7352 = vsub.f32 %v7326, %v7348
    %v7353 = vsub.f32 %v7329, %v7349
    %v7354 = vsub.f32 %v7334, %v7350
    %v7355 = vsub.f32 %v7337, %v7351
    %v7356 = vmul.f32 %v7352, %v7352
    %v7357 = vmul.f32 %v7353, %v7353
    %v7358 = vmul.f32 %v7354, %v7354
    %v7359 = vmul.f32 %v7355, %v7355
    %7360 = vadd.xlane.f32.xlu0 %v7356
    %v7361 = vpop.xlane.xlu0 %7360
    %7362 = vadd.xlane.f32.xlu0 %v7357
    %v7363 = vpop.xlane.xlu0 %7362
    %7364 = vadd.xlane.f32.xlu0 %v7358
    %v7365 = vpop.xlane.xlu0 %7364
    %7366 = vadd.xlane.f32.xlu0 %v7359
    %v7367 = vpop.xlane.xlu0 %7366
    %v7368 = vmul.f32 %v7361, %v990
    %v7369 = vmul.f32 %v7363, %v990
    %v7370 = vmul.f32 %v7365, %v990
    %v7371 = vmul.f32 %v7367, %v990
    %v7372 = vadd.f32 %v7368, 1e-05
    %v7373 = vadd.f32 %v7369, 1e-05
    %v7374 = vadd.f32 %v7370, 1e-05
    %v7375 = vadd.f32 %v7371, 1e-05
    %v7376 = vrsqrt.pop %v7372
    %v7377 = vrsqrt.pop %v7373
    %v7378 = vrsqrt.pop %v7374
    %v7379 = vrsqrt.pop %v7375
    %v7380 = vmul.f32 %v210, %v7376
    %v7381 = vmul.f32 %v211, %v7377
    %v7382 = vmul.f32 %v212, %v7378
    %v7383 = vmul.f32 %v213, %v7379
    %7385 = vset.pattern.permute.xlu0 1
    %7386 = vperm.xlu0 %7385, %v7380
    %v7387 = vpop.permute.xlu0 %7386
    %7390 = vset.pattern.permute.xlu0 1
    %7391 = vperm.xlu0 %7390, %v7381
    %v7392 = vpop.permute.xlu0 %7391
    %7395 = vset.pattern.permute.xlu0 1
    %7396 = vperm.xlu0 %7395, %v7382
    %v7397 = vpop.permute.xlu0 %7396
    %7400 = vset.pattern.permute.xlu0 1
    %7401 = vperm.xlu0 %7400, %v7383
    %v7402 = vpop.permute.xlu0 %7401
    %v7404 = vmul.f32 %v7352, %v7387
    %v7405 = vmul.f32 %v7353, %v7392
    %v7406 = vmul.f32 %v7354, %v7397
    %v7407 = vmul.f32 %v7355, %v7402
    %7408 = vset.pattern.permute.xlu0 1
    %7409 = vperm.xlu0 %7408, %v214
    %v7410 = vpop.permute.xlu0 %7409
    %7412 = vset.pattern.permute.xlu0 1
    %7413 = vperm.xlu0 %7412, %v215
    %v7414 = vpop.permute.xlu0 %7413
    %7416 = vset.pattern.permute.xlu0 1
    %7417 = vperm.xlu0 %7416, %v216
    %v7418 = vpop.permute.xlu0 %7417
    %7420 = vset.pattern.permute.xlu0 1
    %7421 = vperm.xlu0 %7420, %v217
    %v7422 = vpop.permute.xlu0 %7421
    %v7424 = vadd.f32 %v7404, %v7410
    %v7425 = vadd.f32 %v7405, %v7414
    %v7426 = vadd.f32 %v7406, %v7418
    %v7427 = vadd.f32 %v7407, %v7422
    %v7428 = vadd.f32 %v7424, %v6636
    %v7429 = vadd.f32 %v7425, %v6639
    %v7430 = vadd.f32 %v7426, %v6644
    %v7431 = vadd.f32 %v7427, %v6647
    %v7432 = vmax.f32 %v7428, 0.0
    %v7433 = vmax.f32 %v7429, 0.0
    %v7434 = vmax.f32 %v7430, 0.0
    %v7435 = vmax.f32 %v7431, 0.0
    %s7436 = scalar_lea.vmem %s8, 96
    %v7437 = vld [vmem:[%s7436] sm:$0xff]
    %v7438 = vld [vmem:[%s7436 + $0x8] sm:$0xf]
    %v7439 = vld [vmem:[%s7436 + $0xc] sm:$0xff]
    %v7440 = vld [vmem:[%s7436 + $0x14] sm:$0xf]
    %v7441 = vld [vmem:[%s7436 + $0x18] sm:$0xff]
    %v7442 = vld [vmem:[%s7436 + $0x20] sm:$0xf]
    %v7443 = vld [vmem:[%s7436 + $0x24] sm:$0xff]
    %v7444 = vld [vmem:[%s7436 + $0x2c] sm:$0xf]
    %7445 = vrot.lane.b32.xlu0 %v7432, 9
    %v7446 = vpop.permute.xlu0 %7445
    %7447 = vrot.lane.b32.xlu0 %v7433, 9
    %v7448 = vpop.permute.xlu0 %7447
    %7449 = vrot.lane.b32.xlu0 %v7434, 9
    %v7450 = vpop.permute.xlu0 %7449
    %7451 = vrot.lane.b32.xlu0 %v7435, 9
    %v7452 = vpop.permute.xlu0 %7451
    %7453 = vrot.lane.b32.xlu0 %v7432, 8
    %v7454 = vpop.permute.xlu0 %7453
    %7455 = vrot.lane.b32.xlu0 %v7433, 8
    %v7456 = vpop.permute.xlu0 %7455
    %7457 = vrot.lane.b32.xlu0 %v7434, 8
    %v7458 = vpop.permute.xlu0 %7457
    %7459 = vrot.lane.b32.xlu0 %v7435, 8
    %v7460 = vpop.permute.xlu0 %7459
    %7461 = vrot.lane.b32.xlu0 %v7432, 7
    %v7462 = vpop.permute.xlu0 %7461
    %7463 = vrot.lane.b32.xlu0 %v7433, 7
    %v7464 = vpop.permute.xlu0 %7463
    %7465 = vrot.lane.b32.xlu0 %v7434, 7
    %v7466 = vpop.permute.xlu0 %7465
    %7467 = vrot.lane.b32.xlu0 %v7435, 7
    %v7468 = vpop.permute.xlu0 %7467
    %7469 = vrot.lane.b32.xlu0 %v7432, 1
    %v7470 = vpop.permute.xlu0 %7469
    %7471 = vrot.lane.b32.xlu0 %v7433, 1
    %v7472 = vpop.permute.xlu0 %7471
    %7473 = vrot.lane.b32.xlu0 %v7434, 1
    %v7474 = vpop.permute.xlu0 %7473
    %7475 = vrot.lane.b32.xlu0 %v7435, 1
    %v7476 = vpop.permute.xlu0 %7475
    %7477 = vrot.lane.b32.xlu0 %v7432, 127
    %v7478 = vpop.permute.xlu0 %7477
    %7479 = vrot.lane.b32.xlu0 %v7433, 127
    %v7480 = vpop.permute.xlu0 %7479
    %7481 = vrot.lane.b32.xlu0 %v7434, 127
    %v7482 = vpop.permute.xlu0 %7481
    %7483 = vrot.lane.b32.xlu0 %v7435, 127
    %v7484 = vpop.permute.xlu0 %7483
    %7485 = vrot.lane.b32.xlu0 %v7432, 121
    %v7486 = vpop.permute.xlu0 %7485
    %7487 = vrot.lane.b32.xlu0 %v7433, 121
    %v7488 = vpop.permute.xlu0 %7487
    %7489 = vrot.lane.b32.xlu0 %v7434, 121
    %v7490 = vpop.permute.xlu0 %7489
    %7491 = vrot.lane.b32.xlu0 %v7435, 121
    %v7492 = vpop.permute.xlu0 %7491
    %7493 = vrot.lane.b32.xlu0 %v7432, 120
    %v7494 = vpop.permute.xlu0 %7493
    %7495 = vrot.lane.b32.xlu0 %v7433, 120
    %v7496 = vpop.permute.xlu0 %7495
    %7497 = vrot.lane.b32.xlu0 %v7434, 120
    %v7498 = vpop.permute.xlu0 %7497
    %7499 = vrot.lane.b32.xlu0 %v7435, 120
    %v7500 = vpop.permute.xlu0 %7499
    %7501 = vrot.lane.b32.xlu0 %v7432, 119
    %v7502 = vpop.permute.xlu0 %7501
    %7503 = vrot.lane.b32.xlu0 %v7433, 119
    %v7504 = vpop.permute.xlu0 %7503
    %7505 = vrot.lane.b32.xlu0 %v7434, 119
    %v7506 = vpop.permute.xlu0 %7505
    %7507 = vrot.lane.b32.xlu0 %v7435, 119
    %v7508 = vpop.permute.xlu0 %7507
    %v7509 = vpack.c.bf16 %v7448, %v7446
    %v7510 = vpack.c.bf16 %v7452, %v7450
    %v7511 = vpack.c.bf16 %v7456, %v7454
    %v7512 = vpack.c.bf16 %v7460, %v7458
    %v7513 = vpack.c.bf16 %v7464, %v7462
    %v7514 = vpack.c.bf16 %v7468, %v7466
    %v7515 = vpack.c.bf16 %v7472, %v7470
    %v7516 = vpack.c.bf16 %v7476, %v7474
    %v7517 = vpack.c.bf16 %v7433, %v7432
    %v7518 = vpack.c.bf16 %v7435, %v7434
    %v7519 = vpack.c.bf16 %v7480, %v7478
    %v7520 = vpack.c.bf16 %v7484, %v7482
    %v7521 = vpack.c.bf16 %v7488, %v7486
    %v7522 = vpack.c.bf16 %v7492, %v7490
    %v7523 = vpack.c.bf16 %v7496, %v7494
    %v7524 = vpack.c.bf16 %v7500, %v7498
    %v7525 = vpack.c.bf16 %v7504, %v7502
    %v7526 = vpack.c.bf16 %v7508, %v7506
    %v7527 = vmul.bf16 %v7509, %v6812
    %v7528 = vmul.bf16 %v7510, %v6813
    %v7529 = vmul.bf16 %v7511, %v6814
    %v7530 = vmul.bf16 %v7512, %v6815
    %v7531 = vmul.bf16 %v7513, %v6816
    %v7532 = vmul.bf16 %v7514, %v6817
    %v7533 = vmul.bf16 %v7515, %v6818
    %v7534 = vmul.bf16 %v7516, %v6819
    %v7535 = vmul.bf16 %v7517, %v6820
    %v7536 = vmul.bf16 %v7518, %v6821
    %v7537 = vmul.bf16 %v7519, %v6822
    %v7538 = vmul.bf16 %v7520, %v6823
    %v7539 = vmul.bf16 %v7521, %v6824
    %v7540 = vmul.bf16 %v7522, %v6825
    %v7541 = vmul.bf16 %v7523, %v6826
    %v7542 = vmul.bf16 %v7524, %v6827
    %v7543 = vmul.bf16 %v7525, %v6828
    %v7544 = vmul.bf16 %v7526, %v6829
    %v7553 = vunpack.c.l.b16 %v7437
    %v7554 = vunpack.c.h.b16 %v7437
    %v7555 = vunpack.c.l.b16 %v7438
    %v7556 = vunpack.c.l.b16 %v7439
    %v7557 = vunpack.c.h.b16 %v7439
    %v7558 = vunpack.c.l.b16 %v7440
    %v7559 = vunpack.c.l.b16 %v7441
    %v7560 = vunpack.c.h.b16 %v7441
    %v7561 = vunpack.c.l.b16 %v7442
    %v7562 = vunpack.c.l.b16 %v7443
    %v7563 = vunpack.c.h.b16 %v7443
    %v7564 = vunpack.c.l.b16 %v7444
    %v7565 = vpack.c.b16 %v7556, %v7553
    %v7566 = vpack.c.b16 %v7557, %v7554
    %v7567 = vpack.c.b16 %v7558, %v7555
    %v7568 = vpack.c.b16 %v7562, %v7559
    %v7569 = vpack.c.b16 %v7563, %v7560
    %v7570 = vpack.c.b16 %v7564, %v7561
    %v7576 = vsel %vm6896, %v7567, 0
    %v7579 = vsel %vm6896, %v7570, 0
    %7581 = vmatprep.subr.bf16.mxu0 0
    %7582 = vmatpush1.bf16.msra.mxu0 %v7527
    %7583 = vmatprep.subr.bf16.mxu0 0
    %7584 = vmatpush1.bf16.msra.mxu0 %v7528
    %7585 = vmatprep.subr.bf16.mxu0 0
    %7586 = vmatpush1.bf16.msra.mxu0 %v7529
    %7587 = vmatprep.subr.bf16.mxu0 0
    %7588 = vmatpush1.bf16.msra.mxu0 %v7530
    %7589 = vmatprep.subr.bf16.mxu0 0
    %7590 = vmatpush1.bf16.msra.mxu0 %v7531
    %7591 = vmatprep.subr.bf16.mxu0 0
    %7592 = vmatpush1.bf16.msra.mxu0 %v7532
    %7593 = vmatprep.subr.bf16.mxu0 0
    %7594 = vmatpush1.bf16.msra.mxu0 %v7533
    %7595 = vmatprep.subr.bf16.mxu0 0
    %7596 = vmatpush1.bf16.msra.mxu0 %v7534
    %7597 = vmatprep.subr.bf16.mxu0 0
    %7598 = vmatpush1.bf16.msra.mxu0 %v7535
    %7599 = vmatprep.subr.bf16.mxu0 0
    %7600 = vmatpush1.bf16.msra.mxu0 %v7536
    %7601 = vmatprep.subr.bf16.mxu0 0
    %7602 = vmatpush1.bf16.msra.mxu0 %v7537
    %7603 = vmatprep.subr.bf16.mxu0 0
    %7604 = vmatpush1.bf16.msra.mxu0 %v7538
    %7605 = vmatprep.subr.bf16.mxu0 0
    %7606 = vmatpush1.bf16.msra.mxu0 %v7539
    %7607 = vmatprep.subr.bf16.mxu0 0
    %7608 = vmatpush1.bf16.msra.mxu0 %v7540
    %7609 = vmatprep.subr.bf16.mxu0 0
    %7610 = vmatpush1.bf16.msra.mxu0 %v7541
    %7611 = vmatprep.subr.bf16.mxu0 0
    %7612 = vmatpush1.bf16.msra.mxu0 %v7542
    %7613 = vmatprep.mubr.bf16.mxu0 %v7566
    %7614 = vmatmul.mubr.bf16.gmra.mrb[0].mxu0 %v7565
    %v7615 = vpop.f32.mrb[0].mxu0
    %v7616 = vadd.f32 0.0, %v7615
    %v7617 = vpop.f32.mrb[0].mxu0
    %v7618 = vpop.f32.mrb[0].mxu0
    %v7619 = vadd.f32 0.0, %v7618
    %v7620 = vpop.f32.mrb[0].mxu0
    %7621 = vmatprep.mubr.bf16.mxu0 %v7569
    %7622 = vmatmul.mubr.bf16.gmra.mrb[0].mxu0 %v7568
    %v7623 = vpop.f32.mrb[0].mxu0
    %v7624 = vadd.f32 0.0, %v7623
    %v7625 = vpop.f32.mrb[0].mxu0
    %v7626 = vpop.f32.mrb[0].mxu0
    %v7627 = vadd.f32 0.0, %v7626
    %v7628 = vpop.f32.mrb[0].mxu0
    %7629 = vdwg.mxu0
    %7630 = vmatprep.subr.bf16.mxu0 0
    %7631 = vmatpush1.bf16.msra.mxu0 %v7543
    %7632 = vmatprep.subr.bf16.mxu0 0
    %7633 = vmatpush1.bf16.msra.mxu0 %v7544
    %7634 = vmatprep.subr.bf16.mxu0 0
    %7635 = vmatpush1.bf16.msra.mxu0 0
    %7636 = vmatprep.subr.bf16.mxu0 0
    %7637 = vmatpush1.bf16.msra.mxu0 0
    %7638 = vmatprep.subr.bf16.mxu0 0
    %7639 = vmatpush1.bf16.msra.mxu0 0
    %7640 = vmatprep.subr.bf16.mxu0 0
    %7641 = vmatpush1.bf16.msra.mxu0 0
    %7642 = vmatprep.subr.bf16.mxu0 0
    %7643 = vmatpush1.bf16.msra.mxu0 0
    %7644 = vmatprep.subr.bf16.mxu0 0
    %7645 = vmatpush1.bf16.msra.mxu0 0
    %7646 = vmatprep.subr.bf16.mxu0 0
    %7647 = vmatpush1.bf16.msra.mxu0 0
    %7648 = vmatprep.subr.bf16.mxu0 0
    %7649 = vmatpush1.bf16.msra.mxu0 0
    %7650 = vmatprep.subr.bf16.mxu0 0
    %7651 = vmatpush1.bf16.msra.mxu0 0
    %7652 = vmatprep.subr.bf16.mxu0 0
    %7653 = vmatpush1.bf16.msra.mxu0 0
    %7654 = vmatprep.subr.bf16.mxu0 0
    %7655 = vmatpush1.bf16.msra.mxu0 0
    %7656 = vmatprep.subr.bf16.mxu0 0
    %7657 = vmatpush1.bf16.msra.mxu0 0
    %7658 = vmatprep.subr.bf16.mxu0 0
    %7659 = vmatpush1.bf16.msra.mxu0 0
    %7660 = vmatprep.subr.bf16.mxu0 0
    %7661 = vmatpush1.bf16.msra.mxu0 0
    %7662 = vmatprep.mubr.bf16.mxu0 0
    %7663 = vmatmul.mubr.bf16.gmra.mrb[0].mxu0 %v7576
    %v7664 = vpop.f32.mrb[0].mxu0
    %v7665 = vadd.f32 %v7616, %v7664
    %v7666 = vpop.f32.mrb[0].mxu0
    %v7667 = vpop.f32.mrb[0].mxu0
    %v7668 = vadd.f32 %v7619, %v7667
    %v7669 = vpop.f32.mrb[0].mxu0
    %7670 = vmatprep.mubr.bf16.mxu0 0
    %7671 = vmatmul.mubr.bf16.gmra.mrb[0].mxu0 %v7579
    %v7672 = vpop.f32.mrb[0].mxu0
    %v7673 = vadd.f32 %v7624, %v7672
    %v7674 = vpop.f32.mrb[0].mxu0
    %v7675 = vpop.f32.mrb[0].mxu0
    %v7676 = vadd.f32 %v7627, %v7675
    %v7677 = vpop.f32.mrb[0].mxu0
    %7678 = vdwg.mxu0
    %7679 = vadd.xlane.f32.xlu0 %v7665
    %v7680 = vpop.xlane.xlu0 %7679
    %7681 = vadd.xlane.f32.xlu0 %v7668
    %v7682 = vpop.xlane.xlu0 %7681
    %7683 = vadd.xlane.f32.xlu0 %v7673
    %v7684 = vpop.xlane.xlu0 %7683
    %7685 = vadd.xlane.f32.xlu0 %v7676
    %v7686 = vpop.xlane.xlu0 %7685
    %v7687 = vmul.f32 %v7680, %v990
    %v7688 = vmul.f32 %v7682, %v990
    %v7689 = vmul.f32 %v7684, %v990
    %v7690 = vmul.f32 %v7686, %v990
    %v7691 = vsub.f32 %v7665, %v7687
    %v7692 = vsub.f32 %v7668, %v7688
    %v7693 = vsub.f32 %v7673, %v7689
    %v7694 = vsub.f32 %v7676, %v7690
    %v7695 = vmul.f32 %v7691, %v7691
    %v7696 = vmul.f32 %v7692, %v7692
    %v7697 = vmul.f32 %v7693, %v7693
    %v7698 = vmul.f32 %v7694, %v7694
    %7699 = vadd.xlane.f32.xlu0 %v7695
    %v7700 = vpop.xlane.xlu0 %7699
    %7701 = vadd.xlane.f32.xlu0 %v7696
    %v7702 = vpop.xlane.xlu0 %7701
    %7703 = vadd.xlane.f32.xlu0 %v7697
    %v7704 = vpop.xlane.xlu0 %7703
    %7705 = vadd.xlane.f32.xlu0 %v7698
    %v7706 = vpop.xlane.xlu0 %7705
    %v7707 = vmul.f32 %v7700, %v990
    %v7708 = vmul.f32 %v7702, %v990
    %v7709 = vmul.f32 %v7704, %v990
    %v7710 = vmul.f32 %v7706, %v990
    %v7711 = vadd.f32 %v7707, 1e-05
    %v7712 = vadd.f32 %v7708, 1e-05
    %v7713 = vadd.f32 %v7709, 1e-05
    %v7714 = vadd.f32 %v7710, 1e-05
    %v7715 = vrsqrt.pop %v7711
    %v7716 = vrsqrt.pop %v7712
    %v7717 = vrsqrt.pop %v7713
    %v7718 = vrsqrt.pop %v7714
    %v7719 = vmul.f32 %v210, %v7715
    %v7720 = vmul.f32 %v211, %v7716
    %v7721 = vmul.f32 %v212, %v7717
    %v7722 = vmul.f32 %v213, %v7718
    %7724 = vset.pattern.permute.xlu0 2
    %7725 = vperm.xlu0 %7724, %v7719
    %v7726 = vpop.permute.xlu0 %7725
    %7729 = vset.pattern.permute.xlu0 2
    %7730 = vperm.xlu0 %7729, %v7720
    %v7731 = vpop.permute.xlu0 %7730
    %7734 = vset.pattern.permute.xlu0 2
    %7735 = vperm.xlu0 %7734, %v7721
    %v7736 = vpop.permute.xlu0 %7735
    %7739 = vset.pattern.permute.xlu0 2
    %7740 = vperm.xlu0 %7739, %v7722
    %v7741 = vpop.permute.xlu0 %7740
    %v7743 = vmul.f32 %v7691, %v7726
    %v7744 = vmul.f32 %v7692, %v7731
    %v7745 = vmul.f32 %v7693, %v7736
    %v7746 = vmul.f32 %v7694, %v7741
    %7747 = vset.pattern.permute.xlu0 2
    %7748 = vperm.xlu0 %7747, %v214
    %v7749 = vpop.permute.xlu0 %7748
    %7751 = vset.pattern.permute.xlu0 2
    %7752 = vperm.xlu0 %7751, %v215
    %v7753 = vpop.permute.xlu0 %7752
    %7755 = vset.pattern.permute.xlu0 2
    %7756 = vperm.xlu0 %7755, %v216
    %v7757 = vpop.permute.xlu0 %7756
    %7759 = vset.pattern.permute.xlu0 2
    %7760 = vperm.xlu0 %7759, %v217
    %v7761 = vpop.permute.xlu0 %7760
    %v7763 = vadd.f32 %v7743, %v7749
    %v7764 = vadd.f32 %v7744, %v7753
    %v7765 = vadd.f32 %v7745, %v7757
    %v7766 = vadd.f32 %v7746, %v7761
    %v7767 = vmax.f32 %v7763, 0.0
    %v7768 = vmax.f32 %v7764, 0.0
    %v7769 = vmax.f32 %v7765, 0.0
    %v7770 = vmax.f32 %v7766, 0.0
    %s7771 = scalar_lea.vmem %s8, 144
    %v7772 = vld [vmem:[%s7771] sm:$0xff]
    %v7773 = vld [vmem:[%s7771 + $0x8] sm:$0xf]
    %v7774 = vld [vmem:[%s7771 + $0xc] sm:$0xff]
    %v7775 = vld [vmem:[%s7771 + $0x14] sm:$0xf]
    %v7776 = vld [vmem:[%s7771 + $0x18] sm:$0xff]
    %v7777 = vld [vmem:[%s7771 + $0x20] sm:$0xf]
    %v7778 = vld [vmem:[%s7771 + $0x24] sm:$0xff]
    %v7779 = vld [vmem:[%s7771 + $0x2c] sm:$0xf]
    %7780 = vrot.lane.b32.xlu0 %v7767, 9
    %v7781 = vpop.permute.xlu0 %7780
    %7782 = vrot.lane.b32.xlu0 %v7768, 9
    %v7783 = vpop.permute.xlu0 %7782
    %7784 = vrot.lane.b32.xlu0 %v7769, 9
    %v7785 = vpop.permute.xlu0 %7784
    %7786 = vrot.lane.b32.xlu0 %v7770, 9
    %v7787 = vpop.permute.xlu0 %7786
    %7788 = vrot.lane.b32.xlu0 %v7767, 8
    %v7789 = vpop.permute.xlu0 %7788
    %7790 = vrot.lane.b32.xlu0 %v7768, 8
    %v7791 = vpop.permute.xlu0 %7790
    %7792 = vrot.lane.b32.xlu0 %v7769, 8
    %v7793 = vpop.permute.xlu0 %7792
    %7794 = vrot.lane.b32.xlu0 %v7770, 8
    %v7795 = vpop.permute.xlu0 %7794
    %7796 = vrot.lane.b32.xlu0 %v7767, 7
    %v7797 = vpop.permute.xlu0 %7796
    %7798 = vrot.lane.b32.xlu0 %v7768, 7
    %v7799 = vpop.permute.xlu0 %7798
    %7800 = vrot.lane.b32.xlu0 %v7769, 7
    %v7801 = vpop.permute.xlu0 %7800
    %7802 = vrot.lane.b32.xlu0 %v7770, 7
    %v7803 = vpop.permute.xlu0 %7802
    %7804 = vrot.lane.b32.xlu0 %v7767, 1
    %v7805 = vpop.permute.xlu0 %7804
    %7806 = vrot.lane.b32.xlu0 %v7768, 1
    %v7807 = vpop.permute.xlu0 %7806
    %7808 = vrot.lane.b32.xlu0 %v7769, 1
    %v7809 = vpop.permute.xlu0 %7808
    %7810 = vrot.lane.b32.xlu0 %v7770, 1
    %v7811 = vpop.permute.xlu0 %7810
    %7812 = vrot.lane.b32.xlu0 %v7767, 127
    %v7813 = vpop.permute.xlu0 %7812
    %7814 = vrot.lane.b32.xlu0 %v7768, 127
    %v7815 = vpop.permute.xlu0 %7814
    %7816 = vrot.lane.b32.xlu0 %v7769, 127
    %v7817 = vpop.permute.xlu0 %7816
    %7818 = vrot.lane.b32.xlu0 %v7770, 127
    %v7819 = vpop.permute.xlu0 %7818
    %7820 = vrot.lane.b32.xlu0 %v7767, 121
    %v7821 = vpop.permute.xlu0 %7820
    %7822 = vrot.lane.b32.xlu0 %v7768, 121
    %v7823 = vpop.permute.xlu0 %7822
    %7824 = vrot.lane.b32.xlu0 %v7769, 121
    %v7825 = vpop.permute.xlu0 %7824
    %7826 = vrot.lane.b32.xlu0 %v7770, 121
    %v7827 = vpop.permute.xlu0 %7826
    %7828 = vrot.lane.b32.xlu0 %v7767, 120
    %v7829 = vpop.permute.xlu0 %7828
    %7830 = vrot.lane.b32.xlu0 %v7768, 120
    %v7831 = vpop.permute.xlu0 %7830
    %7832 = vrot.lane.b32.xlu0 %v7769, 120
    %v7833 = vpop.permute.xlu0 %7832
    %7834 = vrot.lane.b32.xlu0 %v7770, 120
    %v7835 = vpop.permute.xlu0 %7834
    %7836 = vrot.lane.b32.xlu0 %v7767, 119
    %v7837 = vpop.permute.xlu0 %7836
    %7838 = vrot.lane.b32.xlu0 %v7768, 119
    %v7839 = vpop.permute.xlu0 %7838
    %7840 = vrot.lane.b32.xlu0 %v7769, 119
    %v7841 = vpop.permute.xlu0 %7840
    %7842 = vrot.lane.b32.xlu0 %v7770, 119
    %v7843 = vpop.permute.xlu0 %7842
    %v7844 = vpack.c.bf16 %v7783, %v7781
    %v7845 = vpack.c.bf16 %v7787, %v7785
    %v7846 = vpack.c.bf16 %v7791, %v7789
    %v7847 = vpack.c.bf16 %v7795, %v7793
    %v7848 = vpack.c.bf16 %v7799, %v7797
    %v7849 = vpack.c.bf16 %v7803, %v7801
    %v7850 = vpack.c.bf16 %v7807, %v7805
    %v7851 = vpack.c.bf16 %v7811, %v7809
    %v7852 = vpack.c.bf16 %v7768, %v7767
    %v7853 = vpack.c.bf16 %v7770, %v7769
    %v7854 = vpack.c.bf16 %v7815, %v7813
    %v7855 = vpack.c.bf16 %v7819, %v7817
    %v7856 = vpack.c.bf16 %v7823, %v7821
    %v7857 = vpack.c.bf16 %v7827, %v7825
    %v7858 = vpack.c.bf16 %v7831, %v7829
    %v7859 = vpack.c.bf16 %v7835, %v7833
    %v7860 = vpack.c.bf16 %v7839, %v7837
    %v7861 = vpack.c.bf16 %v7843, %v7841
    %v7862 = vmul.bf16 %v7844, %v6812
    %v7863 = vmul.bf16 %v7845, %v6813
    %v7864 = vmul.bf16 %v7846, %v6814
    %v7865 = vmul.bf16 %v7847, %v6815
    %v7866 = vmul.bf16 %v7848, %v6816
    %v7867 = vmul.bf16 %v7849, %v6817
    %v7868 = vmul.bf16 %v7850, %v6818
    %v7869 = vmul.bf16 %v7851, %v6819
    %v7870 = vmul.bf16 %v7852, %v6820
    %v7871 = vmul.bf16 %v7853, %v6821
    %v7872 = vmul.bf16 %v7854, %v6822
    %v7873 = vmul.bf16 %v7855, %v6823
    %v7874 = vmul.bf16 %v7856, %v6824
    %v7875 = vmul.bf16 %v7857, %v6825
    %v7876 = vmul.bf16 %v7858, %v6826
    %v7877 = vmul.bf16 %v7859, %v6827
    %v7878 = vmul.bf16 %v7860, %v6828
    %v7879 = vmul.bf16 %v7861, %v6829
    %v7888 = vunpack.c.l.b16 %v7772
    %v7889 = vunpack.c.h.b16 %v7772
    %v7890 = vunpack.c.l.b16 %v7773
    %v7891 = vunpack.c.l.b16 %v7774
    %v7892 = vunpack.c.h.b16 %v7774
    %v7893 = vunpack.c.l.b16 %v7775
    %v7894 = vunpack.c.l.b16 %v7776
    %v7895 = vunpack.c.h.b16 %v7776
    %v7896 = vunpack.c.l.b16 %v7777
    %v7897 = vunpack.c.l.b16 %v7778
    %v7898 = vunpack.c.h.b16 %v7778
    %v7899 = vunpack.c.l.b16 %v7779
    %v7900 = vpack.c.b16 %v7891, %v7888
    %v7901 = vpack.c.b16 %v7892, %v7889
    %v7902 = vpack.c.b16 %v7893, %v7890
    %v7903 = vpack.c.b16 %v7897, %v7894
    %v7904 = vpack.c.b16 %v7898, %v7895
    %v7905 = vpack.c.b16 %v7899, %v7896
    %v7911 = vsel %vm6896, %v7902, 0
    %v7914 = vsel %vm6896, %v7905, 0
    %7916 = vmatprep.subr.bf16.mxu0 0
    %7917 = vmatpush1.bf16.msra.mxu0 %v7862
    %7918 = vmatprep.subr.bf16.mxu0 0
    %7919 = vmatpush1.bf16.msra.mxu0 %v7863
    %7920 = vmatprep.subr.bf16.mxu0 0
    %7921 = vmatpush1.bf16.msra.mxu0 %v7864
    %7922 = vmatprep.subr.bf16.mxu0 0
    %7923 = vmatpush1.bf16.msra.mxu0 %v7865
    %7924 = vmatprep.subr.bf16.mxu0 0
    %7925 = vmatpush1.bf16.msra.mxu0 %v7866
    %7926 = vmatprep.subr.bf16.mxu0 0
    %7927 = vmatpush1.bf16.msra.mxu0 %v7867
    %7928 = vmatprep.subr.bf16.mxu0 0
    %7929 = vmatpush1.bf16.msra.mxu0 %v7868
    %7930 = vmatprep.subr.bf16.mxu0 0
    %7931 = vmatpush1.bf16.msra.mxu0 %v7869
    %7932 = vmatprep.subr.bf16.mxu0 0
    %7933 = vmatpush1.bf16.msra.mxu0 %v7870
    %7934 = vmatprep.subr.bf16.mxu0 0
    %7935 = vmatpush1.bf16.msra.mxu0 %v7871
    %7936 = vmatprep.subr.bf16.mxu0 0
    %7937 = vmatpush1.bf16.msra.mxu0 %v7872
    %7938 = vmatprep.subr.bf16.mxu0 0
    %7939 = vmatpush1.bf16.msra.mxu0 %v7873
    %7940 = vmatprep.subr.bf16.mxu0 0
    %7941 = vmatpush1.bf16.msra.mxu0 %v7874
    %7942 = vmatprep.subr.bf16.mxu0 0
    %7943 = vmatpush1.bf16.msra.mxu0 %v7875
    %7944 = vmatprep.subr.bf16.mxu0 0
    %7945 = vmatpush1.bf16.msra.mxu0 %v7876
    %7946 = vmatprep.subr.bf16.mxu0 0
    %7947 = vmatpush1.bf16.msra.mxu0 %v7877
    %7948 = vmatprep.mubr.bf16.mxu0 %v7901
    %7949 = vmatmul.mubr.bf16.gmra.mrb[0].mxu0 %v7900
    %v7950 = vpop.f32.mrb[0].mxu0
    %v7951 = vadd.f32 0.0, %v7950
    %v7952 = vpop.f32.mrb[0].mxu0
    %v7953 = vpop.f32.mrb[0].mxu0
    %v7954 = vadd.f32 0.0, %v7953
    %v7955 = vpop.f32.mrb[0].mxu0
    %7956 = vmatprep.mubr.bf16.mxu0 %v7904
    %7957 = vmatmul.mubr.bf16.gmra.mrb[0].mxu0 %v7903
    %v7958 = vpop.f32.mrb[0].mxu0
    %v7959 = vadd.f32 0.0, %v7958
    %v7960 = vpop.f32.mrb[0].mxu0
    %v7961 = vpop.f32.mrb[0].mxu0
    %v7962 = vadd.f32 0.0, %v7961
    %v7963 = vpop.f32.mrb[0].mxu0
    %7964 = vdwg.mxu0
    %7965 = vmatprep.subr.bf16.mxu0 0
    %7966 = vmatpush1.bf16.msra.mxu0 %v7878
    %7967 = vmatprep.subr.bf16.mxu0 0
    %7968 = vmatpush1.bf16.msra.mxu0 %v7879
    %7969 = vmatprep.subr.bf16.mxu0 0
    %7970 = vmatpush1.bf16.msra.mxu0 0
    %7971 = vmatprep.subr.bf16.mxu0 0
    %7972 = vmatpush1.bf16.msra.mxu0 0
    %7973 = vmatprep.subr.bf16.mxu0 0
    %7974 = vmatpush1.bf16.msra.mxu0 0
    %7975 = vmatprep.subr.bf16.mxu0 0
    %7976 = vmatpush1.bf16.msra.mxu0 0
    %7977 = vmatprep.subr.bf16.mxu0 0
    %7978 = vmatpush1.bf16.msra.mxu0 0
    %7979 = vmatprep.subr.bf16.mxu0 0
    %7980 = vmatpush1.bf16.msra.mxu0 0
    %7981 = vmatprep.subr.bf16.mxu0 0
    %7982 = vmatpush1.bf16.msra.mxu0 0
    %7983 = vmatprep.subr.bf16.mxu0 0
    %7984 = vmatpush1.bf16.msra.mxu0 0
    %7985 = vmatprep.subr.bf16.mxu0 0
    %7986 = vmatpush1.bf16.msra.mxu0 0
    %7987 = vmatprep.subr.bf16.mxu0 0
    %7988 = vmatpush1.bf16.msra.mxu0 0
    %7989 = vmatprep.subr.bf16.mxu0 0
    %7990 = vmatpush1.bf16.msra.mxu0 0
    %7991 = vmatprep.subr.bf16.mxu0 0
    %7992 = vmatpush1.bf16.msra.mxu0 0
    %7993 = vmatprep.subr.bf16.mxu0 0
    %7994 = vmatpush1.bf16.msra.mxu0 0
    %7995 = vmatprep.subr.bf16.mxu0 0
    %7996 = vmatpush1.bf16.msra.mxu0 0
    %7997 = vmatprep.mubr.bf16.mxu0 0
    %7998 = vmatmul.mubr.bf16.gmra.mrb[0].mxu0 %v7911
    %v7999 = vpop.f32.mrb[0].mxu0
    %v8000 = vadd.f32 %v7951, %v7999
    %v8001 = vpop.f32.mrb[0].mxu0
    %v8002 = vpop.f32.mrb[0].mxu0
    %v8003 = vadd.f32 %v7954, %v8002
    %v8004 = vpop.f32.mrb[0].mxu0
    %8005 = vmatprep.mubr.bf16.mxu0 0
    %8006 = vmatmul.mubr.bf16.gmra.mrb[0].mxu0 %v7914
    %v8007 = vpop.f32.mrb[0].mxu0
    %v8008 = vadd.f32 %v7959, %v8007
    %v8009 = vpop.f32.mrb[0].mxu0
    %v8010 = vpop.f32.mrb[0].mxu0
    %v8011 = vadd.f32 %v7962, %v8010
    %v8012 = vpop.f32.mrb[0].mxu0
    %8013 = vdwg.mxu0
    %8014 = vadd.xlane.f32.xlu0 %v8000
    %v8015 = vpop.xlane.xlu0 %8014
    %8016 = vadd.xlane.f32.xlu0 %v8003
    %v8017 = vpop.xlane.xlu0 %8016
    %8018 = vadd.xlane.f32.xlu0 %v8008
    %v8019 = vpop.xlane.xlu0 %8018
    %8020 = vadd.xlane.f32.xlu0 %v8011
    %v8021 = vpop.xlane.xlu0 %8020
    %v8022 = vmul.f32 %v8015, %v990
    %v8023 = vmul.f32 %v8017, %v990
    %v8024 = vmul.f32 %v8019, %v990
    %v8025 = vmul.f32 %v8021, %v990
    %v8026 = vsub.f32 %v8000, %v8022
    %v8027 = vsub.f32 %v8003, %v8023
    %v8028 = vsub.f32 %v8008, %v8024
    %v8029 = vsub.f32 %v8011, %v8025
    %v8030 = vmul.f32 %v8026, %v8026
    %v8031 = vmul.f32 %v8027, %v8027
    %v8032 = vmul.f32 %v8028, %v8028
    %v8033 = vmul.f32 %v8029, %v8029
    %8034 = vadd.xlane.f32.xlu0 %v8030
    %v8035 = vpop.xlane.xlu0 %8034
    %8036 = vadd.xlane.f32.xlu0 %v8031
    %v8037 = vpop.xlane.xlu0 %8036
    %8038 = vadd.xlane.f32.xlu0 %v8032
    %v8039 = vpop.xlane.xlu0 %8038
    %8040 = vadd.xlane.f32.xlu0 %v8033
    %v8041 = vpop.xlane.xlu0 %8040
    %v8042 = vmul.f32 %v8035, %v990
    %v8043 = vmul.f32 %v8037, %v990
    %v8044 = vmul.f32 %v8039, %v990
    %v8045 = vmul.f32 %v8041, %v990
    %v8046 = vadd.f32 %v8042, 1e-05
    %v8047 = vadd.f32 %v8043, 1e-05
    %v8048 = vadd.f32 %v8044, 1e-05
    %v8049 = vadd.f32 %v8045, 1e-05
    %v8050 = vrsqrt.pop %v8046
    %v8051 = vrsqrt.pop %v8047
    %v8052 = vrsqrt.pop %v8048
    %v8053 = vrsqrt.pop %v8049
    %v8054 = vmul.f32 %v210, %v8050
    %v8055 = vmul.f32 %v211, %v8051
    %v8056 = vmul.f32 %v212, %v8052
    %v8057 = vmul.f32 %v213, %v8053
    %8059 = vset.pattern.permute.xlu0 3
    %8060 = vperm.xlu0 %8059, %v8054
    %v8061 = vpop.permute.xlu0 %8060
    %8064 = vset.pattern.permute.xlu0 3
    %8065 = vperm.xlu0 %8064, %v8055
    %v8066 = vpop.permute.xlu0 %8065
    %8069 = vset.pattern.permute.xlu0 3
    %8070 = vperm.xlu0 %8069, %v8056
    %v8071 = vpop.permute.xlu0 %8070
    %8074 = vset.pattern.permute.xlu0 3
    %8075 = vperm.xlu0 %8074, %v8057
    %v8076 = vpop.permute.xlu0 %8075
    %v8078 = vmul.f32 %v8026, %v8061
    %v8079 = vmul.f32 %v8027, %v8066
    %v8080 = vmul.f32 %v8028, %v8071
    %v8081 = vmul.f32 %v8029, %v8076
    %8082 = vset.pattern.permute.xlu0 3
    %8083 = vperm.xlu0 %8082, %v214
    %v8084 = vpop.permute.xlu0 %8083
    %8086 = vset.pattern.permute.xlu0 3
    %8087 = vperm.xlu0 %8086, %v215
    %v8088 = vpop.permute.xlu0 %8087
    %8090 = vset.pattern.permute.xlu0 3
    %8091 = vperm.xlu0 %8090, %v216
    %v8092 = vpop.permute.xlu0 %8091
    %8094 = vset.pattern.permute.xlu0 3
    %8095 = vperm.xlu0 %8094, %v217
    %v8096 = vpop.permute.xlu0 %8095
    %v8098 = vadd.f32 %v8078, %v8084
    %v8099 = vadd.f32 %v8079, %v8088
    %v8100 = vadd.f32 %v8080, %v8092
    %v8101 = vadd.f32 %v8081, %v8096
    %v8102 = vadd.f32 %v8098, %v7432
    %v8103 = vadd.f32 %v8099, %v7433
    %v8104 = vadd.f32 %v8100, %v7434
    %v8105 = vadd.f32 %v8101, %v7435
    %v8106 = vmax.f32 %v8102, 0.0
    %v8107 = vmax.f32 %v8103, 0.0
    %v8108 = vmax.f32 %v8104, 0.0
    %v8109 = vmax.f32 %v8105, 0.0
    %s8110 = scalar_lea.vmem %s8, 192
    %v8111 = vld [vmem:[%s8110] sm:$0xff]
    %v8112 = vld [vmem:[%s8110 + $0x8] sm:$0xf]
    %v8113 = vld [vmem:[%s8110 + $0xc] sm:$0xff]
    %v8114 = vld [vmem:[%s8110 + $0x14] sm:$0xf]
    %v8115 = vld [vmem:[%s8110 + $0x18] sm:$0xff]
    %v8116 = vld [vmem:[%s8110 + $0x20] sm:$0xf]
    %v8117 = vld [vmem:[%s8110 + $0x24] sm:$0xff]
    %v8118 = vld [vmem:[%s8110 + $0x2c] sm:$0xf]
    %8119 = vrot.lane.b32.xlu0 %v8106, 9
    %v8120 = vpop.permute.xlu0 %8119
    %8121 = vrot.lane.b32.xlu0 %v8107, 9
    %v8122 = vpop.permute.xlu0 %8121
    %8123 = vrot.lane.b32.xlu0 %v8108, 9
    %v8124 = vpop.permute.xlu0 %8123
    %8125 = vrot.lane.b32.xlu0 %v8109, 9
    %v8126 = vpop.permute.xlu0 %8125
    %8127 = vrot.lane.b32.xlu0 %v8106, 8
    %v8128 = vpop.permute.xlu0 %8127
    %8129 = vrot.lane.b32.xlu0 %v8107, 8
    %v8130 = vpop.permute.xlu0 %8129
    %8131 = vrot.lane.b32.xlu0 %v8108, 8
    %v8132 = vpop.permute.xlu0 %8131
    %8133 = vrot.lane.b32.xlu0 %v8109, 8
    %v8134 = vpop.permute.xlu0 %8133
    %8135 = vrot.lane.b32.xlu0 %v8106, 7
    %v8136 = vpop.permute.xlu0 %8135
    %8137 = vrot.lane.b32.xlu0 %v8107, 7
    %v8138 = vpop.permute.xlu0 %8137
    %8139 = vrot.lane.b32.xlu0 %v8108, 7
    %v8140 = vpop.permute.xlu0 %8139
    %8141 = vrot.lane.b32.xlu0 %v8109, 7
    %v8142 = vpop.permute.xlu0 %8141
    %8143 = vrot.lane.b32.xlu0 %v8106, 1
    %v8144 = vpop.permute.xlu0 %8143
    %8145 = vrot.lane.b32.xlu0 %v8107, 1
    %v8146 = vpop.permute.xlu0 %8145
    %8147 = vrot.lane.b32.xlu0 %v8108, 1
    %v8148 = vpop.permute.xlu0 %8147
    %8149 = vrot.lane.b32.xlu0 %v8109, 1
    %v8150 = vpop.permute.xlu0 %8149
    %8151 = vrot.lane.b32.xlu0 %v8106, 127
    %v8152 = vpop.permute.xlu0 %8151
    %8153 = vrot.lane.b32.xlu0 %v8107, 127
    %v8154 = vpop.permute.xlu0 %8153
    %8155 = vrot.lane.b32.xlu0 %v8108, 127
    %v8156 = vpop.permute.xlu0 %8155
    %8157 = vrot.lane.b32.xlu0 %v8109, 127
    %v8158 = vpop.permute.xlu0 %8157
    %8159 = vrot.lane.b32.xlu0 %v8106, 121
    %v8160 = vpop.permute.xlu0 %8159
    %8161 = vrot.lane.b32.xlu0 %v8107, 121
    %v8162 = vpop.permute.xlu0 %8161
    %8163 = vrot.lane.b32.xlu0 %v8108, 121
    %v8164 = vpop.permute.xlu0 %8163
    %8165 = vrot.lane.b32.xlu0 %v8109, 121
    %v8166 = vpop.permute.xlu0 %8165
    %8167 = vrot.lane.b32.xlu0 %v8106, 120
    %v8168 = vpop.permute.xlu0 %8167
    %8169 = vrot.lane.b32.xlu0 %v8107, 120
    %v8170 = vpop.permute.xlu0 %8169
    %8171 = vrot.lane.b32.xlu0 %v8108, 120
    %v8172 = vpop.permute.xlu0 %8171
    %8173 = vrot.lane.b32.xlu0 %v8109, 120
    %v8174 = vpop.permute.xlu0 %8173
    %8175 = vrot.lane.b32.xlu0 %v8106, 119
    %v8176 = vpop.permute.xlu0 %8175
    %8177 = vrot.lane.b32.xlu0 %v8107, 119
    %v8178 = vpop.permute.xlu0 %8177
    %8179 = vrot.lane.b32.xlu0 %v8108, 119
    %v8180 = vpop.permute.xlu0 %8179
    %8181 = vrot.lane.b32.xlu0 %v8109, 119
    %v8182 = vpop.permute.xlu0 %8181
    %v8183 = vpack.c.bf16 %v8122, %v8120
    %v8184 = vpack.c.bf16 %v8126, %v8124
    %v8185 = vpack.c.bf16 %v8130, %v8128
    %v8186 = vpack.c.bf16 %v8134, %v8132
    %v8187 = vpack.c.bf16 %v8138, %v8136
    %v8188 = vpack.c.bf16 %v8142, %v8140
    %v8189 = vpack.c.bf16 %v8146, %v8144
    %v8190 = vpack.c.bf16 %v8150, %v8148
    %v8191 = vpack.c.bf16 %v8107, %v8106
    %v8192 = vpack.c.bf16 %v8109, %v8108
    %v8193 = vpack.c.bf16 %v8154, %v8152
    %v8194 = vpack.c.bf16 %v8158, %v8156
    %v8195 = vpack.c.bf16 %v8162, %v8160
    %v8196 = vpack.c.bf16 %v8166, %v8164
    %v8197 = vpack.c.bf16 %v8170, %v8168
    %v8198 = vpack.c.bf16 %v8174, %v8172
    %v8199 = vpack.c.bf16 %v8178, %v8176
    %v8200 = vpack.c.bf16 %v8182, %v8180
    %v8201 = vmul.bf16 %v8183, %v6812
    %v8202 = vmul.bf16 %v8184, %v6813
    %v8203 = vmul.bf16 %v8185, %v6814
    %v8204 = vmul.bf16 %v8186, %v6815
    %v8205 = vmul.bf16 %v8187, %v6816
    %v8206 = vmul.bf16 %v8188, %v6817
    %v8207 = vmul.bf16 %v8189, %v6818
    %v8208 = vmul.bf16 %v8190, %v6819
    %v8209 = vmul.bf16 %v8191, %v6820
    %v8210 = vmul.bf16 %v8192, %v6821
    %v8211 = vmul.bf16 %v8193, %v6822
    %v8212 = vmul.bf16 %v8194, %v6823
    %v8213 = vmul.bf16 %v8195, %v6824
    %v8214 = vmul.bf16 %v8196, %v6825
    %v8215 = vmul.bf16 %v8197, %v6826
    %v8216 = vmul.bf16 %v8198, %v6827
    %v8217 = vmul.bf16 %v8199, %v6828
    %v8218 = vmul.bf16 %v8200, %v6829
    %v8227 = vunpack.c.l.b16 %v8111
    %v8228 = vunpack.c.h.b16 %v8111
    %v8229 = vunpack.c.l.b16 %v8112
    %v8230 = vunpack.c.l.b16 %v8113
    %v8231 = vunpack.c.h.b16 %v8113
    %v8232 = vunpack.c.l.b16 %v8114
    %v8233 = vunpack.c.l.b16 %v8115
    %v8234 = vunpack.c.h.b16 %v8115
    %v8235 = vunpack.c.l.b16 %v8116
    %v8236 = vunpack.c.l.b16 %v8117
    %v8237 = vunpack.c.h.b16 %v8117
    %v8238 = vunpack.c.l.b16 %v8118
    %v8239 = vpack.c.b16 %v8230, %v8227
    %v8240 = vpack.c.b16 %v8231, %v8228
    %v8241 = vpack.c.b16 %v8232, %v8229
    %v8242 = vpack.c.b16 %v8236, %v8233
    %v8243 = vpack.c.b16 %v8237, %v8234
    %v8244 = vpack.c.b16 %v8238, %v8235
    %v8250 = vsel %vm6896, %v8241, 0
    %v8253 = vsel %vm6896, %v8244, 0
    %8255 = vmatprep.subr.bf16.mxu0 0
    %8256 = vmatpush1.bf16.msra.mxu0 %v8201
    %8257 = vmatprep.subr.bf16.mxu0 0
    %8258 = vmatpush1.bf16.msra.mxu0 %v8202
    %8259 = vmatprep.subr.bf16.mxu0 0
    %8260 = vmatpush1.bf16.msra.mxu0 %v8203
    %8261 = vmatprep.subr.bf16.mxu0 0
    %8262 = vmatpush1.bf16.msra.mxu0 %v8204
    %8263 = vmatprep.subr.bf16.mxu0 0
    %8264 = vmatpush1.bf16.msra.mxu0 %v8205
    %8265 = vmatprep.subr.bf16.mxu0 0
    %8266 = vmatpush1.bf16.msra.mxu0 %v8206
    %8267 = vmatprep.subr.bf16.mxu0 0
    %8268 = vmatpush1.bf16.msra.mxu0 %v8207
    %8269 = vmatprep.subr.bf16.mxu0 0
    %8270 = vmatpush1.bf16.msra.mxu0 %v8208
    %8271 = vmatprep.subr.bf16.mxu0 0
    %8272 = vmatpush1.bf16.msra.mxu0 %v8209
    %8273 = vmatprep.subr.bf16.mxu0 0
    %8274 = vmatpush1.bf16.msra.mxu0 %v8210
    %8275 = vmatprep.subr.bf16.mxu0 0
    %8276 = vmatpush1.bf16.msra.mxu0 %v8211
    %8277 = vmatprep.subr.bf16.mxu0 0
    %8278 = vmatpush1.bf16.msra.mxu0 %v8212
    %8279 = vmatprep.subr.bf16.mxu0 0
    %8280 = vmatpush1.bf16.msra.mxu0 %v8213
    %8281 = vmatprep.subr.bf16.mxu0 0
    %8282 = vmatpush1.bf16.msra.mxu0 %v8214
    %8283 = vmatprep.subr.bf16.mxu0 0
    %8284 = vmatpush1.bf16.msra.mxu0 %v8215
    %8285 = vmatprep.subr.bf16.mxu0 0
    %8286 = vmatpush1.bf16.msra.mxu0 %v8216
    %8287 = vmatprep.mubr.bf16.mxu0 %v8240
    %8288 = vmatmul.mubr.bf16.gmra.mrb[0].mxu0 %v8239
    %v8289 = vpop.f32.mrb[0].mxu0
    %v8290 = vadd.f32 0.0, %v8289
    %v8291 = vpop.f32.mrb[0].mxu0
    %v8292 = vpop.f32.mrb[0].mxu0
    %v8293 = vadd.f32 0.0, %v8292
    %v8294 = vpop.f32.mrb[0].mxu0
    %8295 = vmatprep.mubr.bf16.mxu0 %v8243
    %8296 = vmatmul.mubr.bf16.gmra.mrb[0].mxu0 %v8242
    %v8297 = vpop.f32.mrb[0].mxu0
    %v8298 = vadd.f32 0.0, %v8297
    %v8299 = vpop.f32.mrb[0].mxu0
    %v8300 = vpop.f32.mrb[0].mxu0
    %v8301 = vadd.f32 0.0, %v8300
    %v8302 = vpop.f32.mrb[0].mxu0
    %8303 = vdwg.mxu0
    %8304 = vmatprep.subr.bf16.mxu0 0
    %8305 = vmatpush1.bf16.msra.mxu0 %v8217
    %8306 = vmatprep.subr.bf16.mxu0 0
    %8307 = vmatpush1.bf16.msra.mxu0 %v8218
    %8308 = vmatprep.subr.bf16.mxu0 0
    %8309 = vmatpush1.bf16.msra.mxu0 0
    %8310 = vmatprep.subr.bf16.mxu0 0
    %8311 = vmatpush1.bf16.msra.mxu0 0
    %8312 = vmatprep.subr.bf16.mxu0 0
    %8313 = vmatpush1.bf16.msra.mxu0 0
    %8314 = vmatprep.subr.bf16.mxu0 0
    %8315 = vmatpush1.bf16.msra.mxu0 0
    %8316 = vmatprep.subr.bf16.mxu0 0
    %8317 = vmatpush1.bf16.msra.mxu0 0
    %8318 = vmatprep.subr.bf16.mxu0 0
    %8319 = vmatpush1.bf16.msra.mxu0 0
    %8320 = vmatprep.subr.bf16.mxu0 0
    %8321 = vmatpush1.bf16.msra.mxu0 0
    %8322 = vmatprep.subr.bf16.mxu0 0
    %8323 = vmatpush1.bf16.msra.mxu0 0
    %8324 = vmatprep.subr.bf16.mxu0 0
    %8325 = vmatpush1.bf16.msra.mxu0 0
    %8326 = vmatprep.subr.bf16.mxu0 0
    %8327 = vmatpush1.bf16.msra.mxu0 0
    %8328 = vmatprep.subr.bf16.mxu0 0
    %8329 = vmatpush1.bf16.msra.mxu0 0
    %8330 = vmatprep.subr.bf16.mxu0 0
    %8331 = vmatpush1.bf16.msra.mxu0 0
    %8332 = vmatprep.subr.bf16.mxu0 0
    %8333 = vmatpush1.bf16.msra.mxu0 0
    %8334 = vmatprep.subr.bf16.mxu0 0
    %8335 = vmatpush1.bf16.msra.mxu0 0
    %8336 = vmatprep.mubr.bf16.mxu0 0
    %8337 = vmatmul.mubr.bf16.gmra.mrb[0].mxu0 %v8250
    %v8338 = vpop.f32.mrb[0].mxu0
    %v8339 = vadd.f32 %v8290, %v8338
    %v8340 = vpop.f32.mrb[0].mxu0
    %v8341 = vpop.f32.mrb[0].mxu0
    %v8342 = vadd.f32 %v8293, %v8341
    %v8343 = vpop.f32.mrb[0].mxu0
    %8344 = vmatprep.mubr.bf16.mxu0 0
    %8345 = vmatmul.mubr.bf16.gmra.mrb[0].mxu0 %v8253
    %v8346 = vpop.f32.mrb[0].mxu0
    %v8347 = vadd.f32 %v8298, %v8346
    %v8348 = vpop.f32.mrb[0].mxu0
    %v8349 = vpop.f32.mrb[0].mxu0
    %v8350 = vadd.f32 %v8301, %v8349
    %v8351 = vpop.f32.mrb[0].mxu0
    %8352 = vdwg.mxu0
    %8353 = vadd.xlane.f32.xlu0 %v8339
    %v8354 = vpop.xlane.xlu0 %8353
    %8355 = vadd.xlane.f32.xlu0 %v8342
    %v8356 = vpop.xlane.xlu0 %8355
    %8357 = vadd.xlane.f32.xlu0 %v8347
    %v8358 = vpop.xlane.xlu0 %8357
    %8359 = vadd.xlane.f32.xlu0 %v8350
    %v8360 = vpop.xlane.xlu0 %8359
    %v8361 = vmul.f32 %v8354, %v990
    %v8362 = vmul.f32 %v8356, %v990
    %v8363 = vmul.f32 %v8358, %v990
    %v8364 = vmul.f32 %v8360, %v990
    %v8365 = vsub.f32 %v8339, %v8361
    %v8366 = vsub.f32 %v8342, %v8362
    %v8367 = vsub.f32 %v8347, %v8363
    %v8368 = vsub.f32 %v8350, %v8364
    %v8369 = vmul.f32 %v8365, %v8365
    %v8370 = vmul.f32 %v8366, %v8366
    %v8371 = vmul.f32 %v8367, %v8367
    %v8372 = vmul.f32 %v8368, %v8368
    %8373 = vadd.xlane.f32.xlu0 %v8369
    %v8374 = vpop.xlane.xlu0 %8373
    %8375 = vadd.xlane.f32.xlu0 %v8370
    %v8376 = vpop.xlane.xlu0 %8375
    %8377 = vadd.xlane.f32.xlu0 %v8371
    %v8378 = vpop.xlane.xlu0 %8377
    %8379 = vadd.xlane.f32.xlu0 %v8372
    %v8380 = vpop.xlane.xlu0 %8379
    %v8381 = vmul.f32 %v8374, %v990
    %v8382 = vmul.f32 %v8376, %v990
    %v8383 = vmul.f32 %v8378, %v990
    %v8384 = vmul.f32 %v8380, %v990
    %v8385 = vadd.f32 %v8381, 1e-05
    %v8386 = vadd.f32 %v8382, 1e-05
    %v8387 = vadd.f32 %v8383, 1e-05
    %v8388 = vadd.f32 %v8384, 1e-05
    %v8389 = vrsqrt.pop %v8385
    %v8390 = vrsqrt.pop %v8386
    %v8391 = vrsqrt.pop %v8387
    %v8392 = vrsqrt.pop %v8388
    %v8393 = vmul.f32 %v210, %v8389
    %v8394 = vmul.f32 %v211, %v8390
    %v8395 = vmul.f32 %v212, %v8391
    %v8396 = vmul.f32 %v213, %v8392
    %8398 = vset.pattern.permute.xlu0 4
    %8399 = vperm.xlu0 %8398, %v8393
    %v8400 = vpop.permute.xlu0 %8399
    %8403 = vset.pattern.permute.xlu0 4
    %8404 = vperm.xlu0 %8403, %v8394
    %v8405 = vpop.permute.xlu0 %8404
    %8408 = vset.pattern.permute.xlu0 4
    %8409 = vperm.xlu0 %8408, %v8395
    %v8410 = vpop.permute.xlu0 %8409
    %8413 = vset.pattern.permute.xlu0 4
    %8414 = vperm.xlu0 %8413, %v8396
    %v8415 = vpop.permute.xlu0 %8414
    %v8417 = vmul.f32 %v8365, %v8400
    %v8418 = vmul.f32 %v8366, %v8405
    %v8419 = vmul.f32 %v8367, %v8410
    %v8420 = vmul.f32 %v8368, %v8415
    %8421 = vset.pattern.permute.xlu0 4
    %8422 = vperm.xlu0 %8421, %v214
    %v8423 = vpop.permute.xlu0 %8422
    %8425 = vset.pattern.permute.xlu0 4
    %8426 = vperm.xlu0 %8425, %v215
    %v8427 = vpop.permute.xlu0 %8426
    %8429 = vset.pattern.permute.xlu0 4
    %8430 = vperm.xlu0 %8429, %v216
    %v8431 = vpop.permute.xlu0 %8430
    %8433 = vset.pattern.permute.xlu0 4
    %8434 = vperm.xlu0 %8433, %v217
    %v8435 = vpop.permute.xlu0 %8434
    %v8437 = vadd.f32 %v8417, %v8423
    %v8438 = vadd.f32 %v8418, %v8427
    %v8439 = vadd.f32 %v8419, %v8431
    %v8440 = vadd.f32 %v8420, %v8435
    %v8441 = vmax.f32 %v8437, 0.0
    %v8442 = vmax.f32 %v8438, 0.0
    %v8443 = vmax.f32 %v8439, 0.0
    %v8444 = vmax.f32 %v8440, 0.0
    %s8445 = scalar_lea.vmem %s8, 240
    %v8446 = vld [vmem:[%s8445] sm:$0xff]
    %v8447 = vld [vmem:[%s8445 + $0x8] sm:$0xf]
    %v8448 = vld [vmem:[%s8445 + $0xc] sm:$0xff]
    %v8449 = vld [vmem:[%s8445 + $0x14] sm:$0xf]
    %v8450 = vld [vmem:[%s8445 + $0x18] sm:$0xff]
    %v8451 = vld [vmem:[%s8445 + $0x20] sm:$0xf]
    %v8452 = vld [vmem:[%s8445 + $0x24] sm:$0xff]
    %v8453 = vld [vmem:[%s8445 + $0x2c] sm:$0xf]
    %8454 = vrot.lane.b32.xlu0 %v8441, 9
    %v8455 = vpop.permute.xlu0 %8454
    %8456 = vrot.lane.b32.xlu0 %v8442, 9
    %v8457 = vpop.permute.xlu0 %8456
    %8458 = vrot.lane.b32.xlu0 %v8443, 9
    %v8459 = vpop.permute.xlu0 %8458
    %8460 = vrot.lane.b32.xlu0 %v8444, 9
    %v8461 = vpop.permute.xlu0 %8460
    %8462 = vrot.lane.b32.xlu0 %v8441, 8
    %v8463 = vpop.permute.xlu0 %8462
    %8464 = vrot.lane.b32.xlu0 %v8442, 8
    %v8465 = vpop.permute.xlu0 %8464
    %8466 = vrot.lane.b32.xlu0 %v8443, 8
    %v8467 = vpop.permute.xlu0 %8466
    %8468 = vrot.lane.b32.xlu0 %v8444, 8
    %v8469 = vpop.permute.xlu0 %8468
    %8470 = vrot.lane.b32.xlu0 %v8441, 7
    %v8471 = vpop.permute.xlu0 %8470
    %8472 = vrot.lane.b32.xlu0 %v8442, 7
    %v8473 = vpop.permute.xlu0 %8472
    %8474 = vrot.lane.b32.xlu0 %v8443, 7
    %v8475 = vpop.permute.xlu0 %8474
    %8476 = vrot.lane.b32.xlu0 %v8444, 7
    %v8477 = vpop.permute.xlu0 %8476
    %8478 = vrot.lane.b32.xlu0 %v8441, 1
    %v8479 = vpop.permute.xlu0 %8478
    %8480 = vrot.lane.b32.xlu0 %v8442, 1
    %v8481 = vpop.permute.xlu0 %8480
    %8482 = vrot.lane.b32.xlu0 %v8443, 1
    %v8483 = vpop.permute.xlu0 %8482
    %8484 = vrot.lane.b32.xlu0 %v8444, 1
    %v8485 = vpop.permute.xlu0 %8484
    %8486 = vrot.lane.b32.xlu0 %v8441, 127
    %v8487 = vpop.permute.xlu0 %8486
    %8488 = vrot.lane.b32.xlu0 %v8442, 127
    %v8489 = vpop.permute.xlu0 %8488
    %8490 = vrot.lane.b32.xlu0 %v8443, 127
    %v8491 = vpop.permute.xlu0 %8490
    %8492 = vrot.lane.b32.xlu0 %v8444, 127
    %v8493 = vpop.permute.xlu0 %8492
    %8494 = vrot.lane.b32.xlu0 %v8441, 121
    %v8495 = vpop.permute.xlu0 %8494
    %8496 = vrot.lane.b32.xlu0 %v8442, 121
    %v8497 = vpop.permute.xlu0 %8496
    %8498 = vrot.lane.b32.xlu0 %v8443, 121
    %v8499 = vpop.permute.xlu0 %8498
    %8500 = vrot.lane.b32.xlu0 %v8444, 121
    %v8501 = vpop.permute.xlu0 %8500
    %8502 = vrot.lane.b32.xlu0 %v8441, 120
    %v8503 = vpop.permute.xlu0 %8502
    %8504 = vrot.lane.b32.xlu0 %v8442, 120
    %v8505 = vpop.permute.xlu0 %8504
    %8506 = vrot.lane.b32.xlu0 %v8443, 120
    %v8507 = vpop.permute.xlu0 %8506
    %8508 = vrot.lane.b32.xlu0 %v8444, 120
    %v8509 = vpop.permute.xlu0 %8508
    %8510 = vrot.lane.b32.xlu0 %v8441, 119
    %v8511 = vpop.permute.xlu0 %8510
    %8512 = vrot.lane.b32.xlu0 %v8442, 119
    %v8513 = vpop.permute.xlu0 %8512
    %8514 = vrot.lane.b32.xlu0 %v8443, 119
    %v8515 = vpop.permute.xlu0 %8514
    %8516 = vrot.lane.b32.xlu0 %v8444, 119
    %v8517 = vpop.permute.xlu0 %8516
    %v8518 = vpack.c.bf16 %v8457, %v8455
    %v8519 = vpack.c.bf16 %v8461, %v8459
    %v8520 = vpack.c.bf16 %v8465, %v8463
    %v8521 = vpack.c.bf16 %v8469, %v8467
    %v8522 = vpack.c.bf16 %v8473, %v8471
    %v8523 = vpack.c.bf16 %v8477, %v8475
    %v8524 = vpack.c.bf16 %v8481, %v8479
    %v8525 = vpack.c.bf16 %v8485, %v8483
    %v8526 = vpack.c.bf16 %v8442, %v8441
    %v8527 = vpack.c.bf16 %v8444, %v8443
    %v8528 = vpack.c.bf16 %v8489, %v8487
    %v8529 = vpack.c.bf16 %v8493, %v8491
    %v8530 = vpack.c.bf16 %v8497, %v8495
    %v8531 = vpack.c.bf16 %v8501, %v8499
    %v8532 = vpack.c.bf16 %v8505, %v8503
    %v8533 = vpack.c.bf16 %v8509, %v8507
    %v8534 = vpack.c.bf16 %v8513, %v8511
    %v8535 = vpack.c.bf16 %v8517, %v8515
    %v8536 = vmul.bf16 %v8518, %v6812
    %v8537 = vmul.bf16 %v8519, %v6813
    %v8538 = vmul.bf16 %v8520, %v6814
    %v8539 = vmul.bf16 %v8521, %v6815
    %v8540 = vmul.bf16 %v8522, %v6816
    %v8541 = vmul.bf16 %v8523, %v6817
    %v8542 = vmul.bf16 %v8524, %v6818
    %v8543 = vmul.bf16 %v8525, %v6819
    %v8544 = vmul.bf16 %v8526, %v6820
    %v8545 = vmul.bf16 %v8527, %v6821
    %v8546 = vmul.bf16 %v8528, %v6822
    %v8547 = vmul.bf16 %v8529, %v6823
    %v8548 = vmul.bf16 %v8530, %v6824
    %v8549 = vmul.bf16 %v8531, %v6825
    %v8550 = vmul.bf16 %v8532, %v6826
    %v8551 = vmul.bf16 %v8533, %v6827
    %v8552 = vmul.bf16 %v8534, %v6828
    %v8553 = vmul.bf16 %v8535, %v6829
    %v8562 = vunpack.c.l.b16 %v8446
    %v8563 = vunpack.c.h.b16 %v8446
    %v8564 = vunpack.c.l.b16 %v8447
    %v8565 = vunpack.c.l.b16 %v8448
    %v8566 = vunpack.c.h.b16 %v8448
    %v8567 = vunpack.c.l.b16 %v8449
    %v8568 = vunpack.c.l.b16 %v8450
    %v8569 = vunpack.c.h.b16 %v8450
    %v8570 = vunpack.c.l.b16 %v8451
    %v8571 = vunpack.c.l.b16 %v8452
    %v8572 = vunpack.c.h.b16 %v8452
    %v8573 = vunpack.c.l.b16 %v8453
    %v8574 = vpack.c.b16 %v8565, %v8562
    %v8575 = vpack.c.b16 %v8566, %v8563
    %v8576 = vpack.c.b16 %v8567, %v8564
    %v8577 = vpack.c.b16 %v8571, %v8568
    %v8578 = vpack.c.b16 %v8572, %v8569
    %v8579 = vpack.c.b16 %v8573, %v8570
    %v8585 = vsel %vm6896, %v8576, 0
    %v8588 = vsel %vm6896, %v8579, 0
    %8590 = vmatprep.subr.bf16.mxu0 0
    %8591 = vmatpush1.bf16.msra.mxu0 %v8536
    %8592 = vmatprep.subr.bf16.mxu0 0
    %8593 = vmatpush1.bf16.msra.mxu0 %v8537
    %8594 = vmatprep.subr.bf16.mxu0 0
    %8595 = vmatpush1.bf16.msra.mxu0 %v8538
    %8596 = vmatprep.subr.bf16.mxu0 0
    %8597 = vmatpush1.bf16.msra.mxu0 %v8539
    %8598 = vmatprep.subr.bf16.mxu0 0
    %8599 = vmatpush1.bf16.msra.mxu0 %v8540
    %8600 = vmatprep.subr.bf16.mxu0 0
    %8601 = vmatpush1.bf16.msra.mxu0 %v8541
    %8602 = vmatprep.subr.bf16.mxu0 0
    %8603 = vmatpush1.bf16.msra.mxu0 %v8542
    %8604 = vmatprep.subr.bf16.mxu0 0
    %8605 = vmatpush1.bf16.msra.mxu0 %v8543
    %8606 = vmatprep.subr.bf16.mxu0 0
    %8607 = vmatpush1.bf16.msra.mxu0 %v8544
    %8608 = vmatprep.subr.bf16.mxu0 0
    %8609 = vmatpush1.bf16.msra.mxu0 %v8545
    %8610 = vmatprep.subr.bf16.mxu0 0
    %8611 = vmatpush1.bf16.msra.mxu0 %v8546
    %8612 = vmatprep.subr.bf16.mxu0 0
    %8613 = vmatpush1.bf16.msra.mxu0 %v8547
    %8614 = vmatprep.subr.bf16.mxu0 0
    %8615 = vmatpush1.bf16.msra.mxu0 %v8548
    %8616 = vmatprep.subr.bf16.mxu0 0
    %8617 = vmatpush1.bf16.msra.mxu0 %v8549
    %8618 = vmatprep.subr.bf16.mxu0 0
    %8619 = vmatpush1.bf16.msra.mxu0 %v8550
    %8620 = vmatprep.subr.bf16.mxu0 0
    %8621 = vmatpush1.bf16.msra.mxu0 %v8551
    %8622 = vmatprep.mubr.bf16.mxu0 %v8575
    %8623 = vmatmul.mubr.bf16.gmra.mrb[0].mxu0 %v8574
    %v8624 = vpop.f32.mrb[0].mxu0
    %v8625 = vadd.f32 0.0, %v8624
    %v8626 = vpop.f32.mrb[0].mxu0
    %v8627 = vpop.f32.mrb[0].mxu0
    %v8628 = vadd.f32 0.0, %v8627
    %v8629 = vpop.f32.mrb[0].mxu0
    %8630 = vmatprep.mubr.bf16.mxu0 %v8578
    %8631 = vmatmul.mubr.bf16.gmra.mrb[0].mxu0 %v8577
    %v8632 = vpop.f32.mrb[0].mxu0
    %v8633 = vadd.f32 0.0, %v8632
    %v8634 = vpop.f32.mrb[0].mxu0
    %v8635 = vpop.f32.mrb[0].mxu0
    %v8636 = vadd.f32 0.0, %v8635
    %v8637 = vpop.f32.mrb[0].mxu0
    %8638 = vdwg.mxu0
    %8639 = vmatprep.subr.bf16.mxu0 0
    %8640 = vmatpush1.bf16.msra.mxu0 %v8552
    %8641 = vmatprep.subr.bf16.mxu0 0
    %8642 = vmatpush1.bf16.msra.mxu0 %v8553
    %8643 = vmatprep.subr.bf16.mxu0 0
    %8644 = vmatpush1.bf16.msra.mxu0 0
    %8645 = vmatprep.subr.bf16.mxu0 0
    %8646 = vmatpush1.bf16.msra.mxu0 0
    %8647 = vmatprep.subr.bf16.mxu0 0
    %8648 = vmatpush1.bf16.msra.mxu0 0
    %8649 = vmatprep.subr.bf16.mxu0 0
    %8650 = vmatpush1.bf16.msra.mxu0 0
    %8651 = vmatprep.subr.bf16.mxu0 0
    %8652 = vmatpush1.bf16.msra.mxu0 0
    %8653 = vmatprep.subr.bf16.mxu0 0
    %8654 = vmatpush1.bf16.msra.mxu0 0
    %8655 = vmatprep.subr.bf16.mxu0 0
    %8656 = vmatpush1.bf16.msra.mxu0 0
    %8657 = vmatprep.subr.bf16.mxu0 0
    %8658 = vmatpush1.bf16.msra.mxu0 0
    %8659 = vmatprep.subr.bf16.mxu0 0
    %8660 = vmatpush1.bf16.msra.mxu0 0
    %8661 = vmatprep.subr.bf16.mxu0 0
    %8662 = vmatpush1.bf16.msra.mxu0 0
    %8663 = vmatprep.subr.bf16.mxu0 0
    %8664 = vmatpush1.bf16.msra.mxu0 0
    %8665 = vmatprep.subr.bf16.mxu0 0
    %8666 = vmatpush1.bf16.msra.mxu0 0
    %8667 = vmatprep.subr.bf16.mxu0 0
    %8668 = vmatpush1.bf16.msra.mxu0 0
    %8669 = vmatprep.subr.bf16.mxu0 0
    %8670 = vmatpush1.bf16.msra.mxu0 0
    %8671 = vmatprep.mubr.bf16.mxu0 0
    %8672 = vmatmul.mubr.bf16.gmra.mrb[0].mxu0 %v8585
    %v8673 = vpop.f32.mrb[0].mxu0
    %v8674 = vadd.f32 %v8625, %v8673
    %v8675 = vpop.f32.mrb[0].mxu0
    %v8676 = vpop.f32.mrb[0].mxu0
    %v8677 = vadd.f32 %v8628, %v8676
    %v8678 = vpop.f32.mrb[0].mxu0
    %8679 = vmatprep.mubr.bf16.mxu0 0
    %8680 = vmatmul.mubr.bf16.gmra.mrb[0].mxu0 %v8588
    %v8681 = vpop.f32.mrb[0].mxu0
    %v8682 = vadd.f32 %v8633, %v8681
    %v8683 = vpop.f32.mrb[0].mxu0
    %v8684 = vpop.f32.mrb[0].mxu0
    %v8685 = vadd.f32 %v8636, %v8684
    %v8686 = vpop.f32.mrb[0].mxu0
    %8687 = vdwg.mxu0
    %8688 = vadd.xlane.f32.xlu0 %v8674
    %v8689 = vpop.xlane.xlu0 %8688
    %8690 = vadd.xlane.f32.xlu0 %v8677
    %v8691 = vpop.xlane.xlu0 %8690
    %8692 = vadd.xlane.f32.xlu0 %v8682
    %v8693 = vpop.xlane.xlu0 %8692
    %8694 = vadd.xlane.f32.xlu0 %v8685
    %v8695 = vpop.xlane.xlu0 %8694
    %v8696 = vmul.f32 %v8689, %v990
    %v8697 = vmul.f32 %v8691, %v990
    %v8698 = vmul.f32 %v8693, %v990
    %v8699 = vmul.f32 %v8695, %v990
    %v8700 = vsub.f32 %v8674, %v8696
    %v8701 = vsub.f32 %v8677, %v8697
    %v8702 = vsub.f32 %v8682, %v8698
    %v8703 = vsub.f32 %v8685, %v8699
    %v8704 = vmul.f32 %v8700, %v8700
    %v8705 = vmul.f32 %v8701, %v8701
    %v8706 = vmul.f32 %v8702, %v8702
    %v8707 = vmul.f32 %v8703, %v8703
    %8708 = vadd.xlane.f32.xlu0 %v8704
    %v8709 = vpop.xlane.xlu0 %8708
    %8710 = vadd.xlane.f32.xlu0 %v8705
    %v8711 = vpop.xlane.xlu0 %8710
    %8712 = vadd.xlane.f32.xlu0 %v8706
    %v8713 = vpop.xlane.xlu0 %8712
    %8714 = vadd.xlane.f32.xlu0 %v8707
    %v8715 = vpop.xlane.xlu0 %8714
    %v8716 = vmul.f32 %v8709, %v990
    %v8717 = vmul.f32 %v8711, %v990
    %v8718 = vmul.f32 %v8713, %v990
    %v8719 = vmul.f32 %v8715, %v990
    %v8720 = vadd.f32 %v8716, 1e-05
    %v8721 = vadd.f32 %v8717, 1e-05
    %v8722 = vadd.f32 %v8718, 1e-05
    %v8723 = vadd.f32 %v8719, 1e-05
    %v8724 = vrsqrt.pop %v8720
    %v8725 = vrsqrt.pop %v8721
    %v8726 = vrsqrt.pop %v8722
    %v8727 = vrsqrt.pop %v8723
    %v8728 = vmul.f32 %v210, %v8724
    %v8729 = vmul.f32 %v211, %v8725
    %v8730 = vmul.f32 %v212, %v8726
    %v8731 = vmul.f32 %v213, %v8727
    %8733 = vset.pattern.permute.xlu0 5
    %8734 = vperm.xlu0 %8733, %v8728
    %v8735 = vpop.permute.xlu0 %8734
    %8738 = vset.pattern.permute.xlu0 5
    %8739 = vperm.xlu0 %8738, %v8729
    %v8740 = vpop.permute.xlu0 %8739
    %8743 = vset.pattern.permute.xlu0 5
    %8744 = vperm.xlu0 %8743, %v8730
    %v8745 = vpop.permute.xlu0 %8744
    %8748 = vset.pattern.permute.xlu0 5
    %8749 = vperm.xlu0 %8748, %v8731
    %v8750 = vpop.permute.xlu0 %8749
    %v8752 = vmul.f32 %v8700, %v8735
    %v8753 = vmul.f32 %v8701, %v8740
    %v8754 = vmul.f32 %v8702, %v8745
    %v8755 = vmul.f32 %v8703, %v8750
    %8756 = vset.pattern.permute.xlu0 5
    %8757 = vperm.xlu0 %8756, %v214
    %v8758 = vpop.permute.xlu0 %8757
    %8760 = vset.pattern.permute.xlu0 5
    %8761 = vperm.xlu0 %8760, %v215
    %v8762 = vpop.permute.xlu0 %8761
    %8764 = vset.pattern.permute.xlu0 5
    %8765 = vperm.xlu0 %8764, %v216
    %v8766 = vpop.permute.xlu0 %8765
    %8768 = vset.pattern.permute.xlu0 5
    %8769 = vperm.xlu0 %8768, %v217
    %v8770 = vpop.permute.xlu0 %8769
    %v8772 = vadd.f32 %v8752, %v8758
    %v8773 = vadd.f32 %v8753, %v8762
    %v8774 = vadd.f32 %v8754, %v8766
    %v8775 = vadd.f32 %v8755, %v8770
    %v8776 = vadd.f32 %v8772, %v8106
    %v8777 = vadd.f32 %v8773, %v8107
    %v8778 = vadd.f32 %v8774, %v8108
    %v8779 = vadd.f32 %v8775, %v8109
    %v8780 = vmax.f32 %v8776, 0.0
    %v8781 = vmax.f32 %v8777, 0.0
    %v8782 = vmax.f32 %v8778, 0.0
    %v8783 = vmax.f32 %v8779, 0.0
    %s8784 = scalar_lea.vmem %s8, 288
    %v8785 = vld [vmem:[%s8784] sm:$0xff]
    %v8786 = vld [vmem:[%s8784 + $0x8] sm:$0xf]
    %v8787 = vld [vmem:[%s8784 + $0xc] sm:$0xff]
    %v8788 = vld [vmem:[%s8784 + $0x14] sm:$0xf]
    %v8789 = vld [vmem:[%s8784 + $0x18] sm:$0xff]
    %v8790 = vld [vmem:[%s8784 + $0x20] sm:$0xf]
    %v8791 = vld [vmem:[%s8784 + $0x24] sm:$0xff]
    %v8792 = vld [vmem:[%s8784 + $0x2c] sm:$0xf]
    %8793 = vrot.lane.b32.xlu0 %v8780, 9
    %v8794 = vpop.permute.xlu0 %8793
    %8795 = vrot.lane.b32.xlu0 %v8781, 9
    %v8796 = vpop.permute.xlu0 %8795
    %8797 = vrot.lane.b32.xlu0 %v8782, 9
    %v8798 = vpop.permute.xlu0 %8797
    %8799 = vrot.lane.b32.xlu0 %v8783, 9
    %v8800 = vpop.permute.xlu0 %8799
    %8801 = vrot.lane.b32.xlu0 %v8780, 8
    %v8802 = vpop.permute.xlu0 %8801
    %8803 = vrot.lane.b32.xlu0 %v8781, 8
    %v8804 = vpop.permute.xlu0 %8803
    %8805 = vrot.lane.b32.xlu0 %v8782, 8
    %v8806 = vpop.permute.xlu0 %8805
    %8807 = vrot.lane.b32.xlu0 %v8783, 8
    %v8808 = vpop.permute.xlu0 %8807
    %8809 = vrot.lane.b32.xlu0 %v8780, 7
    %v8810 = vpop.permute.xlu0 %8809
    %8811 = vrot.lane.b32.xlu0 %v8781, 7
    %v8812 = vpop.permute.xlu0 %8811
    %8813 = vrot.lane.b32.xlu0 %v8782, 7
    %v8814 = vpop.permute.xlu0 %8813
    %8815 = vrot.lane.b32.xlu0 %v8783, 7
    %v8816 = vpop.permute.xlu0 %8815
    %8817 = vrot.lane.b32.xlu0 %v8780, 1
    %v8818 = vpop.permute.xlu0 %8817
    %8819 = vrot.lane.b32.xlu0 %v8781, 1
    %v8820 = vpop.permute.xlu0 %8819
    %8821 = vrot.lane.b32.xlu0 %v8782, 1
    %v8822 = vpop.permute.xlu0 %8821
    %8823 = vrot.lane.b32.xlu0 %v8783, 1
    %v8824 = vpop.permute.xlu0 %8823
    %8825 = vrot.lane.b32.xlu0 %v8780, 127
    %v8826 = vpop.permute.xlu0 %8825
    %8827 = vrot.lane.b32.xlu0 %v8781, 127
    %v8828 = vpop.permute.xlu0 %8827
    %8829 = vrot.lane.b32.xlu0 %v8782, 127
    %v8830 = vpop.permute.xlu0 %8829
    %8831 = vrot.lane.b32.xlu0 %v8783, 127
    %v8832 = vpop.permute.xlu0 %8831
    %8833 = vrot.lane.b32.xlu0 %v8780, 121
    %v8834 = vpop.permute.xlu0 %8833
    %8835 = vrot.lane.b32.xlu0 %v8781, 121
    %v8836 = vpop.permute.xlu0 %8835
    %8837 = vrot.lane.b32.xlu0 %v8782, 121
    %v8838 = vpop.permute.xlu0 %8837
    %8839 = vrot.lane.b32.xlu0 %v8783, 121
    %v8840 = vpop.permute.xlu0 %8839
    %8841 = vrot.lane.b32.xlu0 %v8780, 120
    %v8842 = vpop.permute.xlu0 %8841
    %8843 = vrot.lane.b32.xlu0 %v8781, 120
    %v8844 = vpop.permute.xlu0 %8843
    %8845 = vrot.lane.b32.xlu0 %v8782, 120
    %v8846 = vpop.permute.xlu0 %8845
    %8847 = vrot.lane.b32.xlu0 %v8783, 120
    %v8848 = vpop.permute.xlu0 %8847
    %8849 = vrot.lane.b32.xlu0 %v8780, 119
    %v8850 = vpop.permute.xlu0 %8849
    %8851 = vrot.lane.b32.xlu0 %v8781, 119
    %v8852 = vpop.permute.xlu0 %8851
    %8853 = vrot.lane.b32.xlu0 %v8782, 119
    %v8854 = vpop.permute.xlu0 %8853
    %8855 = vrot.lane.b32.xlu0 %v8783, 119
    %v8856 = vpop.permute.xlu0 %8855
    %v8857 = vpack.c.bf16 %v8796, %v8794
    %v8858 = vpack.c.bf16 %v8800, %v8798
    %v8859 = vpack.c.bf16 %v8804, %v8802
    %v8860 = vpack.c.bf16 %v8808, %v8806
    %v8861 = vpack.c.bf16 %v8812, %v8810
    %v8862 = vpack.c.bf16 %v8816, %v8814
    %v8863 = vpack.c.bf16 %v8820, %v8818
    %v8864 = vpack.c.bf16 %v8824, %v8822
    %v8865 = vpack.c.bf16 %v8781, %v8780
    %v8866 = vpack.c.bf16 %v8783, %v8782
    %v8867 = vpack.c.bf16 %v8828, %v8826
    %v8868 = vpack.c.bf16 %v8832, %v8830
    %v8869 = vpack.c.bf16 %v8836, %v8834
    %v8870 = vpack.c.bf16 %v8840, %v8838
    %v8871 = vpack.c.bf16 %v8844, %v8842
    %v8872 = vpack.c.bf16 %v8848, %v8846
    %v8873 = vpack.c.bf16 %v8852, %v8850
    %v8874 = vpack.c.bf16 %v8856, %v8854
    %v8875 = vmul.bf16 %v8857, %v6812
    %v8876 = vmul.bf16 %v8858, %v6813
    %v8877 = vmul.bf16 %v8859, %v6814
    %v8878 = vmul.bf16 %v8860, %v6815
    %v8879 = vmul.bf16 %v8861, %v6816
    %v8880 = vmul.bf16 %v8862, %v6817
    %v8881 = vmul.bf16 %v8863, %v6818
    %v8882 = vmul.bf16 %v8864, %v6819
    %v8883 = vmul.bf16 %v8865, %v6820
    %v8884 = vmul.bf16 %v8866, %v6821
    %v8885 = vmul.bf16 %v8867, %v6822
    %v8886 = vmul.bf16 %v8868, %v6823
    %v8887 = vmul.bf16 %v8869, %v6824
    %v8888 = vmul.bf16 %v8870, %v6825
    %v8889 = vmul.bf16 %v8871, %v6826
    %v8890 = vmul.bf16 %v8872, %v6827
    %v8891 = vmul.bf16 %v8873, %v6828
    %v8892 = vmul.bf16 %v8874, %v6829
    %v8901 = vunpack.c.l.b16 %v8785
    %v8902 = vunpack.c.h.b16 %v8785
    %v8903 = vunpack.c.l.b16 %v8786
    %v8904 = vunpack.c.l.b16 %v8787
    %v8905 = vunpack.c.h.b16 %v8787
    %v8906 = vunpack.c.l.b16 %v8788
    %v8907 = vunpack.c.l.b16 %v8789
    %v8908 = vunpack.c.h.b16 %v8789
    %v8909 = vunpack.c.l.b16 %v8790
    %v8910 = vunpack.c.l.b16 %v8791
    %v8911 = vunpack.c.h.b16 %v8791
    %v8912 = vunpack.c.l.b16 %v8792
    %v8913 = vpack.c.b16 %v8904, %v8901
    %v8914 = vpack.c.b16 %v8905, %v8902
    %v8915 = vpack.c.b16 %v8906, %v8903
    %v8916 = vpack.c.b16 %v8910, %v8907
    %v8917 = vpack.c.b16 %v8911, %v8908
    %v8918 = vpack.c.b16 %v8912, %v8909
    %v8924 = vsel %vm6896, %v8915, 0
    %v8927 = vsel %vm6896, %v8918, 0
    %8929 = vmatprep.subr.bf16.mxu0 0
    %8930 = vmatpush1.bf16.msra.mxu0 %v8875
    %8931 = vmatprep.subr.bf16.mxu0 0
    %8932 = vmatpush1.bf16.msra.mxu0 %v8876
    %8933 = vmatprep.subr.bf16.mxu0 0
    %8934 = vmatpush1.bf16.msra.mxu0 %v8877
    %8935 = vmatprep.subr.bf16.mxu0 0
    %8936 = vmatpush1.bf16.msra.mxu0 %v8878
    %8937 = vmatprep.subr.bf16.mxu0 0
    %8938 = vmatpush1.bf16.msra.mxu0 %v8879
    %8939 = vmatprep.subr.bf16.mxu0 0
    %8940 = vmatpush1.bf16.msra.mxu0 %v8880
    %8941 = vmatprep.subr.bf16.mxu0 0
    %8942 = vmatpush1.bf16.msra.mxu0 %v8881
    %8943 = vmatprep.subr.bf16.mxu0 0
    %8944 = vmatpush1.bf16.msra.mxu0 %v8882
    %8945 = vmatprep.subr.bf16.mxu0 0
    %8946 = vmatpush1.bf16.msra.mxu0 %v8883
    %8947 = vmatprep.subr.bf16.mxu0 0
    %8948 = vmatpush1.bf16.msra.mxu0 %v8884
    %8949 = vmatprep.subr.bf16.mxu0 0
    %8950 = vmatpush1.bf16.msra.mxu0 %v8885
    %8951 = vmatprep.subr.bf16.mxu0 0
    %8952 = vmatpush1.bf16.msra.mxu0 %v8886
    %8953 = vmatprep.subr.bf16.mxu0 0
    %8954 = vmatpush1.bf16.msra.mxu0 %v8887
    %8955 = vmatprep.subr.bf16.mxu0 0
    %8956 = vmatpush1.bf16.msra.mxu0 %v8888
    %8957 = vmatprep.subr.bf16.mxu0 0
    %8958 = vmatpush1.bf16.msra.mxu0 %v8889
    %8959 = vmatprep.subr.bf16.mxu0 0
    %8960 = vmatpush1.bf16.msra.mxu0 %v8890
    %8961 = vmatprep.mubr.bf16.mxu0 %v8914
    %8962 = vmatmul.mubr.bf16.gmra.mrb[0].mxu0 %v8913
    %v8963 = vpop.f32.mrb[0].mxu0
    %v8964 = vadd.f32 0.0, %v8963
    %v8965 = vpop.f32.mrb[0].mxu0
    %v8966 = vpop.f32.mrb[0].mxu0
    %v8967 = vadd.f32 0.0, %v8966
    %v8968 = vpop.f32.mrb[0].mxu0
    %8969 = vmatprep.mubr.bf16.mxu0 %v8917
    %8970 = vmatmul.mubr.bf16.gmra.mrb[0].mxu0 %v8916
    %v8971 = vpop.f32.mrb[0].mxu0
    %v8972 = vadd.f32 0.0, %v8971
    %v8973 = vpop.f32.mrb[0].mxu0
    %v8974 = vpop.f32.mrb[0].mxu0
    %v8975 = vadd.f32 0.0, %v8974
    %v8976 = vpop.f32.mrb[0].mxu0
    %8977 = vdwg.mxu0
    %8978 = vmatprep.subr.bf16.mxu0 0
    %8979 = vmatpush1.bf16.msra.mxu0 %v8891
    %8980 = vmatprep.subr.bf16.mxu0 0
    %8981 = vmatpush1.bf16.msra.mxu0 %v8892
    %8982 = vmatprep.subr.bf16.mxu0 0
    %8983 = vmatpush1.bf16.msra.mxu0 0
    %8984 = vmatprep.subr.bf16.mxu0 0
    %8985 = vmatpush1.bf16.msra.mxu0 0
    %8986 = vmatprep.subr.bf16.mxu0 0
    %8987 = vmatpush1.bf16.msra.mxu0 0
    %8988 = vmatprep.subr.bf16.mxu0 0
    %8989 = vmatpush1.bf16.msra.mxu0 0
    %8990 = vmatprep.subr.bf16.mxu0 0
    %8991 = vmatpush1.bf16.msra.mxu0 0
    %8992 = vmatprep.subr.bf16.mxu0 0
    %8993 = vmatpush1.bf16.msra.mxu0 0
    %8994 = vmatprep.subr.bf16.mxu0 0
    %8995 = vmatpush1.bf16.msra.mxu0 0
    %8996 = vmatprep.subr.bf16.mxu0 0
    %8997 = vmatpush1.bf16.msra.mxu0 0
    %8998 = vmatprep.subr.bf16.mxu0 0
    %8999 = vmatpush1.bf16.msra.mxu0 0
    %9000 = vmatprep.subr.bf16.mxu0 0
    %9001 = vmatpush1.bf16.msra.mxu0 0
    %9002 = vmatprep.subr.bf16.mxu0 0
    %9003 = vmatpush1.bf16.msra.mxu0 0
    %9004 = vmatprep.subr.bf16.mxu0 0
    %9005 = vmatpush1.bf16.msra.mxu0 0
    %9006 = vmatprep.subr.bf16.mxu0 0
    %9007 = vmatpush1.bf16.msra.mxu0 0
    %9008 = vmatprep.subr.bf16.mxu0 0
    %9009 = vmatpush1.bf16.msra.mxu0 0
    %9010 = vmatprep.mubr.bf16.mxu0 0
    %9011 = vmatmul.mubr.bf16.gmra.mrb[0].mxu0 %v8924
    %v9012 = vpop.f32.mrb[0].mxu0
    %v9013 = vadd.f32 %v8964, %v9012
    %v9014 = vpop.f32.mrb[0].mxu0
    %v9015 = vpop.f32.mrb[0].mxu0
    %v9016 = vadd.f32 %v8967, %v9015
    %v9017 = vpop.f32.mrb[0].mxu0
    %9018 = vmatprep.mubr.bf16.mxu0 0
    %9019 = vmatmul.mubr.bf16.gmra.mrb[0].mxu0 %v8927
    %v9020 = vpop.f32.mrb[0].mxu0
    %v9021 = vadd.f32 %v8972, %v9020
    %v9022 = vpop.f32.mrb[0].mxu0
    %v9023 = vpop.f32.mrb[0].mxu0
    %v9024 = vadd.f32 %v8975, %v9023
    %v9025 = vpop.f32.mrb[0].mxu0
    %9026 = vdwg.mxu0
    %9027 = vadd.xlane.f32.xlu0 %v9013
    %v9028 = vpop.xlane.xlu0 %9027
    %9029 = vadd.xlane.f32.xlu0 %v9016
    %v9030 = vpop.xlane.xlu0 %9029
    %9031 = vadd.xlane.f32.xlu0 %v9021
    %v9032 = vpop.xlane.xlu0 %9031
    %9033 = vadd.xlane.f32.xlu0 %v9024
    %v9034 = vpop.xlane.xlu0 %9033
    %v9035 = vmul.f32 %v9028, %v990
    %v9036 = vmul.f32 %v9030, %v990
    %v9037 = vmul.f32 %v9032, %v990
    %v9038 = vmul.f32 %v9034, %v990
    %v9039 = vsub.f32 %v9013, %v9035
    %v9040 = vsub.f32 %v9016, %v9036
    %v9041 = vsub.f32 %v9021, %v9037
    %v9042 = vsub.f32 %v9024, %v9038
    %v9043 = vmul.f32 %v9039, %v9039
    %v9044 = vmul.f32 %v9040, %v9040
    %v9045 = vmul.f32 %v9041, %v9041
    %v9046 = vmul.f32 %v9042, %v9042
    %9047 = vadd.xlane.f32.xlu0 %v9043
    %v9048 = vpop.xlane.xlu0 %9047
    %9049 = vadd.xlane.f32.xlu0 %v9044
    %v9050 = vpop.xlane.xlu0 %9049
    %9051 = vadd.xlane.f32.xlu0 %v9045
    %v9052 = vpop.xlane.xlu0 %9051
    %9053 = vadd.xlane.f32.xlu0 %v9046
    %v9054 = vpop.xlane.xlu0 %9053
    %v9055 = vmul.f32 %v9048, %v990
    %v9056 = vmul.f32 %v9050, %v990
    %v9057 = vmul.f32 %v9052, %v990
    %v9058 = vmul.f32 %v9054, %v990
    %v9059 = vadd.f32 %v9055, 1e-05
    %v9060 = vadd.f32 %v9056, 1e-05
    %v9061 = vadd.f32 %v9057, 1e-05
    %v9062 = vadd.f32 %v9058, 1e-05
    %v9063 = vrsqrt.pop %v9059
    %v9064 = vrsqrt.pop %v9060
    %v9065 = vrsqrt.pop %v9061
    %v9066 = vrsqrt.pop %v9062
    %v9067 = vmul.f32 %v210, %v9063
    %v9068 = vmul.f32 %v211, %v9064
    %v9069 = vmul.f32 %v212, %v9065
    %v9070 = vmul.f32 %v213, %v9066
    %9072 = vset.pattern.permute.xlu0 6
    %9073 = vperm.xlu0 %9072, %v9067
    %v9074 = vpop.permute.xlu0 %9073
    %9077 = vset.pattern.permute.xlu0 6
    %9078 = vperm.xlu0 %9077, %v9068
    %v9079 = vpop.permute.xlu0 %9078
    %9082 = vset.pattern.permute.xlu0 6
    %9083 = vperm.xlu0 %9082, %v9069
    %v9084 = vpop.permute.xlu0 %9083
    %9087 = vset.pattern.permute.xlu0 6
    %9088 = vperm.xlu0 %9087, %v9070
    %v9089 = vpop.permute.xlu0 %9088
    %v9091 = vmul.f32 %v9039, %v9074
    %v9092 = vmul.f32 %v9040, %v9079
    %v9093 = vmul.f32 %v9041, %v9084
    %v9094 = vmul.f32 %v9042, %v9089
    %9095 = vset.pattern.permute.xlu0 6
    %9096 = vperm.xlu0 %9095, %v214
    %v9097 = vpop.permute.xlu0 %9096
    %9099 = vset.pattern.permute.xlu0 6
    %9100 = vperm.xlu0 %9099, %v215
    %v9101 = vpop.permute.xlu0 %9100
    %9103 = vset.pattern.permute.xlu0 6
    %9104 = vperm.xlu0 %9103, %v216
    %v9105 = vpop.permute.xlu0 %9104
    %9107 = vset.pattern.permute.xlu0 6
    %9108 = vperm.xlu0 %9107, %v217
    %v9109 = vpop.permute.xlu0 %9108
    %v9111 = vadd.f32 %v9091, %v9097
    %v9112 = vadd.f32 %v9092, %v9101
    %v9113 = vadd.f32 %v9093, %v9105
    %v9114 = vadd.f32 %v9094, %v9109
    %v9115 = vmax.f32 %v9111, 0.0
    %v9116 = vmax.f32 %v9112, 0.0
    %v9117 = vmax.f32 %v9113, 0.0
    %v9118 = vmax.f32 %v9114, 0.0
    %s9119 = scalar_lea.vmem %s8, 336
    %v9120 = vld [vmem:[%s9119] sm:$0xff]
    %v9121 = vld [vmem:[%s9119 + $0x8] sm:$0xf]
    %v9122 = vld [vmem:[%s9119 + $0xc] sm:$0xff]
    %v9123 = vld [vmem:[%s9119 + $0x14] sm:$0xf]
    %v9124 = vld [vmem:[%s9119 + $0x18] sm:$0xff]
    %v9125 = vld [vmem:[%s9119 + $0x20] sm:$0xf]
    %v9126 = vld [vmem:[%s9119 + $0x24] sm:$0xff]
    %v9127 = vld [vmem:[%s9119 + $0x2c] sm:$0xf]
    %9128 = vrot.lane.b32.xlu0 %v9115, 9
    %v9129 = vpop.permute.xlu0 %9128
    %9130 = vrot.lane.b32.xlu0 %v9116, 9
    %v9131 = vpop.permute.xlu0 %9130
    %9132 = vrot.lane.b32.xlu0 %v9117, 9
    %v9133 = vpop.permute.xlu0 %9132
    %9134 = vrot.lane.b32.xlu0 %v9118, 9
    %v9135 = vpop.permute.xlu0 %9134
    %9136 = vrot.lane.b32.xlu0 %v9115, 8
    %v9137 = vpop.permute.xlu0 %9136
    %9138 = vrot.lane.b32.xlu0 %v9116, 8
    %v9139 = vpop.permute.xlu0 %9138
    %9140 = vrot.lane.b32.xlu0 %v9117, 8
    %v9141 = vpop.permute.xlu0 %9140
    %9142 = vrot.lane.b32.xlu0 %v9118, 8
    %v9143 = vpop.permute.xlu0 %9142
    %9144 = vrot.lane.b32.xlu0 %v9115, 7
    %v9145 = vpop.permute.xlu0 %9144
    %9146 = vrot.lane.b32.xlu0 %v9116, 7
    %v9147 = vpop.permute.xlu0 %9146
    %9148 = vrot.lane.b32.xlu0 %v9117, 7
    %v9149 = vpop.permute.xlu0 %9148
    %9150 = vrot.lane.b32.xlu0 %v9118, 7
    %v9151 = vpop.permute.xlu0 %9150
    %9152 = vrot.lane.b32.xlu0 %v9115, 1
    %v9153 = vpop.permute.xlu0 %9152
    %9154 = vrot.lane.b32.xlu0 %v9116, 1
    %v9155 = vpop.permute.xlu0 %9154
    %9156 = vrot.lane.b32.xlu0 %v9117, 1
    %v9157 = vpop.permute.xlu0 %9156
    %9158 = vrot.lane.b32.xlu0 %v9118, 1
    %v9159 = vpop.permute.xlu0 %9158
    %9160 = vrot.lane.b32.xlu0 %v9115, 127
    %v9161 = vpop.permute.xlu0 %9160
    %9162 = vrot.lane.b32.xlu0 %v9116, 127
    %v9163 = vpop.permute.xlu0 %9162
    %9164 = vrot.lane.b32.xlu0 %v9117, 127
    %v9165 = vpop.permute.xlu0 %9164
    %9166 = vrot.lane.b32.xlu0 %v9118, 127
    %v9167 = vpop.permute.xlu0 %9166
    %9168 = vrot.lane.b32.xlu0 %v9115, 121
    %v9169 = vpop.permute.xlu0 %9168
    %9170 = vrot.lane.b32.xlu0 %v9116, 121
    %v9171 = vpop.permute.xlu0 %9170
    %9172 = vrot.lane.b32.xlu0 %v9117, 121
    %v9173 = vpop.permute.xlu0 %9172
    %9174 = vrot.lane.b32.xlu0 %v9118, 121
    %v9175 = vpop.permute.xlu0 %9174
    %9176 = vrot.lane.b32.xlu0 %v9115, 120
    %v9177 = vpop.permute.xlu0 %9176
    %9178 = vrot.lane.b32.xlu0 %v9116, 120
    %v9179 = vpop.permute.xlu0 %9178
    %9180 = vrot.lane.b32.xlu0 %v9117, 120
    %v9181 = vpop.permute.xlu0 %9180
    %9182 = vrot.lane.b32.xlu0 %v9118, 120
    %v9183 = vpop.permute.xlu0 %9182
    %9184 = vrot.lane.b32.xlu0 %v9115, 119
    %v9185 = vpop.permute.xlu0 %9184
    %9186 = vrot.lane.b32.xlu0 %v9116, 119
    %v9187 = vpop.permute.xlu0 %9186
    %9188 = vrot.lane.b32.xlu0 %v9117, 119
    %v9189 = vpop.permute.xlu0 %9188
    %9190 = vrot.lane.b32.xlu0 %v9118, 119
    %v9191 = vpop.permute.xlu0 %9190
    %v9192 = vpack.c.bf16 %v9131, %v9129
    %v9193 = vpack.c.bf16 %v9135, %v9133
    %v9194 = vpack.c.bf16 %v9139, %v9137
    %v9195 = vpack.c.bf16 %v9143, %v9141
    %v9196 = vpack.c.bf16 %v9147, %v9145
    %v9197 = vpack.c.bf16 %v9151, %v9149
    %v9198 = vpack.c.bf16 %v9155, %v9153
    %v9199 = vpack.c.bf16 %v9159, %v9157
    %v9200 = vpack.c.bf16 %v9116, %v9115
    %v9201 = vpack.c.bf16 %v9118, %v9117
    %v9202 = vpack.c.bf16 %v9163, %v9161
    %v9203 = vpack.c.bf16 %v9167, %v9165
    %v9204 = vpack.c.bf16 %v9171, %v9169
    %v9205 = vpack.c.bf16 %v9175, %v9173
    %v9206 = vpack.c.bf16 %v9179, %v9177
    %v9207 = vpack.c.bf16 %v9183, %v9181
    %v9208 = vpack.c.bf16 %v9187, %v9185
    %v9209 = vpack.c.bf16 %v9191, %v9189
    %v9210 = vmul.bf16 %v9192, %v6812
    %v9211 = vmul.bf16 %v9193, %v6813
    %v9212 = vmul.bf16 %v9194, %v6814
    %v9213 = vmul.bf16 %v9195, %v6815
    %v9214 = vmul.bf16 %v9196, %v6816
    %v9215 = vmul.bf16 %v9197, %v6817
    %v9216 = vmul.bf16 %v9198, %v6818
    %v9217 = vmul.bf16 %v9199, %v6819
    %v9218 = vmul.bf16 %v9200, %v6820
    %v9219 = vmul.bf16 %v9201, %v6821
    %v9220 = vmul.bf16 %v9202, %v6822
    %v9221 = vmul.bf16 %v9203, %v6823
    %v9222 = vmul.bf16 %v9204, %v6824
    %v9223 = vmul.bf16 %v9205, %v6825
    %v9224 = vmul.bf16 %v9206, %v6826
    %v9225 = vmul.bf16 %v9207, %v6827
    %v9226 = vmul.bf16 %v9208, %v6828
    %v9227 = vmul.bf16 %v9209, %v6829
    %v9236 = vunpack.c.l.b16 %v9120
    %v9237 = vunpack.c.h.b16 %v9120
    %v9238 = vunpack.c.l.b16 %v9121
    %v9239 = vunpack.c.l.b16 %v9122
    %v9240 = vunpack.c.h.b16 %v9122
    %v9241 = vunpack.c.l.b16 %v9123
    %v9242 = vunpack.c.l.b16 %v9124
    %v9243 = vunpack.c.h.b16 %v9124
    %v9244 = vunpack.c.l.b16 %v9125
    %v9245 = vunpack.c.l.b16 %v9126
    %v9246 = vunpack.c.h.b16 %v9126
    %v9247 = vunpack.c.l.b16 %v9127
    %v9248 = vpack.c.b16 %v9239, %v9236
    %v9249 = vpack.c.b16 %v9240, %v9237
    %v9250 = vpack.c.b16 %v9241, %v9238
    %v9251 = vpack.c.b16 %v9245, %v9242
    %v9252 = vpack.c.b16 %v9246, %v9243
    %v9253 = vpack.c.b16 %v9247, %v9244
    %v9259 = vsel %vm6896, %v9250, 0
    %v9262 = vsel %vm6896, %v9253, 0
    %9264 = vmatprep.subr.bf16.mxu0 0
    %9265 = vmatpush1.bf16.msra.mxu0 %v9210
    %9266 = vmatprep.subr.bf16.mxu0 0
    %9267 = vmatpush1.bf16.msra.mxu0 %v9211
    %9268 = vmatprep.subr.bf16.mxu0 0
    %9269 = vmatpush1.bf16.msra.mxu0 %v9212
    %9270 = vmatprep.subr.bf16.mxu0 0
    %9271 = vmatpush1.bf16.msra.mxu0 %v9213
    %9272 = vmatprep.subr.bf16.mxu0 0
    %9273 = vmatpush1.bf16.msra.mxu0 %v9214
    %9274 = vmatprep.subr.bf16.mxu0 0
    %9275 = vmatpush1.bf16.msra.mxu0 %v9215
    %9276 = vmatprep.subr.bf16.mxu0 0
    %9277 = vmatpush1.bf16.msra.mxu0 %v9216
    %9278 = vmatprep.subr.bf16.mxu0 0
    %9279 = vmatpush1.bf16.msra.mxu0 %v9217
    %9280 = vmatprep.subr.bf16.mxu0 0
    %9281 = vmatpush1.bf16.msra.mxu0 %v9218
    %9282 = vmatprep.subr.bf16.mxu0 0
    %9283 = vmatpush1.bf16.msra.mxu0 %v9219
    %9284 = vmatprep.subr.bf16.mxu0 0
    %9285 = vmatpush1.bf16.msra.mxu0 %v9220
    %9286 = vmatprep.subr.bf16.mxu0 0
    %9287 = vmatpush1.bf16.msra.mxu0 %v9221
    %9288 = vmatprep.subr.bf16.mxu0 0
    %9289 = vmatpush1.bf16.msra.mxu0 %v9222
    %9290 = vmatprep.subr.bf16.mxu0 0
    %9291 = vmatpush1.bf16.msra.mxu0 %v9223
    %9292 = vmatprep.subr.bf16.mxu0 0
    %9293 = vmatpush1.bf16.msra.mxu0 %v9224
    %9294 = vmatprep.subr.bf16.mxu0 0
    %9295 = vmatpush1.bf16.msra.mxu0 %v9225
    %9296 = vmatprep.mubr.bf16.mxu0 %v9249
    %9297 = vmatmul.mubr.bf16.gmra.mrb[0].mxu0 %v9248
    %v9298 = vpop.f32.mrb[0].mxu0
    %v9299 = vadd.f32 0.0, %v9298
    %v9300 = vpop.f32.mrb[0].mxu0
    %v9301 = vpop.f32.mrb[0].mxu0
    %v9302 = vadd.f32 0.0, %v9301
    %v9303 = vpop.f32.mrb[0].mxu0
    %9304 = vmatprep.mubr.bf16.mxu0 %v9252
    %9305 = vmatmul.mubr.bf16.gmra.mrb[0].mxu0 %v9251
    %v9306 = vpop.f32.mrb[0].mxu0
    %v9307 = vadd.f32 0.0, %v9306
    %v9308 = vpop.f32.mrb[0].mxu0
    %v9309 = vpop.f32.mrb[0].mxu0
    %v9310 = vadd.f32 0.0, %v9309
    %v9311 = vpop.f32.mrb[0].mxu0
    %9312 = vdwg.mxu0
    %9313 = vmatprep.subr.bf16.mxu0 0
    %9314 = vmatpush1.bf16.msra.mxu0 %v9226
    %9315 = vmatprep.subr.bf16.mxu0 0
    %9316 = vmatpush1.bf16.msra.mxu0 %v9227
    %9317 = vmatprep.subr.bf16.mxu0 0
    %9318 = vmatpush1.bf16.msra.mxu0 0
    %9319 = vmatprep.subr.bf16.mxu0 0
    %9320 = vmatpush1.bf16.msra.mxu0 0
    %9321 = vmatprep.subr.bf16.mxu0 0
    %9322 = vmatpush1.bf16.msra.mxu0 0
    %9323 = vmatprep.subr.bf16.mxu0 0
    %9324 = vmatpush1.bf16.msra.mxu0 0
    %9325 = vmatprep.subr.bf16.mxu0 0
    %9326 = vmatpush1.bf16.msra.mxu0 0
    %9327 = vmatprep.subr.bf16.mxu0 0
    %9328 = vmatpush1.bf16.msra.mxu0 0
    %9329 = vmatprep.subr.bf16.mxu0 0
    %9330 = vmatpush1.bf16.msra.mxu0 0
    %9331 = vmatprep.subr.bf16.mxu0 0
    %9332 = vmatpush1.bf16.msra.mxu0 0
    %9333 = vmatprep.subr.bf16.mxu0 0
    %9334 = vmatpush1.bf16.msra.mxu0 0
    %9335 = vmatprep.subr.bf16.mxu0 0
    %9336 = vmatpush1.bf16.msra.mxu0 0
    %9337 = vmatprep.subr.bf16.mxu0 0
    %9338 = vmatpush1.bf16.msra.mxu0 0
    %9339 = vmatprep.subr.bf16.mxu0 0
    %9340 = vmatpush1.bf16.msra.mxu0 0
    %9341 = vmatprep.subr.bf16.mxu0 0
    %9342 = vmatpush1.bf16.msra.mxu0 0
    %9343 = vmatprep.subr.bf16.mxu0 0
    %9344 = vmatpush1.bf16.msra.mxu0 0
    %9345 = vmatprep.mubr.bf16.mxu0 0
    %9346 = vmatmul.mubr.bf16.gmra.mrb[0].mxu0 %v9259
    %v9347 = vpop.f32.mrb[0].mxu0
    %v9348 = vadd.f32 %v9299, %v9347
    %v9349 = vpop.f32.mrb[0].mxu0
    %v9350 = vpop.f32.mrb[0].mxu0
    %v9351 = vadd.f32 %v9302, %v9350
    %v9352 = vpop.f32.mrb[0].mxu0
    %9353 = vmatprep.mubr.bf16.mxu0 0
    %9354 = vmatmul.mubr.bf16.gmra.mrb[0].mxu0 %v9262
    %v9355 = vpop.f32.mrb[0].mxu0
    %v9356 = vadd.f32 %v9307, %v9355
    %v9357 = vpop.f32.mrb[0].mxu0
    %v9358 = vpop.f32.mrb[0].mxu0
    %v9359 = vadd.f32 %v9310, %v9358
    %v9360 = vpop.f32.mrb[0].mxu0
    %9361 = vdwg.mxu0
    %9362 = vadd.xlane.f32.xlu0 %v9348
    %v9363 = vpop.xlane.xlu0 %9362
    %9364 = vadd.xlane.f32.xlu0 %v9351
    %v9365 = vpop.xlane.xlu0 %9364
    %9366 = vadd.xlane.f32.xlu0 %v9356
    %v9367 = vpop.xlane.xlu0 %9366
    %9368 = vadd.xlane.f32.xlu0 %v9359
    %v9369 = vpop.xlane.xlu0 %9368
    %v9370 = vmul.f32 %v9363, %v990
    %v9371 = vmul.f32 %v9365, %v990
    %v9372 = vmul.f32 %v9367, %v990
    %v9373 = vmul.f32 %v9369, %v990
    %v9374 = vsub.f32 %v9348, %v9370
    %v9375 = vsub.f32 %v9351, %v9371
    %v9376 = vsub.f32 %v9356, %v9372
    %v9377 = vsub.f32 %v9359, %v9373
    %v9378 = vmul.f32 %v9374, %v9374
    %v9379 = vmul.f32 %v9375, %v9375
    %v9380 = vmul.f32 %v9376, %v9376
    %v9381 = vmul.f32 %v9377, %v9377
    %9382 = vadd.xlane.f32.xlu0 %v9378
    %v9383 = vpop.xlane.xlu0 %9382
    %9384 = vadd.xlane.f32.xlu0 %v9379
    %v9385 = vpop.xlane.xlu0 %9384
    %9386 = vadd.xlane.f32.xlu0 %v9380
    %v9387 = vpop.xlane.xlu0 %9386
    %9388 = vadd.xlane.f32.xlu0 %v9381
    %v9389 = vpop.xlane.xlu0 %9388
    %v9390 = vmul.f32 %v9383, %v990
    %v9391 = vmul.f32 %v9385, %v990
    %v9392 = vmul.f32 %v9387, %v990
    %v9393 = vmul.f32 %v9389, %v990
    %v9394 = vadd.f32 %v9390, 1e-05
    %v9395 = vadd.f32 %v9391, 1e-05
    %v9396 = vadd.f32 %v9392, 1e-05
    %v9397 = vadd.f32 %v9393, 1e-05
    %v9398 = vrsqrt.pop %v9394
    %v9399 = vrsqrt.pop %v9395
    %v9400 = vrsqrt.pop %v9396
    %v9401 = vrsqrt.pop %v9397
    %v9402 = vmul.f32 %v210, %v9398
    %v9403 = vmul.f32 %v211, %v9399
    %v9404 = vmul.f32 %v212, %v9400
    %v9405 = vmul.f32 %v213, %v9401
    %9407 = vset.pattern.permute.xlu0 7
    %9408 = vperm.xlu0 %9407, %v9402
    %v9409 = vpop.permute.xlu0 %9408
    %9412 = vset.pattern.permute.xlu0 7
    %9413 = vperm.xlu0 %9412, %v9403
    %v9414 = vpop.permute.xlu0 %9413
    %9417 = vset.pattern.permute.xlu0 7
    %9418 = vperm.xlu0 %9417, %v9404
    %v9419 = vpop.permute.xlu0 %9418
    %9422 = vset.pattern.permute.xlu0 7
    %9423 = vperm.xlu0 %9422, %v9405
    %v9424 = vpop.permute.xlu0 %9423
    %v9426 = vmul.f32 %v9374, %v9409
    %v9427 = vmul.f32 %v9375, %v9414
    %v9428 = vmul.f32 %v9376, %v9419
    %v9429 = vmul.f32 %v9377, %v9424
    %9430 = vset.pattern.permute.xlu0 7
    %9431 = vperm.xlu0 %9430, %v214
    %v9432 = vpop.permute.xlu0 %9431
    %9434 = vset.pattern.permute.xlu0 7
    %9435 = vperm.xlu0 %9434, %v215
    %v9436 = vpop.permute.xlu0 %9435
    %9438 = vset.pattern.permute.xlu0 7
    %9439 = vperm.xlu0 %9438, %v216
    %v9440 = vpop.permute.xlu0 %9439
    %9442 = vset.pattern.permute.xlu0 7
    %9443 = vperm.xlu0 %9442, %v217
    %v9444 = vpop.permute.xlu0 %9443
    %v9446 = vadd.f32 %v9426, %v9432
    %v9447 = vadd.f32 %v9427, %v9436
    %v9448 = vadd.f32 %v9428, %v9440
    %v9449 = vadd.f32 %v9429, %v9444
    %v9450 = vadd.f32 %v9446, %v8780
    %v9451 = vadd.f32 %v9447, %v8781
    %v9452 = vadd.f32 %v9448, %v8782
    %v9453 = vadd.f32 %v9449, %v8783
    %v9454 = vmax.f32 %v9450, 0.0
    %v9455 = vmax.f32 %v9451, 0.0
    %v9456 = vmax.f32 %v9452, 0.0
    %v9457 = vmax.f32 %v9453, 0.0
    %v9458 = vld [vmem:[%s11] sm:$0xf]
    %v9459 = vpack.c.bf16 %v9455, %v9454
    %v9460 = vpack.c.bf16 %v9457, %v9456
    %v9461 = vld [vmem:[%s12] sm:$0xff]
    %9463 = vset.pattern.permute.xlu0 0
    %9464 = vperm.xlu0 %9463, %v9461
    %v9465 = vpop.permute.xlu0 %9464
    %v9468 = vsel %vm6896, %v9458, 0
    %9470 = vmatprep.subr.bf16.mxu0 0
    %9471 = vmatpush1.bf16.msra.mxu0 %v9459
    %9472 = vmatprep.subr.bf16.mxu0 0
    %9473 = vmatpush1.bf16.msra.mxu0 %v9460
    %9474 = vmatprep.subr.bf16.mxu0 0
    %9475 = vmatpush1.bf16.msra.mxu0 0
    %9476 = vmatprep.subr.bf16.mxu0 0
    %9477 = vmatpush1.bf16.msra.mxu0 0
    %9478 = vmatprep.subr.bf16.mxu0 0
    %9479 = vmatpush1.bf16.msra.mxu0 0
    %9480 = vmatprep.subr.bf16.mxu0 0
    %9481 = vmatpush1.bf16.msra.mxu0 0
    %9482 = vmatprep.subr.bf16.mxu0 0
    %9483 = vmatpush1.bf16.msra.mxu0 0
    %9484 = vmatprep.subr.bf16.mxu0 0
    %9485 = vmatpush1.bf16.msra.mxu0 0
    %9486 = vmatprep.subr.bf16.mxu0 0
    %9487 = vmatpush1.bf16.msra.mxu0 0
    %9488 = vmatprep.subr.bf16.mxu0 0
    %9489 = vmatpush1.bf16.msra.mxu0 0
    %9490 = vmatprep.subr.bf16.mxu0 0
    %9491 = vmatpush1.bf16.msra.mxu0 0
    %9492 = vmatprep.subr.bf16.mxu0 0
    %9493 = vmatpush1.bf16.msra.mxu0 0
    %9494 = vmatprep.subr.bf16.mxu0 0
    %9495 = vmatpush1.bf16.msra.mxu0 0
    %9496 = vmatprep.subr.bf16.mxu0 0
    %9497 = vmatpush1.bf16.msra.mxu0 0
    %9498 = vmatprep.subr.bf16.mxu0 0
    %9499 = vmatpush1.bf16.msra.mxu0 0
    %9500 = vmatprep.subr.bf16.mxu0 0
    %9501 = vmatpush1.bf16.msra.mxu0 0
    %9502 = vmatprep.mubr.bf16.mxu0 0
    %9503 = vmatmul.mubr.bf16.gmra.mrb[0].mxu0 %v9468
    %v9504 = vpop.f32.mrb[0].mxu0
    %v9505 = vadd.f32 %v9465, %v9504
    %v9506 = vpop.f32.mrb[0].mxu0
    %v9507 = vpop.f32.mrb[0].mxu0
    %v9508 = vpop.f32.mrb[0].mxu0
    %9509 = vdwg.mxu0
    %9510 = vst [vmem:[%s13] sm:$0xff] %v9505
    // Predicated region
    $region66: #{hrnet_forward.1} parent=1 // pred_check
      _
    $region67: #{hrnet_forward.1} parent=1 // pred_check_branch
      %9512 = sbr.rel (0) target = $region69
    $region68: #{hrnet_forward.1} parent=1 // pred_region
      _
    $region69: #{hrnet_forward.1} parent=1 // pred_fallthru
      _
    // Predicated region
    $region70: #{hrnet_forward.1} parent=1 // pred_check
      _
    $region71: #{hrnet_forward.1} parent=1 // pred_check_branch
      %9514 = sbr.rel (0) target = $region73
    $region72: #{hrnet_forward.1} parent=1 // pred_region
      _
    $region73: #{hrnet_forward.1} parent=1 // pred_fallthru
      _
    %9515 = vsyncpa [#allocation3], 1
    %9516 = vsyncpa [#allocation5], 1

</llo_original>
